<compile_context>
chip_gen: v7x
topology: tpu7x:2x2x1
jax: 0.10.0
libtpu: 0.0.40
codegen_flags: <defaults>
</compile_context>

<pallas_src>
import math
import functools

import jax
import jax.numpy as jnp
from jax.experimental import pallas as pl
from jax.experimental.pallas import tpu as pltpu


_PARAM_NAMES = ("g1", "b1", "wqkv", "wproj", "bproj", "g2", "b2", "w1", "bb1", "w2", "bb2")
_NUM_BLOCK_PARAMS = len(_PARAM_NAMES)   # 11


# ----------------------------------------------------------------------------------
# math helpers (run inside the kernel)
# ----------------------------------------------------------------------------------
def _erf(x):
    # Abramowitz & Stegun 7.1.26, |abs err| < 1.5e-7 (float32-exact), so the GELU below
    # matches torch.nn.GELU() (exact erf formulation).  ~12 VALU ops on <=2 vregs here,
    # negligible after fusion.
    a1, a2, a3, a4, a5 = 0.254829592, -0.284496736, 1.421413741, -1.453152027, 1.061405429
    p = 0.3275911
    s = jnp.where(x >= 0.0, 1.0, -1.0)
    ax = jnp.abs(x)
    t = 1.0 / (1.0 + p * ax)
    poly = ((((a5 * t + a4) * t + a3) * t + a2) * t + a1) * t
    return s * (1.0 - poly * jnp.exp(-ax * ax))


def _gelu_exact(x):
    return 0.5 * x * (1.0 + _erf(x * (1.0 / math.sqrt(2.0))))


def _layernorm(x, g, b):
    mu = jnp.mean(x, axis=-1, keepdims=True)
    var = jnp.mean((x - mu) ** 2, axis=-1, keepdims=True)
    return (x - mu) * jax.lax.rsqrt(var + 1e-5) * g + b


def _attention(h, wqkv, wproj, bproj, num_heads):
    """Multi-head self-attention on a single (N, C) tile, batched over heads.

    Head separation uses a 0/1 channel mask: scores_h = (q * mask_h) @ k^T and the
    concatenated output = sum_h mask_h * (p_h @ v).  This removes the per-head loop,
    the concatenate and every lane-relayout, at the cost of a few extra masked flops
    that are free at these sizes.
    """
    N, C = h.shape
    dh = C // num_heads
    scale = 1.0 / math.sqrt(dh)

    qkv = jnp.dot(h, wqkv, preferred_element_type=jnp.float32)           # (N, 3C)
    q = qkv[:, 0 * C:1 * C]
    k = qkv[:, 1 * C:2 * C]
    v = qkv[:, 2 * C:3 * C]

    # mask[h, c] = 1.0 iff channel c belongs to head h
    ci = jax.lax.broadcasted_iota(jnp.int32, (num_heads, C), 1)
    hi = jax.lax.broadcasted_iota(jnp.int32, (num_heads, C), 0)
    mask = ((ci >= hi * dh) & (ci < (hi + 1) * dh)).astype(jnp.float32)  # (H, C)

    qh = q[None, :, :] * mask[:, None, :]                                # (H, N, C)
    kb = jnp.broadcast_to(k[None, :, :], (num_heads, N, C))              # (H, N, C)
    vb = jnp.broadcast_to(v[None, :, :], (num_heads, N, C))              # (H, N, C)

    s = jnp.einsum("hqc,hkc->hqk", qh, kb,
                   preferred_element_type=jnp.float32) * scale           # (H, N, N)
    s = s - jnp.max(s, axis=-1, keepdims=True)
    p = jnp.exp(s)
    p = p * pl.reciprocal(jnp.sum(p, axis=-1, keepdims=True), approx=True)

    o = jnp.einsum("hqk,hkc->hqc", p, vb,
                   preferred_element_type=jnp.float32)                   # (H, N, C)
    attn = jnp.sum(o * mask[:, None, :], axis=0)                         # (N, C) = concat(heads)
    return jnp.dot(attn, wproj, preferred_element_type=jnp.float32) + bproj


def _transformer_block(x, prm, num_heads):
    g1, b1, wqkv, wproj, bproj, g2, b2, w1, bb1, w2, bb2 = prm
    h = _layernorm(x, g1, b1)
    x = x + _attention(h, wqkv, wproj, bproj, num_heads)
    h2 = _layernorm(x, g2, b2)
    m = jnp.dot(h2, w1, preferred_element_type=jnp.float32) + bb1
    m = _gelu_exact(m)
    m = jnp.dot(m, w2, preferred_element_type=jnp.float32) + bb2
    return x + m


def _upsample_add(x_small, x_big, wcat, bias):
    """ConvTranspose1d(N, N, kernel=2, stride=2) on (N, L) + residual (N, 2L).

    wcat is (2N, N): rows [0:N] = weight[:, :, 0].T, rows [N:2N] = weight[:, :, 1].T,
    so both taps come from one MXU push.  The even/odd column interleave
    y[n, 2l+k] = Y[k*N + n, l] is done with two tiny 0/1 scatter matmuls (MXU),
    so no strided writes and no host-side transposes are needed.
    """
    N, L = x_small.shape
    Y = jnp.dot(wcat, x_small, preferred_element_type=jnp.float32)       # (2N, L)
    li = jax.lax.broadcasted_iota(jnp.int32, (L, 2 * L), 0)
    ci = jax.lax.broadcasted_iota(jnp.int32, (L, 2 * L), 1)
    s0 = (ci == 2 * li).astype(jnp.float32)                              # (L, 2L)
    s1 = (ci == 2 * li + 1).astype(jnp.float32)
    out = (jnp.dot(Y[:N, :], s0, preferred_element_type=jnp.float32)
           + jnp.dot(Y[N:, :], s1, preferred_element_type=jnp.float32)
           + bias + x_big)
    return out                                                           # (N, 2L)


# ----------------------------------------------------------------------------------
# fused MultiScaleBlock kernel: one grid step per batch element
# ----------------------------------------------------------------------------------
def _fused_kernel(*refs, num_heads):
    # refs layout: x0, x1, x2 | 3 x 11 block params | up_s_wcat, up_s_bias,
    #              up_m_wcat, up_m_bias | o0, o1, o2
    x_refs = refs[0:3]
    blk = [refs[3 + i * _NUM_BLOCK_PARAMS: 3 + (i + 1) * _NUM_BLOCK_PARAMS] for i in range(3)]
    base = 3 + 3 * _NUM_BLOCK_PARAMS
    up_s_w, up_s_b, up_m_w, up_m_b = refs[base:base + 4]
    o_refs = refs[base + 4:]

    xs = []
    for i in range(3):
        x = x_refs[i][0].astype(jnp.float32)                    # (N, Ci)
        prm = tuple(r[...].astype(jnp.float32) for r in blk[i])
        xs.append(_transformer_block(x, prm, num_heads))

    # cascade the upsample+residual path, all in VMEM
    xs[1] = _upsample_add(xs[2], xs[1], up_s_w[...], up_s_b[...])
    xs[0] = _upsample_add(xs[1], xs[0], up_m_w[...], up_m_b[...])

    for i in range(3):
        o_refs[i][0] = xs[i].astype(o_refs[i].dtype)


def multi_scale_block(xs, params, num_heads):
    x0, x1, x2 = xs
    B, N, _ = x0.shape

    def _full_spec_2d(arr):
        assert arr.ndim == 2
        return pl.BlockSpec(arr.shape, lambda b: (0, 0))

    def _batch_spec(arr):
        _, n, c = arr.shape
        return pl.BlockSpec((1, n, c), lambda b: (b, 0, 0))

    blk_args = []
    for i in range(3):
        p = params["blocks"][i]
        blk_args.extend(p[name] for name in _PARAM_NAMES)

    def _prep_up(w, b):
        # PyTorch ConvTranspose1d weight (in_ch, out_ch, k=2) -> merged (2N, N) taps.
        wcat = jnp.concatenate([w[:, :, 0].T, w[:, :, 1].T], axis=0)
        return wcat, b.reshape(-1, 1)

    up_s_wcat, up_s_bias = _prep_up(params["up_s_w"], params["up_s_b"])
    up_m_wcat, up_m_bias = _prep_up(params["up_m_w"], params["up_m_b"])
    up_args = [up_s_wcat, up_s_bias, up_m_wcat, up_m_bias]

    all_inputs = [x0, x1, x2] + blk_args + up_args
    in_specs = ([_batch_spec(x0), _batch_spec(x1), _batch_spec(x2)]
                + [_full_spec_2d(a) for a in blk_args + up_args])
    out_shape = tuple(jax.ShapeDtypeStruct(x.shape, x.dtype) for x in (x0, x1, x2))
    out_specs = tuple(_batch_spec(x) for x in (x0, x1, x2))

    kernel = functools.partial(_fused_kernel, num_heads=num_heads)
    outs = pl.pallas_call(
        kernel,
        out_shape=out_shape,
        grid=(B,),
        in_specs=in_specs,
        out_specs=out_specs,
        compiler_params=pltpu.CompilerParams(dimension_semantics=("parallel",)),
    )(*all_inputs)
    return list(outs)


# ----------------------------------------------------------------------------------
# parameter init + pure-JAX reference (for correctness checking)
# ----------------------------------------------------------------------------------
def init_params(key, embed_len, dims, mlp_ratio):
    N = embed_len + 1
    params = {"blocks": []}
    for i, C in enumerate(dims):
        hidden = int(C * mlp_ratio)
        ks = jax.random.split(jax.random.fold_in(key, i), 4)
        params["blocks"].append(dict(
            g1=jnp.ones((1, C), jnp.float32),
            b1=jnp.zeros((1, C), jnp.float32),
            wqkv=0.02 * jax.random.normal(ks[0], (C, 3 * C), jnp.float32),
            wproj=0.02 * jax.random.normal(ks[1], (C, C), jnp.float32),
            bproj=jnp.zeros((1, C), jnp.float32),
            g2=jnp.ones((1, C), jnp.float32),
            b2=jnp.zeros((1, C), jnp.float32),
            w1=0.02 * jax.random.normal(ks[2], (C, hidden), jnp.float32),
            bb1=jnp.zeros((1, hidden), jnp.float32),
            w2=0.02 * jax.random.normal(ks[3], (hidden, C), jnp.float32),
            bb2=jnp.zeros((1, C), jnp.float32),
        ))
    kw = jax.random.split(jax.random.fold_in(key, 100), 4)
    # PyTorch ConvTranspose1d weight shape: (in_channels, out_channels, kernel) = (N, N, 2)
    params["up_m_w"] = 0.1 * jax.random.normal(kw[0], (N, N, 2), jnp.float32)
    params["up_m_b"] = 0.1 * jax.random.normal(kw[1], (N,), jnp.float32)
    params["up_s_w"] = 0.1 * jax.random.normal(kw[2], (N, N, 2), jnp.float32)
    params["up_s_b"] = 0.1 * jax.random.normal(kw[3], (N,), jnp.float32)
    return params


def _reference_forward(xs, params, num_heads):
    """Pure-JAX (non-Pallas) reference of the same forward pass."""
    def ln(t, g, b):
        mu = t.mean(-1, keepdims=True)
        var = ((t - mu) ** 2).mean(-1, keepdims=True)
        return (t - mu) / jnp.sqrt(var + 1e-5) * g + b

    def block(x, p):
        B, N, C = x.shape
        H = num_heads
        dh = C // H
        h = ln(x, p["g1"], p["b1"])
        qkv = jnp.einsum("bnc,cd->bnd", h, p["wqkv"])
        qkv = qkv.reshape(B, N, 3, H, dh).transpose(2, 0, 3, 1, 4)       # (3, B, H, N, dh)
        q, k, v = qkv[0], qkv[1], qkv[2]
        s = jnp.einsum("bhqd,bhkd->bhqk", q, k) / math.sqrt(dh)
        a = jax.nn.softmax(s, axis=-1)
        o = jnp.einsum("bhqk,bhkd->bhqd", a, v)
        o = o.transpose(0, 2, 1, 3).reshape(B, N, C)
        x = x + jnp.einsum("bnc,cd->bnd", o, p["wproj"]) + p["bproj"]
        h2 = ln(x, p["g2"], p["b2"])
        m = jnp.einsum("bnc,ch->bnh", h2, p["w1"]) + p["bb1"]
        m = 0.5 * m * (1.0 + jax.scipy.special.erf(m / math.sqrt(2.0)))
        m = jnp.einsum("bnh,hc->bnc", m, p["w2"]) + p["bb2"]
        return x + m

    def up(x_small, x_big, w, b):
        # ConvTranspose1d(k=2, s=2): y[b, co, 2l+k] = b[co] + sum_ci x[b, ci, l] * w[ci, co, k]
        y = jnp.einsum("bil,iok->bolk", x_small, w)
        y = y.reshape(y.shape[0], y.shape[1], -1)
        return y + b[None, :, None] + x_big

    ys = [block(xs[i], params["blocks"][i]) for i in range(3)]
    ys[1] = up(ys[2], ys[1], params["up_s_w"], params["up_s_b"])
    ys[0] = up(ys[1], ys[0], params["up_m_w"], params["up_m_b"])
    return ys


# ----------------------------------------------------------------------------------
if __name__ == "__main__":
    key = jax.random.PRNGKey(0)
    B = 2
    embed_len = 7                 # -> N = 8 tokens (incl. CLS)
    dims = [32, 16, 8]            # [C, C/2, C/4]
    num_heads = 4
    mlp_ratio = 4.0
    N = embed_len + 1

    params = init_params(key, embed_len, dims, mlp_ratio)
    kx = jax.random.split(jax.random.fold_in(key, 999), 3)
    xs = [jax.random.normal(kx[i], (B, N, dims[i]), jnp.float32) for i in range(3)]

    out = multi_scale_block(xs, params, num_heads)
    out = [jax.block_until_ready(o) for o in out]

    with jax.default_matmul_precision("float32"):
        ref = _reference_forward(xs, params, num_heads)
    ref = [jax.block_until_ready(r) for r in ref]

    assert out[0].shape == (B, N, dims[0])
    assert out[1].shape == (B, N, dims[1])
    assert out[2].shape == (B, N, dims[2])
    for o, r in zip(out, ref):
        assert bool(jnp.all(jnp.isfinite(o)))
        err = float(jnp.max(jnp.abs(o - r)))
        assert err < 5e-3, f"mismatch vs reference: {err}"
    print("KERNEL_OK")
</pallas_src>

<mosaic_0001>
module attributes {stable_mosaic.version = 11 : i64} {
  func.func @_fused_kernel(%arg0: i32, %arg1: memref<1x8x32xf32, #tpu.memory_space<vmem>>, %arg2: memref<1x8x16xf32, #tpu.memory_space<vmem>>, %arg3: memref<1x8x8xf32, #tpu.memory_space<vmem>>, %arg4: memref<1x32xf32, #tpu.memory_space<vmem>>, %arg5: memref<1x32xf32, #tpu.memory_space<vmem>>, %arg6: memref<32x96xf32, #tpu.memory_space<vmem>>, %arg7: memref<32x32xf32, #tpu.memory_space<vmem>>, %arg8: memref<1x32xf32, #tpu.memory_space<vmem>>, %arg9: memref<1x32xf32, #tpu.memory_space<vmem>>, %arg10: memref<1x32xf32, #tpu.memory_space<vmem>>, %arg11: memref<32x128xf32, #tpu.memory_space<vmem>>, %arg12: memref<1x128xf32, #tpu.memory_space<vmem>>, %arg13: memref<128x32xf32, #tpu.memory_space<vmem>>, %arg14: memref<1x32xf32, #tpu.memory_space<vmem>>, %arg15: memref<1x16xf32, #tpu.memory_space<vmem>>, %arg16: memref<1x16xf32, #tpu.memory_space<vmem>>, %arg17: memref<16x48xf32, #tpu.memory_space<vmem>>, %arg18: memref<16x16xf32, #tpu.memory_space<vmem>>, %arg19: memref<1x16xf32, #tpu.memory_space<vmem>>, %arg20: memref<1x16xf32, #tpu.memory_space<vmem>>, %arg21: memref<1x16xf32, #tpu.memory_space<vmem>>, %arg22: memref<16x64xf32, #tpu.memory_space<vmem>>, %arg23: memref<1x64xf32, #tpu.memory_space<vmem>>, %arg24: memref<64x16xf32, #tpu.memory_space<vmem>>, %arg25: memref<1x16xf32, #tpu.memory_space<vmem>>, %arg26: memref<1x8xf32, #tpu.memory_space<vmem>>, %arg27: memref<1x8xf32, #tpu.memory_space<vmem>>, %arg28: memref<8x24xf32, #tpu.memory_space<vmem>>, %arg29: memref<8x8xf32, #tpu.memory_space<vmem>>, %arg30: memref<1x8xf32, #tpu.memory_space<vmem>>, %arg31: memref<1x8xf32, #tpu.memory_space<vmem>>, %arg32: memref<1x8xf32, #tpu.memory_space<vmem>>, %arg33: memref<8x32xf32, #tpu.memory_space<vmem>>, %arg34: memref<1x32xf32, #tpu.memory_space<vmem>>, %arg35: memref<32x8xf32, #tpu.memory_space<vmem>>, %arg36: memref<1x8xf32, #tpu.memory_space<vmem>>, %arg37: memref<16x8xf32, #tpu.memory_space<vmem>>, %arg38: memref<8x1xf32, #tpu.memory_space<vmem>>, %arg39: memref<16x8xf32, #tpu.memory_space<vmem>>, %arg40: memref<8x1xf32, #tpu.memory_space<vmem>>, %arg41: memref<1x8x32xf32, #tpu.memory_space<vmem>>, %arg42: memref<1x8x16xf32, #tpu.memory_space<vmem>>, %arg43: memref<1x8x8xf32, #tpu.memory_space<vmem>>) attributes {dimension_semantics = [#tpu.dimension_semantics<parallel>], iteration_bounds = array<i64: 2>, scalar_prefetch = 0 : i64, scratch_operands = 0 : i64, tpu.core_type = #tpu.core_type<tc>, window_params = [{transform_indices = @transform_0, window_bounds = array<i64: 1, 8, 32>}, {transform_indices = @transform_1, window_bounds = array<i64: 1, 8, 16>}, {transform_indices = @transform_2, window_bounds = array<i64: 1, 8, 8>}, {pipeline_mode = #tpu.pipeline_mode<synchronous>, transform_indices = @transform_3, window_bounds = array<i64: 1, 32>}, {pipeline_mode = #tpu.pipeline_mode<synchronous>, transform_indices = @transform_4, window_bounds = array<i64: 1, 32>}, {pipeline_mode = #tpu.pipeline_mode<synchronous>, transform_indices = @transform_5, window_bounds = array<i64: 32, 96>}, {pipeline_mode = #tpu.pipeline_mode<synchronous>, transform_indices = @transform_6, window_bounds = array<i64: 32, 32>}, {pipeline_mode = #tpu.pipeline_mode<synchronous>, transform_indices = @transform_7, window_bounds = array<i64: 1, 32>}, {pipeline_mode = #tpu.pipeline_mode<synchronous>, transform_indices = @transform_8, window_bounds = array<i64: 1, 32>}, {pipeline_mode = #tpu.pipeline_mode<synchronous>, transform_indices = @transform_9, window_bounds = array<i64: 1, 32>}, {pipeline_mode = #tpu.pipeline_mode<synchronous>, transform_indices = @transform_10, window_bounds = array<i64: 32, 128>}, {pipeline_mode = #tpu.pipeline_mode<synchronous>, transform_indices = @transform_11, window_bounds = array<i64: 1, 128>}, {pipeline_mode = #tpu.pipeline_mode<synchronous>, transform_indices = @transform_12, window_bounds = array<i64: 128, 32>}, {pipeline_mode = #tpu.pipeline_mode<synchronous>, transform_indices = @transform_13, window_bounds = array<i64: 1, 32>}, {pipeline_mode = #tpu.pipeline_mode<synchronous>, transform_indices = @transform_14, window_bounds = array<i64: 1, 16>}, {pipeline_mode = #tpu.pipeline_mode<synchronous>, transform_indices = @transform_15, window_bounds = array<i64: 1, 16>}, {pipeline_mode = #tpu.pipeline_mode<synchronous>, transform_indices = @transform_16, window_bounds = array<i64: 16, 48>}, {pipeline_mode = #tpu.pipeline_mode<synchronous>, transform_indices = @transform_17, window_bounds = array<i64: 16, 16>}, {pipeline_mode = #tpu.pipeline_mode<synchronous>, transform_indices = @transform_18, window_bounds = array<i64: 1, 16>}, {pipeline_mode = #tpu.pipeline_mode<synchronous>, transform_indices = @transform_19, window_bounds = array<i64: 1, 16>}, {pipeline_mode = #tpu.pipeline_mode<synchronous>, transform_indices = @transform_20, window_bounds = array<i64: 1, 16>}, {pipeline_mode = #tpu.pipeline_mode<synchronous>, transform_indices = @transform_21, window_bounds = array<i64: 16, 64>}, {pipeline_mode = #tpu.pipeline_mode<synchronous>, transform_indices = @transform_22, window_bounds = array<i64: 1, 64>}, {pipeline_mode = #tpu.pipeline_mode<synchronous>, transform_indices = @transform_23, window_bounds = array<i64: 64, 16>}, {pipeline_mode = #tpu.pipeline_mode<synchronous>, transform_indices = @transform_24, window_bounds = array<i64: 1, 16>}, {pipeline_mode = #tpu.pipeline_mode<synchronous>, transform_indices = @transform_25, window_bounds = array<i64: 1, 8>}, {pipeline_mode = #tpu.pipeline_mode<synchronous>, transform_indices = @transform_26, window_bounds = array<i64: 1, 8>}, {pipeline_mode = #tpu.pipeline_mode<synchronous>, transform_indices = @transform_27, window_bounds = array<i64: 8, 24>}, {pipeline_mode = #tpu.pipeline_mode<synchronous>, transform_indices = @transform_28, window_bounds = array<i64: 8, 8>}, {pipeline_mode = #tpu.pipeline_mode<synchronous>, transform_indices = @transform_29, window_bounds = array<i64: 1, 8>}, {pipeline_mode = #tpu.pipeline_mode<synchronous>, transform_indices = @transform_30, window_bounds = array<i64: 1, 8>}, {pipeline_mode = #tpu.pipeline_mode<synchronous>, transform_indices = @transform_31, window_bounds = array<i64: 1, 8>}, {pipeline_mode = #tpu.pipeline_mode<synchronous>, transform_indices = @transform_32, window_bounds = array<i64: 8, 32>}, {pipeline_mode = #tpu.pipeline_mode<synchronous>, transform_indices = @transform_33, window_bounds = array<i64: 1, 32>}, {pipeline_mode = #tpu.pipeline_mode<synchronous>, transform_indices = @transform_34, window_bounds = array<i64: 32, 8>}, {pipeline_mode = #tpu.pipeline_mode<synchronous>, transform_indices = @transform_35, window_bounds = array<i64: 1, 8>}, {pipeline_mode = #tpu.pipeline_mode<synchronous>, transform_indices = @transform_36, window_bounds = array<i64: 16, 8>}, {pipeline_mode = #tpu.pipeline_mode<synchronous>, transform_indices = @transform_37, window_bounds = array<i64: 8, 1>}, {pipeline_mode = #tpu.pipeline_mode<synchronous>, transform_indices = @transform_38, window_bounds = array<i64: 16, 8>}, {pipeline_mode = #tpu.pipeline_mode<synchronous>, transform_indices = @transform_39, window_bounds = array<i64: 8, 1>}, {transform_indices = @transform_40, window_bounds = array<i64: 1, 8, 32>}, {transform_indices = @transform_41, window_bounds = array<i64: 1, 8, 16>}, {transform_indices = @transform_42, window_bounds = array<i64: 1, 8, 8>}]} {
    %c0 = arith.constant 0 : index
    %c0_0 = arith.constant 0 : index
    %c0_1 = arith.constant 0 : index
    %0 = vector.load %arg1[%c0, %c0_0, %c0_1] : memref<1x8x32xf32, #tpu.memory_space<vmem>>, vector<1x8x32xf32>
    %1 = vector.shape_cast %0 : vector<1x8x32xf32> to vector<8x32xf32>
    %c0_2 = arith.constant 0 : index
    %c0_3 = arith.constant 0 : index
    %2 = vector.load %arg4[%c0_2, %c0_3] : memref<1x32xf32, #tpu.memory_space<vmem>>, vector<1x32xf32>
    %c0_4 = arith.constant 0 : index
    %c0_5 = arith.constant 0 : index
    %3 = vector.load %arg5[%c0_4, %c0_5] : memref<1x32xf32, #tpu.memory_space<vmem>>, vector<1x32xf32>
    %c0_6 = arith.constant 0 : index
    %c0_7 = arith.constant 0 : index
    %4 = vector.load %arg6[%c0_6, %c0_7] : memref<32x96xf32, #tpu.memory_space<vmem>>, vector<32x96xf32>
    %c0_8 = arith.constant 0 : index
    %c0_9 = arith.constant 0 : index
    %5 = vector.load %arg7[%c0_8, %c0_9] : memref<32x32xf32, #tpu.memory_space<vmem>>, vector<32x32xf32>
    %c0_10 = arith.constant 0 : index
    %c0_11 = arith.constant 0 : index
    %6 = vector.load %arg8[%c0_10, %c0_11] : memref<1x32xf32, #tpu.memory_space<vmem>>, vector<1x32xf32>
    %c0_12 = arith.constant 0 : index
    %c0_13 = arith.constant 0 : index
    %7 = vector.load %arg9[%c0_12, %c0_13] : memref<1x32xf32, #tpu.memory_space<vmem>>, vector<1x32xf32>
    %c0_14 = arith.constant 0 : index
    %c0_15 = arith.constant 0 : index
    %8 = vector.load %arg10[%c0_14, %c0_15] : memref<1x32xf32, #tpu.memory_space<vmem>>, vector<1x32xf32>
    %c0_16 = arith.constant 0 : index
    %c0_17 = arith.constant 0 : index
    %9 = vector.load %arg11[%c0_16, %c0_17] : memref<32x128xf32, #tpu.memory_space<vmem>>, vector<32x128xf32>
    %c0_18 = arith.constant 0 : index
    %c0_19 = arith.constant 0 : index
    %10 = vector.load %arg12[%c0_18, %c0_19] : memref<1x128xf32, #tpu.memory_space<vmem>>, vector<1x128xf32>
    %c0_20 = arith.constant 0 : index
    %c0_21 = arith.constant 0 : index
    %11 = vector.load %arg13[%c0_20, %c0_21] : memref<128x32xf32, #tpu.memory_space<vmem>>, vector<128x32xf32>
    %c0_22 = arith.constant 0 : index
    %c0_23 = arith.constant 0 : index
    %12 = vector.load %arg14[%c0_22, %c0_23] : memref<1x32xf32, #tpu.memory_space<vmem>>, vector<1x32xf32>
    %cst = arith.constant dense<0.000000e+00> : vector<8xf32>
    %13 = vector.multi_reduction <add>, %1, %cst [1] : vector<8x32xf32> to vector<8xf32>
    %14 = vector.shape_cast %13 : vector<8xf32> to vector<8x1xf32>
    %cst_24 = arith.constant 3.200000e+01 : f32
    %15 = vector.broadcast %cst_24 : f32 to vector<8x1xf32>
    %16 = arith.divf %14, %15 : vector<8x1xf32>
    %17 = vector.broadcast %16 : vector<8x1xf32> to vector<8x32xf32>
    %18 = arith.subf %1, %17 : vector<8x32xf32>
    %19 = arith.mulf %18, %18 : vector<8x32xf32>
    %cst_25 = arith.constant dense<0.000000e+00> : vector<8xf32>
    %20 = vector.multi_reduction <add>, %19, %cst_25 [1] : vector<8x32xf32> to vector<8xf32>
    %21 = vector.shape_cast %20 : vector<8xf32> to vector<8x1xf32>
    %cst_26 = arith.constant 3.200000e+01 : f32
    %22 = vector.broadcast %cst_26 : f32 to vector<8x1xf32>
    %23 = arith.divf %21, %22 : vector<8x1xf32>
    %24 = vector.broadcast %16 : vector<8x1xf32> to vector<8x32xf32>
    %25 = arith.subf %1, %24 : vector<8x32xf32>
    %cst_27 = arith.constant 9.99999974E-6 : f32
    %26 = vector.broadcast %cst_27 : f32 to vector<8x1xf32>
    %27 = arith.addf %23, %26 : vector<8x1xf32>
    %28 = math.rsqrt %27 : vector<8x1xf32>
    %29 = vector.broadcast %28 : vector<8x1xf32> to vector<8x32xf32>
    %30 = arith.mulf %25, %29 : vector<8x32xf32>
    %31 = vector.broadcast %2 : vector<1x32xf32> to vector<8x32xf32>
    %32 = arith.mulf %30, %31 : vector<8x32xf32>
    %33 = vector.broadcast %3 : vector<1x32xf32> to vector<8x32xf32>
    %34 = arith.addf %32, %33 : vector<8x32xf32>
    %cst_28 = arith.constant dense<0.000000e+00> : vector<8x96xf32>
    %35 = tpu.matmul %34, %4, %cst_28 {dimension_numbers = #tpu.dot_dimension_numbers<[1], [0], [0], [1], [0, 0, 1, 1], [], []>} : vector<8x32xf32>, vector<32x96xf32>, vector<8x96xf32> -> vector<8x96xf32>
    %36 = vector.extract_strided_slice %35 {offsets = [0, 0], sizes = [8, 32], strides = [1, 1]} : vector<8x96xf32> to vector<8x32xf32>
    %37 = vector.extract_strided_slice %35 {offsets = [0, 32], sizes = [8, 32], strides = [1, 1]} : vector<8x96xf32> to vector<8x32xf32>
    %38 = vector.extract_strided_slice %35 {offsets = [0, 64], sizes = [8, 32], strides = [1, 1]} : vector<8x96xf32> to vector<8x32xf32>
    %39 = tpu.iota {dimensions = array<i32: 1>} : vector<4x32xi32>
    %40 = tpu.iota {dimensions = array<i32: 0>} : vector<4x32xi32>
    %c8_i32 = arith.constant 8 : i32
    %41 = vector.broadcast %c8_i32 : i32 to vector<4x32xi32>
    %42 = arith.muli %40, %41 : vector<4x32xi32>
    %43 = arith.cmpi sge, %39, %42 : vector<4x32xi32>
    %c1_i32 = arith.constant 1 : i32
    %44 = vector.broadcast %c1_i32 : i32 to vector<4x32xi32>
    %45 = arith.addi %40, %44 : vector<4x32xi32>
    %c8_i32_29 = arith.constant 8 : i32
    %46 = vector.broadcast %c8_i32_29 : i32 to vector<4x32xi32>
    %47 = arith.muli %45, %46 : vector<4x32xi32>
    %48 = arith.cmpi slt, %39, %47 : vector<4x32xi32>
    %49 = arith.andi %43, %48 : vector<4x32xi1>
    %50 = arith.extui %49 : vector<4x32xi1> to vector<4x32xi32>
    %51 = arith.sitofp %50 : vector<4x32xi32> to vector<4x32xf32>
    %52 = vector.shape_cast %36 : vector<8x32xf32> to vector<1x8x32xf32>
    %53 = vector.shape_cast %51 : vector<4x32xf32> to vector<4x1x32xf32>
    %54 = vector.broadcast %52 : vector<1x8x32xf32> to vector<4x8x32xf32>
    %55 = vector.broadcast %53 : vector<4x1x32xf32> to vector<4x8x32xf32>
    %56 = arith.mulf %54, %55 : vector<4x8x32xf32>
    %57 = vector.shape_cast %37 : vector<8x32xf32> to vector<1x8x32xf32>
    %58 = vector.shape_cast %57 : vector<1x8x32xf32> to vector<1x8x32xf32>
    %59 = vector.broadcast %58 : vector<1x8x32xf32> to vector<4x8x32xf32>
    %60 = vector.shape_cast %38 : vector<8x32xf32> to vector<1x8x32xf32>
    %61 = vector.shape_cast %60 : vector<1x8x32xf32> to vector<1x8x32xf32>
    %62 = vector.broadcast %61 : vector<1x8x32xf32> to vector<4x8x32xf32>
    "tpu.trace_start"() <{level = 10 : i32, message = "hqc,hkc->hqk"}> : () -> ()
    %cst_30 = arith.constant dense<0.000000e+00> : vector<4x8x8xf32>
    %63 = tpu.matmul %56, %59, %cst_30 {dimension_numbers = #tpu.dot_dimension_numbers<[2], [2], [1], [1], [0, 0, 0, 1, 1, 1], [0], [0]>} : vector<4x8x32xf32>, vector<4x8x32xf32>, vector<4x8x8xf32> -> vector<4x8x8xf32>
    "tpu.trace_stop"() : () -> ()
    %cst_31 = arith.constant 0.353553385 : f32
    %64 = vector.broadcast %cst_31 : f32 to vector<4x8x8xf32>
    %65 = arith.mulf %63, %64 : vector<4x8x8xf32>
    %cst_32 = arith.constant dense<0xFF800000> : vector<4x8xf32>
    %66 = vector.multi_reduction <maximumf>, %65, %cst_32 [2] : vector<4x8x8xf32> to vector<4x8xf32>
    %67 = vector.shape_cast %66 : vector<4x8xf32> to vector<4x8x1xf32>
    %68 = vector.broadcast %67 : vector<4x8x1xf32> to vector<4x8x8xf32>
    %69 = arith.subf %65, %68 : vector<4x8x8xf32>
    %70 = math.exp %69 : vector<4x8x8xf32>
    %cst_33 = arith.constant dense<0.000000e+00> : vector<4x8xf32>
    %71 = vector.multi_reduction <add>, %70, %cst_33 [2] : vector<4x8x8xf32> to vector<4x8xf32>
    %72 = vector.shape_cast %71 : vector<4x8xf32> to vector<4x8x1xf32>
    %73 = tpu.reciprocal %72 {approx = true} : vector<4x8x1xf32> -> vector<4x8x1xf32>
    %74 = vector.broadcast %73 : vector<4x8x1xf32> to vector<4x8x8xf32>
    %75 = arith.mulf %70, %74 : vector<4x8x8xf32>
    "tpu.trace_start"() <{level = 10 : i32, message = "hqk,hkc->hqc"}> : () -> ()
    %cst_34 = arith.constant dense<0.000000e+00> : vector<4x8x32xf32>
    %76 = tpu.matmul %75, %62, %cst_34 {dimension_numbers = #tpu.dot_dimension_numbers<[2], [1], [1], [2], [0, 0, 0, 1, 1, 2], [0], [0]>} : vector<4x8x8xf32>, vector<4x8x32xf32>, vector<4x8x32xf32> -> vector<4x8x32xf32>
    "tpu.trace_stop"() : () -> ()
    %77 = vector.shape_cast %51 : vector<4x32xf32> to vector<4x1x32xf32>
    %78 = vector.broadcast %77 : vector<4x1x32xf32> to vector<4x8x32xf32>
    %79 = arith.mulf %76, %78 : vector<4x8x32xf32>
    %cst_35 = arith.constant dense<0.000000e+00> : vector<8x32xf32>
    %80 = vector.multi_reduction <add>, %79, %cst_35 [0] : vector<4x8x32xf32> to vector<8x32xf32>
    %cst_36 = arith.constant dense<0.000000e+00> : vector<8x32xf32>
    %81 = tpu.matmul %80, %5, %cst_36 {dimension_numbers = #tpu.dot_dimension_numbers<[1], [0], [0], [1], [0, 0, 1, 1], [], []>} : vector<8x32xf32>, vector<32x32xf32>, vector<8x32xf32> -> vector<8x32xf32>
    %82 = vector.broadcast %6 : vector<1x32xf32> to vector<8x32xf32>
    %83 = arith.addf %81, %82 : vector<8x32xf32>
    %84 = arith.addf %1, %83 : vector<8x32xf32>
    %cst_37 = arith.constant dense<0.000000e+00> : vector<8xf32>
    %85 = vector.multi_reduction <add>, %84, %cst_37 [1] : vector<8x32xf32> to vector<8xf32>
    %86 = vector.shape_cast %85 : vector<8xf32> to vector<8x1xf32>
    %cst_38 = arith.constant 3.200000e+01 : f32
    %87 = vector.broadcast %cst_38 : f32 to vector<8x1xf32>
    %88 = arith.divf %86, %87 : vector<8x1xf32>
    %89 = vector.broadcast %88 : vector<8x1xf32> to vector<8x32xf32>
    %90 = arith.subf %84, %89 : vector<8x32xf32>
    %91 = arith.mulf %90, %90 : vector<8x32xf32>
    %cst_39 = arith.constant dense<0.000000e+00> : vector<8xf32>
    %92 = vector.multi_reduction <add>, %91, %cst_39 [1] : vector<8x32xf32> to vector<8xf32>
    %93 = vector.shape_cast %92 : vector<8xf32> to vector<8x1xf32>
    %cst_40 = arith.constant 3.200000e+01 : f32
    %94 = vector.broadcast %cst_40 : f32 to vector<8x1xf32>
    %95 = arith.divf %93, %94 : vector<8x1xf32>
    %96 = vector.broadcast %88 : vector<8x1xf32> to vector<8x32xf32>
    %97 = arith.subf %84, %96 : vector<8x32xf32>
    %cst_41 = arith.constant 9.99999974E-6 : f32
    %98 = vector.broadcast %cst_41 : f32 to vector<8x1xf32>
    %99 = arith.addf %95, %98 : vector<8x1xf32>
    %100 = math.rsqrt %99 : vector<8x1xf32>
    %101 = vector.broadcast %100 : vector<8x1xf32> to vector<8x32xf32>
    %102 = arith.mulf %97, %101 : vector<8x32xf32>
    %103 = vector.broadcast %7 : vector<1x32xf32> to vector<8x32xf32>
    %104 = arith.mulf %102, %103 : vector<8x32xf32>
    %105 = vector.broadcast %8 : vector<1x32xf32> to vector<8x32xf32>
    %106 = arith.addf %104, %105 : vector<8x32xf32>
    %cst_42 = arith.constant dense<0.000000e+00> : vector<8x128xf32>
    %107 = tpu.matmul %106, %9, %cst_42 {dimension_numbers = #tpu.dot_dimension_numbers<[1], [0], [0], [1], [0, 0, 1, 1], [], []>} : vector<8x32xf32>, vector<32x128xf32>, vector<8x128xf32> -> vector<8x128xf32>
    %108 = vector.broadcast %10 : vector<1x128xf32> to vector<8x128xf32>
    %109 = arith.addf %107, %108 : vector<8x128xf32>
    %cst_43 = arith.constant 5.000000e-01 : f32
    %110 = vector.broadcast %cst_43 : f32 to vector<8x128xf32>
    %111 = arith.mulf %110, %109 : vector<8x128xf32>
    %cst_44 = arith.constant 0.707106769 : f32
    %112 = vector.broadcast %cst_44 : f32 to vector<8x128xf32>
    %113 = arith.mulf %109, %112 : vector<8x128xf32>
    %cst_45 = arith.constant 0.000000e+00 : f32
    %114 = vector.broadcast %cst_45 : f32 to vector<8x128xf32>
    %115 = arith.cmpf oge, %113, %114 : vector<8x128xf32>
    %cst_46 = arith.constant 1.000000e+00 : f32
    %cst_47 = arith.constant -1.000000e+00 : f32
    %116 = vector.broadcast %cst_46 : f32 to vector<8x128xf32>
    %117 = vector.broadcast %cst_47 : f32 to vector<8x128xf32>
    %118 = arith.select %115, %116, %117 : vector<8x128xi1>, vector<8x128xf32>
    %119 = math.absf %113 : vector<8x128xf32>
    %cst_48 = arith.constant 0.327591091 : f32
    %120 = vector.broadcast %cst_48 : f32 to vector<8x128xf32>
    %121 = arith.mulf %120, %119 : vector<8x128xf32>
    %cst_49 = arith.constant 1.000000e+00 : f32
    %122 = vector.broadcast %cst_49 : f32 to vector<8x128xf32>
    %123 = arith.addf %122, %121 : vector<8x128xf32>
    %cst_50 = arith.constant 1.000000e+00 : f32
    %124 = vector.broadcast %cst_50 : f32 to vector<8x128xf32>
    %125 = arith.divf %124, %123 : vector<8x128xf32>
    %cst_51 = arith.constant 1.06140542 : f32
    %126 = vector.broadcast %cst_51 : f32 to vector<8x128xf32>
    %127 = arith.mulf %126, %125 : vector<8x128xf32>
    %cst_52 = arith.constant -1.45315206 : f32
    %128 = vector.broadcast %cst_52 : f32 to vector<8x128xf32>
    %129 = arith.addf %127, %128 : vector<8x128xf32>
    %130 = arith.mulf %129, %125 : vector<8x128xf32>
    %cst_53 = arith.constant 1.42141378 : f32
    %131 = vector.broadcast %cst_53 : f32 to vector<8x128xf32>
    %132 = arith.addf %130, %131 : vector<8x128xf32>
    %133 = arith.mulf %132, %125 : vector<8x128xf32>
    %cst_54 = arith.constant -0.284496725 : f32
    %134 = vector.broadcast %cst_54 : f32 to vector<8x128xf32>
    %135 = arith.addf %133, %134 : vector<8x128xf32>
    %136 = arith.mulf %135, %125 : vector<8x128xf32>
    %cst_55 = arith.constant 0.254829586 : f32
    %137 = vector.broadcast %cst_55 : f32 to vector<8x128xf32>
    %138 = arith.addf %136, %137 : vector<8x128xf32>
    %139 = arith.mulf %138, %125 : vector<8x128xf32>
    %cst_56 = arith.constant 0.000000e+00 : f32
    %140 = vector.broadcast %cst_56 : f32 to vector<8x128xf32>
    %141 = arith.subf %140, %119 : vector<8x128xf32>
    %142 = arith.mulf %141, %119 : vector<8x128xf32>
    %143 = math.exp %142 : vector<8x128xf32>
    %144 = arith.mulf %139, %143 : vector<8x128xf32>
    %cst_57 = arith.constant 1.000000e+00 : f32
    %145 = vector.broadcast %cst_57 : f32 to vector<8x128xf32>
    %146 = arith.subf %145, %144 : vector<8x128xf32>
    %147 = arith.mulf %118, %146 : vector<8x128xf32>
    %cst_58 = arith.constant 1.000000e+00 : f32
    %148 = vector.broadcast %cst_58 : f32 to vector<8x128xf32>
    %149 = arith.addf %148, %147 : vector<8x128xf32>
    %150 = arith.mulf %111, %149 : vector<8x128xf32>
    %cst_59 = arith.constant dense<0.000000e+00> : vector<8x32xf32>
    %151 = tpu.matmul %150, %11, %cst_59 {dimension_numbers = #tpu.dot_dimension_numbers<[1], [0], [0], [1], [0, 0, 1, 1], [], []>} : vector<8x128xf32>, vector<128x32xf32>, vector<8x32xf32> -> vector<8x32xf32>
    %152 = vector.broadcast %12 : vector<1x32xf32> to vector<8x32xf32>
    %153 = arith.addf %151, %152 : vector<8x32xf32>
    %154 = arith.addf %84, %153 : vector<8x32xf32>
    %c0_60 = arith.constant 0 : index
    %c0_61 = arith.constant 0 : index
    %c0_62 = arith.constant 0 : index
    %155 = vector.load %arg2[%c0_60, %c0_61, %c0_62] : memref<1x8x16xf32, #tpu.memory_space<vmem>>, vector<1x8x16xf32>
    %156 = vector.shape_cast %155 : vector<1x8x16xf32> to vector<8x16xf32>
    %c0_63 = arith.constant 0 : index
    %c0_64 = arith.constant 0 : index
    %157 = vector.load %arg15[%c0_63, %c0_64] : memref<1x16xf32, #tpu.memory_space<vmem>>, vector<1x16xf32>
    %c0_65 = arith.constant 0 : index
    %c0_66 = arith.constant 0 : index
    %158 = vector.load %arg16[%c0_65, %c0_66] : memref<1x16xf32, #tpu.memory_space<vmem>>, vector<1x16xf32>
    %c0_67 = arith.constant 0 : index
    %c0_68 = arith.constant 0 : index
    %159 = vector.load %arg17[%c0_67, %c0_68] : memref<16x48xf32, #tpu.memory_space<vmem>>, vector<16x48xf32>
    %c0_69 = arith.constant 0 : index
    %c0_70 = arith.constant 0 : index
    %160 = vector.load %arg18[%c0_69, %c0_70] : memref<16x16xf32, #tpu.memory_space<vmem>>, vector<16x16xf32>
    %c0_71 = arith.constant 0 : index
    %c0_72 = arith.constant 0 : index
    %161 = vector.load %arg19[%c0_71, %c0_72] : memref<1x16xf32, #tpu.memory_space<vmem>>, vector<1x16xf32>
    %c0_73 = arith.constant 0 : index
    %c0_74 = arith.constant 0 : index
    %162 = vector.load %arg20[%c0_73, %c0_74] : memref<1x16xf32, #tpu.memory_space<vmem>>, vector<1x16xf32>
    %c0_75 = arith.constant 0 : index
    %c0_76 = arith.constant 0 : index
    %163 = vector.load %arg21[%c0_75, %c0_76] : memref<1x16xf32, #tpu.memory_space<vmem>>, vector<1x16xf32>
    %c0_77 = arith.constant 0 : index
    %c0_78 = arith.constant 0 : index
    %164 = vector.load %arg22[%c0_77, %c0_78] : memref<16x64xf32, #tpu.memory_space<vmem>>, vector<16x64xf32>
    %c0_79 = arith.constant 0 : index
    %c0_80 = arith.constant 0 : index
    %165 = vector.load %arg23[%c0_79, %c0_80] : memref<1x64xf32, #tpu.memory_space<vmem>>, vector<1x64xf32>
    %c0_81 = arith.constant 0 : index
    %c0_82 = arith.constant 0 : index
    %166 = vector.load %arg24[%c0_81, %c0_82] : memref<64x16xf32, #tpu.memory_space<vmem>>, vector<64x16xf32>
    %c0_83 = arith.constant 0 : index
    %c0_84 = arith.constant 0 : index
    %167 = vector.load %arg25[%c0_83, %c0_84] : memref<1x16xf32, #tpu.memory_space<vmem>>, vector<1x16xf32>
    %cst_85 = arith.constant dense<0.000000e+00> : vector<8xf32>
    %168 = vector.multi_reduction <add>, %156, %cst_85 [1] : vector<8x16xf32> to vector<8xf32>
    %169 = vector.shape_cast %168 : vector<8xf32> to vector<8x1xf32>
    %cst_86 = arith.constant 1.600000e+01 : f32
    %170 = vector.broadcast %cst_86 : f32 to vector<8x1xf32>
    %171 = arith.divf %169, %170 : vector<8x1xf32>
    %172 = vector.broadcast %171 : vector<8x1xf32> to vector<8x16xf32>
    %173 = arith.subf %156, %172 : vector<8x16xf32>
    %174 = arith.mulf %173, %173 : vector<8x16xf32>
    %cst_87 = arith.constant dense<0.000000e+00> : vector<8xf32>
    %175 = vector.multi_reduction <add>, %174, %cst_87 [1] : vector<8x16xf32> to vector<8xf32>
    %176 = vector.shape_cast %175 : vector<8xf32> to vector<8x1xf32>
    %cst_88 = arith.constant 1.600000e+01 : f32
    %177 = vector.broadcast %cst_88 : f32 to vector<8x1xf32>
    %178 = arith.divf %176, %177 : vector<8x1xf32>
    %179 = vector.broadcast %171 : vector<8x1xf32> to vector<8x16xf32>
    %180 = arith.subf %156, %179 : vector<8x16xf32>
    %cst_89 = arith.constant 9.99999974E-6 : f32
    %181 = vector.broadcast %cst_89 : f32 to vector<8x1xf32>
    %182 = arith.addf %178, %181 : vector<8x1xf32>
    %183 = math.rsqrt %182 : vector<8x1xf32>
    %184 = vector.broadcast %183 : vector<8x1xf32> to vector<8x16xf32>
    %185 = arith.mulf %180, %184 : vector<8x16xf32>
    %186 = vector.broadcast %157 : vector<1x16xf32> to vector<8x16xf32>
    %187 = arith.mulf %185, %186 : vector<8x16xf32>
    %188 = vector.broadcast %158 : vector<1x16xf32> to vector<8x16xf32>
    %189 = arith.addf %187, %188 : vector<8x16xf32>
    %cst_90 = arith.constant dense<0.000000e+00> : vector<8x48xf32>
    %190 = tpu.matmul %189, %159, %cst_90 {dimension_numbers = #tpu.dot_dimension_numbers<[1], [0], [0], [1], [0, 0, 1, 1], [], []>} : vector<8x16xf32>, vector<16x48xf32>, vector<8x48xf32> -> vector<8x48xf32>
    %191 = vector.extract_strided_slice %190 {offsets = [0, 0], sizes = [8, 16], strides = [1, 1]} : vector<8x48xf32> to vector<8x16xf32>
    %192 = vector.extract_strided_slice %190 {offsets = [0, 16], sizes = [8, 16], strides = [1, 1]} : vector<8x48xf32> to vector<8x16xf32>
    %193 = vector.extract_strided_slice %190 {offsets = [0, 32], sizes = [8, 16], strides = [1, 1]} : vector<8x48xf32> to vector<8x16xf32>
    %194 = tpu.iota {dimensions = array<i32: 1>} : vector<4x16xi32>
    %195 = tpu.iota {dimensions = array<i32: 0>} : vector<4x16xi32>
    %c4_i32 = arith.constant 4 : i32
    %196 = vector.broadcast %c4_i32 : i32 to vector<4x16xi32>
    %197 = arith.muli %195, %196 : vector<4x16xi32>
    %198 = arith.cmpi sge, %194, %197 : vector<4x16xi32>
    %c1_i32_91 = arith.constant 1 : i32
    %199 = vector.broadcast %c1_i32_91 : i32 to vector<4x16xi32>
    %200 = arith.addi %195, %199 : vector<4x16xi32>
    %c4_i32_92 = arith.constant 4 : i32
    %201 = vector.broadcast %c4_i32_92 : i32 to vector<4x16xi32>
    %202 = arith.muli %200, %201 : vector<4x16xi32>
    %203 = arith.cmpi slt, %194, %202 : vector<4x16xi32>
    %204 = arith.andi %198, %203 : vector<4x16xi1>
    %205 = arith.extui %204 : vector<4x16xi1> to vector<4x16xi32>
    %206 = arith.sitofp %205 : vector<4x16xi32> to vector<4x16xf32>
    %207 = vector.shape_cast %191 : vector<8x16xf32> to vector<1x8x16xf32>
    %208 = vector.shape_cast %206 : vector<4x16xf32> to vector<4x1x16xf32>
    %209 = vector.broadcast %207 : vector<1x8x16xf32> to vector<4x8x16xf32>
    %210 = vector.broadcast %208 : vector<4x1x16xf32> to vector<4x8x16xf32>
    %211 = arith.mulf %209, %210 : vector<4x8x16xf32>
    %212 = vector.shape_cast %192 : vector<8x16xf32> to vector<1x8x16xf32>
    %213 = vector.shape_cast %212 : vector<1x8x16xf32> to vector<1x8x16xf32>
    %214 = vector.broadcast %213 : vector<1x8x16xf32> to vector<4x8x16xf32>
    %215 = vector.shape_cast %193 : vector<8x16xf32> to vector<1x8x16xf32>
    %216 = vector.shape_cast %215 : vector<1x8x16xf32> to vector<1x8x16xf32>
    %217 = vector.broadcast %216 : vector<1x8x16xf32> to vector<4x8x16xf32>
    "tpu.trace_start"() <{level = 10 : i32, message = "hqc,hkc->hqk"}> : () -> ()
    %cst_93 = arith.constant dense<0.000000e+00> : vector<4x8x8xf32>
    %218 = tpu.matmul %211, %214, %cst_93 {dimension_numbers = #tpu.dot_dimension_numbers<[2], [2], [1], [1], [0, 0, 0, 1, 1, 1], [0], [0]>} : vector<4x8x16xf32>, vector<4x8x16xf32>, vector<4x8x8xf32> -> vector<4x8x8xf32>
    "tpu.trace_stop"() : () -> ()
    %cst_94 = arith.constant 5.000000e-01 : f32
    %219 = vector.broadcast %cst_94 : f32 to vector<4x8x8xf32>
    %220 = arith.mulf %218, %219 : vector<4x8x8xf32>
    %cst_95 = arith.constant dense<0xFF800000> : vector<4x8xf32>
    %221 = vector.multi_reduction <maximumf>, %220, %cst_95 [2] : vector<4x8x8xf32> to vector<4x8xf32>
    %222 = vector.shape_cast %221 : vector<4x8xf32> to vector<4x8x1xf32>
    %223 = vector.broadcast %222 : vector<4x8x1xf32> to vector<4x8x8xf32>
    %224 = arith.subf %220, %223 : vector<4x8x8xf32>
    %225 = math.exp %224 : vector<4x8x8xf32>
    %cst_96 = arith.constant dense<0.000000e+00> : vector<4x8xf32>
    %226 = vector.multi_reduction <add>, %225, %cst_96 [2] : vector<4x8x8xf32> to vector<4x8xf32>
    %227 = vector.shape_cast %226 : vector<4x8xf32> to vector<4x8x1xf32>
    %228 = tpu.reciprocal %227 {approx = true} : vector<4x8x1xf32> -> vector<4x8x1xf32>
    %229 = vector.broadcast %228 : vector<4x8x1xf32> to vector<4x8x8xf32>
    %230 = arith.mulf %225, %229 : vector<4x8x8xf32>
    "tpu.trace_start"() <{level = 10 : i32, message = "hqk,hkc->hqc"}> : () -> ()
    %cst_97 = arith.constant dense<0.000000e+00> : vector<4x8x16xf32>
    %231 = tpu.matmul %230, %217, %cst_97 {dimension_numbers = #tpu.dot_dimension_numbers<[2], [1], [1], [2], [0, 0, 0, 1, 1, 2], [0], [0]>} : vector<4x8x8xf32>, vector<4x8x16xf32>, vector<4x8x16xf32> -> vector<4x8x16xf32>
    "tpu.trace_stop"() : () -> ()
    %232 = vector.shape_cast %206 : vector<4x16xf32> to vector<4x1x16xf32>
    %233 = vector.broadcast %232 : vector<4x1x16xf32> to vector<4x8x16xf32>
    %234 = arith.mulf %231, %233 : vector<4x8x16xf32>
    %cst_98 = arith.constant dense<0.000000e+00> : vector<8x16xf32>
    %235 = vector.multi_reduction <add>, %234, %cst_98 [0] : vector<4x8x16xf32> to vector<8x16xf32>
    %cst_99 = arith.constant dense<0.000000e+00> : vector<8x16xf32>
    %236 = tpu.matmul %235, %160, %cst_99 {dimension_numbers = #tpu.dot_dimension_numbers<[1], [0], [0], [1], [0, 0, 1, 1], [], []>} : vector<8x16xf32>, vector<16x16xf32>, vector<8x16xf32> -> vector<8x16xf32>
    %237 = vector.broadcast %161 : vector<1x16xf32> to vector<8x16xf32>
    %238 = arith.addf %236, %237 : vector<8x16xf32>
    %239 = arith.addf %156, %238 : vector<8x16xf32>
    %cst_100 = arith.constant dense<0.000000e+00> : vector<8xf32>
    %240 = vector.multi_reduction <add>, %239, %cst_100 [1] : vector<8x16xf32> to vector<8xf32>
    %241 = vector.shape_cast %240 : vector<8xf32> to vector<8x1xf32>
    %cst_101 = arith.constant 1.600000e+01 : f32
    %242 = vector.broadcast %cst_101 : f32 to vector<8x1xf32>
    %243 = arith.divf %241, %242 : vector<8x1xf32>
    %244 = vector.broadcast %243 : vector<8x1xf32> to vector<8x16xf32>
    %245 = arith.subf %239, %244 : vector<8x16xf32>
    %246 = arith.mulf %245, %245 : vector<8x16xf32>
    %cst_102 = arith.constant dense<0.000000e+00> : vector<8xf32>
    %247 = vector.multi_reduction <add>, %246, %cst_102 [1] : vector<8x16xf32> to vector<8xf32>
    %248 = vector.shape_cast %247 : vector<8xf32> to vector<8x1xf32>
    %cst_103 = arith.constant 1.600000e+01 : f32
    %249 = vector.broadcast %cst_103 : f32 to vector<8x1xf32>
    %250 = arith.divf %248, %249 : vector<8x1xf32>
    %251 = vector.broadcast %243 : vector<8x1xf32> to vector<8x16xf32>
    %252 = arith.subf %239, %251 : vector<8x16xf32>
    %cst_104 = arith.constant 9.99999974E-6 : f32
    %253 = vector.broadcast %cst_104 : f32 to vector<8x1xf32>
    %254 = arith.addf %250, %253 : vector<8x1xf32>
    %255 = math.rsqrt %254 : vector<8x1xf32>
    %256 = vector.broadcast %255 : vector<8x1xf32> to vector<8x16xf32>
    %257 = arith.mulf %252, %256 : vector<8x16xf32>
    %258 = vector.broadcast %162 : vector<1x16xf32> to vector<8x16xf32>
    %259 = arith.mulf %257, %258 : vector<8x16xf32>
    %260 = vector.broadcast %163 : vector<1x16xf32> to vector<8x16xf32>
    %261 = arith.addf %259, %260 : vector<8x16xf32>
    %cst_105 = arith.constant dense<0.000000e+00> : vector<8x64xf32>
    %262 = tpu.matmul %261, %164, %cst_105 {dimension_numbers = #tpu.dot_dimension_numbers<[1], [0], [0], [1], [0, 0, 1, 1], [], []>} : vector<8x16xf32>, vector<16x64xf32>, vector<8x64xf32> -> vector<8x64xf32>
    %263 = vector.broadcast %165 : vector<1x64xf32> to vector<8x64xf32>
    %264 = arith.addf %262, %263 : vector<8x64xf32>
    %cst_106 = arith.constant 5.000000e-01 : f32
    %265 = vector.broadcast %cst_106 : f32 to vector<8x64xf32>
    %266 = arith.mulf %265, %264 : vector<8x64xf32>
    %cst_107 = arith.constant 0.707106769 : f32
    %267 = vector.broadcast %cst_107 : f32 to vector<8x64xf32>
    %268 = arith.mulf %264, %267 : vector<8x64xf32>
    %cst_108 = arith.constant 0.000000e+00 : f32
    %269 = vector.broadcast %cst_108 : f32 to vector<8x64xf32>
    %270 = arith.cmpf oge, %268, %269 : vector<8x64xf32>
    %cst_109 = arith.constant 1.000000e+00 : f32
    %cst_110 = arith.constant -1.000000e+00 : f32
    %271 = vector.broadcast %cst_109 : f32 to vector<8x64xf32>
    %272 = vector.broadcast %cst_110 : f32 to vector<8x64xf32>
    %273 = arith.select %270, %271, %272 : vector<8x64xi1>, vector<8x64xf32>
    %274 = math.absf %268 : vector<8x64xf32>
    %cst_111 = arith.constant 0.327591091 : f32
    %275 = vector.broadcast %cst_111 : f32 to vector<8x64xf32>
    %276 = arith.mulf %275, %274 : vector<8x64xf32>
    %cst_112 = arith.constant 1.000000e+00 : f32
    %277 = vector.broadcast %cst_112 : f32 to vector<8x64xf32>
    %278 = arith.addf %277, %276 : vector<8x64xf32>
    %cst_113 = arith.constant 1.000000e+00 : f32
    %279 = vector.broadcast %cst_113 : f32 to vector<8x64xf32>
    %280 = arith.divf %279, %278 : vector<8x64xf32>
    %cst_114 = arith.constant 1.06140542 : f32
    %281 = vector.broadcast %cst_114 : f32 to vector<8x64xf32>
    %282 = arith.mulf %281, %280 : vector<8x64xf32>
    %cst_115 = arith.constant -1.45315206 : f32
    %283 = vector.broadcast %cst_115 : f32 to vector<8x64xf32>
    %284 = arith.addf %282, %283 : vector<8x64xf32>
    %285 = arith.mulf %284, %280 : vector<8x64xf32>
    %cst_116 = arith.constant 1.42141378 : f32
    %286 = vector.broadcast %cst_116 : f32 to vector<8x64xf32>
    %287 = arith.addf %285, %286 : vector<8x64xf32>
    %288 = arith.mulf %287, %280 : vector<8x64xf32>
    %cst_117 = arith.constant -0.284496725 : f32
    %289 = vector.broadcast %cst_117 : f32 to vector<8x64xf32>
    %290 = arith.addf %288, %289 : vector<8x64xf32>
    %291 = arith.mulf %290, %280 : vector<8x64xf32>
    %cst_118 = arith.constant 0.254829586 : f32
    %292 = vector.broadcast %cst_118 : f32 to vector<8x64xf32>
    %293 = arith.addf %291, %292 : vector<8x64xf32>
    %294 = arith.mulf %293, %280 : vector<8x64xf32>
    %cst_119 = arith.constant 0.000000e+00 : f32
    %295 = vector.broadcast %cst_119 : f32 to vector<8x64xf32>
    %296 = arith.subf %295, %274 : vector<8x64xf32>
    %297 = arith.mulf %296, %274 : vector<8x64xf32>
    %298 = math.exp %297 : vector<8x64xf32>
    %299 = arith.mulf %294, %298 : vector<8x64xf32>
    %cst_120 = arith.constant 1.000000e+00 : f32
    %300 = vector.broadcast %cst_120 : f32 to vector<8x64xf32>
    %301 = arith.subf %300, %299 : vector<8x64xf32>
    %302 = arith.mulf %273, %301 : vector<8x64xf32>
    %cst_121 = arith.constant 1.000000e+00 : f32
    %303 = vector.broadcast %cst_121 : f32 to vector<8x64xf32>
    %304 = arith.addf %303, %302 : vector<8x64xf32>
    %305 = arith.mulf %266, %304 : vector<8x64xf32>
    %cst_122 = arith.constant dense<0.000000e+00> : vector<8x16xf32>
    %306 = tpu.matmul %305, %166, %cst_122 {dimension_numbers = #tpu.dot_dimension_numbers<[1], [0], [0], [1], [0, 0, 1, 1], [], []>} : vector<8x64xf32>, vector<64x16xf32>, vector<8x16xf32> -> vector<8x16xf32>
    %307 = vector.broadcast %167 : vector<1x16xf32> to vector<8x16xf32>
    %308 = arith.addf %306, %307 : vector<8x16xf32>
    %309 = arith.addf %239, %308 : vector<8x16xf32>
    %c0_123 = arith.constant 0 : index
    %c0_124 = arith.constant 0 : index
    %c0_125 = arith.constant 0 : index
    %310 = vector.load %arg3[%c0_123, %c0_124, %c0_125] : memref<1x8x8xf32, #tpu.memory_space<vmem>>, vector<1x8x8xf32>
    %311 = vector.shape_cast %310 : vector<1x8x8xf32> to vector<8x8xf32>
    %c0_126 = arith.constant 0 : index
    %c0_127 = arith.constant 0 : index
    %312 = vector.load %arg26[%c0_126, %c0_127] : memref<1x8xf32, #tpu.memory_space<vmem>>, vector<1x8xf32>
    %c0_128 = arith.constant 0 : index
    %c0_129 = arith.constant 0 : index
    %313 = vector.load %arg27[%c0_128, %c0_129] : memref<1x8xf32, #tpu.memory_space<vmem>>, vector<1x8xf32>
    %c0_130 = arith.constant 0 : index
    %c0_131 = arith.constant 0 : index
    %314 = vector.load %arg28[%c0_130, %c0_131] : memref<8x24xf32, #tpu.memory_space<vmem>>, vector<8x24xf32>
    %c0_132 = arith.constant 0 : index
    %c0_133 = arith.constant 0 : index
    %315 = vector.load %arg29[%c0_132, %c0_133] : memref<8x8xf32, #tpu.memory_space<vmem>>, vector<8x8xf32>
    %c0_134 = arith.constant 0 : index
    %c0_135 = arith.constant 0 : index
    %316 = vector.load %arg30[%c0_134, %c0_135] : memref<1x8xf32, #tpu.memory_space<vmem>>, vector<1x8xf32>
    %c0_136 = arith.constant 0 : index
    %c0_137 = arith.constant 0 : index
    %317 = vector.load %arg31[%c0_136, %c0_137] : memref<1x8xf32, #tpu.memory_space<vmem>>, vector<1x8xf32>
    %c0_138 = arith.constant 0 : index
    %c0_139 = arith.constant 0 : index
    %318 = vector.load %arg32[%c0_138, %c0_139] : memref<1x8xf32, #tpu.memory_space<vmem>>, vector<1x8xf32>
    %c0_140 = arith.constant 0 : index
    %c0_141 = arith.constant 0 : index
    %319 = vector.load %arg33[%c0_140, %c0_141] : memref<8x32xf32, #tpu.memory_space<vmem>>, vector<8x32xf32>
    %c0_142 = arith.constant 0 : index
    %c0_143 = arith.constant 0 : index
    %320 = vector.load %arg34[%c0_142, %c0_143] : memref<1x32xf32, #tpu.memory_space<vmem>>, vector<1x32xf32>
    %c0_144 = arith.constant 0 : index
    %c0_145 = arith.constant 0 : index
    %321 = vector.load %arg35[%c0_144, %c0_145] : memref<32x8xf32, #tpu.memory_space<vmem>>, vector<32x8xf32>
    %c0_146 = arith.constant 0 : index
    %c0_147 = arith.constant 0 : index
    %322 = vector.load %arg36[%c0_146, %c0_147] : memref<1x8xf32, #tpu.memory_space<vmem>>, vector<1x8xf32>
    %cst_148 = arith.constant dense<0.000000e+00> : vector<8xf32>
    %323 = vector.multi_reduction <add>, %311, %cst_148 [1] : vector<8x8xf32> to vector<8xf32>
    %324 = vector.shape_cast %323 : vector<8xf32> to vector<8x1xf32>
    %cst_149 = arith.constant 8.000000e+00 : f32
    %325 = vector.broadcast %cst_149 : f32 to vector<8x1xf32>
    %326 = arith.divf %324, %325 : vector<8x1xf32>
    %327 = vector.broadcast %326 : vector<8x1xf32> to vector<8x8xf32>
    %328 = arith.subf %311, %327 : vector<8x8xf32>
    %329 = arith.mulf %328, %328 : vector<8x8xf32>
    %cst_150 = arith.constant dense<0.000000e+00> : vector<8xf32>
    %330 = vector.multi_reduction <add>, %329, %cst_150 [1] : vector<8x8xf32> to vector<8xf32>
    %331 = vector.shape_cast %330 : vector<8xf32> to vector<8x1xf32>
    %cst_151 = arith.constant 8.000000e+00 : f32
    %332 = vector.broadcast %cst_151 : f32 to vector<8x1xf32>
    %333 = arith.divf %331, %332 : vector<8x1xf32>
    %334 = vector.broadcast %326 : vector<8x1xf32> to vector<8x8xf32>
    %335 = arith.subf %311, %334 : vector<8x8xf32>
    %cst_152 = arith.constant 9.99999974E-6 : f32
    %336 = vector.broadcast %cst_152 : f32 to vector<8x1xf32>
    %337 = arith.addf %333, %336 : vector<8x1xf32>
    %338 = math.rsqrt %337 : vector<8x1xf32>
    %339 = vector.broadcast %338 : vector<8x1xf32> to vector<8x8xf32>
    %340 = arith.mulf %335, %339 : vector<8x8xf32>
    %341 = vector.broadcast %312 : vector<1x8xf32> to vector<8x8xf32>
    %342 = arith.mulf %340, %341 : vector<8x8xf32>
    %343 = vector.broadcast %313 : vector<1x8xf32> to vector<8x8xf32>
    %344 = arith.addf %342, %343 : vector<8x8xf32>
    %cst_153 = arith.constant dense<0.000000e+00> : vector<8x24xf32>
    %345 = tpu.matmul %344, %314, %cst_153 {dimension_numbers = #tpu.dot_dimension_numbers<[1], [0], [0], [1], [0, 0, 1, 1], [], []>} : vector<8x8xf32>, vector<8x24xf32>, vector<8x24xf32> -> vector<8x24xf32>
    %346 = vector.extract_strided_slice %345 {offsets = [0, 0], sizes = [8, 8], strides = [1, 1]} : vector<8x24xf32> to vector<8x8xf32>
    %347 = vector.extract_strided_slice %345 {offsets = [0, 8], sizes = [8, 8], strides = [1, 1]} : vector<8x24xf32> to vector<8x8xf32>
    %348 = vector.extract_strided_slice %345 {offsets = [0, 16], sizes = [8, 8], strides = [1, 1]} : vector<8x24xf32> to vector<8x8xf32>
    %349 = tpu.iota {dimensions = array<i32: 1>} : vector<4x8xi32>
    %350 = tpu.iota {dimensions = array<i32: 0>} : vector<4x8xi32>
    %c2_i32 = arith.constant 2 : i32
    %351 = vector.broadcast %c2_i32 : i32 to vector<4x8xi32>
    %352 = arith.muli %350, %351 : vector<4x8xi32>
    %353 = arith.cmpi sge, %349, %352 : vector<4x8xi32>
    %c1_i32_154 = arith.constant 1 : i32
    %354 = vector.broadcast %c1_i32_154 : i32 to vector<4x8xi32>
    %355 = arith.addi %350, %354 : vector<4x8xi32>
    %c2_i32_155 = arith.constant 2 : i32
    %356 = vector.broadcast %c2_i32_155 : i32 to vector<4x8xi32>
    %357 = arith.muli %355, %356 : vector<4x8xi32>
    %358 = arith.cmpi slt, %349, %357 : vector<4x8xi32>
    %359 = arith.andi %353, %358 : vector<4x8xi1>
    %360 = arith.extui %359 : vector<4x8xi1> to vector<4x8xi32>
    %361 = arith.sitofp %360 : vector<4x8xi32> to vector<4x8xf32>
    %362 = vector.shape_cast %346 : vector<8x8xf32> to vector<1x8x8xf32>
    %363 = vector.shape_cast %361 : vector<4x8xf32> to vector<4x1x8xf32>
    %364 = vector.broadcast %362 : vector<1x8x8xf32> to vector<4x8x8xf32>
    %365 = vector.broadcast %363 : vector<4x1x8xf32> to vector<4x8x8xf32>
    %366 = arith.mulf %364, %365 : vector<4x8x8xf32>
    %367 = vector.shape_cast %347 : vector<8x8xf32> to vector<1x8x8xf32>
    %368 = vector.shape_cast %367 : vector<1x8x8xf32> to vector<1x8x8xf32>
    %369 = vector.broadcast %368 : vector<1x8x8xf32> to vector<4x8x8xf32>
    %370 = vector.shape_cast %348 : vector<8x8xf32> to vector<1x8x8xf32>
    %371 = vector.shape_cast %370 : vector<1x8x8xf32> to vector<1x8x8xf32>
    %372 = vector.broadcast %371 : vector<1x8x8xf32> to vector<4x8x8xf32>
    "tpu.trace_start"() <{level = 10 : i32, message = "hqc,hkc->hqk"}> : () -> ()
    %cst_156 = arith.constant dense<0.000000e+00> : vector<4x8x8xf32>
    %373 = tpu.matmul %366, %369, %cst_156 {dimension_numbers = #tpu.dot_dimension_numbers<[2], [2], [1], [1], [0, 0, 0, 1, 1, 1], [0], [0]>} : vector<4x8x8xf32>, vector<4x8x8xf32>, vector<4x8x8xf32> -> vector<4x8x8xf32>
    "tpu.trace_stop"() : () -> ()
    %cst_157 = arith.constant 0.707106769 : f32
    %374 = vector.broadcast %cst_157 : f32 to vector<4x8x8xf32>
    %375 = arith.mulf %373, %374 : vector<4x8x8xf32>
    %cst_158 = arith.constant dense<0xFF800000> : vector<4x8xf32>
    %376 = vector.multi_reduction <maximumf>, %375, %cst_158 [2] : vector<4x8x8xf32> to vector<4x8xf32>
    %377 = vector.shape_cast %376 : vector<4x8xf32> to vector<4x8x1xf32>
    %378 = vector.broadcast %377 : vector<4x8x1xf32> to vector<4x8x8xf32>
    %379 = arith.subf %375, %378 : vector<4x8x8xf32>
    %380 = math.exp %379 : vector<4x8x8xf32>
    %cst_159 = arith.constant dense<0.000000e+00> : vector<4x8xf32>
    %381 = vector.multi_reduction <add>, %380, %cst_159 [2] : vector<4x8x8xf32> to vector<4x8xf32>
    %382 = vector.shape_cast %381 : vector<4x8xf32> to vector<4x8x1xf32>
    %383 = tpu.reciprocal %382 {approx = true} : vector<4x8x1xf32> -> vector<4x8x1xf32>
    %384 = vector.broadcast %383 : vector<4x8x1xf32> to vector<4x8x8xf32>
    %385 = arith.mulf %380, %384 : vector<4x8x8xf32>
    "tpu.trace_start"() <{level = 10 : i32, message = "hqk,hkc->hqc"}> : () -> ()
    %cst_160 = arith.constant dense<0.000000e+00> : vector<4x8x8xf32>
    %386 = tpu.matmul %385, %372, %cst_160 {dimension_numbers = #tpu.dot_dimension_numbers<[2], [1], [1], [2], [0, 0, 0, 1, 1, 2], [0], [0]>} : vector<4x8x8xf32>, vector<4x8x8xf32>, vector<4x8x8xf32> -> vector<4x8x8xf32>
    "tpu.trace_stop"() : () -> ()
    %387 = vector.shape_cast %361 : vector<4x8xf32> to vector<4x1x8xf32>
    %388 = vector.broadcast %387 : vector<4x1x8xf32> to vector<4x8x8xf32>
    %389 = arith.mulf %386, %388 : vector<4x8x8xf32>
    %cst_161 = arith.constant dense<0.000000e+00> : vector<8x8xf32>
    %390 = vector.multi_reduction <add>, %389, %cst_161 [0] : vector<4x8x8xf32> to vector<8x8xf32>
    %cst_162 = arith.constant dense<0.000000e+00> : vector<8x8xf32>
    %391 = tpu.matmul %390, %315, %cst_162 {dimension_numbers = #tpu.dot_dimension_numbers<[1], [0], [0], [1], [0, 0, 1, 1], [], []>} : vector<8x8xf32>, vector<8x8xf32>, vector<8x8xf32> -> vector<8x8xf32>
    %392 = vector.broadcast %316 : vector<1x8xf32> to vector<8x8xf32>
    %393 = arith.addf %391, %392 : vector<8x8xf32>
    %394 = arith.addf %311, %393 : vector<8x8xf32>
    %cst_163 = arith.constant dense<0.000000e+00> : vector<8xf32>
    %395 = vector.multi_reduction <add>, %394, %cst_163 [1] : vector<8x8xf32> to vector<8xf32>
    %396 = vector.shape_cast %395 : vector<8xf32> to vector<8x1xf32>
    %cst_164 = arith.constant 8.000000e+00 : f32
    %397 = vector.broadcast %cst_164 : f32 to vector<8x1xf32>
    %398 = arith.divf %396, %397 : vector<8x1xf32>
    %399 = vector.broadcast %398 : vector<8x1xf32> to vector<8x8xf32>
    %400 = arith.subf %394, %399 : vector<8x8xf32>
    %401 = arith.mulf %400, %400 : vector<8x8xf32>
    %cst_165 = arith.constant dense<0.000000e+00> : vector<8xf32>
    %402 = vector.multi_reduction <add>, %401, %cst_165 [1] : vector<8x8xf32> to vector<8xf32>
    %403 = vector.shape_cast %402 : vector<8xf32> to vector<8x1xf32>
    %cst_166 = arith.constant 8.000000e+00 : f32
    %404 = vector.broadcast %cst_166 : f32 to vector<8x1xf32>
    %405 = arith.divf %403, %404 : vector<8x1xf32>
    %406 = vector.broadcast %398 : vector<8x1xf32> to vector<8x8xf32>
    %407 = arith.subf %394, %406 : vector<8x8xf32>
    %cst_167 = arith.constant 9.99999974E-6 : f32
    %408 = vector.broadcast %cst_167 : f32 to vector<8x1xf32>
    %409 = arith.addf %405, %408 : vector<8x1xf32>
    %410 = math.rsqrt %409 : vector<8x1xf32>
    %411 = vector.broadcast %410 : vector<8x1xf32> to vector<8x8xf32>
    %412 = arith.mulf %407, %411 : vector<8x8xf32>
    %413 = vector.broadcast %317 : vector<1x8xf32> to vector<8x8xf32>
    %414 = arith.mulf %412, %413 : vector<8x8xf32>
    %415 = vector.broadcast %318 : vector<1x8xf32> to vector<8x8xf32>
    %416 = arith.addf %414, %415 : vector<8x8xf32>
    %cst_168 = arith.constant dense<0.000000e+00> : vector<8x32xf32>
    %417 = tpu.matmul %416, %319, %cst_168 {dimension_numbers = #tpu.dot_dimension_numbers<[1], [0], [0], [1], [0, 0, 1, 1], [], []>} : vector<8x8xf32>, vector<8x32xf32>, vector<8x32xf32> -> vector<8x32xf32>
    %418 = vector.broadcast %320 : vector<1x32xf32> to vector<8x32xf32>
    %419 = arith.addf %417, %418 : vector<8x32xf32>
    %cst_169 = arith.constant 5.000000e-01 : f32
    %420 = vector.broadcast %cst_169 : f32 to vector<8x32xf32>
    %421 = arith.mulf %420, %419 : vector<8x32xf32>
    %cst_170 = arith.constant 0.707106769 : f32
    %422 = vector.broadcast %cst_170 : f32 to vector<8x32xf32>
    %423 = arith.mulf %419, %422 : vector<8x32xf32>
    %cst_171 = arith.constant 0.000000e+00 : f32
    %424 = vector.broadcast %cst_171 : f32 to vector<8x32xf32>
    %425 = arith.cmpf oge, %423, %424 : vector<8x32xf32>
    %cst_172 = arith.constant 1.000000e+00 : f32
    %cst_173 = arith.constant -1.000000e+00 : f32
    %426 = vector.broadcast %cst_172 : f32 to vector<8x32xf32>
    %427 = vector.broadcast %cst_173 : f32 to vector<8x32xf32>
    %428 = arith.select %425, %426, %427 : vector<8x32xi1>, vector<8x32xf32>
    %429 = math.absf %423 : vector<8x32xf32>
    %cst_174 = arith.constant 0.327591091 : f32
    %430 = vector.broadcast %cst_174 : f32 to vector<8x32xf32>
    %431 = arith.mulf %430, %429 : vector<8x32xf32>
    %cst_175 = arith.constant 1.000000e+00 : f32
    %432 = vector.broadcast %cst_175 : f32 to vector<8x32xf32>
    %433 = arith.addf %432, %431 : vector<8x32xf32>
    %cst_176 = arith.constant 1.000000e+00 : f32
    %434 = vector.broadcast %cst_176 : f32 to vector<8x32xf32>
    %435 = arith.divf %434, %433 : vector<8x32xf32>
    %cst_177 = arith.constant 1.06140542 : f32
    %436 = vector.broadcast %cst_177 : f32 to vector<8x32xf32>
    %437 = arith.mulf %436, %435 : vector<8x32xf32>
    %cst_178 = arith.constant -1.45315206 : f32
    %438 = vector.broadcast %cst_178 : f32 to vector<8x32xf32>
    %439 = arith.addf %437, %438 : vector<8x32xf32>
    %440 = arith.mulf %439, %435 : vector<8x32xf32>
    %cst_179 = arith.constant 1.42141378 : f32
    %441 = vector.broadcast %cst_179 : f32 to vector<8x32xf32>
    %442 = arith.addf %440, %441 : vector<8x32xf32>
    %443 = arith.mulf %442, %435 : vector<8x32xf32>
    %cst_180 = arith.constant -0.284496725 : f32
    %444 = vector.broadcast %cst_180 : f32 to vector<8x32xf32>
    %445 = arith.addf %443, %444 : vector<8x32xf32>
    %446 = arith.mulf %445, %435 : vector<8x32xf32>
    %cst_181 = arith.constant 0.254829586 : f32
    %447 = vector.broadcast %cst_181 : f32 to vector<8x32xf32>
    %448 = arith.addf %446, %447 : vector<8x32xf32>
    %449 = arith.mulf %448, %435 : vector<8x32xf32>
    %cst_182 = arith.constant 0.000000e+00 : f32
    %450 = vector.broadcast %cst_182 : f32 to vector<8x32xf32>
    %451 = arith.subf %450, %429 : vector<8x32xf32>
    %452 = arith.mulf %451, %429 : vector<8x32xf32>
    %453 = math.exp %452 : vector<8x32xf32>
    %454 = arith.mulf %449, %453 : vector<8x32xf32>
    %cst_183 = arith.constant 1.000000e+00 : f32
    %455 = vector.broadcast %cst_183 : f32 to vector<8x32xf32>
    %456 = arith.subf %455, %454 : vector<8x32xf32>
    %457 = arith.mulf %428, %456 : vector<8x32xf32>
    %cst_184 = arith.constant 1.000000e+00 : f32
    %458 = vector.broadcast %cst_184 : f32 to vector<8x32xf32>
    %459 = arith.addf %458, %457 : vector<8x32xf32>
    %460 = arith.mulf %421, %459 : vector<8x32xf32>
    %cst_185 = arith.constant dense<0.000000e+00> : vector<8x8xf32>
    %461 = tpu.matmul %460, %321, %cst_185 {dimension_numbers = #tpu.dot_dimension_numbers<[1], [0], [0], [1], [0, 0, 1, 1], [], []>} : vector<8x32xf32>, vector<32x8xf32>, vector<8x8xf32> -> vector<8x8xf32>
    %462 = vector.broadcast %322 : vector<1x8xf32> to vector<8x8xf32>
    %463 = arith.addf %461, %462 : vector<8x8xf32>
    %464 = arith.addf %394, %463 : vector<8x8xf32>
    %c0_186 = arith.constant 0 : index
    %c0_187 = arith.constant 0 : index
    %465 = vector.load %arg37[%c0_186, %c0_187] : memref<16x8xf32, #tpu.memory_space<vmem>>, vector<16x8xf32>
    %c0_188 = arith.constant 0 : index
    %c0_189 = arith.constant 0 : index
    %466 = vector.load %arg38[%c0_188, %c0_189] : memref<8x1xf32, #tpu.memory_space<vmem>>, vector<8x1xf32>
    %cst_190 = arith.constant dense<0.000000e+00> : vector<16x8xf32>
    %467 = tpu.matmul %465, %464, %cst_190 {dimension_numbers = #tpu.dot_dimension_numbers<[1], [0], [0], [1], [0, 0, 1, 1], [], []>} : vector<16x8xf32>, vector<8x8xf32>, vector<16x8xf32> -> vector<16x8xf32>
    %468 = tpu.iota {dimensions = array<i32: 0>} : vector<8x16xi32>
    %469 = tpu.iota {dimensions = array<i32: 1>} : vector<8x16xi32>
    %c2_i32_191 = arith.constant 2 : i32
    %470 = vector.broadcast %c2_i32_191 : i32 to vector<8x16xi32>
    %471 = arith.muli %470, %468 : vector<8x16xi32>
    %472 = arith.cmpi eq, %469, %471 : vector<8x16xi32>
    %473 = arith.extui %472 : vector<8x16xi1> to vector<8x16xi32>
    %474 = arith.sitofp %473 : vector<8x16xi32> to vector<8x16xf32>
    %c2_i32_192 = arith.constant 2 : i32
    %475 = vector.broadcast %c2_i32_192 : i32 to vector<8x16xi32>
    %476 = arith.muli %475, %468 : vector<8x16xi32>
    %c1_i32_193 = arith.constant 1 : i32
    %477 = vector.broadcast %c1_i32_193 : i32 to vector<8x16xi32>
    %478 = arith.addi %476, %477 : vector<8x16xi32>
    %479 = arith.cmpi eq, %469, %478 : vector<8x16xi32>
    %480 = arith.extui %479 : vector<8x16xi1> to vector<8x16xi32>
    %481 = arith.sitofp %480 : vector<8x16xi32> to vector<8x16xf32>
    %482 = vector.extract_strided_slice %467 {offsets = [0, 0], sizes = [8, 8], strides = [1, 1]} : vector<16x8xf32> to vector<8x8xf32>
    %cst_194 = arith.constant dense<0.000000e+00> : vector<8x16xf32>
    %483 = tpu.matmul %482, %474, %cst_194 {dimension_numbers = #tpu.dot_dimension_numbers<[1], [0], [0], [1], [0, 0, 1, 1], [], []>} : vector<8x8xf32>, vector<8x16xf32>, vector<8x16xf32> -> vector<8x16xf32>
    %484 = vector.extract_strided_slice %467 {offsets = [8, 0], sizes = [8, 8], strides = [1, 1]} : vector<16x8xf32> to vector<8x8xf32>
    %cst_195 = arith.constant dense<0.000000e+00> : vector<8x16xf32>
    %485 = tpu.matmul %484, %481, %cst_195 {dimension_numbers = #tpu.dot_dimension_numbers<[1], [0], [0], [1], [0, 0, 1, 1], [], []>} : vector<8x8xf32>, vector<8x16xf32>, vector<8x16xf32> -> vector<8x16xf32>
    %486 = arith.addf %483, %485 : vector<8x16xf32>
    %487 = vector.broadcast %466 : vector<8x1xf32> to vector<8x16xf32>
    %488 = arith.addf %486, %487 : vector<8x16xf32>
    %489 = arith.addf %488, %309 : vector<8x16xf32>
    %c0_196 = arith.constant 0 : index
    %c0_197 = arith.constant 0 : index
    %490 = vector.load %arg39[%c0_196, %c0_197] : memref<16x8xf32, #tpu.memory_space<vmem>>, vector<16x8xf32>
    %c0_198 = arith.constant 0 : index
    %c0_199 = arith.constant 0 : index
    %491 = vector.load %arg40[%c0_198, %c0_199] : memref<8x1xf32, #tpu.memory_space<vmem>>, vector<8x1xf32>
    %cst_200 = arith.constant dense<0.000000e+00> : vector<16x16xf32>
    %492 = tpu.matmul %490, %489, %cst_200 {dimension_numbers = #tpu.dot_dimension_numbers<[1], [0], [0], [1], [0, 0, 1, 1], [], []>} : vector<16x8xf32>, vector<8x16xf32>, vector<16x16xf32> -> vector<16x16xf32>
    %493 = tpu.iota {dimensions = array<i32: 0>} : vector<16x32xi32>
    %494 = tpu.iota {dimensions = array<i32: 1>} : vector<16x32xi32>
    %c2_i32_201 = arith.constant 2 : i32
    %495 = vector.broadcast %c2_i32_201 : i32 to vector<16x32xi32>
    %496 = arith.muli %495, %493 : vector<16x32xi32>
    %497 = arith.cmpi eq, %494, %496 : vector<16x32xi32>
    %498 = arith.extui %497 : vector<16x32xi1> to vector<16x32xi32>
    %499 = arith.sitofp %498 : vector<16x32xi32> to vector<16x32xf32>
    %c2_i32_202 = arith.constant 2 : i32
    %500 = vector.broadcast %c2_i32_202 : i32 to vector<16x32xi32>
    %501 = arith.muli %500, %493 : vector<16x32xi32>
    %c1_i32_203 = arith.constant 1 : i32
    %502 = vector.broadcast %c1_i32_203 : i32 to vector<16x32xi32>
    %503 = arith.addi %501, %502 : vector<16x32xi32>
    %504 = arith.cmpi eq, %494, %503 : vector<16x32xi32>
    %505 = arith.extui %504 : vector<16x32xi1> to vector<16x32xi32>
    %506 = arith.sitofp %505 : vector<16x32xi32> to vector<16x32xf32>
    %507 = vector.extract_strided_slice %492 {offsets = [0, 0], sizes = [8, 16], strides = [1, 1]} : vector<16x16xf32> to vector<8x16xf32>
    %cst_204 = arith.constant dense<0.000000e+00> : vector<8x32xf32>
    %508 = tpu.matmul %507, %499, %cst_204 {dimension_numbers = #tpu.dot_dimension_numbers<[1], [0], [0], [1], [0, 0, 1, 1], [], []>} : vector<8x16xf32>, vector<16x32xf32>, vector<8x32xf32> -> vector<8x32xf32>
    %509 = vector.extract_strided_slice %492 {offsets = [8, 0], sizes = [8, 16], strides = [1, 1]} : vector<16x16xf32> to vector<8x16xf32>
    %cst_205 = arith.constant dense<0.000000e+00> : vector<8x32xf32>
    %510 = tpu.matmul %509, %506, %cst_205 {dimension_numbers = #tpu.dot_dimension_numbers<[1], [0], [0], [1], [0, 0, 1, 1], [], []>} : vector<8x16xf32>, vector<16x32xf32>, vector<8x32xf32> -> vector<8x32xf32>
    %511 = arith.addf %508, %510 : vector<8x32xf32>
    %512 = vector.broadcast %491 : vector<8x1xf32> to vector<8x32xf32>
    %513 = arith.addf %511, %512 : vector<8x32xf32>
    %514 = arith.addf %513, %154 : vector<8x32xf32>
    %c0_206 = arith.constant 0 : index
    %c0_207 = arith.constant 0 : index
    %c0_208 = arith.constant 0 : index
    %515 = vector.load %arg41[%c0_206, %c0_207, %c0_208] : memref<1x8x32xf32, #tpu.memory_space<vmem>>, vector<1x8x32xf32>
    %516 = vector.shape_cast %515 : vector<1x8x32xf32> to vector<8x32xf32>
    %517 = vector.shape_cast %514 : vector<8x32xf32> to vector<1x8x32xf32>
    tpu.vector_store %arg41[%c0_206, %c0_207, %c0_208], %517 {strides = array<i32>} : memref<1x8x32xf32, #tpu.memory_space<vmem>>, vector<1x8x32xf32>,
    %c0_209 = arith.constant 0 : index
    %c0_210 = arith.constant 0 : index
    %c0_211 = arith.constant 0 : index
    %518 = vector.load %arg42[%c0_209, %c0_210, %c0_211] : memref<1x8x16xf32, #tpu.memory_space<vmem>>, vector<1x8x16xf32>
    %519 = vector.shape_cast %518 : vector<1x8x16xf32> to vector<8x16xf32>
    %520 = vector.shape_cast %489 : vector<8x16xf32> to vector<1x8x16xf32>
    tpu.vector_store %arg42[%c0_209, %c0_210, %c0_211], %520 {strides = array<i32>} : memref<1x8x16xf32, #tpu.memory_space<vmem>>, vector<1x8x16xf32>,
    %c0_212 = arith.constant 0 : index
    %c0_213 = arith.constant 0 : index
    %c0_214 = arith.constant 0 : index
    %521 = vector.load %arg43[%c0_212, %c0_213, %c0_214] : memref<1x8x8xf32, #tpu.memory_space<vmem>>, vector<1x8x8xf32>
    %522 = vector.shape_cast %521 : vector<1x8x8xf32> to vector<8x8xf32>
    %523 = vector.shape_cast %464 : vector<8x8xf32> to vector<1x8x8xf32>
    tpu.vector_store %arg43[%c0_212, %c0_213, %c0_214], %523 {strides = array<i32>} : memref<1x8x8xf32, #tpu.memory_space<vmem>>, vector<1x8x8xf32>,
    return
  }
  func.func @transform_0(%arg0: i32) -> (i32, i32, i32) {
    %c0_i32 = arith.constant 0 : i32
    %c0_i32_0 = arith.constant 0 : i32
    %c0_i32_1 = arith.constant 0 : i32
    return %arg0, %c0_i32, %c0_i32_0 : i32, i32, i32
  }
  func.func @transform_1(%arg0: i32) -> (i32, i32, i32) {
    %c0_i32 = arith.constant 0 : i32
    %c0_i32_0 = arith.constant 0 : i32
    %c0_i32_1 = arith.constant 0 : i32
    return %arg0, %c0_i32, %c0_i32_0 : i32, i32, i32
  }
  func.func @transform_2(%arg0: i32) -> (i32, i32, i32) {
    %c0_i32 = arith.constant 0 : i32
    %c0_i32_0 = arith.constant 0 : i32
    %c0_i32_1 = arith.constant 0 : i32
    return %arg0, %c0_i32, %c0_i32_0 : i32, i32, i32
  }
  func.func @transform_3(%arg0: i32) -> (i32, i32) {
    %c0_i32 = arith.constant 0 : i32
    %c0_i32_0 = arith.constant 0 : i32
    %c0_i32_1 = arith.constant 0 : i32
    return %c0_i32, %c0_i32_0 : i32, i32
  }
  func.func @transform_4(%arg0: i32) -> (i32, i32) {
    %c0_i32 = arith.constant 0 : i32
    %c0_i32_0 = arith.constant 0 : i32
    %c0_i32_1 = arith.constant 0 : i32
    return %c0_i32, %c0_i32_0 : i32, i32
  }
  func.func @transform_5(%arg0: i32) -> (i32, i32) {
    %c0_i32 = arith.constant 0 : i32
    %c0_i32_0 = arith.constant 0 : i32
    %c0_i32_1 = arith.constant 0 : i32
    return %c0_i32, %c0_i32_0 : i32, i32
  }
  func.func @transform_6(%arg0: i32) -> (i32, i32) {
    %c0_i32 = arith.constant 0 : i32
    %c0_i32_0 = arith.constant 0 : i32
    %c0_i32_1 = arith.constant 0 : i32
    return %c0_i32, %c0_i32_0 : i32, i32
  }
  func.func @transform_7(%arg0: i32) -> (i32, i32) {
    %c0_i32 = arith.constant 0 : i32
    %c0_i32_0 = arith.constant 0 : i32
    %c0_i32_1 = arith.constant 0 : i32
    return %c0_i32, %c0_i32_0 : i32, i32
  }
  func.func @transform_8(%arg0: i32) -> (i32, i32) {
    %c0_i32 = arith.constant 0 : i32
    %c0_i32_0 = arith.constant 0 : i32
    %c0_i32_1 = arith.constant 0 : i32
    return %c0_i32, %c0_i32_0 : i32, i32
  }
  func.func @transform_9(%arg0: i32) -> (i32, i32) {
    %c0_i32 = arith.constant 0 : i32
    %c0_i32_0 = arith.constant 0 : i32
    %c0_i32_1 = arith.constant 0 : i32
    return %c0_i32, %c0_i32_0 : i32, i32
  }
  func.func @transform_10(%arg0: i32) -> (i32, i32) {
    %c0_i32 = arith.constant 0 : i32
    %c0_i32_0 = arith.constant 0 : i32
    %c0_i32_1 = arith.constant 0 : i32
    return %c0_i32, %c0_i32_0 : i32, i32
  }
  func.func @transform_11(%arg0: i32) -> (i32, i32) {
    %c0_i32 = arith.constant 0 : i32
    %c0_i32_0 = arith.constant 0 : i32
    %c0_i32_1 = arith.constant 0 : i32
    return %c0_i32, %c0_i32_0 : i32, i32
  }
  func.func @transform_12(%arg0: i32) -> (i32, i32) {
    %c0_i32 = arith.constant 0 : i32
    %c0_i32_0 = arith.constant 0 : i32
    %c0_i32_1 = arith.constant 0 : i32
    return %c0_i32, %c0_i32_0 : i32, i32
  }
  func.func @transform_13(%arg0: i32) -> (i32, i32) {
    %c0_i32 = arith.constant 0 : i32
    %c0_i32_0 = arith.constant 0 : i32
    %c0_i32_1 = arith.constant 0 : i32
    return %c0_i32, %c0_i32_0 : i32, i32
  }
  func.func @transform_14(%arg0: i32) -> (i32, i32) {
    %c0_i32 = arith.constant 0 : i32
    %c0_i32_0 = arith.constant 0 : i32
    %c0_i32_1 = arith.constant 0 : i32
    return %c0_i32, %c0_i32_0 : i32, i32
  }
  func.func @transform_15(%arg0: i32) -> (i32, i32) {
    %c0_i32 = arith.constant 0 : i32
    %c0_i32_0 = arith.constant 0 : i32
    %c0_i32_1 = arith.constant 0 : i32
    return %c0_i32, %c0_i32_0 : i32, i32
  }
  func.func @transform_16(%arg0: i32) -> (i32, i32) {
    %c0_i32 = arith.constant 0 : i32
    %c0_i32_0 = arith.constant 0 : i32
    %c0_i32_1 = arith.constant 0 : i32
    return %c0_i32, %c0_i32_0 : i32, i32
  }
  func.func @transform_17(%arg0: i32) -> (i32, i32) {
    %c0_i32 = arith.constant 0 : i32
    %c0_i32_0 = arith.constant 0 : i32
    %c0_i32_1 = arith.constant 0 : i32
    return %c0_i32, %c0_i32_0 : i32, i32
  }
  func.func @transform_18(%arg0: i32) -> (i32, i32) {
    %c0_i32 = arith.constant 0 : i32
    %c0_i32_0 = arith.constant 0 : i32
    %c0_i32_1 = arith.constant 0 : i32
    return %c0_i32, %c0_i32_0 : i32, i32
  }
  func.func @transform_19(%arg0: i32) -> (i32, i32) {
    %c0_i32 = arith.constant 0 : i32
    %c0_i32_0 = arith.constant 0 : i32
    %c0_i32_1 = arith.constant 0 : i32
    return %c0_i32, %c0_i32_0 : i32, i32
  }
  func.func @transform_20(%arg0: i32) -> (i32, i32) {
    %c0_i32 = arith.constant 0 : i32
    %c0_i32_0 = arith.constant 0 : i32
    %c0_i32_1 = arith.constant 0 : i32
    return %c0_i32, %c0_i32_0 : i32, i32
  }
  func.func @transform_21(%arg0: i32) -> (i32, i32) {
    %c0_i32 = arith.constant 0 : i32
    %c0_i32_0 = arith.constant 0 : i32
    %c0_i32_1 = arith.constant 0 : i32
    return %c0_i32, %c0_i32_0 : i32, i32
  }
  func.func @transform_22(%arg0: i32) -> (i32, i32) {
    %c0_i32 = arith.constant 0 : i32
    %c0_i32_0 = arith.constant 0 : i32
    %c0_i32_1 = arith.constant 0 : i32
    return %c0_i32, %c0_i32_0 : i32, i32
  }
  func.func @transform_23(%arg0: i32) -> (i32, i32) {
    %c0_i32 = arith.constant 0 : i32
    %c0_i32_0 = arith.constant 0 : i32
    %c0_i32_1 = arith.constant 0 : i32
    return %c0_i32, %c0_i32_0 : i32, i32
  }
  func.func @transform_24(%arg0: i32) -> (i32, i32) {
    %c0_i32 = arith.constant 0 : i32
    %c0_i32_0 = arith.constant 0 : i32
    %c0_i32_1 = arith.constant 0 : i32
    return %c0_i32, %c0_i32_0 : i32, i32
  }
  func.func @transform_25(%arg0: i32) -> (i32, i32) {
    %c0_i32 = arith.constant 0 : i32
    %c0_i32_0 = arith.constant 0 : i32
    %c0_i32_1 = arith.constant 0 : i32
    return %c0_i32, %c0_i32_0 : i32, i32
  }
  func.func @transform_26(%arg0: i32) -> (i32, i32) {
    %c0_i32 = arith.constant 0 : i32
    %c0_i32_0 = arith.constant 0 : i32
    %c0_i32_1 = arith.constant 0 : i32
    return %c0_i32, %c0_i32_0 : i32, i32
  }
  func.func @transform_27(%arg0: i32) -> (i32, i32) {
    %c0_i32 = arith.constant 0 : i32
    %c0_i32_0 = arith.constant 0 : i32
    %c0_i32_1 = arith.constant 0 : i32
    return %c0_i32, %c0_i32_0 : i32, i32
  }
  func.func @transform_28(%arg0: i32) -> (i32, i32) {
    %c0_i32 = arith.constant 0 : i32
    %c0_i32_0 = arith.constant 0 : i32
    %c0_i32_1 = arith.constant 0 : i32
    return %c0_i32, %c0_i32_0 : i32, i32
  }
  func.func @transform_29(%arg0: i32) -> (i32, i32) {
    %c0_i32 = arith.constant 0 : i32
    %c0_i32_0 = arith.constant 0 : i32
    %c0_i32_1 = arith.constant 0 : i32
    return %c0_i32, %c0_i32_0 : i32, i32
  }
  func.func @transform_30(%arg0: i32) -> (i32, i32) {
    %c0_i32 = arith.constant 0 : i32
    %c0_i32_0 = arith.constant 0 : i32
    %c0_i32_1 = arith.constant 0 : i32
    return %c0_i32, %c0_i32_0 : i32, i32
  }
  func.func @transform_31(%arg0: i32) -> (i32, i32) {
    %c0_i32 = arith.constant 0 : i32
    %c0_i32_0 = arith.constant 0 : i32
    %c0_i32_1 = arith.constant 0 : i32
    return %c0_i32, %c0_i32_0 : i32, i32
  }
  func.func @transform_32(%arg0: i32) -> (i32, i32) {
    %c0_i32 = arith.constant 0 : i32
    %c0_i32_0 = arith.constant 0 : i32
    %c0_i32_1 = arith.constant 0 : i32
    return %c0_i32, %c0_i32_0 : i32, i32
  }
  func.func @transform_33(%arg0: i32) -> (i32, i32) {
    %c0_i32 = arith.constant 0 : i32
    %c0_i32_0 = arith.constant 0 : i32
    %c0_i32_1 = arith.constant 0 : i32
    return %c0_i32, %c0_i32_0 : i32, i32
  }
  func.func @transform_34(%arg0: i32) -> (i32, i32) {
    %c0_i32 = arith.constant 0 : i32
    %c0_i32_0 = arith.constant 0 : i32
    %c0_i32_1 = arith.constant 0 : i32
    return %c0_i32, %c0_i32_0 : i32, i32
  }
  func.func @transform_35(%arg0: i32) -> (i32, i32) {
    %c0_i32 = arith.constant 0 : i32
    %c0_i32_0 = arith.constant 0 : i32
    %c0_i32_1 = arith.constant 0 : i32
    return %c0_i32, %c0_i32_0 : i32, i32
  }
  func.func @transform_36(%arg0: i32) -> (i32, i32) {
    %c0_i32 = arith.constant 0 : i32
    %c0_i32_0 = arith.constant 0 : i32
    %c0_i32_1 = arith.constant 0 : i32
    return %c0_i32, %c0_i32_0 : i32, i32
  }
  func.func @transform_37(%arg0: i32) -> (i32, i32) {
    %c0_i32 = arith.constant 0 : i32
    %c0_i32_0 = arith.constant 0 : i32
    %c0_i32_1 = arith.constant 0 : i32
    return %c0_i32, %c0_i32_0 : i32, i32
  }
  func.func @transform_38(%arg0: i32) -> (i32, i32) {
    %c0_i32 = arith.constant 0 : i32
    %c0_i32_0 = arith.constant 0 : i32
    %c0_i32_1 = arith.constant 0 : i32
    return %c0_i32, %c0_i32_0 : i32, i32
  }
  func.func @transform_39(%arg0: i32) -> (i32, i32) {
    %c0_i32 = arith.constant 0 : i32
    %c0_i32_0 = arith.constant 0 : i32
    %c0_i32_1 = arith.constant 0 : i32
    return %c0_i32, %c0_i32_0 : i32, i32
  }
  func.func @transform_40(%arg0: i32) -> (i32, i32, i32) {
    %c0_i32 = arith.constant 0 : i32
    %c0_i32_0 = arith.constant 0 : i32
    %c0_i32_1 = arith.constant 0 : i32
    return %arg0, %c0_i32, %c0_i32_0 : i32, i32, i32
  }
  func.func @transform_41(%arg0: i32) -> (i32, i32, i32) {
    %c0_i32 = arith.constant 0 : i32
    %c0_i32_0 = arith.constant 0 : i32
    %c0_i32_1 = arith.constant 0 : i32
    return %arg0, %c0_i32, %c0_i32_0 : i32, i32, i32
  }
  func.func @transform_42(%arg0: i32) -> (i32, i32, i32) {
    %c0_i32 = arith.constant 0 : i32
    %c0_i32_0 = arith.constant 0 : i32
    %c0_i32_1 = arith.constant 0 : i32
    return %arg0, %c0_i32, %c0_i32_0 : i32, i32, i32
  }
}

</mosaic_0001>

<llo_original>
// kernel: tpu_custom_call.1
$region0: #{tpu_custom_call.1}
  #allocation0 [shape = 'u32[]', space=smem, size = 0x4, offset = 0x4, fixed_abs, tag = 'smem constant byte address 0x4 - core index']
  #allocation1 [shape = 'u32[144,128]{1,0:T(1,128)}', space=vmem, size = 0x12000, scoped, tag = 'internal scratch']
  %s0 = inlined_call_operand.smem [shape: u32[43], index: -1, kind: input, shape index: {}]
  %s1 = sld [smem:[%s0]]
  %s2 = scalar_lea.smem %s0, 1
  %s3 = sld [smem:[%s2]]
  %s4 = scalar_lea.smem %s0, 2
  %s5 = sld [smem:[%s4]]
  %s6 = scalar_lea.smem %s0, 3
  %s7 = sld [smem:[%s6]]
  %s8 = scalar_lea.smem %s0, 4
  %s9 = sld [smem:[%s8]]
  %s10 = scalar_lea.smem %s0, 5
  %s11 = sld [smem:[%s10]]
  %s12 = scalar_lea.smem %s0, 6
  %s13 = sld [smem:[%s12]]
  %s14 = scalar_lea.smem %s0, 7
  %s15 = sld [smem:[%s14]]
  %s16 = scalar_lea.smem %s0, 8
  %s17 = sld [smem:[%s16]]
  %s18 = scalar_lea.smem %s0, 9
  %s19 = sld [smem:[%s18]]
  %s20 = scalar_lea.smem %s0, 10
  %s21 = sld [smem:[%s20]]
  %s22 = scalar_lea.smem %s0, 11
  %s23 = sld [smem:[%s22]]
  %s24 = scalar_lea.smem %s0, 12
  %s25 = sld [smem:[%s24]]
  %s26 = scalar_lea.smem %s0, 13
  %s27 = sld [smem:[%s26]]
  %s28 = scalar_lea.smem %s0, 14
  %s29 = sld [smem:[%s28]]
  %s30 = scalar_lea.smem %s0, 15
  %s31 = sld [smem:[%s30]]
  %s32 = scalar_lea.smem %s0, 16
  %s33 = sld [smem:[%s32]]
  %s34 = scalar_lea.smem %s0, 17
  %s35 = sld [smem:[%s34]]
  %s36 = scalar_lea.smem %s0, 18
  %s37 = sld [smem:[%s36]]
  %s38 = scalar_lea.smem %s0, 19
  %s39 = sld [smem:[%s38]]
  %s40 = scalar_lea.smem %s0, 20
  %s41 = sld [smem:[%s40]]
  %s42 = scalar_lea.smem %s0, 21
  %s43 = sld [smem:[%s42]]
  %s44 = scalar_lea.smem %s0, 22
  %s45 = sld [smem:[%s44]]
  %s46 = scalar_lea.smem %s0, 23
  %s47 = sld [smem:[%s46]]
  %s48 = scalar_lea.smem %s0, 24
  %s49 = sld [smem:[%s48]]
  %s50 = scalar_lea.smem %s0, 25
  %s51 = sld [smem:[%s50]]
  %s52 = scalar_lea.smem %s0, 26
  %s53 = sld [smem:[%s52]]
  %s54 = scalar_lea.smem %s0, 27
  %s55 = sld [smem:[%s54]]
  %s56 = scalar_lea.smem %s0, 28
  %s57 = sld [smem:[%s56]]
  %s58 = scalar_lea.smem %s0, 29
  %s59 = sld [smem:[%s58]]
  %s60 = scalar_lea.smem %s0, 30
  %s61 = sld [smem:[%s60]]
  %s62 = scalar_lea.smem %s0, 31
  %s63 = sld [smem:[%s62]]
  %s64 = scalar_lea.smem %s0, 32
  %s65 = sld [smem:[%s64]]
  %s66 = scalar_lea.smem %s0, 33
  %s67 = sld [smem:[%s66]]
  %s68 = scalar_lea.smem %s0, 34
  %s69 = sld [smem:[%s68]]
  %s70 = scalar_lea.smem %s0, 35
  %s71 = sld [smem:[%s70]]
  %s72 = scalar_lea.smem %s0, 36
  %s73 = sld [smem:[%s72]]
  %s74 = scalar_lea.smem %s0, 37
  %s75 = sld [smem:[%s74]]
  %s76 = scalar_lea.smem %s0, 38
  %s77 = sld [smem:[%s76]]
  %s78 = scalar_lea.smem %s0, 39
  %s79 = sld [smem:[%s78]]
  %s80 = scalar_lea.smem %s0, 40
  %s81 = sld [smem:[%s80]]
  %s82 = scalar_lea.smem %s0, 41
  %s83 = sld [smem:[%s82]]
  %s84 = scalar_lea.smem %s0, 42
  %s85 = sld [smem:[%s84]]
  %86 = xla_tuple %s81, %s83, %s85
  %s87 = sld [smem:[#allocation0]]
  $region209: #{tpu_custom_call.1} parent=0
    _
  %s89 = ssub.s32 1, %s87
  %s90 = scalar_select 0, %s89, %s87
  $region1: #{tpu_custom_call.1} parent=0
    #allocation2 [shape = 'u8[8192]{0}', space=vmem, size = 0x2000, scoped, tag = 'output window, operand 0']
    #allocation3 [shape = 's32[2]{0}', space=sflag, size = 0x8, scoped, tag = 'scoped memory for tpu_custom_call.1']
    #allocation4 [shape = 'u8[8192]{0}', space=vmem, size = 0x2000, scoped, tag = 'output window, operand 1']
    #allocation5 [shape = 's32[2]{0}', space=sflag, size = 0x8, scoped, tag = 'scoped memory for tpu_custom_call.1']
    #allocation6 [shape = 'u8[8192]{0}', space=vmem, size = 0x2000, scoped, tag = 'output window, operand 2']
    %91 = vsyncpa [#allocation3], 0
    %s92 = scalar_lea.sflag [#allocation3], 1
    %93 = vsyncpa %s92, 0
    %94 = vsyncpa [#allocation5], 0
    %s95 = scalar_lea.sflag [#allocation5], 1
    %96 = vsyncpa %s95, 0
    loop: start=0, step=1, limit=4
    $region2: #{tpu_custom_call.1} parent=1 // loop_pre_header
      _
    $region3: #{tpu_custom_call.1} parent=1 // loop_header
      %s98 = sphi 0, %s102
      %p99 = scmp.ge.s32.totalorder %s98, 4
      %s108 = sphi 0, %s110
      %s111 = sphi 0, %s108
      %s112 = sphi 0, %s111
      %s128 = sphi 0, %s112
      %s134 = sphi 0, %s136
      %s137 = sphi 0, %s134
      %s138 = sphi 0, %s137
      %s154 = sphi 0, %s138
      %s160 = sphi 0, %s162
      %s163 = sphi 0, %s160
      %s164 = sphi 0, %s163
      %s180 = sphi 0, %s164
      %s184 = sphi 0, %s184
      %s186 = sphi 0, %s184
      %s187 = sphi 0, %s186
      %s201 = sphi 0, %s187
      %s205 = sphi 0, %s205
      %s207 = sphi 0, %s205
      %s208 = sphi 0, %s207
      %s222 = sphi 0, %s208
      %s226 = sphi 0, %s226
      %s228 = sphi 0, %s226
      %s229 = sphi 0, %s228
      %s243 = sphi 0, %s229
      %s247 = sphi 0, %s247
      %s249 = sphi 0, %s247
      %s250 = sphi 0, %s249
      %s264 = sphi 0, %s250
      %s268 = sphi 0, %s268
      %s270 = sphi 0, %s268
      %s271 = sphi 0, %s270
      %s285 = sphi 0, %s271
      %s289 = sphi 0, %s289
      %s291 = sphi 0, %s289
      %s292 = sphi 0, %s291
      %s306 = sphi 0, %s292
      %s310 = sphi 0, %s310
      %s312 = sphi 0, %s310
      %s313 = sphi 0, %s312
      %s327 = sphi 0, %s313
      %s331 = sphi 0, %s331
      %s333 = sphi 0, %s331
      %s334 = sphi 0, %s333
      %s348 = sphi 0, %s334
      %s352 = sphi 0, %s352
      %s354 = sphi 0, %s352
      %s355 = sphi 0, %s354
      %s369 = sphi 0, %s355
      %s373 = sphi 0, %s373
      %s375 = sphi 0, %s373
      %s376 = sphi 0, %s375
      %s390 = sphi 0, %s376
      %s394 = sphi 0, %s394
      %s396 = sphi 0, %s394
      %s397 = sphi 0, %s396
      %s411 = sphi 0, %s397
      %s415 = sphi 0, %s415
      %s417 = sphi 0, %s415
      %s418 = sphi 0, %s417
      %s432 = sphi 0, %s418
      %s436 = sphi 0, %s436
      %s438 = sphi 0, %s436
      %s439 = sphi 0, %s438
      %s453 = sphi 0, %s439
      %s457 = sphi 0, %s457
      %s459 = sphi 0, %s457
      %s460 = sphi 0, %s459
      %s474 = sphi 0, %s460
      %s478 = sphi 0, %s478
      %s480 = sphi 0, %s478
      %s481 = sphi 0, %s480
      %s495 = sphi 0, %s481
      %s499 = sphi 0, %s499
      %s501 = sphi 0, %s499
      %s502 = sphi 0, %s501
      %s516 = sphi 0, %s502
      %s520 = sphi 0, %s520
      %s522 = sphi 0, %s520
      %s523 = sphi 0, %s522
      %s537 = sphi 0, %s523
      %s541 = sphi 0, %s541
      %s543 = sphi 0, %s541
      %s544 = sphi 0, %s543
      %s558 = sphi 0, %s544
      %s562 = sphi 0, %s562
      %s564 = sphi 0, %s562
      %s565 = sphi 0, %s564
      %s579 = sphi 0, %s565
      %s583 = sphi 0, %s583
      %s585 = sphi 0, %s583
      %s586 = sphi 0, %s585
      %s600 = sphi 0, %s586
      %s604 = sphi 0, %s604
      %s606 = sphi 0, %s604
      %s607 = sphi 0, %s606
      %s621 = sphi 0, %s607
      %s625 = sphi 0, %s625
      %s627 = sphi 0, %s625
      %s628 = sphi 0, %s627
      %s642 = sphi 0, %s628
      %s646 = sphi 0, %s646
      %s648 = sphi 0, %s646
      %s649 = sphi 0, %s648
      %s663 = sphi 0, %s649
      %s667 = sphi 0, %s667
      %s669 = sphi 0, %s667
      %s670 = sphi 0, %s669
      %s684 = sphi 0, %s670
      %s688 = sphi 0, %s688
      %s690 = sphi 0, %s688
      %s691 = sphi 0, %s690
      %s705 = sphi 0, %s691
      %s709 = sphi 0, %s709
      %s711 = sphi 0, %s709
      %s712 = sphi 0, %s711
      %s726 = sphi 0, %s712
      %s730 = sphi 0, %s730
      %s732 = sphi 0, %s730
      %s733 = sphi 0, %s732
      %s747 = sphi 0, %s733
      %s751 = sphi 0, %s751
      %s753 = sphi 0, %s751
      %s754 = sphi 0, %s753
      %s768 = sphi 0, %s754
      %s772 = sphi 0, %s772
      %s774 = sphi 0, %s772
      %s775 = sphi 0, %s774
      %s789 = sphi 0, %s775
      %s793 = sphi 0, %s793
      %s795 = sphi 0, %s793
      %s796 = sphi 0, %s795
      %s810 = sphi 0, %s796
      %s814 = sphi 0, %s814
      %s816 = sphi 0, %s814
      %s817 = sphi 0, %s816
      %s831 = sphi 0, %s817
      %s835 = sphi 0, %s835
      %s837 = sphi 0, %s835
      %s838 = sphi 0, %s837
      %s852 = sphi 0, %s838
      %s856 = sphi 0, %s856
      %s858 = sphi 0, %s856
      %s859 = sphi 0, %s858
      %s873 = sphi 0, %s859
      %s877 = sphi 0, %s877
      %s879 = sphi 0, %s877
      %s880 = sphi 0, %s879
      %s894 = sphi 0, %s880
      %s898 = sphi 0, %s898
      %s900 = sphi 0, %s898
      %s901 = sphi 0, %s900
      %s915 = sphi 0, %s901
      %s919 = sphi 0, %s919
      %s921 = sphi 0, %s919
      %s922 = sphi 0, %s921
      %s936 = sphi 0, %s922
      %s940 = sphi 0, %s940
      %s942 = sphi 0, %s940
      %s943 = sphi 0, %s942
      %s957 = sphi 0, %s943
      %s963 = sphi 0, %s965
      %s966 = sphi 0, %s963
      %s967 = sphi 0, %s966
      %s983 = sphi 0, %s967
      %s989 = sphi 0, %s991
      %s992 = sphi 0, %s989
      %s993 = sphi 0, %s992
      %s1009 = sphi 0, %s993
      %s1015 = sphi 0, %s1017
      %s1018 = sphi 0, %s1015
      %s1019 = sphi 0, %s1018
      %s1035 = sphi 0, %s1019
    $region4: #{tpu_custom_call.1} parent=1 // loop_header_branch
      %101 = sbr.rel (%p99) target = $region8
    $region5: #{tpu_custom_call.1} parent=1 // loop_body
      %s103 = ssub.s32 %s98, 1
      %s104 = ssub.s32 %s98, 2
      %s105 = sadd.s32 %s98, 1
      %s106 = ssub.s32 %s98, %s105
      %p107 = scmp.eq.s32.totalorder %s106, 0
      %s109 = sadd.s32 %s108, 1
      %s110 = scalar_select %p107, %s108, %s109
      %p113 = pneg %p107
      %p114 = scmp.eq.s32.totalorder %s98, 1
      %p115 = por %p113, %p114
      %p116 = scmp.ne.s32.totalorder %s108, %s111
      %p117 = scmp.eq.s32.totalorder %s98, 0
      %p118 = por %p116, %p117
      %p119 = scmp.ne.s32.totalorder %s108, %s111
      %p120 = scmp.eq.s32.totalorder %s103, 1
      %p121 = por %p119, %p120
      %p122 = scmp.ne.s32.totalorder %s111, %s112
      %p123 = scmp.eq.s32.totalorder %s103, 0
      %p124 = por %p122, %p123
      %p125 = scmp.ne.s32.totalorder %s111, %s112
      %p126 = scmp.eq.s32.totalorder %s104, 1
      %p127 = por %p125, %p126
      %p129 = scmp.ne.s32.totalorder %s112, %s128
      %p130 = scmp.eq.s32.totalorder %s104, 0
      %p131 = por %p129, %p130
      %s132 = ssub.s32 %s98, %s105
      %p133 = scmp.eq.s32.totalorder %s132, 0
      %s135 = sadd.s32 %s134, 1
      %s136 = scalar_select %p133, %s134, %s135
      %p139 = pneg %p133
      %p140 = scmp.eq.s32.totalorder %s98, 1
      %p141 = por %p139, %p140
      %p142 = scmp.ne.s32.totalorder %s134, %s137
      %p143 = scmp.eq.s32.totalorder %s98, 0
      %p144 = por %p142, %p143
      %p145 = scmp.ne.s32.totalorder %s134, %s137
      %p146 = scmp.eq.s32.totalorder %s103, 1
      %p147 = por %p145, %p146
      %p148 = scmp.ne.s32.totalorder %s137, %s138
      %p149 = scmp.eq.s32.totalorder %s103, 0
      %p150 = por %p148, %p149
      %p151 = scmp.ne.s32.totalorder %s137, %s138
      %p152 = scmp.eq.s32.totalorder %s104, 1
      %p153 = por %p151, %p152
      %p155 = scmp.ne.s32.totalorder %s138, %s154
      %p156 = scmp.eq.s32.totalorder %s104, 0
      %p157 = por %p155, %p156
      %s158 = ssub.s32 %s98, %s105
      %p159 = scmp.eq.s32.totalorder %s158, 0
      %s161 = sadd.s32 %s160, 1
      %s162 = scalar_select %p159, %s160, %s161
      %p165 = pneg %p159
      %p166 = scmp.eq.s32.totalorder %s98, 1
      %p167 = por %p165, %p166
      %p168 = scmp.ne.s32.totalorder %s160, %s163
      %p169 = scmp.eq.s32.totalorder %s98, 0
      %p170 = por %p168, %p169
      %p171 = scmp.ne.s32.totalorder %s160, %s163
      %p172 = scmp.eq.s32.totalorder %s103, 1
      %p173 = por %p171, %p172
      %p174 = scmp.ne.s32.totalorder %s163, %s164
      %p175 = scmp.eq.s32.totalorder %s103, 0
      %p176 = por %p174, %p175
      %p177 = scmp.ne.s32.totalorder %s163, %s164
      %p178 = scmp.eq.s32.totalorder %s104, 1
      %p179 = por %p177, %p178
      %p181 = scmp.ne.s32.totalorder %s164, %s180
      %p182 = scmp.eq.s32.totalorder %s104, 0
      %p183 = por %p181, %p182
      %s185 = sadd.s32 %s184, 1
      %p188 = scmp.eq.s32.totalorder %s98, 1
      %p189 = scmp.ne.s32.totalorder %s184, %s186
      %p190 = scmp.eq.s32.totalorder %s98, 0
      %p191 = por %p189, %p190
      %p192 = scmp.ne.s32.totalorder %s184, %s186
      %p193 = scmp.eq.s32.totalorder %s103, 1
      %p194 = por %p192, %p193
      %p195 = scmp.ne.s32.totalorder %s186, %s187
      %p196 = scmp.eq.s32.totalorder %s103, 0
      %p197 = por %p195, %p196
      %p198 = scmp.ne.s32.totalorder %s186, %s187
      %p199 = scmp.eq.s32.totalorder %s104, 1
      %p200 = por %p198, %p199
      %p202 = scmp.ne.s32.totalorder %s187, %s201
      %p203 = scmp.eq.s32.totalorder %s104, 0
      %p204 = por %p202, %p203
      %s206 = sadd.s32 %s205, 1
      %p209 = scmp.eq.s32.totalorder %s98, 1
      %p210 = scmp.ne.s32.totalorder %s205, %s207
      %p211 = scmp.eq.s32.totalorder %s98, 0
      %p212 = por %p210, %p211
      %p213 = scmp.ne.s32.totalorder %s205, %s207
      %p214 = scmp.eq.s32.totalorder %s103, 1
      %p215 = por %p213, %p214
      %p216 = scmp.ne.s32.totalorder %s207, %s208
      %p217 = scmp.eq.s32.totalorder %s103, 0
      %p218 = por %p216, %p217
      %p219 = scmp.ne.s32.totalorder %s207, %s208
      %p220 = scmp.eq.s32.totalorder %s104, 1
      %p221 = por %p219, %p220
      %p223 = scmp.ne.s32.totalorder %s208, %s222
      %p224 = scmp.eq.s32.totalorder %s104, 0
      %p225 = por %p223, %p224
      %s227 = sadd.s32 %s226, 1
      %p230 = scmp.eq.s32.totalorder %s98, 1
      %p231 = scmp.ne.s32.totalorder %s226, %s228
      %p232 = scmp.eq.s32.totalorder %s98, 0
      %p233 = por %p231, %p232
      %p234 = scmp.ne.s32.totalorder %s226, %s228
      %p235 = scmp.eq.s32.totalorder %s103, 1
      %p236 = por %p234, %p235
      %p237 = scmp.ne.s32.totalorder %s228, %s229
      %p238 = scmp.eq.s32.totalorder %s103, 0
      %p239 = por %p237, %p238
      %p240 = scmp.ne.s32.totalorder %s228, %s229
      %p241 = scmp.eq.s32.totalorder %s104, 1
      %p242 = por %p240, %p241
      %p244 = scmp.ne.s32.totalorder %s229, %s243
      %p245 = scmp.eq.s32.totalorder %s104, 0
      %p246 = por %p244, %p245
      %s248 = sadd.s32 %s247, 1
      %p251 = scmp.eq.s32.totalorder %s98, 1
      %p252 = scmp.ne.s32.totalorder %s247, %s249
      %p253 = scmp.eq.s32.totalorder %s98, 0
      %p254 = por %p252, %p253
      %p255 = scmp.ne.s32.totalorder %s247, %s249
      %p256 = scmp.eq.s32.totalorder %s103, 1
      %p257 = por %p255, %p256
      %p258 = scmp.ne.s32.totalorder %s249, %s250
      %p259 = scmp.eq.s32.totalorder %s103, 0
      %p260 = por %p258, %p259
      %p261 = scmp.ne.s32.totalorder %s249, %s250
      %p262 = scmp.eq.s32.totalorder %s104, 1
      %p263 = por %p261, %p262
      %p265 = scmp.ne.s32.totalorder %s250, %s264
      %p266 = scmp.eq.s32.totalorder %s104, 0
      %p267 = por %p265, %p266
      %s269 = sadd.s32 %s268, 1
      %p272 = scmp.eq.s32.totalorder %s98, 1
      %p273 = scmp.ne.s32.totalorder %s268, %s270
      %p274 = scmp.eq.s32.totalorder %s98, 0
      %p275 = por %p273, %p274
      %p276 = scmp.ne.s32.totalorder %s268, %s270
      %p277 = scmp.eq.s32.totalorder %s103, 1
      %p278 = por %p276, %p277
      %p279 = scmp.ne.s32.totalorder %s270, %s271
      %p280 = scmp.eq.s32.totalorder %s103, 0
      %p281 = por %p279, %p280
      %p282 = scmp.ne.s32.totalorder %s270, %s271
      %p283 = scmp.eq.s32.totalorder %s104, 1
      %p284 = por %p282, %p283
      %p286 = scmp.ne.s32.totalorder %s271, %s285
      %p287 = scmp.eq.s32.totalorder %s104, 0
      %p288 = por %p286, %p287
      %s290 = sadd.s32 %s289, 1
      %p293 = scmp.eq.s32.totalorder %s98, 1
      %p294 = scmp.ne.s32.totalorder %s289, %s291
      %p295 = scmp.eq.s32.totalorder %s98, 0
      %p296 = por %p294, %p295
      %p297 = scmp.ne.s32.totalorder %s289, %s291
      %p298 = scmp.eq.s32.totalorder %s103, 1
      %p299 = por %p297, %p298
      %p300 = scmp.ne.s32.totalorder %s291, %s292
      %p301 = scmp.eq.s32.totalorder %s103, 0
      %p302 = por %p300, %p301
      %p303 = scmp.ne.s32.totalorder %s291, %s292
      %p304 = scmp.eq.s32.totalorder %s104, 1
      %p305 = por %p303, %p304
      %p307 = scmp.ne.s32.totalorder %s292, %s306
      %p308 = scmp.eq.s32.totalorder %s104, 0
      %p309 = por %p307, %p308
      %s311 = sadd.s32 %s310, 1
      %p314 = scmp.eq.s32.totalorder %s98, 1
      %p315 = scmp.ne.s32.totalorder %s310, %s312
      %p316 = scmp.eq.s32.totalorder %s98, 0
      %p317 = por %p315, %p316
      %p318 = scmp.ne.s32.totalorder %s310, %s312
      %p319 = scmp.eq.s32.totalorder %s103, 1
      %p320 = por %p318, %p319
      %p321 = scmp.ne.s32.totalorder %s312, %s313
      %p322 = scmp.eq.s32.totalorder %s103, 0
      %p323 = por %p321, %p322
      %p324 = scmp.ne.s32.totalorder %s312, %s313
      %p325 = scmp.eq.s32.totalorder %s104, 1
      %p326 = por %p324, %p325
      %p328 = scmp.ne.s32.totalorder %s313, %s327
      %p329 = scmp.eq.s32.totalorder %s104, 0
      %p330 = por %p328, %p329
      %s332 = sadd.s32 %s331, 1
      %p335 = scmp.eq.s32.totalorder %s98, 1
      %p336 = scmp.ne.s32.totalorder %s331, %s333
      %p337 = scmp.eq.s32.totalorder %s98, 0
      %p338 = por %p336, %p337
      %p339 = scmp.ne.s32.totalorder %s331, %s333
      %p340 = scmp.eq.s32.totalorder %s103, 1
      %p341 = por %p339, %p340
      %p342 = scmp.ne.s32.totalorder %s333, %s334
      %p343 = scmp.eq.s32.totalorder %s103, 0
      %p344 = por %p342, %p343
      %p345 = scmp.ne.s32.totalorder %s333, %s334
      %p346 = scmp.eq.s32.totalorder %s104, 1
      %p347 = por %p345, %p346
      %p349 = scmp.ne.s32.totalorder %s334, %s348
      %p350 = scmp.eq.s32.totalorder %s104, 0
      %p351 = por %p349, %p350
      %s353 = sadd.s32 %s352, 1
      %p356 = scmp.eq.s32.totalorder %s98, 1
      %p357 = scmp.ne.s32.totalorder %s352, %s354
      %p358 = scmp.eq.s32.totalorder %s98, 0
      %p359 = por %p357, %p358
      %p360 = scmp.ne.s32.totalorder %s352, %s354
      %p361 = scmp.eq.s32.totalorder %s103, 1
      %p362 = por %p360, %p361
      %p363 = scmp.ne.s32.totalorder %s354, %s355
      %p364 = scmp.eq.s32.totalorder %s103, 0
      %p365 = por %p363, %p364
      %p366 = scmp.ne.s32.totalorder %s354, %s355
      %p367 = scmp.eq.s32.totalorder %s104, 1
      %p368 = por %p366, %p367
      %p370 = scmp.ne.s32.totalorder %s355, %s369
      %p371 = scmp.eq.s32.totalorder %s104, 0
      %p372 = por %p370, %p371
      %s374 = sadd.s32 %s373, 1
      %p377 = scmp.eq.s32.totalorder %s98, 1
      %p378 = scmp.ne.s32.totalorder %s373, %s375
      %p379 = scmp.eq.s32.totalorder %s98, 0
      %p380 = por %p378, %p379
      %p381 = scmp.ne.s32.totalorder %s373, %s375
      %p382 = scmp.eq.s32.totalorder %s103, 1
      %p383 = por %p381, %p382
      %p384 = scmp.ne.s32.totalorder %s375, %s376
      %p385 = scmp.eq.s32.totalorder %s103, 0
      %p386 = por %p384, %p385
      %p387 = scmp.ne.s32.totalorder %s375, %s376
      %p388 = scmp.eq.s32.totalorder %s104, 1
      %p389 = por %p387, %p388
      %p391 = scmp.ne.s32.totalorder %s376, %s390
      %p392 = scmp.eq.s32.totalorder %s104, 0
      %p393 = por %p391, %p392
      %s395 = sadd.s32 %s394, 1
      %p398 = scmp.eq.s32.totalorder %s98, 1
      %p399 = scmp.ne.s32.totalorder %s394, %s396
      %p400 = scmp.eq.s32.totalorder %s98, 0
      %p401 = por %p399, %p400
      %p402 = scmp.ne.s32.totalorder %s394, %s396
      %p403 = scmp.eq.s32.totalorder %s103, 1
      %p404 = por %p402, %p403
      %p405 = scmp.ne.s32.totalorder %s396, %s397
      %p406 = scmp.eq.s32.totalorder %s103, 0
      %p407 = por %p405, %p406
      %p408 = scmp.ne.s32.totalorder %s396, %s397
      %p409 = scmp.eq.s32.totalorder %s104, 1
      %p410 = por %p408, %p409
      %p412 = scmp.ne.s32.totalorder %s397, %s411
      %p413 = scmp.eq.s32.totalorder %s104, 0
      %p414 = por %p412, %p413
      %s416 = sadd.s32 %s415, 1
      %p419 = scmp.eq.s32.totalorder %s98, 1
      %p420 = scmp.ne.s32.totalorder %s415, %s417
      %p421 = scmp.eq.s32.totalorder %s98, 0
      %p422 = por %p420, %p421
      %p423 = scmp.ne.s32.totalorder %s415, %s417
      %p424 = scmp.eq.s32.totalorder %s103, 1
      %p425 = por %p423, %p424
      %p426 = scmp.ne.s32.totalorder %s417, %s418
      %p427 = scmp.eq.s32.totalorder %s103, 0
      %p428 = por %p426, %p427
      %p429 = scmp.ne.s32.totalorder %s417, %s418
      %p430 = scmp.eq.s32.totalorder %s104, 1
      %p431 = por %p429, %p430
      %p433 = scmp.ne.s32.totalorder %s418, %s432
      %p434 = scmp.eq.s32.totalorder %s104, 0
      %p435 = por %p433, %p434
      %s437 = sadd.s32 %s436, 1
      %p440 = scmp.eq.s32.totalorder %s98, 1
      %p441 = scmp.ne.s32.totalorder %s436, %s438
      %p442 = scmp.eq.s32.totalorder %s98, 0
      %p443 = por %p441, %p442
      %p444 = scmp.ne.s32.totalorder %s436, %s438
      %p445 = scmp.eq.s32.totalorder %s103, 1
      %p446 = por %p444, %p445
      %p447 = scmp.ne.s32.totalorder %s438, %s439
      %p448 = scmp.eq.s32.totalorder %s103, 0
      %p449 = por %p447, %p448
      %p450 = scmp.ne.s32.totalorder %s438, %s439
      %p451 = scmp.eq.s32.totalorder %s104, 1
      %p452 = por %p450, %p451
      %p454 = scmp.ne.s32.totalorder %s439, %s453
      %p455 = scmp.eq.s32.totalorder %s104, 0
      %p456 = por %p454, %p455
      %s458 = sadd.s32 %s457, 1
      %p461 = scmp.eq.s32.totalorder %s98, 1
      %p462 = scmp.ne.s32.totalorder %s457, %s459
      %p463 = scmp.eq.s32.totalorder %s98, 0
      %p464 = por %p462, %p463
      %p465 = scmp.ne.s32.totalorder %s457, %s459
      %p466 = scmp.eq.s32.totalorder %s103, 1
      %p467 = por %p465, %p466
      %p468 = scmp.ne.s32.totalorder %s459, %s460
      %p469 = scmp.eq.s32.totalorder %s103, 0
      %p470 = por %p468, %p469
      %p471 = scmp.ne.s32.totalorder %s459, %s460
      %p472 = scmp.eq.s32.totalorder %s104, 1
      %p473 = por %p471, %p472
      %p475 = scmp.ne.s32.totalorder %s460, %s474
      %p476 = scmp.eq.s32.totalorder %s104, 0
      %p477 = por %p475, %p476
      %s479 = sadd.s32 %s478, 1
      %p482 = scmp.eq.s32.totalorder %s98, 1
      %p483 = scmp.ne.s32.totalorder %s478, %s480
      %p484 = scmp.eq.s32.totalorder %s98, 0
      %p485 = por %p483, %p484
      %p486 = scmp.ne.s32.totalorder %s478, %s480
      %p487 = scmp.eq.s32.totalorder %s103, 1
      %p488 = por %p486, %p487
      %p489 = scmp.ne.s32.totalorder %s480, %s481
      %p490 = scmp.eq.s32.totalorder %s103, 0
      %p491 = por %p489, %p490
      %p492 = scmp.ne.s32.totalorder %s480, %s481
      %p493 = scmp.eq.s32.totalorder %s104, 1
      %p494 = por %p492, %p493
      %p496 = scmp.ne.s32.totalorder %s481, %s495
      %p497 = scmp.eq.s32.totalorder %s104, 0
      %p498 = por %p496, %p497
      %s500 = sadd.s32 %s499, 1
      %p503 = scmp.eq.s32.totalorder %s98, 1
      %p504 = scmp.ne.s32.totalorder %s499, %s501
      %p505 = scmp.eq.s32.totalorder %s98, 0
      %p506 = por %p504, %p505
      %p507 = scmp.ne.s32.totalorder %s499, %s501
      %p508 = scmp.eq.s32.totalorder %s103, 1
      %p509 = por %p507, %p508
      %p510 = scmp.ne.s32.totalorder %s501, %s502
      %p511 = scmp.eq.s32.totalorder %s103, 0
      %p512 = por %p510, %p511
      %p513 = scmp.ne.s32.totalorder %s501, %s502
      %p514 = scmp.eq.s32.totalorder %s104, 1
      %p515 = por %p513, %p514
      %p517 = scmp.ne.s32.totalorder %s502, %s516
      %p518 = scmp.eq.s32.totalorder %s104, 0
      %p519 = por %p517, %p518
      %s521 = sadd.s32 %s520, 1
      %p524 = scmp.eq.s32.totalorder %s98, 1
      %p525 = scmp.ne.s32.totalorder %s520, %s522
      %p526 = scmp.eq.s32.totalorder %s98, 0
      %p527 = por %p525, %p526
      %p528 = scmp.ne.s32.totalorder %s520, %s522
      %p529 = scmp.eq.s32.totalorder %s103, 1
      %p530 = por %p528, %p529
      %p531 = scmp.ne.s32.totalorder %s522, %s523
      %p532 = scmp.eq.s32.totalorder %s103, 0
      %p533 = por %p531, %p532
      %p534 = scmp.ne.s32.totalorder %s522, %s523
      %p535 = scmp.eq.s32.totalorder %s104, 1
      %p536 = por %p534, %p535
      %p538 = scmp.ne.s32.totalorder %s523, %s537
      %p539 = scmp.eq.s32.totalorder %s104, 0
      %p540 = por %p538, %p539
      %s542 = sadd.s32 %s541, 1
      %p545 = scmp.eq.s32.totalorder %s98, 1
      %p546 = scmp.ne.s32.totalorder %s541, %s543
      %p547 = scmp.eq.s32.totalorder %s98, 0
      %p548 = por %p546, %p547
      %p549 = scmp.ne.s32.totalorder %s541, %s543
      %p550 = scmp.eq.s32.totalorder %s103, 1
      %p551 = por %p549, %p550
      %p552 = scmp.ne.s32.totalorder %s543, %s544
      %p553 = scmp.eq.s32.totalorder %s103, 0
      %p554 = por %p552, %p553
      %p555 = scmp.ne.s32.totalorder %s543, %s544
      %p556 = scmp.eq.s32.totalorder %s104, 1
      %p557 = por %p555, %p556
      %p559 = scmp.ne.s32.totalorder %s544, %s558
      %p560 = scmp.eq.s32.totalorder %s104, 0
      %p561 = por %p559, %p560
      %s563 = sadd.s32 %s562, 1
      %p566 = scmp.eq.s32.totalorder %s98, 1
      %p567 = scmp.ne.s32.totalorder %s562, %s564
      %p568 = scmp.eq.s32.totalorder %s98, 0
      %p569 = por %p567, %p568
      %p570 = scmp.ne.s32.totalorder %s562, %s564
      %p571 = scmp.eq.s32.totalorder %s103, 1
      %p572 = por %p570, %p571
      %p573 = scmp.ne.s32.totalorder %s564, %s565
      %p574 = scmp.eq.s32.totalorder %s103, 0
      %p575 = por %p573, %p574
      %p576 = scmp.ne.s32.totalorder %s564, %s565
      %p577 = scmp.eq.s32.totalorder %s104, 1
      %p578 = por %p576, %p577
      %p580 = scmp.ne.s32.totalorder %s565, %s579
      %p581 = scmp.eq.s32.totalorder %s104, 0
      %p582 = por %p580, %p581
      %s584 = sadd.s32 %s583, 1
      %p587 = scmp.eq.s32.totalorder %s98, 1
      %p588 = scmp.ne.s32.totalorder %s583, %s585
      %p589 = scmp.eq.s32.totalorder %s98, 0
      %p590 = por %p588, %p589
      %p591 = scmp.ne.s32.totalorder %s583, %s585
      %p592 = scmp.eq.s32.totalorder %s103, 1
      %p593 = por %p591, %p592
      %p594 = scmp.ne.s32.totalorder %s585, %s586
      %p595 = scmp.eq.s32.totalorder %s103, 0
      %p596 = por %p594, %p595
      %p597 = scmp.ne.s32.totalorder %s585, %s586
      %p598 = scmp.eq.s32.totalorder %s104, 1
      %p599 = por %p597, %p598
      %p601 = scmp.ne.s32.totalorder %s586, %s600
      %p602 = scmp.eq.s32.totalorder %s104, 0
      %p603 = por %p601, %p602
      %s605 = sadd.s32 %s604, 1
      %p608 = scmp.eq.s32.totalorder %s98, 1
      %p609 = scmp.ne.s32.totalorder %s604, %s606
      %p610 = scmp.eq.s32.totalorder %s98, 0
      %p611 = por %p609, %p610
      %p612 = scmp.ne.s32.totalorder %s604, %s606
      %p613 = scmp.eq.s32.totalorder %s103, 1
      %p614 = por %p612, %p613
      %p615 = scmp.ne.s32.totalorder %s606, %s607
      %p616 = scmp.eq.s32.totalorder %s103, 0
      %p617 = por %p615, %p616
      %p618 = scmp.ne.s32.totalorder %s606, %s607
      %p619 = scmp.eq.s32.totalorder %s104, 1
      %p620 = por %p618, %p619
      %p622 = scmp.ne.s32.totalorder %s607, %s621
      %p623 = scmp.eq.s32.totalorder %s104, 0
      %p624 = por %p622, %p623
      %s626 = sadd.s32 %s625, 1
      %p629 = scmp.eq.s32.totalorder %s98, 1
      %p630 = scmp.ne.s32.totalorder %s625, %s627
      %p631 = scmp.eq.s32.totalorder %s98, 0
      %p632 = por %p630, %p631
      %p633 = scmp.ne.s32.totalorder %s625, %s627
      %p634 = scmp.eq.s32.totalorder %s103, 1
      %p635 = por %p633, %p634
      %p636 = scmp.ne.s32.totalorder %s627, %s628
      %p637 = scmp.eq.s32.totalorder %s103, 0
      %p638 = por %p636, %p637
      %p639 = scmp.ne.s32.totalorder %s627, %s628
      %p640 = scmp.eq.s32.totalorder %s104, 1
      %p641 = por %p639, %p640
      %p643 = scmp.ne.s32.totalorder %s628, %s642
      %p644 = scmp.eq.s32.totalorder %s104, 0
      %p645 = por %p643, %p644
      %s647 = sadd.s32 %s646, 1
      %p650 = scmp.eq.s32.totalorder %s98, 1
      %p651 = scmp.ne.s32.totalorder %s646, %s648
      %p652 = scmp.eq.s32.totalorder %s98, 0
      %p653 = por %p651, %p652
      %p654 = scmp.ne.s32.totalorder %s646, %s648
      %p655 = scmp.eq.s32.totalorder %s103, 1
      %p656 = por %p654, %p655
      %p657 = scmp.ne.s32.totalorder %s648, %s649
      %p658 = scmp.eq.s32.totalorder %s103, 0
      %p659 = por %p657, %p658
      %p660 = scmp.ne.s32.totalorder %s648, %s649
      %p661 = scmp.eq.s32.totalorder %s104, 1
      %p662 = por %p660, %p661
      %p664 = scmp.ne.s32.totalorder %s649, %s663
      %p665 = scmp.eq.s32.totalorder %s104, 0
      %p666 = por %p664, %p665
      %s668 = sadd.s32 %s667, 1
      %p671 = scmp.eq.s32.totalorder %s98, 1
      %p672 = scmp.ne.s32.totalorder %s667, %s669
      %p673 = scmp.eq.s32.totalorder %s98, 0
      %p674 = por %p672, %p673
      %p675 = scmp.ne.s32.totalorder %s667, %s669
      %p676 = scmp.eq.s32.totalorder %s103, 1
      %p677 = por %p675, %p676
      %p678 = scmp.ne.s32.totalorder %s669, %s670
      %p679 = scmp.eq.s32.totalorder %s103, 0
      %p680 = por %p678, %p679
      %p681 = scmp.ne.s32.totalorder %s669, %s670
      %p682 = scmp.eq.s32.totalorder %s104, 1
      %p683 = por %p681, %p682
      %p685 = scmp.ne.s32.totalorder %s670, %s684
      %p686 = scmp.eq.s32.totalorder %s104, 0
      %p687 = por %p685, %p686
      %s689 = sadd.s32 %s688, 1
      %p692 = scmp.eq.s32.totalorder %s98, 1
      %p693 = scmp.ne.s32.totalorder %s688, %s690
      %p694 = scmp.eq.s32.totalorder %s98, 0
      %p695 = por %p693, %p694
      %p696 = scmp.ne.s32.totalorder %s688, %s690
      %p697 = scmp.eq.s32.totalorder %s103, 1
      %p698 = por %p696, %p697
      %p699 = scmp.ne.s32.totalorder %s690, %s691
      %p700 = scmp.eq.s32.totalorder %s103, 0
      %p701 = por %p699, %p700
      %p702 = scmp.ne.s32.totalorder %s690, %s691
      %p703 = scmp.eq.s32.totalorder %s104, 1
      %p704 = por %p702, %p703
      %p706 = scmp.ne.s32.totalorder %s691, %s705
      %p707 = scmp.eq.s32.totalorder %s104, 0
      %p708 = por %p706, %p707
      %s710 = sadd.s32 %s709, 1
      %p713 = scmp.eq.s32.totalorder %s98, 1
      %p714 = scmp.ne.s32.totalorder %s709, %s711
      %p715 = scmp.eq.s32.totalorder %s98, 0
      %p716 = por %p714, %p715
      %p717 = scmp.ne.s32.totalorder %s709, %s711
      %p718 = scmp.eq.s32.totalorder %s103, 1
      %p719 = por %p717, %p718
      %p720 = scmp.ne.s32.totalorder %s711, %s712
      %p721 = scmp.eq.s32.totalorder %s103, 0
      %p722 = por %p720, %p721
      %p723 = scmp.ne.s32.totalorder %s711, %s712
      %p724 = scmp.eq.s32.totalorder %s104, 1
      %p725 = por %p723, %p724
      %p727 = scmp.ne.s32.totalorder %s712, %s726
      %p728 = scmp.eq.s32.totalorder %s104, 0
      %p729 = por %p727, %p728
      %s731 = sadd.s32 %s730, 1
      %p734 = scmp.eq.s32.totalorder %s98, 1
      %p735 = scmp.ne.s32.totalorder %s730, %s732
      %p736 = scmp.eq.s32.totalorder %s98, 0
      %p737 = por %p735, %p736
      %p738 = scmp.ne.s32.totalorder %s730, %s732
      %p739 = scmp.eq.s32.totalorder %s103, 1
      %p740 = por %p738, %p739
      %p741 = scmp.ne.s32.totalorder %s732, %s733
      %p742 = scmp.eq.s32.totalorder %s103, 0
      %p743 = por %p741, %p742
      %p744 = scmp.ne.s32.totalorder %s732, %s733
      %p745 = scmp.eq.s32.totalorder %s104, 1
      %p746 = por %p744, %p745
      %p748 = scmp.ne.s32.totalorder %s733, %s747
      %p749 = scmp.eq.s32.totalorder %s104, 0
      %p750 = por %p748, %p749
      %s752 = sadd.s32 %s751, 1
      %p755 = scmp.eq.s32.totalorder %s98, 1
      %p756 = scmp.ne.s32.totalorder %s751, %s753
      %p757 = scmp.eq.s32.totalorder %s98, 0
      %p758 = por %p756, %p757
      %p759 = scmp.ne.s32.totalorder %s751, %s753
      %p760 = scmp.eq.s32.totalorder %s103, 1
      %p761 = por %p759, %p760
      %p762 = scmp.ne.s32.totalorder %s753, %s754
      %p763 = scmp.eq.s32.totalorder %s103, 0
      %p764 = por %p762, %p763
      %p765 = scmp.ne.s32.totalorder %s753, %s754
      %p766 = scmp.eq.s32.totalorder %s104, 1
      %p767 = por %p765, %p766
      %p769 = scmp.ne.s32.totalorder %s754, %s768
      %p770 = scmp.eq.s32.totalorder %s104, 0
      %p771 = por %p769, %p770
      %s773 = sadd.s32 %s772, 1
      %p776 = scmp.eq.s32.totalorder %s98, 1
      %p777 = scmp.ne.s32.totalorder %s772, %s774
      %p778 = scmp.eq.s32.totalorder %s98, 0
      %p779 = por %p777, %p778
      %p780 = scmp.ne.s32.totalorder %s772, %s774
      %p781 = scmp.eq.s32.totalorder %s103, 1
      %p782 = por %p780, %p781
      %p783 = scmp.ne.s32.totalorder %s774, %s775
      %p784 = scmp.eq.s32.totalorder %s103, 0
      %p785 = por %p783, %p784
      %p786 = scmp.ne.s32.totalorder %s774, %s775
      %p787 = scmp.eq.s32.totalorder %s104, 1
      %p788 = por %p786, %p787
      %p790 = scmp.ne.s32.totalorder %s775, %s789
      %p791 = scmp.eq.s32.totalorder %s104, 0
      %p792 = por %p790, %p791
      %s794 = sadd.s32 %s793, 1
      %p797 = scmp.eq.s32.totalorder %s98, 1
      %p798 = scmp.ne.s32.totalorder %s793, %s795
      %p799 = scmp.eq.s32.totalorder %s98, 0
      %p800 = por %p798, %p799
      %p801 = scmp.ne.s32.totalorder %s793, %s795
      %p802 = scmp.eq.s32.totalorder %s103, 1
      %p803 = por %p801, %p802
      %p804 = scmp.ne.s32.totalorder %s795, %s796
      %p805 = scmp.eq.s32.totalorder %s103, 0
      %p806 = por %p804, %p805
      %p807 = scmp.ne.s32.totalorder %s795, %s796
      %p808 = scmp.eq.s32.totalorder %s104, 1
      %p809 = por %p807, %p808
      %p811 = scmp.ne.s32.totalorder %s796, %s810
      %p812 = scmp.eq.s32.totalorder %s104, 0
      %p813 = por %p811, %p812
      %s815 = sadd.s32 %s814, 1
      %p818 = scmp.eq.s32.totalorder %s98, 1
      %p819 = scmp.ne.s32.totalorder %s814, %s816
      %p820 = scmp.eq.s32.totalorder %s98, 0
      %p821 = por %p819, %p820
      %p822 = scmp.ne.s32.totalorder %s814, %s816
      %p823 = scmp.eq.s32.totalorder %s103, 1
      %p824 = por %p822, %p823
      %p825 = scmp.ne.s32.totalorder %s816, %s817
      %p826 = scmp.eq.s32.totalorder %s103, 0
      %p827 = por %p825, %p826
      %p828 = scmp.ne.s32.totalorder %s816, %s817
      %p829 = scmp.eq.s32.totalorder %s104, 1
      %p830 = por %p828, %p829
      %p832 = scmp.ne.s32.totalorder %s817, %s831
      %p833 = scmp.eq.s32.totalorder %s104, 0
      %p834 = por %p832, %p833
      %s836 = sadd.s32 %s835, 1
      %p839 = scmp.eq.s32.totalorder %s98, 1
      %p840 = scmp.ne.s32.totalorder %s835, %s837
      %p841 = scmp.eq.s32.totalorder %s98, 0
      %p842 = por %p840, %p841
      %p843 = scmp.ne.s32.totalorder %s835, %s837
      %p844 = scmp.eq.s32.totalorder %s103, 1
      %p845 = por %p843, %p844
      %p846 = scmp.ne.s32.totalorder %s837, %s838
      %p847 = scmp.eq.s32.totalorder %s103, 0
      %p848 = por %p846, %p847
      %p849 = scmp.ne.s32.totalorder %s837, %s838
      %p850 = scmp.eq.s32.totalorder %s104, 1
      %p851 = por %p849, %p850
      %p853 = scmp.ne.s32.totalorder %s838, %s852
      %p854 = scmp.eq.s32.totalorder %s104, 0
      %p855 = por %p853, %p854
      %s857 = sadd.s32 %s856, 1
      %p860 = scmp.eq.s32.totalorder %s98, 1
      %p861 = scmp.ne.s32.totalorder %s856, %s858
      %p862 = scmp.eq.s32.totalorder %s98, 0
      %p863 = por %p861, %p862
      %p864 = scmp.ne.s32.totalorder %s856, %s858
      %p865 = scmp.eq.s32.totalorder %s103, 1
      %p866 = por %p864, %p865
      %p867 = scmp.ne.s32.totalorder %s858, %s859
      %p868 = scmp.eq.s32.totalorder %s103, 0
      %p869 = por %p867, %p868
      %p870 = scmp.ne.s32.totalorder %s858, %s859
      %p871 = scmp.eq.s32.totalorder %s104, 1
      %p872 = por %p870, %p871
      %p874 = scmp.ne.s32.totalorder %s859, %s873
      %p875 = scmp.eq.s32.totalorder %s104, 0
      %p876 = por %p874, %p875
      %s878 = sadd.s32 %s877, 1
      %p881 = scmp.eq.s32.totalorder %s98, 1
      %p882 = scmp.ne.s32.totalorder %s877, %s879
      %p883 = scmp.eq.s32.totalorder %s98, 0
      %p884 = por %p882, %p883
      %p885 = scmp.ne.s32.totalorder %s877, %s879
      %p886 = scmp.eq.s32.totalorder %s103, 1
      %p887 = por %p885, %p886
      %p888 = scmp.ne.s32.totalorder %s879, %s880
      %p889 = scmp.eq.s32.totalorder %s103, 0
      %p890 = por %p888, %p889
      %p891 = scmp.ne.s32.totalorder %s879, %s880
      %p892 = scmp.eq.s32.totalorder %s104, 1
      %p893 = por %p891, %p892
      %p895 = scmp.ne.s32.totalorder %s880, %s894
      %p896 = scmp.eq.s32.totalorder %s104, 0
      %p897 = por %p895, %p896
      %s899 = sadd.s32 %s898, 1
      %p902 = scmp.eq.s32.totalorder %s98, 1
      %p903 = scmp.ne.s32.totalorder %s898, %s900
      %p904 = scmp.eq.s32.totalorder %s98, 0
      %p905 = por %p903, %p904
      %p906 = scmp.ne.s32.totalorder %s898, %s900
      %p907 = scmp.eq.s32.totalorder %s103, 1
      %p908 = por %p906, %p907
      %p909 = scmp.ne.s32.totalorder %s900, %s901
      %p910 = scmp.eq.s32.totalorder %s103, 0
      %p911 = por %p909, %p910
      %p912 = scmp.ne.s32.totalorder %s900, %s901
      %p913 = scmp.eq.s32.totalorder %s104, 1
      %p914 = por %p912, %p913
      %p916 = scmp.ne.s32.totalorder %s901, %s915
      %p917 = scmp.eq.s32.totalorder %s104, 0
      %p918 = por %p916, %p917
      %s920 = sadd.s32 %s919, 1
      %p923 = scmp.eq.s32.totalorder %s98, 1
      %p924 = scmp.ne.s32.totalorder %s919, %s921
      %p925 = scmp.eq.s32.totalorder %s98, 0
      %p926 = por %p924, %p925
      %p927 = scmp.ne.s32.totalorder %s919, %s921
      %p928 = scmp.eq.s32.totalorder %s103, 1
      %p929 = por %p927, %p928
      %p930 = scmp.ne.s32.totalorder %s921, %s922
      %p931 = scmp.eq.s32.totalorder %s103, 0
      %p932 = por %p930, %p931
      %p933 = scmp.ne.s32.totalorder %s921, %s922
      %p934 = scmp.eq.s32.totalorder %s104, 1
      %p935 = por %p933, %p934
      %p937 = scmp.ne.s32.totalorder %s922, %s936
      %p938 = scmp.eq.s32.totalorder %s104, 0
      %p939 = por %p937, %p938
      %s941 = sadd.s32 %s940, 1
      %p944 = scmp.eq.s32.totalorder %s98, 1
      %p945 = scmp.ne.s32.totalorder %s940, %s942
      %p946 = scmp.eq.s32.totalorder %s98, 0
      %p947 = por %p945, %p946
      %p948 = scmp.ne.s32.totalorder %s940, %s942
      %p949 = scmp.eq.s32.totalorder %s103, 1
      %p950 = por %p948, %p949
      %p951 = scmp.ne.s32.totalorder %s942, %s943
      %p952 = scmp.eq.s32.totalorder %s103, 0
      %p953 = por %p951, %p952
      %p954 = scmp.ne.s32.totalorder %s942, %s943
      %p955 = scmp.eq.s32.totalorder %s104, 1
      %p956 = por %p954, %p955
      %p958 = scmp.ne.s32.totalorder %s943, %s957
      %p959 = scmp.eq.s32.totalorder %s104, 0
      %p960 = por %p958, %p959
      %s961 = ssub.s32 %s98, %s105
      %p962 = scmp.eq.s32.totalorder %s961, 0
      %s964 = sadd.s32 %s963, 1
      %s965 = scalar_select %p962, %s963, %s964
      %p968 = pneg %p962
      %p969 = scmp.eq.s32.totalorder %s98, 1
      %p970 = por %p968, %p969
      %p971 = scmp.ne.s32.totalorder %s963, %s966
      %p972 = scmp.eq.s32.totalorder %s98, 0
      %p973 = por %p971, %p972
      %p974 = scmp.ne.s32.totalorder %s963, %s966
      %p975 = scmp.eq.s32.totalorder %s103, 1
      %p976 = por %p974, %p975
      %p977 = scmp.ne.s32.totalorder %s966, %s967
      %p978 = scmp.eq.s32.totalorder %s103, 0
      %p979 = por %p977, %p978
      %p980 = scmp.ne.s32.totalorder %s966, %s967
      %p981 = scmp.eq.s32.totalorder %s104, 1
      %p982 = por %p980, %p981
      %p984 = scmp.ne.s32.totalorder %s967, %s983
      %p985 = scmp.eq.s32.totalorder %s104, 0
      %p986 = por %p984, %p985
      %s987 = ssub.s32 %s98, %s105
      %p988 = scmp.eq.s32.totalorder %s987, 0
      %s990 = sadd.s32 %s989, 1
      %s991 = scalar_select %p988, %s989, %s990
      %p994 = pneg %p988
      %p995 = scmp.eq.s32.totalorder %s98, 1
      %p996 = por %p994, %p995
      %p997 = scmp.ne.s32.totalorder %s989, %s992
      %p998 = scmp.eq.s32.totalorder %s98, 0
      %p999 = por %p997, %p998
      %p1000 = scmp.ne.s32.totalorder %s989, %s992
      %p1001 = scmp.eq.s32.totalorder %s103, 1
      %p1002 = por %p1000, %p1001
      %p1003 = scmp.ne.s32.totalorder %s992, %s993
      %p1004 = scmp.eq.s32.totalorder %s103, 0
      %p1005 = por %p1003, %p1004
      %p1006 = scmp.ne.s32.totalorder %s992, %s993
      %p1007 = scmp.eq.s32.totalorder %s104, 1
      %p1008 = por %p1006, %p1007
      %p1010 = scmp.ne.s32.totalorder %s993, %s1009
      %p1011 = scmp.eq.s32.totalorder %s104, 0
      %p1012 = por %p1010, %p1011
      %s1013 = ssub.s32 %s98, %s105
      %p1014 = scmp.eq.s32.totalorder %s1013, 0
      %s1016 = sadd.s32 %s1015, 1
      %s1017 = scalar_select %p1014, %s1015, %s1016
      %p1020 = pneg %p1014
      %p1021 = scmp.eq.s32.totalorder %s98, 1
      %p1022 = por %p1020, %p1021
      %p1023 = scmp.ne.s32.totalorder %s1015, %s1018
      %p1024 = scmp.eq.s32.totalorder %s98, 0
      %p1025 = por %p1023, %p1024
      %p1026 = scmp.ne.s32.totalorder %s1015, %s1018
      %p1027 = scmp.eq.s32.totalorder %s103, 1
      %p1028 = por %p1026, %p1027
      %p1029 = scmp.ne.s32.totalorder %s1018, %s1019
      %p1030 = scmp.eq.s32.totalorder %s103, 0
      %p1031 = por %p1029, %p1030
      %p1032 = scmp.ne.s32.totalorder %s1018, %s1019
      %p1033 = scmp.eq.s32.totalorder %s104, 1
      %p1034 = por %p1032, %p1033
      %p1036 = scmp.ne.s32.totalorder %s1019, %s1035
      %p1037 = scmp.eq.s32.totalorder %s104, 0
      %p1038 = por %p1036, %p1037
      %p1039 = scmp.le.s32.totalorder 1, %s98
      %p1040 = scmp.lt.s32.totalorder %s98, 3
      %p1041 = pnand %p1039, %p1040
      %p1042 = pneg %p1041
      // Predicated region
      $region9: #{tpu_custom_call.1} parent=5 // pred_check
        _
      $region10: #{tpu_custom_call.1} parent=5 // pred_check_branch
        %1044 = sbr.rel (%p1041) target = $region12
      $region11: #{tpu_custom_call.1} parent=5 // pred_region
        %s1045 = ssub.s32 %s98, 1
        // Predicated region
        $region13: #{tpu_custom_call.1} parent=11 // pred_check
          %p1046 = pneg %p197
        $region14: #{tpu_custom_call.1} parent=11 // pred_check_branch
          %1048 = sbr.rel (%p1046) target = $region16
        $region15: #{tpu_custom_call.1} parent=11 // pred_region
          _
        $region16: #{tpu_custom_call.1} parent=11 // pred_fallthru
          _
        // Predicated region
        $region17: #{tpu_custom_call.1} parent=11 // pred_check
          %p1049 = pneg %p218
        $region18: #{tpu_custom_call.1} parent=11 // pred_check_branch
          %1051 = sbr.rel (%p1049) target = $region20
        $region19: #{tpu_custom_call.1} parent=11 // pred_region
          _
        $region20: #{tpu_custom_call.1} parent=11 // pred_fallthru
          _
        // Predicated region
        $region21: #{tpu_custom_call.1} parent=11 // pred_check
          %p1052 = pneg %p239
        $region22: #{tpu_custom_call.1} parent=11 // pred_check_branch
          %1054 = sbr.rel (%p1052) target = $region24
        $region23: #{tpu_custom_call.1} parent=11 // pred_region
          _
        $region24: #{tpu_custom_call.1} parent=11 // pred_fallthru
          _
        // Predicated region
        $region25: #{tpu_custom_call.1} parent=11 // pred_check
          %p1055 = pneg %p260
        $region26: #{tpu_custom_call.1} parent=11 // pred_check_branch
          %1057 = sbr.rel (%p1055) target = $region28
        $region27: #{tpu_custom_call.1} parent=11 // pred_region
          _
        $region28: #{tpu_custom_call.1} parent=11 // pred_fallthru
          _
        // Predicated region
        $region29: #{tpu_custom_call.1} parent=11 // pred_check
          %p1058 = pneg %p281
        $region30: #{tpu_custom_call.1} parent=11 // pred_check_branch
          %1060 = sbr.rel (%p1058) target = $region32
        $region31: #{tpu_custom_call.1} parent=11 // pred_region
          _
        $region32: #{tpu_custom_call.1} parent=11 // pred_fallthru
          _
        // Predicated region
        $region33: #{tpu_custom_call.1} parent=11 // pred_check
          %p1061 = pneg %p302
        $region34: #{tpu_custom_call.1} parent=11 // pred_check_branch
          %1063 = sbr.rel (%p1061) target = $region36
        $region35: #{tpu_custom_call.1} parent=11 // pred_region
          _
        $region36: #{tpu_custom_call.1} parent=11 // pred_fallthru
          _
        // Predicated region
        $region37: #{tpu_custom_call.1} parent=11 // pred_check
          %p1064 = pneg %p323
        $region38: #{tpu_custom_call.1} parent=11 // pred_check_branch
          %1066 = sbr.rel (%p1064) target = $region40
        $region39: #{tpu_custom_call.1} parent=11 // pred_region
          _
        $region40: #{tpu_custom_call.1} parent=11 // pred_fallthru
          _
        // Predicated region
        $region41: #{tpu_custom_call.1} parent=11 // pred_check
          %p1067 = pneg %p344
        $region42: #{tpu_custom_call.1} parent=11 // pred_check_branch
          %1069 = sbr.rel (%p1067) target = $region44
        $region43: #{tpu_custom_call.1} parent=11 // pred_region
          _
        $region44: #{tpu_custom_call.1} parent=11 // pred_fallthru
          _
        // Predicated region
        $region45: #{tpu_custom_call.1} parent=11 // pred_check
          %p1070 = pneg %p365
        $region46: #{tpu_custom_call.1} parent=11 // pred_check_branch
          %1072 = sbr.rel (%p1070) target = $region48
        $region47: #{tpu_custom_call.1} parent=11 // pred_region
          _
        $region48: #{tpu_custom_call.1} parent=11 // pred_fallthru
          _
        // Predicated region
        $region49: #{tpu_custom_call.1} parent=11 // pred_check
          %p1073 = pneg %p386
        $region50: #{tpu_custom_call.1} parent=11 // pred_check_branch
          %1075 = sbr.rel (%p1073) target = $region52
        $region51: #{tpu_custom_call.1} parent=11 // pred_region
          _
        $region52: #{tpu_custom_call.1} parent=11 // pred_fallthru
          _
        // Predicated region
        $region53: #{tpu_custom_call.1} parent=11 // pred_check
          %p1076 = pneg %p407
        $region54: #{tpu_custom_call.1} parent=11 // pred_check_branch
          %1078 = sbr.rel (%p1076) target = $region56
        $region55: #{tpu_custom_call.1} parent=11 // pred_region
          _
        $region56: #{tpu_custom_call.1} parent=11 // pred_fallthru
          _
        // Predicated region
        $region57: #{tpu_custom_call.1} parent=11 // pred_check
          %p1079 = pneg %p428
        $region58: #{tpu_custom_call.1} parent=11 // pred_check_branch
          %1081 = sbr.rel (%p1079) target = $region60
        $region59: #{tpu_custom_call.1} parent=11 // pred_region
          _
        $region60: #{tpu_custom_call.1} parent=11 // pred_fallthru
          _
        // Predicated region
        $region61: #{tpu_custom_call.1} parent=11 // pred_check
          %p1082 = pneg %p449
        $region62: #{tpu_custom_call.1} parent=11 // pred_check_branch
          %1084 = sbr.rel (%p1082) target = $region64
        $region63: #{tpu_custom_call.1} parent=11 // pred_region
          _
        $region64: #{tpu_custom_call.1} parent=11 // pred_fallthru
          _
        // Predicated region
        $region65: #{tpu_custom_call.1} parent=11 // pred_check
          %p1085 = pneg %p470
        $region66: #{tpu_custom_call.1} parent=11 // pred_check_branch
          %1087 = sbr.rel (%p1085) target = $region68
        $region67: #{tpu_custom_call.1} parent=11 // pred_region
          _
        $region68: #{tpu_custom_call.1} parent=11 // pred_fallthru
          _
        // Predicated region
        $region69: #{tpu_custom_call.1} parent=11 // pred_check
          %p1088 = pneg %p491
        $region70: #{tpu_custom_call.1} parent=11 // pred_check_branch
          %1090 = sbr.rel (%p1088) target = $region72
        $region71: #{tpu_custom_call.1} parent=11 // pred_region
          _
        $region72: #{tpu_custom_call.1} parent=11 // pred_fallthru
          _
        // Predicated region
        $region73: #{tpu_custom_call.1} parent=11 // pred_check
          %p1091 = pneg %p512
        $region74: #{tpu_custom_call.1} parent=11 // pred_check_branch
          %1093 = sbr.rel (%p1091) target = $region76
        $region75: #{tpu_custom_call.1} parent=11 // pred_region
          _
        $region76: #{tpu_custom_call.1} parent=11 // pred_fallthru
          _
        // Predicated region
        $region77: #{tpu_custom_call.1} parent=11 // pred_check
          %p1094 = pneg %p533
        $region78: #{tpu_custom_call.1} parent=11 // pred_check_branch
          %1096 = sbr.rel (%p1094) target = $region80
        $region79: #{tpu_custom_call.1} parent=11 // pred_region
          _
        $region80: #{tpu_custom_call.1} parent=11 // pred_fallthru
          _
        // Predicated region
        $region81: #{tpu_custom_call.1} parent=11 // pred_check
          %p1097 = pneg %p554
        $region82: #{tpu_custom_call.1} parent=11 // pred_check_branch
          %1099 = sbr.rel (%p1097) target = $region84
        $region83: #{tpu_custom_call.1} parent=11 // pred_region
          _
        $region84: #{tpu_custom_call.1} parent=11 // pred_fallthru
          _
        // Predicated region
        $region85: #{tpu_custom_call.1} parent=11 // pred_check
          %p1100 = pneg %p575
        $region86: #{tpu_custom_call.1} parent=11 // pred_check_branch
          %1102 = sbr.rel (%p1100) target = $region88
        $region87: #{tpu_custom_call.1} parent=11 // pred_region
          _
        $region88: #{tpu_custom_call.1} parent=11 // pred_fallthru
          _
        // Predicated region
        $region89: #{tpu_custom_call.1} parent=11 // pred_check
          %p1103 = pneg %p596
        $region90: #{tpu_custom_call.1} parent=11 // pred_check_branch
          %1105 = sbr.rel (%p1103) target = $region92
        $region91: #{tpu_custom_call.1} parent=11 // pred_region
          _
        $region92: #{tpu_custom_call.1} parent=11 // pred_fallthru
          _
        // Predicated region
        $region93: #{tpu_custom_call.1} parent=11 // pred_check
          %p1106 = pneg %p617
        $region94: #{tpu_custom_call.1} parent=11 // pred_check_branch
          %1108 = sbr.rel (%p1106) target = $region96
        $region95: #{tpu_custom_call.1} parent=11 // pred_region
          _
        $region96: #{tpu_custom_call.1} parent=11 // pred_fallthru
          _
        // Predicated region
        $region97: #{tpu_custom_call.1} parent=11 // pred_check
          %p1109 = pneg %p638
        $region98: #{tpu_custom_call.1} parent=11 // pred_check_branch
          %1111 = sbr.rel (%p1109) target = $region100
        $region99: #{tpu_custom_call.1} parent=11 // pred_region
          _
        $region100: #{tpu_custom_call.1} parent=11 // pred_fallthru
          _
        // Predicated region
        $region101: #{tpu_custom_call.1} parent=11 // pred_check
          %p1112 = pneg %p659
        $region102: #{tpu_custom_call.1} parent=11 // pred_check_branch
          %1114 = sbr.rel (%p1112) target = $region104
        $region103: #{tpu_custom_call.1} parent=11 // pred_region
          _
        $region104: #{tpu_custom_call.1} parent=11 // pred_fallthru
          _
        // Predicated region
        $region105: #{tpu_custom_call.1} parent=11 // pred_check
          %p1115 = pneg %p680
        $region106: #{tpu_custom_call.1} parent=11 // pred_check_branch
          %1117 = sbr.rel (%p1115) target = $region108
        $region107: #{tpu_custom_call.1} parent=11 // pred_region
          _
        $region108: #{tpu_custom_call.1} parent=11 // pred_fallthru
          _
        // Predicated region
        $region109: #{tpu_custom_call.1} parent=11 // pred_check
          %p1118 = pneg %p701
        $region110: #{tpu_custom_call.1} parent=11 // pred_check_branch
          %1120 = sbr.rel (%p1118) target = $region112
        $region111: #{tpu_custom_call.1} parent=11 // pred_region
          _
        $region112: #{tpu_custom_call.1} parent=11 // pred_fallthru
          _
        // Predicated region
        $region113: #{tpu_custom_call.1} parent=11 // pred_check
          %p1121 = pneg %p722
        $region114: #{tpu_custom_call.1} parent=11 // pred_check_branch
          %1123 = sbr.rel (%p1121) target = $region116
        $region115: #{tpu_custom_call.1} parent=11 // pred_region
          _
        $region116: #{tpu_custom_call.1} parent=11 // pred_fallthru
          _
        // Predicated region
        $region117: #{tpu_custom_call.1} parent=11 // pred_check
          %p1124 = pneg %p743
        $region118: #{tpu_custom_call.1} parent=11 // pred_check_branch
          %1126 = sbr.rel (%p1124) target = $region120
        $region119: #{tpu_custom_call.1} parent=11 // pred_region
          _
        $region120: #{tpu_custom_call.1} parent=11 // pred_fallthru
          _
        // Predicated region
        $region121: #{tpu_custom_call.1} parent=11 // pred_check
          %p1127 = pneg %p764
        $region122: #{tpu_custom_call.1} parent=11 // pred_check_branch
          %1129 = sbr.rel (%p1127) target = $region124
        $region123: #{tpu_custom_call.1} parent=11 // pred_region
          _
        $region124: #{tpu_custom_call.1} parent=11 // pred_fallthru
          _
        // Predicated region
        $region125: #{tpu_custom_call.1} parent=11 // pred_check
          %p1130 = pneg %p785
        $region126: #{tpu_custom_call.1} parent=11 // pred_check_branch
          %1132 = sbr.rel (%p1130) target = $region128
        $region127: #{tpu_custom_call.1} parent=11 // pred_region
          _
        $region128: #{tpu_custom_call.1} parent=11 // pred_fallthru
          _
        // Predicated region
        $region129: #{tpu_custom_call.1} parent=11 // pred_check
          %p1133 = pneg %p806
        $region130: #{tpu_custom_call.1} parent=11 // pred_check_branch
          %1135 = sbr.rel (%p1133) target = $region132
        $region131: #{tpu_custom_call.1} parent=11 // pred_region
          _
        $region132: #{tpu_custom_call.1} parent=11 // pred_fallthru
          _
        // Predicated region
        $region133: #{tpu_custom_call.1} parent=11 // pred_check
          %p1136 = pneg %p827
        $region134: #{tpu_custom_call.1} parent=11 // pred_check_branch
          %1138 = sbr.rel (%p1136) target = $region136
        $region135: #{tpu_custom_call.1} parent=11 // pred_region
          _
        $region136: #{tpu_custom_call.1} parent=11 // pred_fallthru
          _
        // Predicated region
        $region137: #{tpu_custom_call.1} parent=11 // pred_check
          %p1139 = pneg %p848
        $region138: #{tpu_custom_call.1} parent=11 // pred_check_branch
          %1141 = sbr.rel (%p1139) target = $region140
        $region139: #{tpu_custom_call.1} parent=11 // pred_region
          _
        $region140: #{tpu_custom_call.1} parent=11 // pred_fallthru
          _
        // Predicated region
        $region141: #{tpu_custom_call.1} parent=11 // pred_check
          %p1142 = pneg %p869
        $region142: #{tpu_custom_call.1} parent=11 // pred_check_branch
          %1144 = sbr.rel (%p1142) target = $region144
        $region143: #{tpu_custom_call.1} parent=11 // pred_region
          _
        $region144: #{tpu_custom_call.1} parent=11 // pred_fallthru
          _
        // Predicated region
        $region145: #{tpu_custom_call.1} parent=11 // pred_check
          %p1145 = pneg %p890
        $region146: #{tpu_custom_call.1} parent=11 // pred_check_branch
          %1147 = sbr.rel (%p1145) target = $region148
        $region147: #{tpu_custom_call.1} parent=11 // pred_region
          _
        $region148: #{tpu_custom_call.1} parent=11 // pred_fallthru
          _
        // Predicated region
        $region149: #{tpu_custom_call.1} parent=11 // pred_check
          %p1148 = pneg %p911
        $region150: #{tpu_custom_call.1} parent=11 // pred_check_branch
          %1150 = sbr.rel (%p1148) target = $region152
        $region151: #{tpu_custom_call.1} parent=11 // pred_region
          _
        $region152: #{tpu_custom_call.1} parent=11 // pred_fallthru
          _
        // Predicated region
        $region153: #{tpu_custom_call.1} parent=11 // pred_check
          %p1151 = pneg %p932
        $region154: #{tpu_custom_call.1} parent=11 // pred_check_branch
          %1153 = sbr.rel (%p1151) target = $region156
        $region155: #{tpu_custom_call.1} parent=11 // pred_region
          _
        $region156: #{tpu_custom_call.1} parent=11 // pred_fallthru
          _
        // Predicated region
        $region157: #{tpu_custom_call.1} parent=11 // pred_check
          %p1154 = pneg %p953
        $region158: #{tpu_custom_call.1} parent=11 // pred_check_branch
          %1156 = sbr.rel (%p1154) target = $region160
        $region159: #{tpu_custom_call.1} parent=11 // pred_region
          _
        $region160: #{tpu_custom_call.1} parent=11 // pred_fallthru
          _
      $region12: #{tpu_custom_call.1} parent=5 // pred_fallthru
        _
      %p1157 = scmp.lt.s32.totalorder %s98, 2
      // Predicated region
      $region161: #{tpu_custom_call.1} parent=5 // pred_check
        %p1158 = pneg %p1157
      $region162: #{tpu_custom_call.1} parent=5 // pred_check_branch
        %1160 = sbr.rel (%p1158) target = $region164
      $region163: #{tpu_custom_call.1} parent=5 // pred_region
        // Predicated region
        $region165: #{tpu_custom_call.1} parent=163 // pred_check
          %p1161 = pneg %p118
        $region166: #{tpu_custom_call.1} parent=163 // pred_check_branch
          %1163 = sbr.rel (%p1161) target = $region168
        $region167: #{tpu_custom_call.1} parent=163 // pred_region
          %p1164 = scmp.lt.s32.totalorder %s98, 1
          %s1165 = scalar_select %p1164, %s98, 1
          %s1166 = smul.addr %s1165, 8
          %s1167 = scalar_lea.vmem %s1, %s1166
        $region168: #{tpu_custom_call.1} parent=163 // pred_fallthru
          _
        // Predicated region
        $region169: #{tpu_custom_call.1} parent=163 // pred_check
          %p1168 = pneg %p144
        $region170: #{tpu_custom_call.1} parent=163 // pred_check_branch
          %1170 = sbr.rel (%p1168) target = $region172
        $region171: #{tpu_custom_call.1} parent=163 // pred_region
          %p1171 = scmp.lt.s32.totalorder %s98, 1
          %s1172 = scalar_select %p1171, %s98, 1
          %s1173 = smul.addr %s1172, 8
          %s1174 = scalar_lea.vmem %s3, %s1173
        $region172: #{tpu_custom_call.1} parent=163 // pred_fallthru
          _
        // Predicated region
        $region173: #{tpu_custom_call.1} parent=163 // pred_check
          %p1175 = pneg %p170
        $region174: #{tpu_custom_call.1} parent=163 // pred_check_branch
          %1177 = sbr.rel (%p1175) target = $region176
        $region175: #{tpu_custom_call.1} parent=163 // pred_region
          %p1178 = scmp.lt.s32.totalorder %s98, 1
          %s1179 = scalar_select %p1178, %s98, 1
          %s1180 = smul.addr %s1179, 8
          %s1181 = scalar_lea.vmem %s5, %s1180
        $region176: #{tpu_custom_call.1} parent=163 // pred_fallthru
          _
      $region164: #{tpu_custom_call.1} parent=5 // pred_fallthru
        _
      %p1182 = scmp.le.s32.totalorder 1, %s98
      %p1183 = scmp.lt.s32.totalorder %s98, 3
      %p1184 = pnand %p1182, %p1183
      %p1185 = pneg %p1184
      // Predicated region
      $region177: #{tpu_custom_call.1} parent=5 // pred_check
        _
      $region178: #{tpu_custom_call.1} parent=5 // pred_check_branch
        %1187 = sbr.rel (%p1184) target = $region180
      $region179: #{tpu_custom_call.1} parent=5 // pred_region
        %s1188 = ssub.s32 %s98, 1
        %p1189 = scmp.lt.s32.totalorder %s103, 1
        %s1190 = scalar_select %p1189, %s103, 1
        %s1191 = smul.addr %s1190, 8
        %s1192 = scalar_lea.vmem %s1, %s1191
        %p1193 = pneg %p124
        %p1194 = pneg %p121
        %p1195 = scmp.lt.s32.totalorder %s103, 1
        %s1196 = scalar_select %p1195, %s103, 1
        %s1197 = smul.addr %s1196, 8
        %s1198 = scalar_lea.vmem %s3, %s1197
        %p1199 = pneg %p150
        %p1200 = pneg %p147
        %p1201 = scmp.lt.s32.totalorder %s103, 1
        %s1202 = scalar_select %p1201, %s103, 1
        %s1203 = smul.addr %s1202, 8
        %s1204 = scalar_lea.vmem %s5, %s1203
        %p1205 = pneg %p176
        %p1206 = pneg %p173
        %p1207 = pneg %p197
        %p1208 = pneg %p194
        %p1209 = pneg %p218
        %p1210 = pneg %p215
        %p1211 = pneg %p239
        %p1212 = pneg %p236
        %p1213 = pneg %p260
        %p1214 = pneg %p257
        %p1215 = pneg %p281
        %p1216 = pneg %p278
        %p1217 = pneg %p302
        %p1218 = pneg %p299
        %p1219 = pneg %p323
        %p1220 = pneg %p320
        %p1221 = pneg %p344
        %p1222 = pneg %p341
        %p1223 = pneg %p365
        %p1224 = pneg %p362
        %p1225 = pneg %p386
        %p1226 = pneg %p383
        %p1227 = pneg %p407
        %p1228 = pneg %p404
        %p1229 = pneg %p428
        %p1230 = pneg %p425
        %p1231 = pneg %p449
        %p1232 = pneg %p446
        %p1233 = pneg %p470
        %p1234 = pneg %p467
        %p1235 = pneg %p491
        %p1236 = pneg %p488
        %p1237 = pneg %p512
        %p1238 = pneg %p509
        %p1239 = pneg %p533
        %p1240 = pneg %p530
        %p1241 = pneg %p554
        %p1242 = pneg %p551
        %p1243 = pneg %p575
        %p1244 = pneg %p572
        %p1245 = pneg %p596
        %p1246 = pneg %p593
        %p1247 = pneg %p617
        %p1248 = pneg %p614
        %p1249 = pneg %p638
        %p1250 = pneg %p635
        %p1251 = pneg %p659
        %p1252 = pneg %p656
        %p1253 = pneg %p680
        %p1254 = pneg %p677
        %p1255 = pneg %p701
        %p1256 = pneg %p698
        %p1257 = pneg %p722
        %p1258 = pneg %p719
        %p1259 = pneg %p743
        %p1260 = pneg %p740
        %p1261 = pneg %p764
        %p1262 = pneg %p761
        %p1263 = pneg %p785
        %p1264 = pneg %p782
        %p1265 = pneg %p806
        %p1266 = pneg %p803
        %p1267 = pneg %p827
        %p1268 = pneg %p824
        %p1269 = pneg %p848
        %p1270 = pneg %p845
        %p1271 = pneg %p869
        %p1272 = pneg %p866
        %p1273 = pneg %p890
        %p1274 = pneg %p887
        %p1275 = pneg %p911
        %p1276 = pneg %p908
        %p1277 = pneg %p932
        %p1278 = pneg %p929
        %p1279 = pneg %p953
        %p1280 = pneg %p950
        %p1281 = pneg %p979
        %p1282 = pneg %p976
        %s1283 = sand.u32 %s966, 1
        %s1284 = scalar_lea.sflag [#allocation3], %s1283
        %s1285 = sand.u32 %s966, 1
        %s1286 = smul.addr %s1285, 8
        %s1287 = scalar_lea.vmem [#allocation2], %s1286
        %p1288 = pneg %p1005
        %p1289 = pneg %p1002
        %s1290 = sand.u32 %s103, 1
        %s1291 = scalar_lea.sflag [#allocation5], %s1290
        %s1292 = sand.u32 %s992, 1
        %s1293 = smul.addr %s1292, 8
        %s1294 = scalar_lea.vmem [#allocation4], %s1293
        %p1295 = pneg %p1031
        %p1296 = pneg %p1028
        %s1297 = sand.u32 %s103, 1
        %s1298 = scalar_lea.sflag [#allocation5], %s1297
        %s1299 = sand.u32 %s1018, 1
        %s1300 = smul.addr %s1299, 8
        %s1301 = scalar_lea.vmem [#allocation6], %s1300
        %p1302 = scmp.lt.s32.totalorder %s103, 1
        %s1303 = scalar_select %p1302, %s103, 1
        %s1304 = smul.addr %s1303, 8
        %s1305 = scalar_lea.vmem %s1, %s1304
        %p1306 = scmp.lt.s32.totalorder %s103, 1
        %s1307 = scalar_select %p1306, %s103, 1
        %s1308 = smul.addr %s1307, 8
        %s1309 = scalar_lea.vmem %s3, %s1308
        %p1310 = scmp.lt.s32.totalorder %s103, 1
        %s1311 = scalar_select %p1310, %s103, 1
        %s1312 = smul.addr %s1311, 8
        %s1313 = scalar_lea.vmem %s5, %s1312
        %v1314 = vld [vmem:[%s1305] sm:$0xff]
        %v1315 = vld [vmem:[%s7] sm:$0x1]
        %v1316 = vld [vmem:[%s9] sm:$0x1]
        %v1317 = vld [vmem:[%s11] sm:$0xff]
        %v1318 = vld [vmem:[%s11 + $0x8] sm:$0xff]
        %v1319 = vld [vmem:[%s11 + $0x10] sm:$0xff]
        %v1320 = vld [vmem:[%s11 + $0x18] sm:$0xff]
        %v1321 = vld [vmem:[%s13] sm:$0xff]
        %v1322 = vld [vmem:[%s13 + $0x8] sm:$0xff]
        %v1323 = vld [vmem:[%s13 + $0x10] sm:$0xff]
        %v1324 = vld [vmem:[%s13 + $0x18] sm:$0xff]
        %v1325 = vld [vmem:[%s15] sm:$0x1]
        %v1326 = vld [vmem:[%s17] sm:$0x1]
        %v1327 = vld [vmem:[%s19] sm:$0x1]
        %v1328 = vld [vmem:[%s21] sm:$0xff]
        %v1329 = vld [vmem:[%s21 + $0x8] sm:$0xff]
        %v1330 = vld [vmem:[%s21 + $0x10] sm:$0xff]
        %v1331 = vld [vmem:[%s21 + $0x18] sm:$0xff]
        %v1332 = vld [vmem:[%s23] sm:$0x1]
        %v1333 = vld [vmem:[%s25] sm:$0xff]
        %v1334 = vld [vmem:[%s25 + $0x8] sm:$0xff]
        %v1335 = vld [vmem:[%s25 + $0x10] sm:$0xff]
        %v1336 = vld [vmem:[%s25 + $0x18] sm:$0xff]
        %v1337 = vld [vmem:[%s25 + $0x20] sm:$0xff]
        %v1338 = vld [vmem:[%s25 + $0x28] sm:$0xff]
        %v1339 = vld [vmem:[%s25 + $0x30] sm:$0xff]
        %v1340 = vld [vmem:[%s25 + $0x38] sm:$0xff]
        %v1341 = vld [vmem:[%s25 + $0x40] sm:$0xff]
        %v1342 = vld [vmem:[%s25 + $0x48] sm:$0xff]
        %v1343 = vld [vmem:[%s25 + $0x50] sm:$0xff]
        %v1344 = vld [vmem:[%s25 + $0x58] sm:$0xff]
        %v1345 = vld [vmem:[%s25 + $0x60] sm:$0xff]
        %v1346 = vld [vmem:[%s25 + $0x68] sm:$0xff]
        %v1347 = vld [vmem:[%s25 + $0x70] sm:$0xff]
        %v1348 = vld [vmem:[%s25 + $0x78] sm:$0xff]
        %v1349 = vld [vmem:[%s27] sm:$0x1]
        %vm1350 = vcmask 261120
        %v1351 = vsel %vm1350, %v1314, 0.0
        %1352 = vadd.xlane.f32.xlu0 %v1351
        %v1353 = vpop.xlane.xlu0 %1352
        %v1354 = vrcp.pop 32.0
        %v1355 = vmul.f32 %v1353, %v1354
        %v1356 = vsub.f32 %v1314, %v1355
        %v1357 = vmul.f32 %v1356, %v1356
        %v1358 = vsel %vm1350, %v1357, 0.0
        %1359 = vadd.xlane.f32.xlu0 %v1358
        %v1360 = vpop.xlane.xlu0 %1359
        %v1361 = vmul.f32 %v1360, %v1354
        %v1362 = vadd.f32 %v1361, 1e-05
        %v1363 = vrsqrt.pop %v1362
        %v1364 = vmul.f32 %v1356, %v1363
        %v1366 = vlaneseq
        %v1367 = vshrl.u32 %v1366, 7
        %v1368 = vsub.s32 0, %v1367
        %v1369 = vrot.slane %v1315, %v1368
        %v1371 = vmul.f32 %v1364, %v1369
        %v1373 = vlaneseq
        %v1374 = vshrl.u32 %v1373, 7
        %v1375 = vsub.s32 0, %v1374
        %v1376 = vrot.slane %v1316, %v1375
        %v1378 = vadd.f32 %v1371, %v1376
        %v1380 = vsel %vm1350, %v1378, 0
        %1382 = vmatprep.subr.mxu0 0.0
        %1383 = vmatpush1.msra.mxu0 %v1317
        %1384 = vmatprep.subr.mxu0 0.0
        %1385 = vmatpush1.msra.mxu0 %v1318
        %1386 = vmatprep.subr.mxu0 0.0
        %1387 = vmatpush1.msra.mxu0 %v1319
        %1388 = vmatprep.subr.mxu0 0.0
        %1389 = vmatpush1.msra.mxu0 %v1320
        %1390 = vmatprep.subr.mxu0 0.0
        %1391 = vmatpush1.msra.mxu0 0.0
        %1392 = vmatprep.subr.mxu0 0.0
        %1393 = vmatpush1.msra.mxu0 0.0
        %1394 = vmatprep.subr.mxu0 0.0
        %1395 = vmatpush1.msra.mxu0 0.0
        %1396 = vmatprep.subr.mxu0 0.0
        %1397 = vmatpush1.msra.mxu0 0.0
        %1398 = vmatprep.subr.mxu0 0.0
        %1399 = vmatpush1.msra.mxu0 0.0
        %1400 = vmatprep.subr.mxu0 0.0
        %1401 = vmatpush1.msra.mxu0 0.0
        %1402 = vmatprep.subr.mxu0 0.0
        %1403 = vmatpush1.msra.mxu0 0.0
        %1404 = vmatprep.subr.mxu0 0.0
        %1405 = vmatpush1.msra.mxu0 0.0
        %1406 = vmatprep.subr.mxu0 0.0
        %1407 = vmatpush1.msra.mxu0 0.0
        %1408 = vmatprep.subr.mxu0 0.0
        %1409 = vmatpush1.msra.mxu0 0.0
        %1410 = vmatprep.subr.mxu0 0.0
        %1411 = vmatpush1.msra.mxu0 0.0
        %1412 = vmatprep.subr.mxu0 0.0
        %1413 = vmatpush1.msra.mxu0 0.0
        %1414 = vmatprep.subr.mxu0 0.0
        %1415 = vmatpush1.msra.mxu0 0.0
        %1416 = vmatprep.subr.mxu0 0.0
        %1417 = vmatpush1.msra.mxu0 0.0
        %1418 = vmatprep.subr.mxu0 0.0
        %1419 = vmatpush1.msra.mxu0 0.0
        %1420 = vmatprep.subr.mxu0 0.0
        %1421 = vmatpush1.msra.mxu0 0.0
        %1422 = vmatprep.subr.mxu0 0.0
        %1423 = vmatpush1.msra.mxu0 0.0
        %1424 = vmatprep.subr.mxu0 0.0
        %1425 = vmatpush1.msra.mxu0 0.0
        %1426 = vmatprep.subr.mxu0 0.0
        %1427 = vmatpush1.msra.mxu0 0.0
        %1428 = vmatprep.subr.mxu0 0.0
        %1429 = vmatpush1.msra.mxu0 0.0
        %1430 = vmatprep.subr.mxu0 0.0
        %1431 = vmatpush1.msra.mxu0 0.0
        %1432 = vmatprep.subr.mxu0 0.0
        %1433 = vmatpush1.msra.mxu0 0.0
        %1434 = vmatprep.subr.mxu0 0.0
        %1435 = vmatpush1.msra.mxu0 0.0
        %1436 = vmatprep.subr.mxu0 0.0
        %1437 = vmatpush1.msra.mxu0 0.0
        %1438 = vmatprep.subr.mxu0 0.0
        %1439 = vmatpush1.msra.mxu0 0.0
        %1440 = vmatprep.subr.mxu0 0.0
        %1441 = vmatpush1.msra.mxu0 0.0
        %1442 = vmatprep.subr.mxu0 0.0
        %1443 = vmatpush1.msra.mxu0 0.0
        %1444 = vmatprep.subr.mxu0 0.0
        %1445 = vmatpush1.msra.mxu0 0.0
        %1446 = vmatprep.mubr.f32.mxu0 0.0
        %1447 = vmatmul.mubr.f32.gmra.mrb[0].mxu0 %v1380
        %v1448 = vpop.f32.mrb[0].mxu0
        %v1449 = vadd.f32 0.0, %v1448
        %v1450 = vpop.f32.mrb[0].mxu0
        %1451 = vdwg.mxu0
        %v1452 = vlaneseq
        %v1453 = vand.u32 %v1452, 127
        %v1454 = vlaneseq
        %v1455 = vshrl.u32 %v1454, 7
        %v1456 = vmul.u32 %v1455, 8
        %vm1457 = vcmp.ge.s32.totalorder %v1453, %v1456
        %v1458 = vadd.s32 %v1455, 1
        %v1459 = vmul.u32 %v1458, 8
        %vm1460 = vcmp.lt.s32.totalorder %v1453, %v1459
        %vm1461 = vmand %vm1457, %vm1460
        %v1462 = vsel %vm1461, 1, 0
        %v1463 = vcvt.s32.f32 %v1462
        %v1466 = vunpack.c.l.s4 1966171168
        %v1467 = vunpack.c.0.s8 %v1466
        %v1468 = vlaneseq
        %v1469 = vshrl.u32 %v1468, 7
        %v1470 = vsub.s32 %v1467, %v1469
        %v1471 = vrot.slane %v1463, %v1470
        %v1472 = vcombine.high %v1471, %v1471
        %v1474 = vunpack.c.l.s4 1966171168
        %v1475 = vunpack.c.0.s8 %v1474
        %v1476 = vlaneseq
        %v1477 = vshrl.u32 %v1476, 7
        %v1478 = vsub.s32 %v1475, %v1477
        %v1479 = vrot.slane %v1471, %v1478
        %v1481 = vunpack.c.l.s4 1966171168
        %v1482 = vunpack.c.0.s8 %v1481
        %v1483 = vlaneseq
        %v1484 = vshrl.u32 %v1483, 7
        %v1485 = vsub.s32 %v1482, %v1484
        %v1486 = vrot.slane %v1472, %v1485
        %v1487 = vcombine.high %v1479, %v1479
        %v1488 = vcombine.high %v1486, %v1486
        %v1489 = vlaneseq
        %v1490 = vshrl.u32 %v1489, 7
        %v1491 = vsub.s32 0, %v1490
        %v1492 = vrot.slane %v1479, %v1491
        %v1493 = vlaneseq
        %v1494 = vshrl.u32 %v1493, 7
        %v1495 = vsub.s32 0, %v1494
        %v1496 = vrot.slane %v1486, %v1495
        %v1497 = vlaneseq
        %v1498 = vshrl.u32 %v1497, 7
        %v1499 = vsub.s32 0, %v1498
        %v1500 = vrot.slane %v1487, %v1499
        %v1501 = vlaneseq
        %v1502 = vshrl.u32 %v1501, 7
        %v1503 = vsub.s32 0, %v1502
        %v1504 = vrot.slane %v1488, %v1503
        %v1509 = vmul.f32 %v1449, %v1492
        %v1510 = vmul.f32 %v1449, %v1496
        %v1511 = vmul.f32 %v1449, %v1500
        %v1512 = vmul.f32 %v1449, %v1504
        %1514 = vrot.lane.b32.xlu0 %v1449, 96
        %v1515 = vpop.permute.xlu0 %1514
        %v1517 = vsel %vm1350, %v1509, 0
        %v1519 = vsel %vm1350, %v1515, 0
        %1521 = vmatprep.subr.mxu0 0.0
        %1522 = vmatpush1.xpose.msra.mxu0 %v1519
        %1523 = vmatprep.subr.mxu0 0.0
        %1524 = vmatpush1.xpose.msra.mxu0 0.0
        %1525 = vmatprep.subr.mxu0 0.0
        %1526 = vmatpush1.xpose.msra.mxu0 0.0
        %1527 = vmatprep.subr.mxu0 0.0
        %1528 = vmatpush1.xpose.msra.mxu0 0.0
        %1529 = vmatprep.subr.mxu0 0.0
        %1530 = vmatpush1.xpose.msra.mxu0 0.0
        %1531 = vmatprep.subr.mxu0 0.0
        %1532 = vmatpush1.xpose.msra.mxu0 0.0
        %1533 = vmatprep.subr.mxu0 0.0
        %1534 = vmatpush1.xpose.msra.mxu0 0.0
        %1535 = vmatprep.subr.mxu0 0.0
        %1536 = vmatpush1.xpose.msra.mxu0 0.0
        %1537 = vmatprep.subr.mxu0 0.0
        %1538 = vmatpush1.xpose.msra.mxu0 0.0
        %1539 = vmatprep.subr.mxu0 0.0
        %1540 = vmatpush1.xpose.msra.mxu0 0.0
        %1541 = vmatprep.subr.mxu0 0.0
        %1542 = vmatpush1.xpose.msra.mxu0 0.0
        %1543 = vmatprep.subr.mxu0 0.0
        %1544 = vmatpush1.xpose.msra.mxu0 0.0
        %1545 = vmatprep.subr.mxu0 0.0
        %1546 = vmatpush1.xpose.msra.mxu0 0.0
        %1547 = vmatprep.subr.mxu0 0.0
        %1548 = vmatpush1.xpose.msra.mxu0 0.0
        %1549 = vmatprep.subr.mxu0 0.0
        %1550 = vmatpush1.xpose.msra.mxu0 0.0
        %1551 = vmatprep.subr.mxu0 0.0
        %1552 = vmatpush1.xpose.msra.mxu0 0.0
        %1553 = vmatprep.subr.mxu0 0.0
        %1554 = vmatpush1.xpose.msra.mxu0 0.0
        %1555 = vmatprep.subr.mxu0 0.0
        %1556 = vmatpush1.xpose.msra.mxu0 0.0
        %1557 = vmatprep.subr.mxu0 0.0
        %1558 = vmatpush1.xpose.msra.mxu0 0.0
        %1559 = vmatprep.subr.mxu0 0.0
        %1560 = vmatpush1.xpose.msra.mxu0 0.0
        %1561 = vmatprep.subr.mxu0 0.0
        %1562 = vmatpush1.xpose.msra.mxu0 0.0
        %1563 = vmatprep.subr.mxu0 0.0
        %1564 = vmatpush1.xpose.msra.mxu0 0.0
        %1565 = vmatprep.subr.mxu0 0.0
        %1566 = vmatpush1.xpose.msra.mxu0 0.0
        %1567 = vmatprep.subr.mxu0 0.0
        %1568 = vmatpush1.xpose.msra.mxu0 0.0
        %1569 = vmatprep.subr.mxu0 0.0
        %1570 = vmatpush1.xpose.msra.mxu0 0.0
        %1571 = vmatprep.subr.mxu0 0.0
        %1572 = vmatpush1.xpose.msra.mxu0 0.0
        %1573 = vmatprep.subr.mxu0 0.0
        %1574 = vmatpush1.xpose.msra.mxu0 0.0
        %1575 = vmatprep.subr.mxu0 0.0
        %1576 = vmatpush1.xpose.msra.mxu0 0.0
        %1577 = vmatprep.subr.mxu0 0.0
        %1578 = vmatpush1.xpose.msra.mxu0 0.0
        %1579 = vmatprep.subr.mxu0 0.0
        %1580 = vmatpush1.xpose.msra.mxu0 0.0
        %1581 = vmatprep.subr.mxu0 0.0
        %1582 = vmatpush1.xpose.msra.mxu0 0.0
        %1583 = vmatprep.subr.mxu0 0.0
        %1584 = vmatpush1.xpose.msra.mxu0 0.0
        %1585 = vmatprep.mubr.f32.mxu0 0.0
        %1586 = vmatmul.mubr.f32.gmra.mrb[0].mxu0 %v1517
        %v1587 = vpop.f32.mrb[0].mxu0
        %v1588 = vadd.f32 0.0, %v1587
        %v1589 = vpop.f32.mrb[0].mxu0
        %1590 = vdwg.mxu0
        %v1592 = vsel %vm1350, %v1510, 0
        %1594 = vmatprep.subr.mxu0 0.0
        %1595 = vmatpush1.xpose.msra.mxu0 %v1519
        %1596 = vmatprep.subr.mxu0 0.0
        %1597 = vmatpush1.xpose.msra.mxu0 0.0
        %1598 = vmatprep.subr.mxu0 0.0
        %1599 = vmatpush1.xpose.msra.mxu0 0.0
        %1600 = vmatprep.subr.mxu0 0.0
        %1601 = vmatpush1.xpose.msra.mxu0 0.0
        %1602 = vmatprep.subr.mxu0 0.0
        %1603 = vmatpush1.xpose.msra.mxu0 0.0
        %1604 = vmatprep.subr.mxu0 0.0
        %1605 = vmatpush1.xpose.msra.mxu0 0.0
        %1606 = vmatprep.subr.mxu0 0.0
        %1607 = vmatpush1.xpose.msra.mxu0 0.0
        %1608 = vmatprep.subr.mxu0 0.0
        %1609 = vmatpush1.xpose.msra.mxu0 0.0
        %1610 = vmatprep.subr.mxu0 0.0
        %1611 = vmatpush1.xpose.msra.mxu0 0.0
        %1612 = vmatprep.subr.mxu0 0.0
        %1613 = vmatpush1.xpose.msra.mxu0 0.0
        %1614 = vmatprep.subr.mxu0 0.0
        %1615 = vmatpush1.xpose.msra.mxu0 0.0
        %1616 = vmatprep.subr.mxu0 0.0
        %1617 = vmatpush1.xpose.msra.mxu0 0.0
        %1618 = vmatprep.subr.mxu0 0.0
        %1619 = vmatpush1.xpose.msra.mxu0 0.0
        %1620 = vmatprep.subr.mxu0 0.0
        %1621 = vmatpush1.xpose.msra.mxu0 0.0
        %1622 = vmatprep.subr.mxu0 0.0
        %1623 = vmatpush1.xpose.msra.mxu0 0.0
        %1624 = vmatprep.subr.mxu0 0.0
        %1625 = vmatpush1.xpose.msra.mxu0 0.0
        %1626 = vmatprep.subr.mxu0 0.0
        %1627 = vmatpush1.xpose.msra.mxu0 0.0
        %1628 = vmatprep.subr.mxu0 0.0
        %1629 = vmatpush1.xpose.msra.mxu0 0.0
        %1630 = vmatprep.subr.mxu0 0.0
        %1631 = vmatpush1.xpose.msra.mxu0 0.0
        %1632 = vmatprep.subr.mxu0 0.0
        %1633 = vmatpush1.xpose.msra.mxu0 0.0
        %1634 = vmatprep.subr.mxu0 0.0
        %1635 = vmatpush1.xpose.msra.mxu0 0.0
        %1636 = vmatprep.subr.mxu0 0.0
        %1637 = vmatpush1.xpose.msra.mxu0 0.0
        %1638 = vmatprep.subr.mxu0 0.0
        %1639 = vmatpush1.xpose.msra.mxu0 0.0
        %1640 = vmatprep.subr.mxu0 0.0
        %1641 = vmatpush1.xpose.msra.mxu0 0.0
        %1642 = vmatprep.subr.mxu0 0.0
        %1643 = vmatpush1.xpose.msra.mxu0 0.0
        %1644 = vmatprep.subr.mxu0 0.0
        %1645 = vmatpush1.xpose.msra.mxu0 0.0
        %1646 = vmatprep.subr.mxu0 0.0
        %1647 = vmatpush1.xpose.msra.mxu0 0.0
        %1648 = vmatprep.subr.mxu0 0.0
        %1649 = vmatpush1.xpose.msra.mxu0 0.0
        %1650 = vmatprep.subr.mxu0 0.0
        %1651 = vmatpush1.xpose.msra.mxu0 0.0
        %1652 = vmatprep.subr.mxu0 0.0
        %1653 = vmatpush1.xpose.msra.mxu0 0.0
        %1654 = vmatprep.subr.mxu0 0.0
        %1655 = vmatpush1.xpose.msra.mxu0 0.0
        %1656 = vmatprep.subr.mxu0 0.0
        %1657 = vmatpush1.xpose.msra.mxu0 0.0
        %1658 = vmatprep.mubr.f32.mxu0 0.0
        %1659 = vmatmul.mubr.f32.gmra.mrb[0].mxu0 %v1592
        %v1660 = vpop.f32.mrb[0].mxu0
        %v1661 = vadd.f32 0.0, %v1660
        %v1662 = vpop.f32.mrb[0].mxu0
        %1663 = vdwg.mxu0
        %v1665 = vsel %vm1350, %v1511, 0
        %1667 = vmatprep.subr.mxu0 0.0
        %1668 = vmatpush1.xpose.msra.mxu0 %v1519
        %1669 = vmatprep.subr.mxu0 0.0
        %1670 = vmatpush1.xpose.msra.mxu0 0.0
        %1671 = vmatprep.subr.mxu0 0.0
        %1672 = vmatpush1.xpose.msra.mxu0 0.0
        %1673 = vmatprep.subr.mxu0 0.0
        %1674 = vmatpush1.xpose.msra.mxu0 0.0
        %1675 = vmatprep.subr.mxu0 0.0
        %1676 = vmatpush1.xpose.msra.mxu0 0.0
        %1677 = vmatprep.subr.mxu0 0.0
        %1678 = vmatpush1.xpose.msra.mxu0 0.0
        %1679 = vmatprep.subr.mxu0 0.0
        %1680 = vmatpush1.xpose.msra.mxu0 0.0
        %1681 = vmatprep.subr.mxu0 0.0
        %1682 = vmatpush1.xpose.msra.mxu0 0.0
        %1683 = vmatprep.subr.mxu0 0.0
        %1684 = vmatpush1.xpose.msra.mxu0 0.0
        %1685 = vmatprep.subr.mxu0 0.0
        %1686 = vmatpush1.xpose.msra.mxu0 0.0
        %1687 = vmatprep.subr.mxu0 0.0
        %1688 = vmatpush1.xpose.msra.mxu0 0.0
        %1689 = vmatprep.subr.mxu0 0.0
        %1690 = vmatpush1.xpose.msra.mxu0 0.0
        %1691 = vmatprep.subr.mxu0 0.0
        %1692 = vmatpush1.xpose.msra.mxu0 0.0
        %1693 = vmatprep.subr.mxu0 0.0
        %1694 = vmatpush1.xpose.msra.mxu0 0.0
        %1695 = vmatprep.subr.mxu0 0.0
        %1696 = vmatpush1.xpose.msra.mxu0 0.0
        %1697 = vmatprep.subr.mxu0 0.0
        %1698 = vmatpush1.xpose.msra.mxu0 0.0
        %1699 = vmatprep.subr.mxu0 0.0
        %1700 = vmatpush1.xpose.msra.mxu0 0.0
        %1701 = vmatprep.subr.mxu0 0.0
        %1702 = vmatpush1.xpose.msra.mxu0 0.0
        %1703 = vmatprep.subr.mxu0 0.0
        %1704 = vmatpush1.xpose.msra.mxu0 0.0
        %1705 = vmatprep.subr.mxu0 0.0
        %1706 = vmatpush1.xpose.msra.mxu0 0.0
        %1707 = vmatprep.subr.mxu0 0.0
        %1708 = vmatpush1.xpose.msra.mxu0 0.0
        %1709 = vmatprep.subr.mxu0 0.0
        %1710 = vmatpush1.xpose.msra.mxu0 0.0
        %1711 = vmatprep.subr.mxu0 0.0
        %1712 = vmatpush1.xpose.msra.mxu0 0.0
        %1713 = vmatprep.subr.mxu0 0.0
        %1714 = vmatpush1.xpose.msra.mxu0 0.0
        %1715 = vmatprep.subr.mxu0 0.0
        %1716 = vmatpush1.xpose.msra.mxu0 0.0
        %1717 = vmatprep.subr.mxu0 0.0
        %1718 = vmatpush1.xpose.msra.mxu0 0.0
        %1719 = vmatprep.subr.mxu0 0.0
        %1720 = vmatpush1.xpose.msra.mxu0 0.0
        %1721 = vmatprep.subr.mxu0 0.0
        %1722 = vmatpush1.xpose.msra.mxu0 0.0
        %1723 = vmatprep.subr.mxu0 0.0
        %1724 = vmatpush1.xpose.msra.mxu0 0.0
        %1725 = vmatprep.subr.mxu0 0.0
        %1726 = vmatpush1.xpose.msra.mxu0 0.0
        %1727 = vmatprep.subr.mxu0 0.0
        %1728 = vmatpush1.xpose.msra.mxu0 0.0
        %1729 = vmatprep.subr.mxu0 0.0
        %1730 = vmatpush1.xpose.msra.mxu0 0.0
        %1731 = vmatprep.mubr.f32.mxu0 0.0
        %1732 = vmatmul.mubr.f32.gmra.mrb[0].mxu0 %v1665
        %v1733 = vpop.f32.mrb[0].mxu0
        %v1734 = vadd.f32 0.0, %v1733
        %v1735 = vpop.f32.mrb[0].mxu0
        %1736 = vdwg.mxu0
        %v1738 = vsel %vm1350, %v1512, 0
        %1740 = vmatprep.subr.mxu0 0.0
        %1741 = vmatpush1.xpose.msra.mxu0 %v1519
        %1742 = vmatprep.subr.mxu0 0.0
        %1743 = vmatpush1.xpose.msra.mxu0 0.0
        %1744 = vmatprep.subr.mxu0 0.0
        %1745 = vmatpush1.xpose.msra.mxu0 0.0
        %1746 = vmatprep.subr.mxu0 0.0
        %1747 = vmatpush1.xpose.msra.mxu0 0.0
        %1748 = vmatprep.subr.mxu0 0.0
        %1749 = vmatpush1.xpose.msra.mxu0 0.0
        %1750 = vmatprep.subr.mxu0 0.0
        %1751 = vmatpush1.xpose.msra.mxu0 0.0
        %1752 = vmatprep.subr.mxu0 0.0
        %1753 = vmatpush1.xpose.msra.mxu0 0.0
        %1754 = vmatprep.subr.mxu0 0.0
        %1755 = vmatpush1.xpose.msra.mxu0 0.0
        %1756 = vmatprep.subr.mxu0 0.0
        %1757 = vmatpush1.xpose.msra.mxu0 0.0
        %1758 = vmatprep.subr.mxu0 0.0
        %1759 = vmatpush1.xpose.msra.mxu0 0.0
        %1760 = vmatprep.subr.mxu0 0.0
        %1761 = vmatpush1.xpose.msra.mxu0 0.0
        %1762 = vmatprep.subr.mxu0 0.0
        %1763 = vmatpush1.xpose.msra.mxu0 0.0
        %1764 = vmatprep.subr.mxu0 0.0
        %1765 = vmatpush1.xpose.msra.mxu0 0.0
        %1766 = vmatprep.subr.mxu0 0.0
        %1767 = vmatpush1.xpose.msra.mxu0 0.0
        %1768 = vmatprep.subr.mxu0 0.0
        %1769 = vmatpush1.xpose.msra.mxu0 0.0
        %1770 = vmatprep.subr.mxu0 0.0
        %1771 = vmatpush1.xpose.msra.mxu0 0.0
        %1772 = vmatprep.subr.mxu0 0.0
        %1773 = vmatpush1.xpose.msra.mxu0 0.0
        %1774 = vmatprep.subr.mxu0 0.0
        %1775 = vmatpush1.xpose.msra.mxu0 0.0
        %1776 = vmatprep.subr.mxu0 0.0
        %1777 = vmatpush1.xpose.msra.mxu0 0.0
        %1778 = vmatprep.subr.mxu0 0.0
        %1779 = vmatpush1.xpose.msra.mxu0 0.0
        %1780 = vmatprep.subr.mxu0 0.0
        %1781 = vmatpush1.xpose.msra.mxu0 0.0
        %1782 = vmatprep.subr.mxu0 0.0
        %1783 = vmatpush1.xpose.msra.mxu0 0.0
        %1784 = vmatprep.subr.mxu0 0.0
        %1785 = vmatpush1.xpose.msra.mxu0 0.0
        %1786 = vmatprep.subr.mxu0 0.0
        %1787 = vmatpush1.xpose.msra.mxu0 0.0
        %1788 = vmatprep.subr.mxu0 0.0
        %1789 = vmatpush1.xpose.msra.mxu0 0.0
        %1790 = vmatprep.subr.mxu0 0.0
        %1791 = vmatpush1.xpose.msra.mxu0 0.0
        %1792 = vmatprep.subr.mxu0 0.0
        %1793 = vmatpush1.xpose.msra.mxu0 0.0
        %1794 = vmatprep.subr.mxu0 0.0
        %1795 = vmatpush1.xpose.msra.mxu0 0.0
        %1796 = vmatprep.subr.mxu0 0.0
        %1797 = vmatpush1.xpose.msra.mxu0 0.0
        %1798 = vmatprep.subr.mxu0 0.0
        %1799 = vmatpush1.xpose.msra.mxu0 0.0
        %1800 = vmatprep.subr.mxu0 0.0
        %1801 = vmatpush1.xpose.msra.mxu0 0.0
        %1802 = vmatprep.subr.mxu0 0.0
        %1803 = vmatpush1.xpose.msra.mxu0 0.0
        %1804 = vmatprep.mubr.f32.mxu0 0.0
        %1805 = vmatmul.mubr.f32.gmra.mrb[0].mxu0 %v1738
        %v1806 = vpop.f32.mrb[0].mxu0
        %v1807 = vadd.f32 0.0, %v1806
        %v1808 = vpop.f32.mrb[0].mxu0
        %1809 = vdwg.mxu0
        %v1810 = vmul.f32 %v1588, 0.35355338
        %v1811 = vmul.f32 %v1661, 0.35355338
        %v1812 = vmul.f32 %v1734, 0.35355338
        %v1813 = vmul.f32 %v1807, 0.35355338
        %vm1814 = vcmask 64512
        %v1815 = vsel %vm1814, %v1810, -inf
        %1816 = vmax.xlane.f32.xlu0 %v1815
        %v1817 = vpop.xlane.xlu0 %1816
        %v1818 = vsel %vm1814, %v1811, -inf
        %1819 = vmax.xlane.f32.xlu0 %v1818
        %v1820 = vpop.xlane.xlu0 %1819
        %v1821 = vsel %vm1814, %v1812, -inf
        %1822 = vmax.xlane.f32.xlu0 %v1821
        %v1823 = vpop.xlane.xlu0 %1822
        %v1824 = vsel %vm1814, %v1813, -inf
        %1825 = vmax.xlane.f32.xlu0 %v1824
        %v1826 = vpop.xlane.xlu0 %1825
        %v1827 = vsub.f32 %v1810, %v1817
        %v1828 = vsub.f32 %v1811, %v1820
        %v1829 = vsub.f32 %v1812, %v1823
        %v1830 = vsub.f32 %v1813, %v1826
        %v1831 = vmul.f32 %v1827, 1.442695
        %v1832 = vpow.pop %v1831
        %v1833 = vmul.f32 %v1828, 1.442695
        %v1834 = vpow.pop %v1833
        %v1835 = vmul.f32 %v1829, 1.442695
        %v1836 = vpow.pop %v1835
        %v1837 = vmul.f32 %v1830, 1.442695
        %v1838 = vpow.pop %v1837
        %v1839 = vsel %vm1814, %v1832, 0.0
        %1840 = vadd.xlane.f32.xlu0 %v1839
        %v1841 = vpop.xlane.xlu0 %1840
        %v1842 = vsel %vm1814, %v1834, 0.0
        %1843 = vadd.xlane.f32.xlu0 %v1842
        %v1844 = vpop.xlane.xlu0 %1843
        %v1845 = vsel %vm1814, %v1836, 0.0
        %1846 = vadd.xlane.f32.xlu0 %v1845
        %v1847 = vpop.xlane.xlu0 %1846
        %v1848 = vsel %vm1814, %v1838, 0.0
        %1849 = vadd.xlane.f32.xlu0 %v1848
        %v1850 = vpop.xlane.xlu0 %1849
        %v1851 = vrcp.pop %v1841
        %v1852 = vrcp.pop %v1844
        %v1853 = vrcp.pop %v1847
        %v1854 = vrcp.pop %v1850
        %v1855 = vmul.f32 %v1832, %v1851
        %v1856 = vmul.f32 %v1834, %v1852
        %v1857 = vmul.f32 %v1836, %v1853
        %v1858 = vmul.f32 %v1838, %v1854
        %1859 = vrot.lane.b32.xlu0 %v1449, 64
        %v1860 = vpop.permute.xlu0 %1859
        %v1863 = vsel %vm1814, %v1855, 0
        %1865 = vmatprep.subr.mxu0 0.0
        %1866 = vmatpush1.msra.mxu0 %v1860
        %1867 = vmatprep.subr.mxu0 0.0
        %1868 = vmatpush1.msra.mxu0 0.0
        %1869 = vmatprep.subr.mxu0 0.0
        %1870 = vmatpush1.msra.mxu0 0.0
        %1871 = vmatprep.subr.mxu0 0.0
        %1872 = vmatpush1.msra.mxu0 0.0
        %1873 = vmatprep.subr.mxu0 0.0
        %1874 = vmatpush1.msra.mxu0 0.0
        %1875 = vmatprep.subr.mxu0 0.0
        %1876 = vmatpush1.msra.mxu0 0.0
        %1877 = vmatprep.subr.mxu0 0.0
        %1878 = vmatpush1.msra.mxu0 0.0
        %1879 = vmatprep.subr.mxu0 0.0
        %1880 = vmatpush1.msra.mxu0 0.0
        %1881 = vmatprep.subr.mxu0 0.0
        %1882 = vmatpush1.msra.mxu0 0.0
        %1883 = vmatprep.subr.mxu0 0.0
        %1884 = vmatpush1.msra.mxu0 0.0
        %1885 = vmatprep.subr.mxu0 0.0
        %1886 = vmatpush1.msra.mxu0 0.0
        %1887 = vmatprep.subr.mxu0 0.0
        %1888 = vmatpush1.msra.mxu0 0.0
        %1889 = vmatprep.subr.mxu0 0.0
        %1890 = vmatpush1.msra.mxu0 0.0
        %1891 = vmatprep.subr.mxu0 0.0
        %1892 = vmatpush1.msra.mxu0 0.0
        %1893 = vmatprep.subr.mxu0 0.0
        %1894 = vmatpush1.msra.mxu0 0.0
        %1895 = vmatprep.subr.mxu0 0.0
        %1896 = vmatpush1.msra.mxu0 0.0
        %1897 = vmatprep.subr.mxu0 0.0
        %1898 = vmatpush1.msra.mxu0 0.0
        %1899 = vmatprep.subr.mxu0 0.0
        %1900 = vmatpush1.msra.mxu0 0.0
        %1901 = vmatprep.subr.mxu0 0.0
        %1902 = vmatpush1.msra.mxu0 0.0
        %1903 = vmatprep.subr.mxu0 0.0
        %1904 = vmatpush1.msra.mxu0 0.0
        %1905 = vmatprep.subr.mxu0 0.0
        %1906 = vmatpush1.msra.mxu0 0.0
        %1907 = vmatprep.subr.mxu0 0.0
        %1908 = vmatpush1.msra.mxu0 0.0
        %1909 = vmatprep.subr.mxu0 0.0
        %1910 = vmatpush1.msra.mxu0 0.0
        %1911 = vmatprep.subr.mxu0 0.0
        %1912 = vmatpush1.msra.mxu0 0.0
        %1913 = vmatprep.subr.mxu0 0.0
        %1914 = vmatpush1.msra.mxu0 0.0
        %1915 = vmatprep.subr.mxu0 0.0
        %1916 = vmatpush1.msra.mxu0 0.0
        %1917 = vmatprep.subr.mxu0 0.0
        %1918 = vmatpush1.msra.mxu0 0.0
        %1919 = vmatprep.subr.mxu0 0.0
        %1920 = vmatpush1.msra.mxu0 0.0
        %1921 = vmatprep.subr.mxu0 0.0
        %1922 = vmatpush1.msra.mxu0 0.0
        %1923 = vmatprep.subr.mxu0 0.0
        %1924 = vmatpush1.msra.mxu0 0.0
        %1925 = vmatprep.subr.mxu0 0.0
        %1926 = vmatpush1.msra.mxu0 0.0
        %1927 = vmatprep.subr.mxu0 0.0
        %1928 = vmatpush1.msra.mxu0 0.0
        %1929 = vmatprep.mubr.f32.mxu0 0.0
        %1930 = vmatmul.mubr.f32.gmra.mrb[0].mxu0 %v1863
        %v1931 = vpop.f32.mrb[0].mxu0
        %v1932 = vadd.f32 0.0, %v1931
        %v1933 = vpop.f32.mrb[0].mxu0
        %1934 = vdwg.mxu0
        %v1936 = vsel %vm1814, %v1856, 0
        %1938 = vmatprep.subr.mxu0 0.0
        %1939 = vmatpush1.msra.mxu0 %v1860
        %1940 = vmatprep.subr.mxu0 0.0
        %1941 = vmatpush1.msra.mxu0 0.0
        %1942 = vmatprep.subr.mxu0 0.0
        %1943 = vmatpush1.msra.mxu0 0.0
        %1944 = vmatprep.subr.mxu0 0.0
        %1945 = vmatpush1.msra.mxu0 0.0
        %1946 = vmatprep.subr.mxu0 0.0
        %1947 = vmatpush1.msra.mxu0 0.0
        %1948 = vmatprep.subr.mxu0 0.0
        %1949 = vmatpush1.msra.mxu0 0.0
        %1950 = vmatprep.subr.mxu0 0.0
        %1951 = vmatpush1.msra.mxu0 0.0
        %1952 = vmatprep.subr.mxu0 0.0
        %1953 = vmatpush1.msra.mxu0 0.0
        %1954 = vmatprep.subr.mxu0 0.0
        %1955 = vmatpush1.msra.mxu0 0.0
        %1956 = vmatprep.subr.mxu0 0.0
        %1957 = vmatpush1.msra.mxu0 0.0
        %1958 = vmatprep.subr.mxu0 0.0
        %1959 = vmatpush1.msra.mxu0 0.0
        %1960 = vmatprep.subr.mxu0 0.0
        %1961 = vmatpush1.msra.mxu0 0.0
        %1962 = vmatprep.subr.mxu0 0.0
        %1963 = vmatpush1.msra.mxu0 0.0
        %1964 = vmatprep.subr.mxu0 0.0
        %1965 = vmatpush1.msra.mxu0 0.0
        %1966 = vmatprep.subr.mxu0 0.0
        %1967 = vmatpush1.msra.mxu0 0.0
        %1968 = vmatprep.subr.mxu0 0.0
        %1969 = vmatpush1.msra.mxu0 0.0
        %1970 = vmatprep.subr.mxu0 0.0
        %1971 = vmatpush1.msra.mxu0 0.0
        %1972 = vmatprep.subr.mxu0 0.0
        %1973 = vmatpush1.msra.mxu0 0.0
        %1974 = vmatprep.subr.mxu0 0.0
        %1975 = vmatpush1.msra.mxu0 0.0
        %1976 = vmatprep.subr.mxu0 0.0
        %1977 = vmatpush1.msra.mxu0 0.0
        %1978 = vmatprep.subr.mxu0 0.0
        %1979 = vmatpush1.msra.mxu0 0.0
        %1980 = vmatprep.subr.mxu0 0.0
        %1981 = vmatpush1.msra.mxu0 0.0
        %1982 = vmatprep.subr.mxu0 0.0
        %1983 = vmatpush1.msra.mxu0 0.0
        %1984 = vmatprep.subr.mxu0 0.0
        %1985 = vmatpush1.msra.mxu0 0.0
        %1986 = vmatprep.subr.mxu0 0.0
        %1987 = vmatpush1.msra.mxu0 0.0
        %1988 = vmatprep.subr.mxu0 0.0
        %1989 = vmatpush1.msra.mxu0 0.0
        %1990 = vmatprep.subr.mxu0 0.0
        %1991 = vmatpush1.msra.mxu0 0.0
        %1992 = vmatprep.subr.mxu0 0.0
        %1993 = vmatpush1.msra.mxu0 0.0
        %1994 = vmatprep.subr.mxu0 0.0
        %1995 = vmatpush1.msra.mxu0 0.0
        %1996 = vmatprep.subr.mxu0 0.0
        %1997 = vmatpush1.msra.mxu0 0.0
        %1998 = vmatprep.subr.mxu0 0.0
        %1999 = vmatpush1.msra.mxu0 0.0
        %2000 = vmatprep.subr.mxu0 0.0
        %2001 = vmatpush1.msra.mxu0 0.0
        %2002 = vmatprep.mubr.f32.mxu0 0.0
        %2003 = vmatmul.mubr.f32.gmra.mrb[0].mxu0 %v1936
        %v2004 = vpop.f32.mrb[0].mxu0
        %v2005 = vadd.f32 0.0, %v2004
        %v2006 = vpop.f32.mrb[0].mxu0
        %2007 = vdwg.mxu0
        %v2009 = vsel %vm1814, %v1857, 0
        %2011 = vmatprep.subr.mxu0 0.0
        %2012 = vmatpush1.msra.mxu0 %v1860
        %2013 = vmatprep.subr.mxu0 0.0
        %2014 = vmatpush1.msra.mxu0 0.0
        %2015 = vmatprep.subr.mxu0 0.0
        %2016 = vmatpush1.msra.mxu0 0.0
        %2017 = vmatprep.subr.mxu0 0.0
        %2018 = vmatpush1.msra.mxu0 0.0
        %2019 = vmatprep.subr.mxu0 0.0
        %2020 = vmatpush1.msra.mxu0 0.0
        %2021 = vmatprep.subr.mxu0 0.0
        %2022 = vmatpush1.msra.mxu0 0.0
        %2023 = vmatprep.subr.mxu0 0.0
        %2024 = vmatpush1.msra.mxu0 0.0
        %2025 = vmatprep.subr.mxu0 0.0
        %2026 = vmatpush1.msra.mxu0 0.0
        %2027 = vmatprep.subr.mxu0 0.0
        %2028 = vmatpush1.msra.mxu0 0.0
        %2029 = vmatprep.subr.mxu0 0.0
        %2030 = vmatpush1.msra.mxu0 0.0
        %2031 = vmatprep.subr.mxu0 0.0
        %2032 = vmatpush1.msra.mxu0 0.0
        %2033 = vmatprep.subr.mxu0 0.0
        %2034 = vmatpush1.msra.mxu0 0.0
        %2035 = vmatprep.subr.mxu0 0.0
        %2036 = vmatpush1.msra.mxu0 0.0
        %2037 = vmatprep.subr.mxu0 0.0
        %2038 = vmatpush1.msra.mxu0 0.0
        %2039 = vmatprep.subr.mxu0 0.0
        %2040 = vmatpush1.msra.mxu0 0.0
        %2041 = vmatprep.subr.mxu0 0.0
        %2042 = vmatpush1.msra.mxu0 0.0
        %2043 = vmatprep.subr.mxu0 0.0
        %2044 = vmatpush1.msra.mxu0 0.0
        %2045 = vmatprep.subr.mxu0 0.0
        %2046 = vmatpush1.msra.mxu0 0.0
        %2047 = vmatprep.subr.mxu0 0.0
        %2048 = vmatpush1.msra.mxu0 0.0
        %2049 = vmatprep.subr.mxu0 0.0
        %2050 = vmatpush1.msra.mxu0 0.0
        %2051 = vmatprep.subr.mxu0 0.0
        %2052 = vmatpush1.msra.mxu0 0.0
        %2053 = vmatprep.subr.mxu0 0.0
        %2054 = vmatpush1.msra.mxu0 0.0
        %2055 = vmatprep.subr.mxu0 0.0
        %2056 = vmatpush1.msra.mxu0 0.0
        %2057 = vmatprep.subr.mxu0 0.0
        %2058 = vmatpush1.msra.mxu0 0.0
        %2059 = vmatprep.subr.mxu0 0.0
        %2060 = vmatpush1.msra.mxu0 0.0
        %2061 = vmatprep.subr.mxu0 0.0
        %2062 = vmatpush1.msra.mxu0 0.0
        %2063 = vmatprep.subr.mxu0 0.0
        %2064 = vmatpush1.msra.mxu0 0.0
        %2065 = vmatprep.subr.mxu0 0.0
        %2066 = vmatpush1.msra.mxu0 0.0
        %2067 = vmatprep.subr.mxu0 0.0
        %2068 = vmatpush1.msra.mxu0 0.0
        %2069 = vmatprep.subr.mxu0 0.0
        %2070 = vmatpush1.msra.mxu0 0.0
        %2071 = vmatprep.subr.mxu0 0.0
        %2072 = vmatpush1.msra.mxu0 0.0
        %2073 = vmatprep.subr.mxu0 0.0
        %2074 = vmatpush1.msra.mxu0 0.0
        %2075 = vmatprep.mubr.f32.mxu0 0.0
        %2076 = vmatmul.mubr.f32.gmra.mrb[0].mxu0 %v2009
        %v2077 = vpop.f32.mrb[0].mxu0
        %v2078 = vadd.f32 0.0, %v2077
        %v2079 = vpop.f32.mrb[0].mxu0
        %2080 = vdwg.mxu0
        %v2082 = vsel %vm1814, %v1858, 0
        %2084 = vmatprep.subr.mxu0 0.0
        %2085 = vmatpush1.msra.mxu0 %v1860
        %2086 = vmatprep.subr.mxu0 0.0
        %2087 = vmatpush1.msra.mxu0 0.0
        %2088 = vmatprep.subr.mxu0 0.0
        %2089 = vmatpush1.msra.mxu0 0.0
        %2090 = vmatprep.subr.mxu0 0.0
        %2091 = vmatpush1.msra.mxu0 0.0
        %2092 = vmatprep.subr.mxu0 0.0
        %2093 = vmatpush1.msra.mxu0 0.0
        %2094 = vmatprep.subr.mxu0 0.0
        %2095 = vmatpush1.msra.mxu0 0.0
        %2096 = vmatprep.subr.mxu0 0.0
        %2097 = vmatpush1.msra.mxu0 0.0
        %2098 = vmatprep.subr.mxu0 0.0
        %2099 = vmatpush1.msra.mxu0 0.0
        %2100 = vmatprep.subr.mxu0 0.0
        %2101 = vmatpush1.msra.mxu0 0.0
        %2102 = vmatprep.subr.mxu0 0.0
        %2103 = vmatpush1.msra.mxu0 0.0
        %2104 = vmatprep.subr.mxu0 0.0
        %2105 = vmatpush1.msra.mxu0 0.0
        %2106 = vmatprep.subr.mxu0 0.0
        %2107 = vmatpush1.msra.mxu0 0.0
        %2108 = vmatprep.subr.mxu0 0.0
        %2109 = vmatpush1.msra.mxu0 0.0
        %2110 = vmatprep.subr.mxu0 0.0
        %2111 = vmatpush1.msra.mxu0 0.0
        %2112 = vmatprep.subr.mxu0 0.0
        %2113 = vmatpush1.msra.mxu0 0.0
        %2114 = vmatprep.subr.mxu0 0.0
        %2115 = vmatpush1.msra.mxu0 0.0
        %2116 = vmatprep.subr.mxu0 0.0
        %2117 = vmatpush1.msra.mxu0 0.0
        %2118 = vmatprep.subr.mxu0 0.0
        %2119 = vmatpush1.msra.mxu0 0.0
        %2120 = vmatprep.subr.mxu0 0.0
        %2121 = vmatpush1.msra.mxu0 0.0
        %2122 = vmatprep.subr.mxu0 0.0
        %2123 = vmatpush1.msra.mxu0 0.0
        %2124 = vmatprep.subr.mxu0 0.0
        %2125 = vmatpush1.msra.mxu0 0.0
        %2126 = vmatprep.subr.mxu0 0.0
        %2127 = vmatpush1.msra.mxu0 0.0
        %2128 = vmatprep.subr.mxu0 0.0
        %2129 = vmatpush1.msra.mxu0 0.0
        %2130 = vmatprep.subr.mxu0 0.0
        %2131 = vmatpush1.msra.mxu0 0.0
        %2132 = vmatprep.subr.mxu0 0.0
        %2133 = vmatpush1.msra.mxu0 0.0
        %2134 = vmatprep.subr.mxu0 0.0
        %2135 = vmatpush1.msra.mxu0 0.0
        %2136 = vmatprep.subr.mxu0 0.0
        %2137 = vmatpush1.msra.mxu0 0.0
        %2138 = vmatprep.subr.mxu0 0.0
        %2139 = vmatpush1.msra.mxu0 0.0
        %2140 = vmatprep.subr.mxu0 0.0
        %2141 = vmatpush1.msra.mxu0 0.0
        %2142 = vmatprep.subr.mxu0 0.0
        %2143 = vmatpush1.msra.mxu0 0.0
        %2144 = vmatprep.subr.mxu0 0.0
        %2145 = vmatpush1.msra.mxu0 0.0
        %2146 = vmatprep.subr.mxu0 0.0
        %2147 = vmatpush1.msra.mxu0 0.0
        %2148 = vmatprep.mubr.f32.mxu0 0.0
        %2149 = vmatmul.mubr.f32.gmra.mrb[0].mxu0 %v2082
        %v2150 = vpop.f32.mrb[0].mxu0
        %v2151 = vadd.f32 0.0, %v2150
        %v2152 = vpop.f32.mrb[0].mxu0
        %2153 = vdwg.mxu0
        %v2154 = vmul.f32 %v1932, %v1492
        %v2155 = vmul.f32 %v2005, %v1496
        %v2156 = vmul.f32 %v2078, %v1500
        %v2157 = vmul.f32 %v2151, %v1504
        %v2158 = vsel %vm1350, %v2154, 0.0
        %v2159 = vsel %vm1350, %v2155, 0.0
        %v2160 = vadd.f32 %v2158, %v2159
        %v2161 = vsel %vm1350, %v2156, 0.0
        %v2162 = vadd.f32 %v2160, %v2161
        %v2163 = vsel %vm1350, %v2157, 0.0
        %v2164 = vadd.f32 %v2162, %v2163
        %v2166 = vlaneseq
        %v2167 = vshrl.u32 %v2166, 7
        %v2168 = vsub.s32 0, %v2167
        %v2169 = vrot.slane %v1325, %v2168
        %v2172 = vsel %vm1350, %v2164, 0
        %2174 = vmatprep.subr.mxu0 0.0
        %2175 = vmatpush1.msra.mxu0 %v1321
        %2176 = vmatprep.subr.mxu0 0.0
        %2177 = vmatpush1.msra.mxu0 %v1322
        %2178 = vmatprep.subr.mxu0 0.0
        %2179 = vmatpush1.msra.mxu0 %v1323
        %2180 = vmatprep.subr.mxu0 0.0
        %2181 = vmatpush1.msra.mxu0 %v1324
        %2182 = vmatprep.subr.mxu0 0.0
        %2183 = vmatpush1.msra.mxu0 0.0
        %2184 = vmatprep.subr.mxu0 0.0
        %2185 = vmatpush1.msra.mxu0 0.0
        %2186 = vmatprep.subr.mxu0 0.0
        %2187 = vmatpush1.msra.mxu0 0.0
        %2188 = vmatprep.subr.mxu0 0.0
        %2189 = vmatpush1.msra.mxu0 0.0
        %2190 = vmatprep.subr.mxu0 0.0
        %2191 = vmatpush1.msra.mxu0 0.0
        %2192 = vmatprep.subr.mxu0 0.0
        %2193 = vmatpush1.msra.mxu0 0.0
        %2194 = vmatprep.subr.mxu0 0.0
        %2195 = vmatpush1.msra.mxu0 0.0
        %2196 = vmatprep.subr.mxu0 0.0
        %2197 = vmatpush1.msra.mxu0 0.0
        %2198 = vmatprep.subr.mxu0 0.0
        %2199 = vmatpush1.msra.mxu0 0.0
        %2200 = vmatprep.subr.mxu0 0.0
        %2201 = vmatpush1.msra.mxu0 0.0
        %2202 = vmatprep.subr.mxu0 0.0
        %2203 = vmatpush1.msra.mxu0 0.0
        %2204 = vmatprep.subr.mxu0 0.0
        %2205 = vmatpush1.msra.mxu0 0.0
        %2206 = vmatprep.subr.mxu0 0.0
        %2207 = vmatpush1.msra.mxu0 0.0
        %2208 = vmatprep.subr.mxu0 0.0
        %2209 = vmatpush1.msra.mxu0 0.0
        %2210 = vmatprep.subr.mxu0 0.0
        %2211 = vmatpush1.msra.mxu0 0.0
        %2212 = vmatprep.subr.mxu0 0.0
        %2213 = vmatpush1.msra.mxu0 0.0
        %2214 = vmatprep.subr.mxu0 0.0
        %2215 = vmatpush1.msra.mxu0 0.0
        %2216 = vmatprep.subr.mxu0 0.0
        %2217 = vmatpush1.msra.mxu0 0.0
        %2218 = vmatprep.subr.mxu0 0.0
        %2219 = vmatpush1.msra.mxu0 0.0
        %2220 = vmatprep.subr.mxu0 0.0
        %2221 = vmatpush1.msra.mxu0 0.0
        %2222 = vmatprep.subr.mxu0 0.0
        %2223 = vmatpush1.msra.mxu0 0.0
        %2224 = vmatprep.subr.mxu0 0.0
        %2225 = vmatpush1.msra.mxu0 0.0
        %2226 = vmatprep.subr.mxu0 0.0
        %2227 = vmatpush1.msra.mxu0 0.0
        %2228 = vmatprep.subr.mxu0 0.0
        %2229 = vmatpush1.msra.mxu0 0.0
        %2230 = vmatprep.subr.mxu0 0.0
        %2231 = vmatpush1.msra.mxu0 0.0
        %2232 = vmatprep.subr.mxu0 0.0
        %2233 = vmatpush1.msra.mxu0 0.0
        %2234 = vmatprep.subr.mxu0 0.0
        %2235 = vmatpush1.msra.mxu0 0.0
        %2236 = vmatprep.subr.mxu0 0.0
        %2237 = vmatpush1.msra.mxu0 0.0
        %2238 = vmatprep.mubr.f32.mxu0 0.0
        %2239 = vmatmul.mubr.f32.gmra.mrb[0].mxu0 %v2172
        %v2240 = vpop.f32.mrb[0].mxu0
        %v2241 = vadd.f32 %v2169, %v2240
        %v2242 = vpop.f32.mrb[0].mxu0
        %2243 = vdwg.mxu0
        %v2244 = vadd.f32 %v1314, %v2241
        %v2245 = vsel %vm1350, %v2244, 0.0
        %2246 = vadd.xlane.f32.xlu0 %v2245
        %v2247 = vpop.xlane.xlu0 %2246
        %v2248 = vmul.f32 %v2247, %v1354
        %v2249 = vsub.f32 %v2244, %v2248
        %v2250 = vmul.f32 %v2249, %v2249
        %v2251 = vsel %vm1350, %v2250, 0.0
        %2252 = vadd.xlane.f32.xlu0 %v2251
        %v2253 = vpop.xlane.xlu0 %2252
        %v2254 = vmul.f32 %v2253, %v1354
        %v2255 = vadd.f32 %v2254, 1e-05
        %v2256 = vrsqrt.pop %v2255
        %v2257 = vmul.f32 %v2249, %v2256
        %v2259 = vlaneseq
        %v2260 = vshrl.u32 %v2259, 7
        %v2261 = vsub.s32 0, %v2260
        %v2262 = vrot.slane %v1326, %v2261
        %v2264 = vmul.f32 %v2257, %v2262
        %v2266 = vlaneseq
        %v2267 = vshrl.u32 %v2266, 7
        %v2268 = vsub.s32 0, %v2267
        %v2269 = vrot.slane %v1327, %v2268
        %v2271 = vadd.f32 %v2264, %v2269
        %v2273 = vlaneseq
        %v2274 = vshrl.u32 %v2273, 7
        %v2275 = vsub.s32 0, %v2274
        %v2276 = vrot.slane %v1332, %v2275
        %v2279 = vsel %vm1350, %v2271, 0
        %2281 = vmatprep.subr.mxu0 0.0
        %2282 = vmatpush1.msra.mxu0 %v1328
        %2283 = vmatprep.subr.mxu0 0.0
        %2284 = vmatpush1.msra.mxu0 %v1329
        %2285 = vmatprep.subr.mxu0 0.0
        %2286 = vmatpush1.msra.mxu0 %v1330
        %2287 = vmatprep.subr.mxu0 0.0
        %2288 = vmatpush1.msra.mxu0 %v1331
        %2289 = vmatprep.subr.mxu0 0.0
        %2290 = vmatpush1.msra.mxu0 0.0
        %2291 = vmatprep.subr.mxu0 0.0
        %2292 = vmatpush1.msra.mxu0 0.0
        %2293 = vmatprep.subr.mxu0 0.0
        %2294 = vmatpush1.msra.mxu0 0.0
        %2295 = vmatprep.subr.mxu0 0.0
        %2296 = vmatpush1.msra.mxu0 0.0
        %2297 = vmatprep.subr.mxu0 0.0
        %2298 = vmatpush1.msra.mxu0 0.0
        %2299 = vmatprep.subr.mxu0 0.0
        %2300 = vmatpush1.msra.mxu0 0.0
        %2301 = vmatprep.subr.mxu0 0.0
        %2302 = vmatpush1.msra.mxu0 0.0
        %2303 = vmatprep.subr.mxu0 0.0
        %2304 = vmatpush1.msra.mxu0 0.0
        %2305 = vmatprep.subr.mxu0 0.0
        %2306 = vmatpush1.msra.mxu0 0.0
        %2307 = vmatprep.subr.mxu0 0.0
        %2308 = vmatpush1.msra.mxu0 0.0
        %2309 = vmatprep.subr.mxu0 0.0
        %2310 = vmatpush1.msra.mxu0 0.0
        %2311 = vmatprep.subr.mxu0 0.0
        %2312 = vmatpush1.msra.mxu0 0.0
        %2313 = vmatprep.subr.mxu0 0.0
        %2314 = vmatpush1.msra.mxu0 0.0
        %2315 = vmatprep.subr.mxu0 0.0
        %2316 = vmatpush1.msra.mxu0 0.0
        %2317 = vmatprep.subr.mxu0 0.0
        %2318 = vmatpush1.msra.mxu0 0.0
        %2319 = vmatprep.subr.mxu0 0.0
        %2320 = vmatpush1.msra.mxu0 0.0
        %2321 = vmatprep.subr.mxu0 0.0
        %2322 = vmatpush1.msra.mxu0 0.0
        %2323 = vmatprep.subr.mxu0 0.0
        %2324 = vmatpush1.msra.mxu0 0.0
        %2325 = vmatprep.subr.mxu0 0.0
        %2326 = vmatpush1.msra.mxu0 0.0
        %2327 = vmatprep.subr.mxu0 0.0
        %2328 = vmatpush1.msra.mxu0 0.0
        %2329 = vmatprep.subr.mxu0 0.0
        %2330 = vmatpush1.msra.mxu0 0.0
        %2331 = vmatprep.subr.mxu0 0.0
        %2332 = vmatpush1.msra.mxu0 0.0
        %2333 = vmatprep.subr.mxu0 0.0
        %2334 = vmatpush1.msra.mxu0 0.0
        %2335 = vmatprep.subr.mxu0 0.0
        %2336 = vmatpush1.msra.mxu0 0.0
        %2337 = vmatprep.subr.mxu0 0.0
        %2338 = vmatpush1.msra.mxu0 0.0
        %2339 = vmatprep.subr.mxu0 0.0
        %2340 = vmatpush1.msra.mxu0 0.0
        %2341 = vmatprep.subr.mxu0 0.0
        %2342 = vmatpush1.msra.mxu0 0.0
        %2343 = vmatprep.subr.mxu0 0.0
        %2344 = vmatpush1.msra.mxu0 0.0
        %2345 = vmatprep.mubr.f32.mxu0 0.0
        %2346 = vmatmul.mubr.f32.gmra.mrb[0].mxu0 %v2279
        %v2347 = vpop.f32.mrb[0].mxu0
        %v2348 = vadd.f32 %v2276, %v2347
        %v2349 = vpop.f32.mrb[0].mxu0
        %2350 = vdwg.mxu0
        %v2351 = vmul.f32 %v2348, 0.5
        %v2352 = vmul.f32 %v2348, 0.70710677
        %vm2353 = vcmp.ge.f32.partialorder %v2352, 0.0
        %v2354 = vsel %vm2353, 1.0, -1.0
        %v2355 = vand.u32 2147483647, %v2352
        %v2356 = vmul.f32 %v2355, 0.3275911
        %v2357 = vadd.f32 %v2356, 1.0
        %v2358 = vrcp.pop %v2357
        %v2359 = vmul.f32 1.0, %v2358
        %v2360 = vmul.f32 %v2359, 1.0614054
        %v2361 = vadd.f32 %v2360, -1.4531521
        %v2362 = vmul.f32 %v2361, %v2359
        %v2363 = vadd.f32 %v2362, 1.4214138
        %v2364 = vmul.f32 %v2363, %v2359
        %v2365 = vadd.f32 %v2364, -0.28449672
        %v2366 = vmul.f32 %v2365, %v2359
        %v2367 = vadd.f32 %v2366, 0.2548296
        %v2368 = vmul.f32 %v2367, %v2359
        %v2369 = vsub.f32 0.0, %v2355
        %v2370 = vmul.f32 %v2369, %v2355
        %v2371 = vmul.f32 %v2370, 1.442695
        %v2372 = vpow.pop %v2371
        %v2373 = vmul.f32 %v2368, %v2372
        %v2374 = vsub.f32 1.0, %v2373
        %v2375 = vmul.f32 %v2354, %v2374
        %v2376 = vadd.f32 %v2375, 1.0
        %v2377 = vmul.f32 %v2351, %v2376
        %v2379 = vlaneseq
        %v2380 = vshrl.u32 %v2379, 7
        %v2381 = vsub.s32 0, %v2380
        %v2382 = vrot.slane %v1349, %v2381
        %2384 = vmatprep.subr.mxu0 0.0
        %2385 = vmatpush1.msra.mxu0 %v1333
        %2386 = vmatprep.subr.mxu0 0.0
        %2387 = vmatpush1.msra.mxu0 %v1334
        %2388 = vmatprep.subr.mxu0 0.0
        %2389 = vmatpush1.msra.mxu0 %v1335
        %2390 = vmatprep.subr.mxu0 0.0
        %2391 = vmatpush1.msra.mxu0 %v1336
        %2392 = vmatprep.subr.mxu0 0.0
        %2393 = vmatpush1.msra.mxu0 %v1337
        %2394 = vmatprep.subr.mxu0 0.0
        %2395 = vmatpush1.msra.mxu0 %v1338
        %2396 = vmatprep.subr.mxu0 0.0
        %2397 = vmatpush1.msra.mxu0 %v1339
        %2398 = vmatprep.subr.mxu0 0.0
        %2399 = vmatpush1.msra.mxu0 %v1340
        %2400 = vmatprep.subr.mxu0 0.0
        %2401 = vmatpush1.msra.mxu0 %v1341
        %2402 = vmatprep.subr.mxu0 0.0
        %2403 = vmatpush1.msra.mxu0 %v1342
        %2404 = vmatprep.subr.mxu0 0.0
        %2405 = vmatpush1.msra.mxu0 %v1343
        %2406 = vmatprep.subr.mxu0 0.0
        %2407 = vmatpush1.msra.mxu0 %v1344
        %2408 = vmatprep.subr.mxu0 0.0
        %2409 = vmatpush1.msra.mxu0 %v1345
        %2410 = vmatprep.subr.mxu0 0.0
        %2411 = vmatpush1.msra.mxu0 %v1346
        %2412 = vmatprep.subr.mxu0 0.0
        %2413 = vmatpush1.msra.mxu0 %v1347
        %2414 = vmatprep.subr.mxu0 0.0
        %2415 = vmatpush1.msra.mxu0 %v1348
        %2416 = vmatprep.subr.mxu0 0.0
        %2417 = vmatpush1.msra.mxu0 0.0
        %2418 = vmatprep.subr.mxu0 0.0
        %2419 = vmatpush1.msra.mxu0 0.0
        %2420 = vmatprep.subr.mxu0 0.0
        %2421 = vmatpush1.msra.mxu0 0.0
        %2422 = vmatprep.subr.mxu0 0.0
        %2423 = vmatpush1.msra.mxu0 0.0
        %2424 = vmatprep.subr.mxu0 0.0
        %2425 = vmatpush1.msra.mxu0 0.0
        %2426 = vmatprep.subr.mxu0 0.0
        %2427 = vmatpush1.msra.mxu0 0.0
        %2428 = vmatprep.subr.mxu0 0.0
        %2429 = vmatpush1.msra.mxu0 0.0
        %2430 = vmatprep.subr.mxu0 0.0
        %2431 = vmatpush1.msra.mxu0 0.0
        %2432 = vmatprep.subr.mxu0 0.0
        %2433 = vmatpush1.msra.mxu0 0.0
        %2434 = vmatprep.subr.mxu0 0.0
        %2435 = vmatpush1.msra.mxu0 0.0
        %2436 = vmatprep.subr.mxu0 0.0
        %2437 = vmatpush1.msra.mxu0 0.0
        %2438 = vmatprep.subr.mxu0 0.0
        %2439 = vmatpush1.msra.mxu0 0.0
        %2440 = vmatprep.subr.mxu0 0.0
        %2441 = vmatpush1.msra.mxu0 0.0
        %2442 = vmatprep.subr.mxu0 0.0
        %2443 = vmatpush1.msra.mxu0 0.0
        %2444 = vmatprep.subr.mxu0 0.0
        %2445 = vmatpush1.msra.mxu0 0.0
        %2446 = vmatprep.subr.mxu0 0.0
        %2447 = vmatpush1.msra.mxu0 0.0
        %2448 = vmatprep.mubr.f32.mxu0 0.0
        %2449 = vmatmul.mubr.f32.gmra.mrb[0].mxu0 %v2377
        %v2450 = vpop.f32.mrb[0].mxu0
        %v2451 = vadd.f32 %v2382, %v2450
        %v2452 = vpop.f32.mrb[0].mxu0
        %2453 = vdwg.mxu0
        %v2454 = vadd.f32 %v2244, %v2451
        %v2455 = vld [vmem:[%s1309] sm:$0xff]
        %v2456 = vld [vmem:[%s29] sm:$0x1]
        %v2457 = vld [vmem:[%s31] sm:$0x1]
        %v2458 = vld [vmem:[%s33] sm:$0xff]
        %v2459 = vld [vmem:[%s33 + $0x8] sm:$0xff]
        %v2460 = vld [vmem:[%s35] sm:$0xff]
        %v2461 = vld [vmem:[%s35 + $0x8] sm:$0xff]
        %v2462 = vld [vmem:[%s37] sm:$0x1]
        %v2463 = vld [vmem:[%s39] sm:$0x1]
        %v2464 = vld [vmem:[%s41] sm:$0x1]
        %v2465 = vld [vmem:[%s43] sm:$0xff]
        %v2466 = vld [vmem:[%s43 + $0x8] sm:$0xff]
        %v2467 = vld [vmem:[%s45] sm:$0x1]
        %v2468 = vld [vmem:[%s47] sm:$0xff]
        %v2469 = vld [vmem:[%s47 + $0x8] sm:$0xff]
        %v2470 = vld [vmem:[%s47 + $0x10] sm:$0xff]
        %v2471 = vld [vmem:[%s47 + $0x18] sm:$0xff]
        %v2472 = vld [vmem:[%s47 + $0x20] sm:$0xff]
        %v2473 = vld [vmem:[%s47 + $0x28] sm:$0xff]
        %v2474 = vld [vmem:[%s47 + $0x30] sm:$0xff]
        %v2475 = vld [vmem:[%s47 + $0x38] sm:$0xff]
        %v2476 = vld [vmem:[%s49] sm:$0x1]
        %vm2477 = vcmask 130048
        %v2478 = vsel %vm2477, %v2455, 0.0
        %2479 = vadd.xlane.f32.xlu0 %v2478
        %v2480 = vpop.xlane.xlu0 %2479
        %v2481 = vrcp.pop 16.0
        %v2482 = vmul.f32 %v2480, %v2481
        %v2483 = vsub.f32 %v2455, %v2482
        %v2484 = vmul.f32 %v2483, %v2483
        %v2485 = vsel %vm2477, %v2484, 0.0
        %2486 = vadd.xlane.f32.xlu0 %v2485
        %v2487 = vpop.xlane.xlu0 %2486
        %v2488 = vmul.f32 %v2487, %v2481
        %v2489 = vadd.f32 %v2488, 1e-05
        %v2490 = vrsqrt.pop %v2489
        %v2491 = vmul.f32 %v2483, %v2490
        %v2493 = vlaneseq
        %v2494 = vshrl.u32 %v2493, 7
        %v2495 = vsub.s32 0, %v2494
        %v2496 = vrot.slane %v2456, %v2495
        %v2498 = vmul.f32 %v2491, %v2496
        %v2500 = vlaneseq
        %v2501 = vshrl.u32 %v2500, 7
        %v2502 = vsub.s32 0, %v2501
        %v2503 = vrot.slane %v2457, %v2502
        %v2505 = vadd.f32 %v2498, %v2503
        %v2507 = vsel %vm2477, %v2505, 0
        %2509 = vmatprep.subr.mxu0 0.0
        %2510 = vmatpush1.msra.mxu0 %v2458
        %2511 = vmatprep.subr.mxu0 0.0
        %2512 = vmatpush1.msra.mxu0 %v2459
        %2513 = vmatprep.subr.mxu0 0.0
        %2514 = vmatpush1.msra.mxu0 0.0
        %2515 = vmatprep.subr.mxu0 0.0
        %2516 = vmatpush1.msra.mxu0 0.0
        %2517 = vmatprep.subr.mxu0 0.0
        %2518 = vmatpush1.msra.mxu0 0.0
        %2519 = vmatprep.subr.mxu0 0.0
        %2520 = vmatpush1.msra.mxu0 0.0
        %2521 = vmatprep.subr.mxu0 0.0
        %2522 = vmatpush1.msra.mxu0 0.0
        %2523 = vmatprep.subr.mxu0 0.0
        %2524 = vmatpush1.msra.mxu0 0.0
        %2525 = vmatprep.subr.mxu0 0.0
        %2526 = vmatpush1.msra.mxu0 0.0
        %2527 = vmatprep.subr.mxu0 0.0
        %2528 = vmatpush1.msra.mxu0 0.0
        %2529 = vmatprep.subr.mxu0 0.0
        %2530 = vmatpush1.msra.mxu0 0.0
        %2531 = vmatprep.subr.mxu0 0.0
        %2532 = vmatpush1.msra.mxu0 0.0
        %2533 = vmatprep.subr.mxu0 0.0
        %2534 = vmatpush1.msra.mxu0 0.0
        %2535 = vmatprep.subr.mxu0 0.0
        %2536 = vmatpush1.msra.mxu0 0.0
        %2537 = vmatprep.subr.mxu0 0.0
        %2538 = vmatpush1.msra.mxu0 0.0
        %2539 = vmatprep.subr.mxu0 0.0
        %2540 = vmatpush1.msra.mxu0 0.0
        %2541 = vmatprep.subr.mxu0 0.0
        %2542 = vmatpush1.msra.mxu0 0.0
        %2543 = vmatprep.subr.mxu0 0.0
        %2544 = vmatpush1.msra.mxu0 0.0
        %2545 = vmatprep.subr.mxu0 0.0
        %2546 = vmatpush1.msra.mxu0 0.0
        %2547 = vmatprep.subr.mxu0 0.0
        %2548 = vmatpush1.msra.mxu0 0.0
        %2549 = vmatprep.subr.mxu0 0.0
        %2550 = vmatpush1.msra.mxu0 0.0
        %2551 = vmatprep.subr.mxu0 0.0
        %2552 = vmatpush1.msra.mxu0 0.0
        %2553 = vmatprep.subr.mxu0 0.0
        %2554 = vmatpush1.msra.mxu0 0.0
        %2555 = vmatprep.subr.mxu0 0.0
        %2556 = vmatpush1.msra.mxu0 0.0
        %2557 = vmatprep.subr.mxu0 0.0
        %2558 = vmatpush1.msra.mxu0 0.0
        %2559 = vmatprep.subr.mxu0 0.0
        %2560 = vmatpush1.msra.mxu0 0.0
        %2561 = vmatprep.subr.mxu0 0.0
        %2562 = vmatpush1.msra.mxu0 0.0
        %2563 = vmatprep.subr.mxu0 0.0
        %2564 = vmatpush1.msra.mxu0 0.0
        %2565 = vmatprep.subr.mxu0 0.0
        %2566 = vmatpush1.msra.mxu0 0.0
        %2567 = vmatprep.subr.mxu0 0.0
        %2568 = vmatpush1.msra.mxu0 0.0
        %2569 = vmatprep.subr.mxu0 0.0
        %2570 = vmatpush1.msra.mxu0 0.0
        %2571 = vmatprep.subr.mxu0 0.0
        %2572 = vmatpush1.msra.mxu0 0.0
        %2573 = vmatprep.mubr.f32.mxu0 0.0
        %2574 = vmatmul.mubr.f32.gmra.mrb[0].mxu0 %v2507
        %v2575 = vpop.f32.mrb[0].mxu0
        %v2576 = vadd.f32 0.0, %v2575
        %v2577 = vpop.f32.mrb[0].mxu0
        %2578 = vdwg.mxu0
        %v2579 = vmul.u32 %v1455, 4
        %vm2580 = vcmp.ge.s32.totalorder %v1453, %v2579
        %v2581 = vmul.u32 %v1458, 4
        %vm2582 = vcmp.lt.s32.totalorder %v1453, %v2581
        %vm2583 = vmand %vm2580, %vm2582
        %v2584 = vsel %vm2583, 1, 0
        %v2585 = vcvt.s32.f32 %v2584
        %v2588 = vunpack.c.l.s4 1966171168
        %v2589 = vunpack.c.0.s8 %v2588
        %v2590 = vlaneseq
        %v2591 = vshrl.u32 %v2590, 7
        %v2592 = vsub.s32 %v2589, %v2591
        %v2593 = vrot.slane %v2585, %v2592
        %v2594 = vcombine.high %v2593, %v2593
        %v2596 = vunpack.c.l.s4 1966171168
        %v2597 = vunpack.c.0.s8 %v2596
        %v2598 = vlaneseq
        %v2599 = vshrl.u32 %v2598, 7
        %v2600 = vsub.s32 %v2597, %v2599
        %v2601 = vrot.slane %v2593, %v2600
        %v2603 = vunpack.c.l.s4 1966171168
        %v2604 = vunpack.c.0.s8 %v2603
        %v2605 = vlaneseq
        %v2606 = vshrl.u32 %v2605, 7
        %v2607 = vsub.s32 %v2604, %v2606
        %v2608 = vrot.slane %v2594, %v2607
        %v2609 = vcombine.high %v2601, %v2601
        %v2610 = vcombine.high %v2608, %v2608
        %v2611 = vlaneseq
        %v2612 = vshrl.u32 %v2611, 7
        %v2613 = vsub.s32 0, %v2612
        %v2614 = vrot.slane %v2601, %v2613
        %v2615 = vlaneseq
        %v2616 = vshrl.u32 %v2615, 7
        %v2617 = vsub.s32 0, %v2616
        %v2618 = vrot.slane %v2608, %v2617
        %v2619 = vlaneseq
        %v2620 = vshrl.u32 %v2619, 7
        %v2621 = vsub.s32 0, %v2620
        %v2622 = vrot.slane %v2609, %v2621
        %v2623 = vlaneseq
        %v2624 = vshrl.u32 %v2623, 7
        %v2625 = vsub.s32 0, %v2624
        %v2626 = vrot.slane %v2610, %v2625
        %v2631 = vmul.f32 %v2576, %v2614
        %v2632 = vmul.f32 %v2576, %v2618
        %v2633 = vmul.f32 %v2576, %v2622
        %v2634 = vmul.f32 %v2576, %v2626
        %2636 = vrot.lane.b32.xlu0 %v2576, 112
        %v2637 = vpop.permute.xlu0 %2636
        %v2639 = vsel %vm2477, %v2631, 0
        %v2641 = vsel %vm2477, %v2637, 0
        %2643 = vmatprep.subr.mxu0 0.0
        %2644 = vmatpush1.xpose.msra.mxu0 %v2641
        %2645 = vmatprep.subr.mxu0 0.0
        %2646 = vmatpush1.xpose.msra.mxu0 0.0
        %2647 = vmatprep.subr.mxu0 0.0
        %2648 = vmatpush1.xpose.msra.mxu0 0.0
        %2649 = vmatprep.subr.mxu0 0.0
        %2650 = vmatpush1.xpose.msra.mxu0 0.0
        %2651 = vmatprep.subr.mxu0 0.0
        %2652 = vmatpush1.xpose.msra.mxu0 0.0
        %2653 = vmatprep.subr.mxu0 0.0
        %2654 = vmatpush1.xpose.msra.mxu0 0.0
        %2655 = vmatprep.subr.mxu0 0.0
        %2656 = vmatpush1.xpose.msra.mxu0 0.0
        %2657 = vmatprep.subr.mxu0 0.0
        %2658 = vmatpush1.xpose.msra.mxu0 0.0
        %2659 = vmatprep.subr.mxu0 0.0
        %2660 = vmatpush1.xpose.msra.mxu0 0.0
        %2661 = vmatprep.subr.mxu0 0.0
        %2662 = vmatpush1.xpose.msra.mxu0 0.0
        %2663 = vmatprep.subr.mxu0 0.0
        %2664 = vmatpush1.xpose.msra.mxu0 0.0
        %2665 = vmatprep.subr.mxu0 0.0
        %2666 = vmatpush1.xpose.msra.mxu0 0.0
        %2667 = vmatprep.subr.mxu0 0.0
        %2668 = vmatpush1.xpose.msra.mxu0 0.0
        %2669 = vmatprep.subr.mxu0 0.0
        %2670 = vmatpush1.xpose.msra.mxu0 0.0
        %2671 = vmatprep.subr.mxu0 0.0
        %2672 = vmatpush1.xpose.msra.mxu0 0.0
        %2673 = vmatprep.subr.mxu0 0.0
        %2674 = vmatpush1.xpose.msra.mxu0 0.0
        %2675 = vmatprep.subr.mxu0 0.0
        %2676 = vmatpush1.xpose.msra.mxu0 0.0
        %2677 = vmatprep.subr.mxu0 0.0
        %2678 = vmatpush1.xpose.msra.mxu0 0.0
        %2679 = vmatprep.subr.mxu0 0.0
        %2680 = vmatpush1.xpose.msra.mxu0 0.0
        %2681 = vmatprep.subr.mxu0 0.0
        %2682 = vmatpush1.xpose.msra.mxu0 0.0
        %2683 = vmatprep.subr.mxu0 0.0
        %2684 = vmatpush1.xpose.msra.mxu0 0.0
        %2685 = vmatprep.subr.mxu0 0.0
        %2686 = vmatpush1.xpose.msra.mxu0 0.0
        %2687 = vmatprep.subr.mxu0 0.0
        %2688 = vmatpush1.xpose.msra.mxu0 0.0
        %2689 = vmatprep.subr.mxu0 0.0
        %2690 = vmatpush1.xpose.msra.mxu0 0.0
        %2691 = vmatprep.subr.mxu0 0.0
        %2692 = vmatpush1.xpose.msra.mxu0 0.0
        %2693 = vmatprep.subr.mxu0 0.0
        %2694 = vmatpush1.xpose.msra.mxu0 0.0
        %2695 = vmatprep.subr.mxu0 0.0
        %2696 = vmatpush1.xpose.msra.mxu0 0.0
        %2697 = vmatprep.subr.mxu0 0.0
        %2698 = vmatpush1.xpose.msra.mxu0 0.0
        %2699 = vmatprep.subr.mxu0 0.0
        %2700 = vmatpush1.xpose.msra.mxu0 0.0
        %2701 = vmatprep.subr.mxu0 0.0
        %2702 = vmatpush1.xpose.msra.mxu0 0.0
        %2703 = vmatprep.subr.mxu0 0.0
        %2704 = vmatpush1.xpose.msra.mxu0 0.0
        %2705 = vmatprep.subr.mxu0 0.0
        %2706 = vmatpush1.xpose.msra.mxu0 0.0
        %2707 = vmatprep.mubr.f32.mxu0 0.0
        %2708 = vmatmul.mubr.f32.gmra.mrb[0].mxu0 %v2639
        %v2709 = vpop.f32.mrb[0].mxu0
        %v2710 = vadd.f32 0.0, %v2709
        %v2711 = vpop.f32.mrb[0].mxu0
        %2712 = vdwg.mxu0
        %v2714 = vsel %vm2477, %v2632, 0
        %2716 = vmatprep.subr.mxu0 0.0
        %2717 = vmatpush1.xpose.msra.mxu0 %v2641
        %2718 = vmatprep.subr.mxu0 0.0
        %2719 = vmatpush1.xpose.msra.mxu0 0.0
        %2720 = vmatprep.subr.mxu0 0.0
        %2721 = vmatpush1.xpose.msra.mxu0 0.0
        %2722 = vmatprep.subr.mxu0 0.0
        %2723 = vmatpush1.xpose.msra.mxu0 0.0
        %2724 = vmatprep.subr.mxu0 0.0
        %2725 = vmatpush1.xpose.msra.mxu0 0.0
        %2726 = vmatprep.subr.mxu0 0.0
        %2727 = vmatpush1.xpose.msra.mxu0 0.0
        %2728 = vmatprep.subr.mxu0 0.0
        %2729 = vmatpush1.xpose.msra.mxu0 0.0
        %2730 = vmatprep.subr.mxu0 0.0
        %2731 = vmatpush1.xpose.msra.mxu0 0.0
        %2732 = vmatprep.subr.mxu0 0.0
        %2733 = vmatpush1.xpose.msra.mxu0 0.0
        %2734 = vmatprep.subr.mxu0 0.0
        %2735 = vmatpush1.xpose.msra.mxu0 0.0
        %2736 = vmatprep.subr.mxu0 0.0
        %2737 = vmatpush1.xpose.msra.mxu0 0.0
        %2738 = vmatprep.subr.mxu0 0.0
        %2739 = vmatpush1.xpose.msra.mxu0 0.0
        %2740 = vmatprep.subr.mxu0 0.0
        %2741 = vmatpush1.xpose.msra.mxu0 0.0
        %2742 = vmatprep.subr.mxu0 0.0
        %2743 = vmatpush1.xpose.msra.mxu0 0.0
        %2744 = vmatprep.subr.mxu0 0.0
        %2745 = vmatpush1.xpose.msra.mxu0 0.0
        %2746 = vmatprep.subr.mxu0 0.0
        %2747 = vmatpush1.xpose.msra.mxu0 0.0
        %2748 = vmatprep.subr.mxu0 0.0
        %2749 = vmatpush1.xpose.msra.mxu0 0.0
        %2750 = vmatprep.subr.mxu0 0.0
        %2751 = vmatpush1.xpose.msra.mxu0 0.0
        %2752 = vmatprep.subr.mxu0 0.0
        %2753 = vmatpush1.xpose.msra.mxu0 0.0
        %2754 = vmatprep.subr.mxu0 0.0
        %2755 = vmatpush1.xpose.msra.mxu0 0.0
        %2756 = vmatprep.subr.mxu0 0.0
        %2757 = vmatpush1.xpose.msra.mxu0 0.0
        %2758 = vmatprep.subr.mxu0 0.0
        %2759 = vmatpush1.xpose.msra.mxu0 0.0
        %2760 = vmatprep.subr.mxu0 0.0
        %2761 = vmatpush1.xpose.msra.mxu0 0.0
        %2762 = vmatprep.subr.mxu0 0.0
        %2763 = vmatpush1.xpose.msra.mxu0 0.0
        %2764 = vmatprep.subr.mxu0 0.0
        %2765 = vmatpush1.xpose.msra.mxu0 0.0
        %2766 = vmatprep.subr.mxu0 0.0
        %2767 = vmatpush1.xpose.msra.mxu0 0.0
        %2768 = vmatprep.subr.mxu0 0.0
        %2769 = vmatpush1.xpose.msra.mxu0 0.0
        %2770 = vmatprep.subr.mxu0 0.0
        %2771 = vmatpush1.xpose.msra.mxu0 0.0
        %2772 = vmatprep.subr.mxu0 0.0
        %2773 = vmatpush1.xpose.msra.mxu0 0.0
        %2774 = vmatprep.subr.mxu0 0.0
        %2775 = vmatpush1.xpose.msra.mxu0 0.0
        %2776 = vmatprep.subr.mxu0 0.0
        %2777 = vmatpush1.xpose.msra.mxu0 0.0
        %2778 = vmatprep.subr.mxu0 0.0
        %2779 = vmatpush1.xpose.msra.mxu0 0.0
        %2780 = vmatprep.mubr.f32.mxu0 0.0
        %2781 = vmatmul.mubr.f32.gmra.mrb[0].mxu0 %v2714
        %v2782 = vpop.f32.mrb[0].mxu0
        %v2783 = vadd.f32 0.0, %v2782
        %v2784 = vpop.f32.mrb[0].mxu0
        %2785 = vdwg.mxu0
        %v2787 = vsel %vm2477, %v2633, 0
        %2789 = vmatprep.subr.mxu0 0.0
        %2790 = vmatpush1.xpose.msra.mxu0 %v2641
        %2791 = vmatprep.subr.mxu0 0.0
        %2792 = vmatpush1.xpose.msra.mxu0 0.0
        %2793 = vmatprep.subr.mxu0 0.0
        %2794 = vmatpush1.xpose.msra.mxu0 0.0
        %2795 = vmatprep.subr.mxu0 0.0
        %2796 = vmatpush1.xpose.msra.mxu0 0.0
        %2797 = vmatprep.subr.mxu0 0.0
        %2798 = vmatpush1.xpose.msra.mxu0 0.0
        %2799 = vmatprep.subr.mxu0 0.0
        %2800 = vmatpush1.xpose.msra.mxu0 0.0
        %2801 = vmatprep.subr.mxu0 0.0
        %2802 = vmatpush1.xpose.msra.mxu0 0.0
        %2803 = vmatprep.subr.mxu0 0.0
        %2804 = vmatpush1.xpose.msra.mxu0 0.0
        %2805 = vmatprep.subr.mxu0 0.0
        %2806 = vmatpush1.xpose.msra.mxu0 0.0
        %2807 = vmatprep.subr.mxu0 0.0
        %2808 = vmatpush1.xpose.msra.mxu0 0.0
        %2809 = vmatprep.subr.mxu0 0.0
        %2810 = vmatpush1.xpose.msra.mxu0 0.0
        %2811 = vmatprep.subr.mxu0 0.0
        %2812 = vmatpush1.xpose.msra.mxu0 0.0
        %2813 = vmatprep.subr.mxu0 0.0
        %2814 = vmatpush1.xpose.msra.mxu0 0.0
        %2815 = vmatprep.subr.mxu0 0.0
        %2816 = vmatpush1.xpose.msra.mxu0 0.0
        %2817 = vmatprep.subr.mxu0 0.0
        %2818 = vmatpush1.xpose.msra.mxu0 0.0
        %2819 = vmatprep.subr.mxu0 0.0
        %2820 = vmatpush1.xpose.msra.mxu0 0.0
        %2821 = vmatprep.subr.mxu0 0.0
        %2822 = vmatpush1.xpose.msra.mxu0 0.0
        %2823 = vmatprep.subr.mxu0 0.0
        %2824 = vmatpush1.xpose.msra.mxu0 0.0
        %2825 = vmatprep.subr.mxu0 0.0
        %2826 = vmatpush1.xpose.msra.mxu0 0.0
        %2827 = vmatprep.subr.mxu0 0.0
        %2828 = vmatpush1.xpose.msra.mxu0 0.0
        %2829 = vmatprep.subr.mxu0 0.0
        %2830 = vmatpush1.xpose.msra.mxu0 0.0
        %2831 = vmatprep.subr.mxu0 0.0
        %2832 = vmatpush1.xpose.msra.mxu0 0.0
        %2833 = vmatprep.subr.mxu0 0.0
        %2834 = vmatpush1.xpose.msra.mxu0 0.0
        %2835 = vmatprep.subr.mxu0 0.0
        %2836 = vmatpush1.xpose.msra.mxu0 0.0
        %2837 = vmatprep.subr.mxu0 0.0
        %2838 = vmatpush1.xpose.msra.mxu0 0.0
        %2839 = vmatprep.subr.mxu0 0.0
        %2840 = vmatpush1.xpose.msra.mxu0 0.0
        %2841 = vmatprep.subr.mxu0 0.0
        %2842 = vmatpush1.xpose.msra.mxu0 0.0
        %2843 = vmatprep.subr.mxu0 0.0
        %2844 = vmatpush1.xpose.msra.mxu0 0.0
        %2845 = vmatprep.subr.mxu0 0.0
        %2846 = vmatpush1.xpose.msra.mxu0 0.0
        %2847 = vmatprep.subr.mxu0 0.0
        %2848 = vmatpush1.xpose.msra.mxu0 0.0
        %2849 = vmatprep.subr.mxu0 0.0
        %2850 = vmatpush1.xpose.msra.mxu0 0.0
        %2851 = vmatprep.subr.mxu0 0.0
        %2852 = vmatpush1.xpose.msra.mxu0 0.0
        %2853 = vmatprep.mubr.f32.mxu0 0.0
        %2854 = vmatmul.mubr.f32.gmra.mrb[0].mxu0 %v2787
        %v2855 = vpop.f32.mrb[0].mxu0
        %v2856 = vadd.f32 0.0, %v2855
        %v2857 = vpop.f32.mrb[0].mxu0
        %2858 = vdwg.mxu0
        %v2860 = vsel %vm2477, %v2634, 0
        %2862 = vmatprep.subr.mxu0 0.0
        %2863 = vmatpush1.xpose.msra.mxu0 %v2641
        %2864 = vmatprep.subr.mxu0 0.0
        %2865 = vmatpush1.xpose.msra.mxu0 0.0
        %2866 = vmatprep.subr.mxu0 0.0
        %2867 = vmatpush1.xpose.msra.mxu0 0.0
        %2868 = vmatprep.subr.mxu0 0.0
        %2869 = vmatpush1.xpose.msra.mxu0 0.0
        %2870 = vmatprep.subr.mxu0 0.0
        %2871 = vmatpush1.xpose.msra.mxu0 0.0
        %2872 = vmatprep.subr.mxu0 0.0
        %2873 = vmatpush1.xpose.msra.mxu0 0.0
        %2874 = vmatprep.subr.mxu0 0.0
        %2875 = vmatpush1.xpose.msra.mxu0 0.0
        %2876 = vmatprep.subr.mxu0 0.0
        %2877 = vmatpush1.xpose.msra.mxu0 0.0
        %2878 = vmatprep.subr.mxu0 0.0
        %2879 = vmatpush1.xpose.msra.mxu0 0.0
        %2880 = vmatprep.subr.mxu0 0.0
        %2881 = vmatpush1.xpose.msra.mxu0 0.0
        %2882 = vmatprep.subr.mxu0 0.0
        %2883 = vmatpush1.xpose.msra.mxu0 0.0
        %2884 = vmatprep.subr.mxu0 0.0
        %2885 = vmatpush1.xpose.msra.mxu0 0.0
        %2886 = vmatprep.subr.mxu0 0.0
        %2887 = vmatpush1.xpose.msra.mxu0 0.0
        %2888 = vmatprep.subr.mxu0 0.0
        %2889 = vmatpush1.xpose.msra.mxu0 0.0
        %2890 = vmatprep.subr.mxu0 0.0
        %2891 = vmatpush1.xpose.msra.mxu0 0.0
        %2892 = vmatprep.subr.mxu0 0.0
        %2893 = vmatpush1.xpose.msra.mxu0 0.0
        %2894 = vmatprep.subr.mxu0 0.0
        %2895 = vmatpush1.xpose.msra.mxu0 0.0
        %2896 = vmatprep.subr.mxu0 0.0
        %2897 = vmatpush1.xpose.msra.mxu0 0.0
        %2898 = vmatprep.subr.mxu0 0.0
        %2899 = vmatpush1.xpose.msra.mxu0 0.0
        %2900 = vmatprep.subr.mxu0 0.0
        %2901 = vmatpush1.xpose.msra.mxu0 0.0
        %2902 = vmatprep.subr.mxu0 0.0
        %2903 = vmatpush1.xpose.msra.mxu0 0.0
        %2904 = vmatprep.subr.mxu0 0.0
        %2905 = vmatpush1.xpose.msra.mxu0 0.0
        %2906 = vmatprep.subr.mxu0 0.0
        %2907 = vmatpush1.xpose.msra.mxu0 0.0
        %2908 = vmatprep.subr.mxu0 0.0
        %2909 = vmatpush1.xpose.msra.mxu0 0.0
        %2910 = vmatprep.subr.mxu0 0.0
        %2911 = vmatpush1.xpose.msra.mxu0 0.0
        %2912 = vmatprep.subr.mxu0 0.0
        %2913 = vmatpush1.xpose.msra.mxu0 0.0
        %2914 = vmatprep.subr.mxu0 0.0
        %2915 = vmatpush1.xpose.msra.mxu0 0.0
        %2916 = vmatprep.subr.mxu0 0.0
        %2917 = vmatpush1.xpose.msra.mxu0 0.0
        %2918 = vmatprep.subr.mxu0 0.0
        %2919 = vmatpush1.xpose.msra.mxu0 0.0
        %2920 = vmatprep.subr.mxu0 0.0
        %2921 = vmatpush1.xpose.msra.mxu0 0.0
        %2922 = vmatprep.subr.mxu0 0.0
        %2923 = vmatpush1.xpose.msra.mxu0 0.0
        %2924 = vmatprep.subr.mxu0 0.0
        %2925 = vmatpush1.xpose.msra.mxu0 0.0
        %2926 = vmatprep.mubr.f32.mxu0 0.0
        %2927 = vmatmul.mubr.f32.gmra.mrb[0].mxu0 %v2860
        %v2928 = vpop.f32.mrb[0].mxu0
        %v2929 = vadd.f32 0.0, %v2928
        %v2930 = vpop.f32.mrb[0].mxu0
        %2931 = vdwg.mxu0
        %v2932 = vmul.f32 %v2710, 0.5
        %v2933 = vmul.f32 %v2783, 0.5
        %v2934 = vmul.f32 %v2856, 0.5
        %v2935 = vmul.f32 %v2929, 0.5
        %v2936 = vsel %vm1814, %v2932, -inf
        %2937 = vmax.xlane.f32.xlu0 %v2936
        %v2938 = vpop.xlane.xlu0 %2937
        %v2939 = vsel %vm1814, %v2933, -inf
        %2940 = vmax.xlane.f32.xlu0 %v2939
        %v2941 = vpop.xlane.xlu0 %2940
        %v2942 = vsel %vm1814, %v2934, -inf
        %2943 = vmax.xlane.f32.xlu0 %v2942
        %v2944 = vpop.xlane.xlu0 %2943
        %v2945 = vsel %vm1814, %v2935, -inf
        %2946 = vmax.xlane.f32.xlu0 %v2945
        %v2947 = vpop.xlane.xlu0 %2946
        %v2948 = vsub.f32 %v2932, %v2938
        %v2949 = vsub.f32 %v2933, %v2941
        %v2950 = vsub.f32 %v2934, %v2944
        %v2951 = vsub.f32 %v2935, %v2947
        %v2952 = vmul.f32 %v2948, 1.442695
        %v2953 = vpow.pop %v2952
        %v2954 = vmul.f32 %v2949, 1.442695
        %v2955 = vpow.pop %v2954
        %v2956 = vmul.f32 %v2950, 1.442695
        %v2957 = vpow.pop %v2956
        %v2958 = vmul.f32 %v2951, 1.442695
        %v2959 = vpow.pop %v2958
        %v2960 = vsel %vm1814, %v2953, 0.0
        %2961 = vadd.xlane.f32.xlu0 %v2960
        %v2962 = vpop.xlane.xlu0 %2961
        %v2963 = vsel %vm1814, %v2955, 0.0
        %2964 = vadd.xlane.f32.xlu0 %v2963
        %v2965 = vpop.xlane.xlu0 %2964
        %v2966 = vsel %vm1814, %v2957, 0.0
        %2967 = vadd.xlane.f32.xlu0 %v2966
        %v2968 = vpop.xlane.xlu0 %2967
        %v2969 = vsel %vm1814, %v2959, 0.0
        %2970 = vadd.xlane.f32.xlu0 %v2969
        %v2971 = vpop.xlane.xlu0 %2970
        %v2972 = vrcp.pop %v2962
        %v2973 = vrcp.pop %v2965
        %v2974 = vrcp.pop %v2968
        %v2975 = vrcp.pop %v2971
        %v2976 = vmul.f32 %v2953, %v2972
        %v2977 = vmul.f32 %v2955, %v2973
        %v2978 = vmul.f32 %v2957, %v2974
        %v2979 = vmul.f32 %v2959, %v2975
        %2980 = vrot.lane.b32.xlu0 %v2576, 96
        %v2981 = vpop.permute.xlu0 %2980
        %v2984 = vsel %vm1814, %v2976, 0
        %2986 = vmatprep.subr.mxu0 0.0
        %2987 = vmatpush1.msra.mxu0 %v2981
        %2988 = vmatprep.subr.mxu0 0.0
        %2989 = vmatpush1.msra.mxu0 0.0
        %2990 = vmatprep.subr.mxu0 0.0
        %2991 = vmatpush1.msra.mxu0 0.0
        %2992 = vmatprep.subr.mxu0 0.0
        %2993 = vmatpush1.msra.mxu0 0.0
        %2994 = vmatprep.subr.mxu0 0.0
        %2995 = vmatpush1.msra.mxu0 0.0
        %2996 = vmatprep.subr.mxu0 0.0
        %2997 = vmatpush1.msra.mxu0 0.0
        %2998 = vmatprep.subr.mxu0 0.0
        %2999 = vmatpush1.msra.mxu0 0.0
        %3000 = vmatprep.subr.mxu0 0.0
        %3001 = vmatpush1.msra.mxu0 0.0
        %3002 = vmatprep.subr.mxu0 0.0
        %3003 = vmatpush1.msra.mxu0 0.0
        %3004 = vmatprep.subr.mxu0 0.0
        %3005 = vmatpush1.msra.mxu0 0.0
        %3006 = vmatprep.subr.mxu0 0.0
        %3007 = vmatpush1.msra.mxu0 0.0
        %3008 = vmatprep.subr.mxu0 0.0
        %3009 = vmatpush1.msra.mxu0 0.0
        %3010 = vmatprep.subr.mxu0 0.0
        %3011 = vmatpush1.msra.mxu0 0.0
        %3012 = vmatprep.subr.mxu0 0.0
        %3013 = vmatpush1.msra.mxu0 0.0
        %3014 = vmatprep.subr.mxu0 0.0
        %3015 = vmatpush1.msra.mxu0 0.0
        %3016 = vmatprep.subr.mxu0 0.0
        %3017 = vmatpush1.msra.mxu0 0.0
        %3018 = vmatprep.subr.mxu0 0.0
        %3019 = vmatpush1.msra.mxu0 0.0
        %3020 = vmatprep.subr.mxu0 0.0
        %3021 = vmatpush1.msra.mxu0 0.0
        %3022 = vmatprep.subr.mxu0 0.0
        %3023 = vmatpush1.msra.mxu0 0.0
        %3024 = vmatprep.subr.mxu0 0.0
        %3025 = vmatpush1.msra.mxu0 0.0
        %3026 = vmatprep.subr.mxu0 0.0
        %3027 = vmatpush1.msra.mxu0 0.0
        %3028 = vmatprep.subr.mxu0 0.0
        %3029 = vmatpush1.msra.mxu0 0.0
        %3030 = vmatprep.subr.mxu0 0.0
        %3031 = vmatpush1.msra.mxu0 0.0
        %3032 = vmatprep.subr.mxu0 0.0
        %3033 = vmatpush1.msra.mxu0 0.0
        %3034 = vmatprep.subr.mxu0 0.0
        %3035 = vmatpush1.msra.mxu0 0.0
        %3036 = vmatprep.subr.mxu0 0.0
        %3037 = vmatpush1.msra.mxu0 0.0
        %3038 = vmatprep.subr.mxu0 0.0
        %3039 = vmatpush1.msra.mxu0 0.0
        %3040 = vmatprep.subr.mxu0 0.0
        %3041 = vmatpush1.msra.mxu0 0.0
        %3042 = vmatprep.subr.mxu0 0.0
        %3043 = vmatpush1.msra.mxu0 0.0
        %3044 = vmatprep.subr.mxu0 0.0
        %3045 = vmatpush1.msra.mxu0 0.0
        %3046 = vmatprep.subr.mxu0 0.0
        %3047 = vmatpush1.msra.mxu0 0.0
        %3048 = vmatprep.subr.mxu0 0.0
        %3049 = vmatpush1.msra.mxu0 0.0
        %3050 = vmatprep.mubr.f32.mxu0 0.0
        %3051 = vmatmul.mubr.f32.gmra.mrb[0].mxu0 %v2984
        %v3052 = vpop.f32.mrb[0].mxu0
        %v3053 = vadd.f32 0.0, %v3052
        %v3054 = vpop.f32.mrb[0].mxu0
        %3055 = vdwg.mxu0
        %v3057 = vsel %vm1814, %v2977, 0
        %3059 = vmatprep.subr.mxu0 0.0
        %3060 = vmatpush1.msra.mxu0 %v2981
        %3061 = vmatprep.subr.mxu0 0.0
        %3062 = vmatpush1.msra.mxu0 0.0
        %3063 = vmatprep.subr.mxu0 0.0
        %3064 = vmatpush1.msra.mxu0 0.0
        %3065 = vmatprep.subr.mxu0 0.0
        %3066 = vmatpush1.msra.mxu0 0.0
        %3067 = vmatprep.subr.mxu0 0.0
        %3068 = vmatpush1.msra.mxu0 0.0
        %3069 = vmatprep.subr.mxu0 0.0
        %3070 = vmatpush1.msra.mxu0 0.0
        %3071 = vmatprep.subr.mxu0 0.0
        %3072 = vmatpush1.msra.mxu0 0.0
        %3073 = vmatprep.subr.mxu0 0.0
        %3074 = vmatpush1.msra.mxu0 0.0
        %3075 = vmatprep.subr.mxu0 0.0
        %3076 = vmatpush1.msra.mxu0 0.0
        %3077 = vmatprep.subr.mxu0 0.0
        %3078 = vmatpush1.msra.mxu0 0.0
        %3079 = vmatprep.subr.mxu0 0.0
        %3080 = vmatpush1.msra.mxu0 0.0
        %3081 = vmatprep.subr.mxu0 0.0
        %3082 = vmatpush1.msra.mxu0 0.0
        %3083 = vmatprep.subr.mxu0 0.0
        %3084 = vmatpush1.msra.mxu0 0.0
        %3085 = vmatprep.subr.mxu0 0.0
        %3086 = vmatpush1.msra.mxu0 0.0
        %3087 = vmatprep.subr.mxu0 0.0
        %3088 = vmatpush1.msra.mxu0 0.0
        %3089 = vmatprep.subr.mxu0 0.0
        %3090 = vmatpush1.msra.mxu0 0.0
        %3091 = vmatprep.subr.mxu0 0.0
        %3092 = vmatpush1.msra.mxu0 0.0
        %3093 = vmatprep.subr.mxu0 0.0
        %3094 = vmatpush1.msra.mxu0 0.0
        %3095 = vmatprep.subr.mxu0 0.0
        %3096 = vmatpush1.msra.mxu0 0.0
        %3097 = vmatprep.subr.mxu0 0.0
        %3098 = vmatpush1.msra.mxu0 0.0
        %3099 = vmatprep.subr.mxu0 0.0
        %3100 = vmatpush1.msra.mxu0 0.0
        %3101 = vmatprep.subr.mxu0 0.0
        %3102 = vmatpush1.msra.mxu0 0.0
        %3103 = vmatprep.subr.mxu0 0.0
        %3104 = vmatpush1.msra.mxu0 0.0
        %3105 = vmatprep.subr.mxu0 0.0
        %3106 = vmatpush1.msra.mxu0 0.0
        %3107 = vmatprep.subr.mxu0 0.0
        %3108 = vmatpush1.msra.mxu0 0.0
        %3109 = vmatprep.subr.mxu0 0.0
        %3110 = vmatpush1.msra.mxu0 0.0
        %3111 = vmatprep.subr.mxu0 0.0
        %3112 = vmatpush1.msra.mxu0 0.0
        %3113 = vmatprep.subr.mxu0 0.0
        %3114 = vmatpush1.msra.mxu0 0.0
        %3115 = vmatprep.subr.mxu0 0.0
        %3116 = vmatpush1.msra.mxu0 0.0
        %3117 = vmatprep.subr.mxu0 0.0
        %3118 = vmatpush1.msra.mxu0 0.0
        %3119 = vmatprep.subr.mxu0 0.0
        %3120 = vmatpush1.msra.mxu0 0.0
        %3121 = vmatprep.subr.mxu0 0.0
        %3122 = vmatpush1.msra.mxu0 0.0
        %3123 = vmatprep.mubr.f32.mxu0 0.0
        %3124 = vmatmul.mubr.f32.gmra.mrb[0].mxu0 %v3057
        %v3125 = vpop.f32.mrb[0].mxu0
        %v3126 = vadd.f32 0.0, %v3125
        %v3127 = vpop.f32.mrb[0].mxu0
        %3128 = vdwg.mxu0
        %v3130 = vsel %vm1814, %v2978, 0
        %3132 = vmatprep.subr.mxu0 0.0
        %3133 = vmatpush1.msra.mxu0 %v2981
        %3134 = vmatprep.subr.mxu0 0.0
        %3135 = vmatpush1.msra.mxu0 0.0
        %3136 = vmatprep.subr.mxu0 0.0
        %3137 = vmatpush1.msra.mxu0 0.0
        %3138 = vmatprep.subr.mxu0 0.0
        %3139 = vmatpush1.msra.mxu0 0.0
        %3140 = vmatprep.subr.mxu0 0.0
        %3141 = vmatpush1.msra.mxu0 0.0
        %3142 = vmatprep.subr.mxu0 0.0
        %3143 = vmatpush1.msra.mxu0 0.0
        %3144 = vmatprep.subr.mxu0 0.0
        %3145 = vmatpush1.msra.mxu0 0.0
        %3146 = vmatprep.subr.mxu0 0.0
        %3147 = vmatpush1.msra.mxu0 0.0
        %3148 = vmatprep.subr.mxu0 0.0
        %3149 = vmatpush1.msra.mxu0 0.0
        %3150 = vmatprep.subr.mxu0 0.0
        %3151 = vmatpush1.msra.mxu0 0.0
        %3152 = vmatprep.subr.mxu0 0.0
        %3153 = vmatpush1.msra.mxu0 0.0
        %3154 = vmatprep.subr.mxu0 0.0
        %3155 = vmatpush1.msra.mxu0 0.0
        %3156 = vmatprep.subr.mxu0 0.0
        %3157 = vmatpush1.msra.mxu0 0.0
        %3158 = vmatprep.subr.mxu0 0.0
        %3159 = vmatpush1.msra.mxu0 0.0
        %3160 = vmatprep.subr.mxu0 0.0
        %3161 = vmatpush1.msra.mxu0 0.0
        %3162 = vmatprep.subr.mxu0 0.0
        %3163 = vmatpush1.msra.mxu0 0.0
        %3164 = vmatprep.subr.mxu0 0.0
        %3165 = vmatpush1.msra.mxu0 0.0
        %3166 = vmatprep.subr.mxu0 0.0
        %3167 = vmatpush1.msra.mxu0 0.0
        %3168 = vmatprep.subr.mxu0 0.0
        %3169 = vmatpush1.msra.mxu0 0.0
        %3170 = vmatprep.subr.mxu0 0.0
        %3171 = vmatpush1.msra.mxu0 0.0
        %3172 = vmatprep.subr.mxu0 0.0
        %3173 = vmatpush1.msra.mxu0 0.0
        %3174 = vmatprep.subr.mxu0 0.0
        %3175 = vmatpush1.msra.mxu0 0.0
        %3176 = vmatprep.subr.mxu0 0.0
        %3177 = vmatpush1.msra.mxu0 0.0
        %3178 = vmatprep.subr.mxu0 0.0
        %3179 = vmatpush1.msra.mxu0 0.0
        %3180 = vmatprep.subr.mxu0 0.0
        %3181 = vmatpush1.msra.mxu0 0.0
        %3182 = vmatprep.subr.mxu0 0.0
        %3183 = vmatpush1.msra.mxu0 0.0
        %3184 = vmatprep.subr.mxu0 0.0
        %3185 = vmatpush1.msra.mxu0 0.0
        %3186 = vmatprep.subr.mxu0 0.0
        %3187 = vmatpush1.msra.mxu0 0.0
        %3188 = vmatprep.subr.mxu0 0.0
        %3189 = vmatpush1.msra.mxu0 0.0
        %3190 = vmatprep.subr.mxu0 0.0
        %3191 = vmatpush1.msra.mxu0 0.0
        %3192 = vmatprep.subr.mxu0 0.0
        %3193 = vmatpush1.msra.mxu0 0.0
        %3194 = vmatprep.subr.mxu0 0.0
        %3195 = vmatpush1.msra.mxu0 0.0
        %3196 = vmatprep.mubr.f32.mxu0 0.0
        %3197 = vmatmul.mubr.f32.gmra.mrb[0].mxu0 %v3130
        %v3198 = vpop.f32.mrb[0].mxu0
        %v3199 = vadd.f32 0.0, %v3198
        %v3200 = vpop.f32.mrb[0].mxu0
        %3201 = vdwg.mxu0
        %v3203 = vsel %vm1814, %v2979, 0
        %3205 = vmatprep.subr.mxu0 0.0
        %3206 = vmatpush1.msra.mxu0 %v2981
        %3207 = vmatprep.subr.mxu0 0.0
        %3208 = vmatpush1.msra.mxu0 0.0
        %3209 = vmatprep.subr.mxu0 0.0
        %3210 = vmatpush1.msra.mxu0 0.0
        %3211 = vmatprep.subr.mxu0 0.0
        %3212 = vmatpush1.msra.mxu0 0.0
        %3213 = vmatprep.subr.mxu0 0.0
        %3214 = vmatpush1.msra.mxu0 0.0
        %3215 = vmatprep.subr.mxu0 0.0
        %3216 = vmatpush1.msra.mxu0 0.0
        %3217 = vmatprep.subr.mxu0 0.0
        %3218 = vmatpush1.msra.mxu0 0.0
        %3219 = vmatprep.subr.mxu0 0.0
        %3220 = vmatpush1.msra.mxu0 0.0
        %3221 = vmatprep.subr.mxu0 0.0
        %3222 = vmatpush1.msra.mxu0 0.0
        %3223 = vmatprep.subr.mxu0 0.0
        %3224 = vmatpush1.msra.mxu0 0.0
        %3225 = vmatprep.subr.mxu0 0.0
        %3226 = vmatpush1.msra.mxu0 0.0
        %3227 = vmatprep.subr.mxu0 0.0
        %3228 = vmatpush1.msra.mxu0 0.0
        %3229 = vmatprep.subr.mxu0 0.0
        %3230 = vmatpush1.msra.mxu0 0.0
        %3231 = vmatprep.subr.mxu0 0.0
        %3232 = vmatpush1.msra.mxu0 0.0
        %3233 = vmatprep.subr.mxu0 0.0
        %3234 = vmatpush1.msra.mxu0 0.0
        %3235 = vmatprep.subr.mxu0 0.0
        %3236 = vmatpush1.msra.mxu0 0.0
        %3237 = vmatprep.subr.mxu0 0.0
        %3238 = vmatpush1.msra.mxu0 0.0
        %3239 = vmatprep.subr.mxu0 0.0
        %3240 = vmatpush1.msra.mxu0 0.0
        %3241 = vmatprep.subr.mxu0 0.0
        %3242 = vmatpush1.msra.mxu0 0.0
        %3243 = vmatprep.subr.mxu0 0.0
        %3244 = vmatpush1.msra.mxu0 0.0
        %3245 = vmatprep.subr.mxu0 0.0
        %3246 = vmatpush1.msra.mxu0 0.0
        %3247 = vmatprep.subr.mxu0 0.0
        %3248 = vmatpush1.msra.mxu0 0.0
        %3249 = vmatprep.subr.mxu0 0.0
        %3250 = vmatpush1.msra.mxu0 0.0
        %3251 = vmatprep.subr.mxu0 0.0
        %3252 = vmatpush1.msra.mxu0 0.0
        %3253 = vmatprep.subr.mxu0 0.0
        %3254 = vmatpush1.msra.mxu0 0.0
        %3255 = vmatprep.subr.mxu0 0.0
        %3256 = vmatpush1.msra.mxu0 0.0
        %3257 = vmatprep.subr.mxu0 0.0
        %3258 = vmatpush1.msra.mxu0 0.0
        %3259 = vmatprep.subr.mxu0 0.0
        %3260 = vmatpush1.msra.mxu0 0.0
        %3261 = vmatprep.subr.mxu0 0.0
        %3262 = vmatpush1.msra.mxu0 0.0
        %3263 = vmatprep.subr.mxu0 0.0
        %3264 = vmatpush1.msra.mxu0 0.0
        %3265 = vmatprep.subr.mxu0 0.0
        %3266 = vmatpush1.msra.mxu0 0.0
        %3267 = vmatprep.subr.mxu0 0.0
        %3268 = vmatpush1.msra.mxu0 0.0
        %3269 = vmatprep.mubr.f32.mxu0 0.0
        %3270 = vmatmul.mubr.f32.gmra.mrb[0].mxu0 %v3203
        %v3271 = vpop.f32.mrb[0].mxu0
        %v3272 = vadd.f32 0.0, %v3271
        %v3273 = vpop.f32.mrb[0].mxu0
        %3274 = vdwg.mxu0
        %v3275 = vmul.f32 %v3053, %v2614
        %v3276 = vmul.f32 %v3126, %v2618
        %v3277 = vmul.f32 %v3199, %v2622
        %v3278 = vmul.f32 %v3272, %v2626
        %v3279 = vsel %vm2477, %v3275, 0.0
        %v3280 = vsel %vm2477, %v3276, 0.0
        %v3281 = vadd.f32 %v3279, %v3280
        %v3282 = vsel %vm2477, %v3277, 0.0
        %v3283 = vadd.f32 %v3281, %v3282
        %v3284 = vsel %vm2477, %v3278, 0.0
        %v3285 = vadd.f32 %v3283, %v3284
        %v3287 = vlaneseq
        %v3288 = vshrl.u32 %v3287, 7
        %v3289 = vsub.s32 0, %v3288
        %v3290 = vrot.slane %v2462, %v3289
        %v3293 = vsel %vm2477, %v3285, 0
        %3295 = vmatprep.subr.mxu0 0.0
        %3296 = vmatpush1.msra.mxu0 %v2460
        %3297 = vmatprep.subr.mxu0 0.0
        %3298 = vmatpush1.msra.mxu0 %v2461
        %3299 = vmatprep.subr.mxu0 0.0
        %3300 = vmatpush1.msra.mxu0 0.0
        %3301 = vmatprep.subr.mxu0 0.0
        %3302 = vmatpush1.msra.mxu0 0.0
        %3303 = vmatprep.subr.mxu0 0.0
        %3304 = vmatpush1.msra.mxu0 0.0
        %3305 = vmatprep.subr.mxu0 0.0
        %3306 = vmatpush1.msra.mxu0 0.0
        %3307 = vmatprep.subr.mxu0 0.0
        %3308 = vmatpush1.msra.mxu0 0.0
        %3309 = vmatprep.subr.mxu0 0.0
        %3310 = vmatpush1.msra.mxu0 0.0
        %3311 = vmatprep.subr.mxu0 0.0
        %3312 = vmatpush1.msra.mxu0 0.0
        %3313 = vmatprep.subr.mxu0 0.0
        %3314 = vmatpush1.msra.mxu0 0.0
        %3315 = vmatprep.subr.mxu0 0.0
        %3316 = vmatpush1.msra.mxu0 0.0
        %3317 = vmatprep.subr.mxu0 0.0
        %3318 = vmatpush1.msra.mxu0 0.0
        %3319 = vmatprep.subr.mxu0 0.0
        %3320 = vmatpush1.msra.mxu0 0.0
        %3321 = vmatprep.subr.mxu0 0.0
        %3322 = vmatpush1.msra.mxu0 0.0
        %3323 = vmatprep.subr.mxu0 0.0
        %3324 = vmatpush1.msra.mxu0 0.0
        %3325 = vmatprep.subr.mxu0 0.0
        %3326 = vmatpush1.msra.mxu0 0.0
        %3327 = vmatprep.subr.mxu0 0.0
        %3328 = vmatpush1.msra.mxu0 0.0
        %3329 = vmatprep.subr.mxu0 0.0
        %3330 = vmatpush1.msra.mxu0 0.0
        %3331 = vmatprep.subr.mxu0 0.0
        %3332 = vmatpush1.msra.mxu0 0.0
        %3333 = vmatprep.subr.mxu0 0.0
        %3334 = vmatpush1.msra.mxu0 0.0
        %3335 = vmatprep.subr.mxu0 0.0
        %3336 = vmatpush1.msra.mxu0 0.0
        %3337 = vmatprep.subr.mxu0 0.0
        %3338 = vmatpush1.msra.mxu0 0.0
        %3339 = vmatprep.subr.mxu0 0.0
        %3340 = vmatpush1.msra.mxu0 0.0
        %3341 = vmatprep.subr.mxu0 0.0
        %3342 = vmatpush1.msra.mxu0 0.0
        %3343 = vmatprep.subr.mxu0 0.0
        %3344 = vmatpush1.msra.mxu0 0.0
        %3345 = vmatprep.subr.mxu0 0.0
        %3346 = vmatpush1.msra.mxu0 0.0
        %3347 = vmatprep.subr.mxu0 0.0
        %3348 = vmatpush1.msra.mxu0 0.0
        %3349 = vmatprep.subr.mxu0 0.0
        %3350 = vmatpush1.msra.mxu0 0.0
        %3351 = vmatprep.subr.mxu0 0.0
        %3352 = vmatpush1.msra.mxu0 0.0
        %3353 = vmatprep.subr.mxu0 0.0
        %3354 = vmatpush1.msra.mxu0 0.0
        %3355 = vmatprep.subr.mxu0 0.0
        %3356 = vmatpush1.msra.mxu0 0.0
        %3357 = vmatprep.subr.mxu0 0.0
        %3358 = vmatpush1.msra.mxu0 0.0
        %3359 = vmatprep.mubr.f32.mxu0 0.0
        %3360 = vmatmul.mubr.f32.gmra.mrb[0].mxu0 %v3293
        %v3361 = vpop.f32.mrb[0].mxu0
        %v3362 = vadd.f32 %v3290, %v3361
        %v3363 = vpop.f32.mrb[0].mxu0
        %3364 = vdwg.mxu0
        %v3365 = vadd.f32 %v2455, %v3362
        %v3366 = vsel %vm2477, %v3365, 0.0
        %3367 = vadd.xlane.f32.xlu0 %v3366
        %v3368 = vpop.xlane.xlu0 %3367
        %v3369 = vmul.f32 %v3368, %v2481
        %v3370 = vsub.f32 %v3365, %v3369
        %v3371 = vmul.f32 %v3370, %v3370
        %v3372 = vsel %vm2477, %v3371, 0.0
        %3373 = vadd.xlane.f32.xlu0 %v3372
        %v3374 = vpop.xlane.xlu0 %3373
        %v3375 = vmul.f32 %v3374, %v2481
        %v3376 = vadd.f32 %v3375, 1e-05
        %v3377 = vrsqrt.pop %v3376
        %v3378 = vmul.f32 %v3370, %v3377
        %v3380 = vlaneseq
        %v3381 = vshrl.u32 %v3380, 7
        %v3382 = vsub.s32 0, %v3381
        %v3383 = vrot.slane %v2463, %v3382
        %v3385 = vmul.f32 %v3378, %v3383
        %v3387 = vlaneseq
        %v3388 = vshrl.u32 %v3387, 7
        %v3389 = vsub.s32 0, %v3388
        %v3390 = vrot.slane %v2464, %v3389
        %v3392 = vadd.f32 %v3385, %v3390
        %v3394 = vlaneseq
        %v3395 = vshrl.u32 %v3394, 7
        %v3396 = vsub.s32 0, %v3395
        %v3397 = vrot.slane %v2467, %v3396
        %v3400 = vsel %vm2477, %v3392, 0
        %3402 = vmatprep.subr.mxu0 0.0
        %3403 = vmatpush1.msra.mxu0 %v2465
        %3404 = vmatprep.subr.mxu0 0.0
        %3405 = vmatpush1.msra.mxu0 %v2466
        %3406 = vmatprep.subr.mxu0 0.0
        %3407 = vmatpush1.msra.mxu0 0.0
        %3408 = vmatprep.subr.mxu0 0.0
        %3409 = vmatpush1.msra.mxu0 0.0
        %3410 = vmatprep.subr.mxu0 0.0
        %3411 = vmatpush1.msra.mxu0 0.0
        %3412 = vmatprep.subr.mxu0 0.0
        %3413 = vmatpush1.msra.mxu0 0.0
        %3414 = vmatprep.subr.mxu0 0.0
        %3415 = vmatpush1.msra.mxu0 0.0
        %3416 = vmatprep.subr.mxu0 0.0
        %3417 = vmatpush1.msra.mxu0 0.0
        %3418 = vmatprep.subr.mxu0 0.0
        %3419 = vmatpush1.msra.mxu0 0.0
        %3420 = vmatprep.subr.mxu0 0.0
        %3421 = vmatpush1.msra.mxu0 0.0
        %3422 = vmatprep.subr.mxu0 0.0
        %3423 = vmatpush1.msra.mxu0 0.0
        %3424 = vmatprep.subr.mxu0 0.0
        %3425 = vmatpush1.msra.mxu0 0.0
        %3426 = vmatprep.subr.mxu0 0.0
        %3427 = vmatpush1.msra.mxu0 0.0
        %3428 = vmatprep.subr.mxu0 0.0
        %3429 = vmatpush1.msra.mxu0 0.0
        %3430 = vmatprep.subr.mxu0 0.0
        %3431 = vmatpush1.msra.mxu0 0.0
        %3432 = vmatprep.subr.mxu0 0.0
        %3433 = vmatpush1.msra.mxu0 0.0
        %3434 = vmatprep.subr.mxu0 0.0
        %3435 = vmatpush1.msra.mxu0 0.0
        %3436 = vmatprep.subr.mxu0 0.0
        %3437 = vmatpush1.msra.mxu0 0.0
        %3438 = vmatprep.subr.mxu0 0.0
        %3439 = vmatpush1.msra.mxu0 0.0
        %3440 = vmatprep.subr.mxu0 0.0
        %3441 = vmatpush1.msra.mxu0 0.0
        %3442 = vmatprep.subr.mxu0 0.0
        %3443 = vmatpush1.msra.mxu0 0.0
        %3444 = vmatprep.subr.mxu0 0.0
        %3445 = vmatpush1.msra.mxu0 0.0
        %3446 = vmatprep.subr.mxu0 0.0
        %3447 = vmatpush1.msra.mxu0 0.0
        %3448 = vmatprep.subr.mxu0 0.0
        %3449 = vmatpush1.msra.mxu0 0.0
        %3450 = vmatprep.subr.mxu0 0.0
        %3451 = vmatpush1.msra.mxu0 0.0
        %3452 = vmatprep.subr.mxu0 0.0
        %3453 = vmatpush1.msra.mxu0 0.0
        %3454 = vmatprep.subr.mxu0 0.0
        %3455 = vmatpush1.msra.mxu0 0.0
        %3456 = vmatprep.subr.mxu0 0.0
        %3457 = vmatpush1.msra.mxu0 0.0
        %3458 = vmatprep.subr.mxu0 0.0
        %3459 = vmatpush1.msra.mxu0 0.0
        %3460 = vmatprep.subr.mxu0 0.0
        %3461 = vmatpush1.msra.mxu0 0.0
        %3462 = vmatprep.subr.mxu0 0.0
        %3463 = vmatpush1.msra.mxu0 0.0
        %3464 = vmatprep.subr.mxu0 0.0
        %3465 = vmatpush1.msra.mxu0 0.0
        %3466 = vmatprep.mubr.f32.mxu0 0.0
        %3467 = vmatmul.mubr.f32.gmra.mrb[0].mxu0 %v3400
        %v3468 = vpop.f32.mrb[0].mxu0
        %v3469 = vadd.f32 %v3397, %v3468
        %v3470 = vpop.f32.mrb[0].mxu0
        %3471 = vdwg.mxu0
        %v3472 = vmul.f32 %v3469, 0.5
        %v3473 = vmul.f32 %v3469, 0.70710677
        %vm3474 = vcmp.ge.f32.partialorder %v3473, 0.0
        %v3475 = vsel %vm3474, 1.0, -1.0
        %v3476 = vand.u32 2147483647, %v3473
        %v3477 = vmul.f32 %v3476, 0.3275911
        %v3478 = vadd.f32 %v3477, 1.0
        %v3479 = vrcp.pop %v3478
        %v3480 = vmul.f32 1.0, %v3479
        %v3481 = vmul.f32 %v3480, 1.0614054
        %v3482 = vadd.f32 %v3481, -1.4531521
        %v3483 = vmul.f32 %v3482, %v3480
        %v3484 = vadd.f32 %v3483, 1.4214138
        %v3485 = vmul.f32 %v3484, %v3480
        %v3486 = vadd.f32 %v3485, -0.28449672
        %v3487 = vmul.f32 %v3486, %v3480
        %v3488 = vadd.f32 %v3487, 0.2548296
        %v3489 = vmul.f32 %v3488, %v3480
        %v3490 = vsub.f32 0.0, %v3476
        %v3491 = vmul.f32 %v3490, %v3476
        %v3492 = vmul.f32 %v3491, 1.442695
        %v3493 = vpow.pop %v3492
        %v3494 = vmul.f32 %v3489, %v3493
        %v3495 = vsub.f32 1.0, %v3494
        %v3496 = vmul.f32 %v3475, %v3495
        %v3497 = vadd.f32 %v3496, 1.0
        %v3498 = vmul.f32 %v3472, %v3497
        %v3500 = vlaneseq
        %v3501 = vshrl.u32 %v3500, 7
        %v3502 = vsub.s32 0, %v3501
        %v3503 = vrot.slane %v2476, %v3502
        %vm3505 = vcmask 523264
        %v3507 = vsel %vm3505, %v3498, 0
        %3509 = vmatprep.subr.mxu0 0.0
        %3510 = vmatpush1.msra.mxu0 %v2468
        %3511 = vmatprep.subr.mxu0 0.0
        %3512 = vmatpush1.msra.mxu0 %v2469
        %3513 = vmatprep.subr.mxu0 0.0
        %3514 = vmatpush1.msra.mxu0 %v2470
        %3515 = vmatprep.subr.mxu0 0.0
        %3516 = vmatpush1.msra.mxu0 %v2471
        %3517 = vmatprep.subr.mxu0 0.0
        %3518 = vmatpush1.msra.mxu0 %v2472
        %3519 = vmatprep.subr.mxu0 0.0
        %3520 = vmatpush1.msra.mxu0 %v2473
        %3521 = vmatprep.subr.mxu0 0.0
        %3522 = vmatpush1.msra.mxu0 %v2474
        %3523 = vmatprep.subr.mxu0 0.0
        %3524 = vmatpush1.msra.mxu0 %v2475
        %3525 = vmatprep.subr.mxu0 0.0
        %3526 = vmatpush1.msra.mxu0 0.0
        %3527 = vmatprep.subr.mxu0 0.0
        %3528 = vmatpush1.msra.mxu0 0.0
        %3529 = vmatprep.subr.mxu0 0.0
        %3530 = vmatpush1.msra.mxu0 0.0
        %3531 = vmatprep.subr.mxu0 0.0
        %3532 = vmatpush1.msra.mxu0 0.0
        %3533 = vmatprep.subr.mxu0 0.0
        %3534 = vmatpush1.msra.mxu0 0.0
        %3535 = vmatprep.subr.mxu0 0.0
        %3536 = vmatpush1.msra.mxu0 0.0
        %3537 = vmatprep.subr.mxu0 0.0
        %3538 = vmatpush1.msra.mxu0 0.0
        %3539 = vmatprep.subr.mxu0 0.0
        %3540 = vmatpush1.msra.mxu0 0.0
        %3541 = vmatprep.subr.mxu0 0.0
        %3542 = vmatpush1.msra.mxu0 0.0
        %3543 = vmatprep.subr.mxu0 0.0
        %3544 = vmatpush1.msra.mxu0 0.0
        %3545 = vmatprep.subr.mxu0 0.0
        %3546 = vmatpush1.msra.mxu0 0.0
        %3547 = vmatprep.subr.mxu0 0.0
        %3548 = vmatpush1.msra.mxu0 0.0
        %3549 = vmatprep.subr.mxu0 0.0
        %3550 = vmatpush1.msra.mxu0 0.0
        %3551 = vmatprep.subr.mxu0 0.0
        %3552 = vmatpush1.msra.mxu0 0.0
        %3553 = vmatprep.subr.mxu0 0.0
        %3554 = vmatpush1.msra.mxu0 0.0
        %3555 = vmatprep.subr.mxu0 0.0
        %3556 = vmatpush1.msra.mxu0 0.0
        %3557 = vmatprep.subr.mxu0 0.0
        %3558 = vmatpush1.msra.mxu0 0.0
        %3559 = vmatprep.subr.mxu0 0.0
        %3560 = vmatpush1.msra.mxu0 0.0
        %3561 = vmatprep.subr.mxu0 0.0
        %3562 = vmatpush1.msra.mxu0 0.0
        %3563 = vmatprep.subr.mxu0 0.0
        %3564 = vmatpush1.msra.mxu0 0.0
        %3565 = vmatprep.subr.mxu0 0.0
        %3566 = vmatpush1.msra.mxu0 0.0
        %3567 = vmatprep.subr.mxu0 0.0
        %3568 = vmatpush1.msra.mxu0 0.0
        %3569 = vmatprep.subr.mxu0 0.0
        %3570 = vmatpush1.msra.mxu0 0.0
        %3571 = vmatprep.subr.mxu0 0.0
        %3572 = vmatpush1.msra.mxu0 0.0
        %3573 = vmatprep.mubr.f32.mxu0 0.0
        %3574 = vmatmul.mubr.f32.gmra.mrb[0].mxu0 %v3507
        %v3575 = vpop.f32.mrb[0].mxu0
        %v3576 = vadd.f32 %v3503, %v3575
        %v3577 = vpop.f32.mrb[0].mxu0
        %3578 = vdwg.mxu0
        %v3579 = vadd.f32 %v3365, %v3576
        %v3580 = vld [vmem:[%s1313] sm:$0xff]
        %v3581 = vld [vmem:[%s51] sm:$0x1]
        %v3582 = vld [vmem:[%s53] sm:$0x1]
        %v3583 = vld [vmem:[%s55] sm:$0xff]
        %v3584 = vld [vmem:[%s57] sm:$0xff]
        %v3585 = vld [vmem:[%s59] sm:$0x1]
        %v3586 = vld [vmem:[%s61] sm:$0x1]
        %v3587 = vld [vmem:[%s63] sm:$0x1]
        %v3588 = vld [vmem:[%s65] sm:$0xff]
        %v3589 = vld [vmem:[%s67] sm:$0x1]
        %v3590 = vld [vmem:[%s69] sm:$0xff]
        %v3591 = vld [vmem:[%s69 + $0x8] sm:$0xff]
        %v3592 = vld [vmem:[%s69 + $0x10] sm:$0xff]
        %v3593 = vld [vmem:[%s69 + $0x18] sm:$0xff]
        %v3594 = vld [vmem:[%s71] sm:$0x1]
        %v3595 = vsel %vm1814, %v3580, 0.0
        %3596 = vadd.xlane.f32.xlu0 %v3595
        %v3597 = vpop.xlane.xlu0 %3596
        %v3598 = vrcp.pop 8.0
        %v3599 = vmul.f32 %v3597, %v3598
        %v3600 = vsub.f32 %v3580, %v3599
        %v3601 = vmul.f32 %v3600, %v3600
        %v3602 = vsel %vm1814, %v3601, 0.0
        %3603 = vadd.xlane.f32.xlu0 %v3602
        %v3604 = vpop.xlane.xlu0 %3603
        %v3605 = vmul.f32 %v3604, %v3598
        %v3606 = vadd.f32 %v3605, 1e-05
        %v3607 = vrsqrt.pop %v3606
        %v3608 = vmul.f32 %v3600, %v3607
        %v3610 = vlaneseq
        %v3611 = vshrl.u32 %v3610, 7
        %v3612 = vsub.s32 0, %v3611
        %v3613 = vrot.slane %v3581, %v3612
        %v3615 = vmul.f32 %v3608, %v3613
        %v3617 = vlaneseq
        %v3618 = vshrl.u32 %v3617, 7
        %v3619 = vsub.s32 0, %v3618
        %v3620 = vrot.slane %v3582, %v3619
        %v3622 = vadd.f32 %v3615, %v3620
        %v3624 = vsel %vm1814, %v3622, 0
        %3626 = vmatprep.subr.mxu0 0.0
        %3627 = vmatpush1.msra.mxu0 %v3583
        %3628 = vmatprep.subr.mxu0 0.0
        %3629 = vmatpush1.msra.mxu0 0.0
        %3630 = vmatprep.subr.mxu0 0.0
        %3631 = vmatpush1.msra.mxu0 0.0
        %3632 = vmatprep.subr.mxu0 0.0
        %3633 = vmatpush1.msra.mxu0 0.0
        %3634 = vmatprep.subr.mxu0 0.0
        %3635 = vmatpush1.msra.mxu0 0.0
        %3636 = vmatprep.subr.mxu0 0.0
        %3637 = vmatpush1.msra.mxu0 0.0
        %3638 = vmatprep.subr.mxu0 0.0
        %3639 = vmatpush1.msra.mxu0 0.0
        %3640 = vmatprep.subr.mxu0 0.0
        %3641 = vmatpush1.msra.mxu0 0.0
        %3642 = vmatprep.subr.mxu0 0.0
        %3643 = vmatpush1.msra.mxu0 0.0
        %3644 = vmatprep.subr.mxu0 0.0
        %3645 = vmatpush1.msra.mxu0 0.0
        %3646 = vmatprep.subr.mxu0 0.0
        %3647 = vmatpush1.msra.mxu0 0.0
        %3648 = vmatprep.subr.mxu0 0.0
        %3649 = vmatpush1.msra.mxu0 0.0
        %3650 = vmatprep.subr.mxu0 0.0
        %3651 = vmatpush1.msra.mxu0 0.0
        %3652 = vmatprep.subr.mxu0 0.0
        %3653 = vmatpush1.msra.mxu0 0.0
        %3654 = vmatprep.subr.mxu0 0.0
        %3655 = vmatpush1.msra.mxu0 0.0
        %3656 = vmatprep.subr.mxu0 0.0
        %3657 = vmatpush1.msra.mxu0 0.0
        %3658 = vmatprep.subr.mxu0 0.0
        %3659 = vmatpush1.msra.mxu0 0.0
        %3660 = vmatprep.subr.mxu0 0.0
        %3661 = vmatpush1.msra.mxu0 0.0
        %3662 = vmatprep.subr.mxu0 0.0
        %3663 = vmatpush1.msra.mxu0 0.0
        %3664 = vmatprep.subr.mxu0 0.0
        %3665 = vmatpush1.msra.mxu0 0.0
        %3666 = vmatprep.subr.mxu0 0.0
        %3667 = vmatpush1.msra.mxu0 0.0
        %3668 = vmatprep.subr.mxu0 0.0
        %3669 = vmatpush1.msra.mxu0 0.0
        %3670 = vmatprep.subr.mxu0 0.0
        %3671 = vmatpush1.msra.mxu0 0.0
        %3672 = vmatprep.subr.mxu0 0.0
        %3673 = vmatpush1.msra.mxu0 0.0
        %3674 = vmatprep.subr.mxu0 0.0
        %3675 = vmatpush1.msra.mxu0 0.0
        %3676 = vmatprep.subr.mxu0 0.0
        %3677 = vmatpush1.msra.mxu0 0.0
        %3678 = vmatprep.subr.mxu0 0.0
        %3679 = vmatpush1.msra.mxu0 0.0
        %3680 = vmatprep.subr.mxu0 0.0
        %3681 = vmatpush1.msra.mxu0 0.0
        %3682 = vmatprep.subr.mxu0 0.0
        %3683 = vmatpush1.msra.mxu0 0.0
        %3684 = vmatprep.subr.mxu0 0.0
        %3685 = vmatpush1.msra.mxu0 0.0
        %3686 = vmatprep.subr.mxu0 0.0
        %3687 = vmatpush1.msra.mxu0 0.0
        %3688 = vmatprep.subr.mxu0 0.0
        %3689 = vmatpush1.msra.mxu0 0.0
        %3690 = vmatprep.mubr.f32.mxu0 0.0
        %3691 = vmatmul.mubr.f32.gmra.mrb[0].mxu0 %v3624
        %v3692 = vpop.f32.mrb[0].mxu0
        %v3693 = vadd.f32 0.0, %v3692
        %v3694 = vpop.f32.mrb[0].mxu0
        %3695 = vdwg.mxu0
        %v3696 = vmul.u32 %v1455, 2
        %vm3697 = vcmp.ge.s32.totalorder %v1453, %v3696
        %v3698 = vmul.u32 %v1458, 2
        %vm3699 = vcmp.lt.s32.totalorder %v1453, %v3698
        %vm3700 = vmand %vm3697, %vm3699
        %v3701 = vsel %vm3700, 1, 0
        %v3702 = vcvt.s32.f32 %v3701
        %v3705 = vunpack.c.l.s4 1966171168
        %v3706 = vunpack.c.0.s8 %v3705
        %v3707 = vlaneseq
        %v3708 = vshrl.u32 %v3707, 7
        %v3709 = vsub.s32 %v3706, %v3708
        %v3710 = vrot.slane %v3702, %v3709
        %v3711 = vcombine.high %v3710, %v3710
        %v3713 = vunpack.c.l.s4 1966171168
        %v3714 = vunpack.c.0.s8 %v3713
        %v3715 = vlaneseq
        %v3716 = vshrl.u32 %v3715, 7
        %v3717 = vsub.s32 %v3714, %v3716
        %v3718 = vrot.slane %v3710, %v3717
        %v3720 = vunpack.c.l.s4 1966171168
        %v3721 = vunpack.c.0.s8 %v3720
        %v3722 = vlaneseq
        %v3723 = vshrl.u32 %v3722, 7
        %v3724 = vsub.s32 %v3721, %v3723
        %v3725 = vrot.slane %v3711, %v3724
        %v3726 = vcombine.high %v3718, %v3718
        %v3727 = vcombine.high %v3725, %v3725
        %v3728 = vlaneseq
        %v3729 = vshrl.u32 %v3728, 7
        %v3730 = vsub.s32 0, %v3729
        %v3731 = vrot.slane %v3718, %v3730
        %v3732 = vlaneseq
        %v3733 = vshrl.u32 %v3732, 7
        %v3734 = vsub.s32 0, %v3733
        %v3735 = vrot.slane %v3725, %v3734
        %v3736 = vlaneseq
        %v3737 = vshrl.u32 %v3736, 7
        %v3738 = vsub.s32 0, %v3737
        %v3739 = vrot.slane %v3726, %v3738
        %v3740 = vlaneseq
        %v3741 = vshrl.u32 %v3740, 7
        %v3742 = vsub.s32 0, %v3741
        %v3743 = vrot.slane %v3727, %v3742
        %v3748 = vmul.f32 %v3693, %v3731
        %v3749 = vmul.f32 %v3693, %v3735
        %v3750 = vmul.f32 %v3693, %v3739
        %v3751 = vmul.f32 %v3693, %v3743
        %3753 = vrot.lane.b32.xlu0 %v3693, 120
        %v3754 = vpop.permute.xlu0 %3753
        %v3756 = vsel %vm1814, %v3748, 0
        %v3758 = vsel %vm1814, %v3754, 0
        %3760 = vmatprep.subr.mxu0 0.0
        %3761 = vmatpush1.xpose.msra.mxu0 %v3758
        %3762 = vmatprep.subr.mxu0 0.0
        %3763 = vmatpush1.xpose.msra.mxu0 0.0
        %3764 = vmatprep.subr.mxu0 0.0
        %3765 = vmatpush1.xpose.msra.mxu0 0.0
        %3766 = vmatprep.subr.mxu0 0.0
        %3767 = vmatpush1.xpose.msra.mxu0 0.0
        %3768 = vmatprep.subr.mxu0 0.0
        %3769 = vmatpush1.xpose.msra.mxu0 0.0
        %3770 = vmatprep.subr.mxu0 0.0
        %3771 = vmatpush1.xpose.msra.mxu0 0.0
        %3772 = vmatprep.subr.mxu0 0.0
        %3773 = vmatpush1.xpose.msra.mxu0 0.0
        %3774 = vmatprep.subr.mxu0 0.0
        %3775 = vmatpush1.xpose.msra.mxu0 0.0
        %3776 = vmatprep.subr.mxu0 0.0
        %3777 = vmatpush1.xpose.msra.mxu0 0.0
        %3778 = vmatprep.subr.mxu0 0.0
        %3779 = vmatpush1.xpose.msra.mxu0 0.0
        %3780 = vmatprep.subr.mxu0 0.0
        %3781 = vmatpush1.xpose.msra.mxu0 0.0
        %3782 = vmatprep.subr.mxu0 0.0
        %3783 = vmatpush1.xpose.msra.mxu0 0.0
        %3784 = vmatprep.subr.mxu0 0.0
        %3785 = vmatpush1.xpose.msra.mxu0 0.0
        %3786 = vmatprep.subr.mxu0 0.0
        %3787 = vmatpush1.xpose.msra.mxu0 0.0
        %3788 = vmatprep.subr.mxu0 0.0
        %3789 = vmatpush1.xpose.msra.mxu0 0.0
        %3790 = vmatprep.subr.mxu0 0.0
        %3791 = vmatpush1.xpose.msra.mxu0 0.0
        %3792 = vmatprep.subr.mxu0 0.0
        %3793 = vmatpush1.xpose.msra.mxu0 0.0
        %3794 = vmatprep.subr.mxu0 0.0
        %3795 = vmatpush1.xpose.msra.mxu0 0.0
        %3796 = vmatprep.subr.mxu0 0.0
        %3797 = vmatpush1.xpose.msra.mxu0 0.0
        %3798 = vmatprep.subr.mxu0 0.0
        %3799 = vmatpush1.xpose.msra.mxu0 0.0
        %3800 = vmatprep.subr.mxu0 0.0
        %3801 = vmatpush1.xpose.msra.mxu0 0.0
        %3802 = vmatprep.subr.mxu0 0.0
        %3803 = vmatpush1.xpose.msra.mxu0 0.0
        %3804 = vmatprep.subr.mxu0 0.0
        %3805 = vmatpush1.xpose.msra.mxu0 0.0
        %3806 = vmatprep.subr.mxu0 0.0
        %3807 = vmatpush1.xpose.msra.mxu0 0.0
        %3808 = vmatprep.subr.mxu0 0.0
        %3809 = vmatpush1.xpose.msra.mxu0 0.0
        %3810 = vmatprep.subr.mxu0 0.0
        %3811 = vmatpush1.xpose.msra.mxu0 0.0
        %3812 = vmatprep.subr.mxu0 0.0
        %3813 = vmatpush1.xpose.msra.mxu0 0.0
        %3814 = vmatprep.subr.mxu0 0.0
        %3815 = vmatpush1.xpose.msra.mxu0 0.0
        %3816 = vmatprep.subr.mxu0 0.0
        %3817 = vmatpush1.xpose.msra.mxu0 0.0
        %3818 = vmatprep.subr.mxu0 0.0
        %3819 = vmatpush1.xpose.msra.mxu0 0.0
        %3820 = vmatprep.subr.mxu0 0.0
        %3821 = vmatpush1.xpose.msra.mxu0 0.0
        %3822 = vmatprep.subr.mxu0 0.0
        %3823 = vmatpush1.xpose.msra.mxu0 0.0
        %3824 = vmatprep.mubr.f32.mxu0 0.0
        %3825 = vmatmul.mubr.f32.gmra.mrb[0].mxu0 %v3756
        %v3826 = vpop.f32.mrb[0].mxu0
        %v3827 = vadd.f32 0.0, %v3826
        %v3828 = vpop.f32.mrb[0].mxu0
        %3829 = vdwg.mxu0
        %v3831 = vsel %vm1814, %v3749, 0
        %3833 = vmatprep.subr.mxu0 0.0
        %3834 = vmatpush1.xpose.msra.mxu0 %v3758
        %3835 = vmatprep.subr.mxu0 0.0
        %3836 = vmatpush1.xpose.msra.mxu0 0.0
        %3837 = vmatprep.subr.mxu0 0.0
        %3838 = vmatpush1.xpose.msra.mxu0 0.0
        %3839 = vmatprep.subr.mxu0 0.0
        %3840 = vmatpush1.xpose.msra.mxu0 0.0
        %3841 = vmatprep.subr.mxu0 0.0
        %3842 = vmatpush1.xpose.msra.mxu0 0.0
        %3843 = vmatprep.subr.mxu0 0.0
        %3844 = vmatpush1.xpose.msra.mxu0 0.0
        %3845 = vmatprep.subr.mxu0 0.0
        %3846 = vmatpush1.xpose.msra.mxu0 0.0
        %3847 = vmatprep.subr.mxu0 0.0
        %3848 = vmatpush1.xpose.msra.mxu0 0.0
        %3849 = vmatprep.subr.mxu0 0.0
        %3850 = vmatpush1.xpose.msra.mxu0 0.0
        %3851 = vmatprep.subr.mxu0 0.0
        %3852 = vmatpush1.xpose.msra.mxu0 0.0
        %3853 = vmatprep.subr.mxu0 0.0
        %3854 = vmatpush1.xpose.msra.mxu0 0.0
        %3855 = vmatprep.subr.mxu0 0.0
        %3856 = vmatpush1.xpose.msra.mxu0 0.0
        %3857 = vmatprep.subr.mxu0 0.0
        %3858 = vmatpush1.xpose.msra.mxu0 0.0
        %3859 = vmatprep.subr.mxu0 0.0
        %3860 = vmatpush1.xpose.msra.mxu0 0.0
        %3861 = vmatprep.subr.mxu0 0.0
        %3862 = vmatpush1.xpose.msra.mxu0 0.0
        %3863 = vmatprep.subr.mxu0 0.0
        %3864 = vmatpush1.xpose.msra.mxu0 0.0
        %3865 = vmatprep.subr.mxu0 0.0
        %3866 = vmatpush1.xpose.msra.mxu0 0.0
        %3867 = vmatprep.subr.mxu0 0.0
        %3868 = vmatpush1.xpose.msra.mxu0 0.0
        %3869 = vmatprep.subr.mxu0 0.0
        %3870 = vmatpush1.xpose.msra.mxu0 0.0
        %3871 = vmatprep.subr.mxu0 0.0
        %3872 = vmatpush1.xpose.msra.mxu0 0.0
        %3873 = vmatprep.subr.mxu0 0.0
        %3874 = vmatpush1.xpose.msra.mxu0 0.0
        %3875 = vmatprep.subr.mxu0 0.0
        %3876 = vmatpush1.xpose.msra.mxu0 0.0
        %3877 = vmatprep.subr.mxu0 0.0
        %3878 = vmatpush1.xpose.msra.mxu0 0.0
        %3879 = vmatprep.subr.mxu0 0.0
        %3880 = vmatpush1.xpose.msra.mxu0 0.0
        %3881 = vmatprep.subr.mxu0 0.0
        %3882 = vmatpush1.xpose.msra.mxu0 0.0
        %3883 = vmatprep.subr.mxu0 0.0
        %3884 = vmatpush1.xpose.msra.mxu0 0.0
        %3885 = vmatprep.subr.mxu0 0.0
        %3886 = vmatpush1.xpose.msra.mxu0 0.0
        %3887 = vmatprep.subr.mxu0 0.0
        %3888 = vmatpush1.xpose.msra.mxu0 0.0
        %3889 = vmatprep.subr.mxu0 0.0
        %3890 = vmatpush1.xpose.msra.mxu0 0.0
        %3891 = vmatprep.subr.mxu0 0.0
        %3892 = vmatpush1.xpose.msra.mxu0 0.0
        %3893 = vmatprep.subr.mxu0 0.0
        %3894 = vmatpush1.xpose.msra.mxu0 0.0
        %3895 = vmatprep.subr.mxu0 0.0
        %3896 = vmatpush1.xpose.msra.mxu0 0.0
        %3897 = vmatprep.mubr.f32.mxu0 0.0
        %3898 = vmatmul.mubr.f32.gmra.mrb[0].mxu0 %v3831
        %v3899 = vpop.f32.mrb[0].mxu0
        %v3900 = vadd.f32 0.0, %v3899
        %v3901 = vpop.f32.mrb[0].mxu0
        %3902 = vdwg.mxu0
        %v3904 = vsel %vm1814, %v3750, 0
        %3906 = vmatprep.subr.mxu0 0.0
        %3907 = vmatpush1.xpose.msra.mxu0 %v3758
        %3908 = vmatprep.subr.mxu0 0.0
        %3909 = vmatpush1.xpose.msra.mxu0 0.0
        %3910 = vmatprep.subr.mxu0 0.0
        %3911 = vmatpush1.xpose.msra.mxu0 0.0
        %3912 = vmatprep.subr.mxu0 0.0
        %3913 = vmatpush1.xpose.msra.mxu0 0.0
        %3914 = vmatprep.subr.mxu0 0.0
        %3915 = vmatpush1.xpose.msra.mxu0 0.0
        %3916 = vmatprep.subr.mxu0 0.0
        %3917 = vmatpush1.xpose.msra.mxu0 0.0
        %3918 = vmatprep.subr.mxu0 0.0
        %3919 = vmatpush1.xpose.msra.mxu0 0.0
        %3920 = vmatprep.subr.mxu0 0.0
        %3921 = vmatpush1.xpose.msra.mxu0 0.0
        %3922 = vmatprep.subr.mxu0 0.0
        %3923 = vmatpush1.xpose.msra.mxu0 0.0
        %3924 = vmatprep.subr.mxu0 0.0
        %3925 = vmatpush1.xpose.msra.mxu0 0.0
        %3926 = vmatprep.subr.mxu0 0.0
        %3927 = vmatpush1.xpose.msra.mxu0 0.0
        %3928 = vmatprep.subr.mxu0 0.0
        %3929 = vmatpush1.xpose.msra.mxu0 0.0
        %3930 = vmatprep.subr.mxu0 0.0
        %3931 = vmatpush1.xpose.msra.mxu0 0.0
        %3932 = vmatprep.subr.mxu0 0.0
        %3933 = vmatpush1.xpose.msra.mxu0 0.0
        %3934 = vmatprep.subr.mxu0 0.0
        %3935 = vmatpush1.xpose.msra.mxu0 0.0
        %3936 = vmatprep.subr.mxu0 0.0
        %3937 = vmatpush1.xpose.msra.mxu0 0.0
        %3938 = vmatprep.subr.mxu0 0.0
        %3939 = vmatpush1.xpose.msra.mxu0 0.0
        %3940 = vmatprep.subr.mxu0 0.0
        %3941 = vmatpush1.xpose.msra.mxu0 0.0
        %3942 = vmatprep.subr.mxu0 0.0
        %3943 = vmatpush1.xpose.msra.mxu0 0.0
        %3944 = vmatprep.subr.mxu0 0.0
        %3945 = vmatpush1.xpose.msra.mxu0 0.0
        %3946 = vmatprep.subr.mxu0 0.0
        %3947 = vmatpush1.xpose.msra.mxu0 0.0
        %3948 = vmatprep.subr.mxu0 0.0
        %3949 = vmatpush1.xpose.msra.mxu0 0.0
        %3950 = vmatprep.subr.mxu0 0.0
        %3951 = vmatpush1.xpose.msra.mxu0 0.0
        %3952 = vmatprep.subr.mxu0 0.0
        %3953 = vmatpush1.xpose.msra.mxu0 0.0
        %3954 = vmatprep.subr.mxu0 0.0
        %3955 = vmatpush1.xpose.msra.mxu0 0.0
        %3956 = vmatprep.subr.mxu0 0.0
        %3957 = vmatpush1.xpose.msra.mxu0 0.0
        %3958 = vmatprep.subr.mxu0 0.0
        %3959 = vmatpush1.xpose.msra.mxu0 0.0
        %3960 = vmatprep.subr.mxu0 0.0
        %3961 = vmatpush1.xpose.msra.mxu0 0.0
        %3962 = vmatprep.subr.mxu0 0.0
        %3963 = vmatpush1.xpose.msra.mxu0 0.0
        %3964 = vmatprep.subr.mxu0 0.0
        %3965 = vmatpush1.xpose.msra.mxu0 0.0
        %3966 = vmatprep.subr.mxu0 0.0
        %3967 = vmatpush1.xpose.msra.mxu0 0.0
        %3968 = vmatprep.subr.mxu0 0.0
        %3969 = vmatpush1.xpose.msra.mxu0 0.0
        %3970 = vmatprep.mubr.f32.mxu0 0.0
        %3971 = vmatmul.mubr.f32.gmra.mrb[0].mxu0 %v3904
        %v3972 = vpop.f32.mrb[0].mxu0
        %v3973 = vadd.f32 0.0, %v3972
        %v3974 = vpop.f32.mrb[0].mxu0
        %3975 = vdwg.mxu0
        %v3977 = vsel %vm1814, %v3751, 0
        %3979 = vmatprep.subr.mxu0 0.0
        %3980 = vmatpush1.xpose.msra.mxu0 %v3758
        %3981 = vmatprep.subr.mxu0 0.0
        %3982 = vmatpush1.xpose.msra.mxu0 0.0
        %3983 = vmatprep.subr.mxu0 0.0
        %3984 = vmatpush1.xpose.msra.mxu0 0.0
        %3985 = vmatprep.subr.mxu0 0.0
        %3986 = vmatpush1.xpose.msra.mxu0 0.0
        %3987 = vmatprep.subr.mxu0 0.0
        %3988 = vmatpush1.xpose.msra.mxu0 0.0
        %3989 = vmatprep.subr.mxu0 0.0
        %3990 = vmatpush1.xpose.msra.mxu0 0.0
        %3991 = vmatprep.subr.mxu0 0.0
        %3992 = vmatpush1.xpose.msra.mxu0 0.0
        %3993 = vmatprep.subr.mxu0 0.0
        %3994 = vmatpush1.xpose.msra.mxu0 0.0
        %3995 = vmatprep.subr.mxu0 0.0
        %3996 = vmatpush1.xpose.msra.mxu0 0.0
        %3997 = vmatprep.subr.mxu0 0.0
        %3998 = vmatpush1.xpose.msra.mxu0 0.0
        %3999 = vmatprep.subr.mxu0 0.0
        %4000 = vmatpush1.xpose.msra.mxu0 0.0
        %4001 = vmatprep.subr.mxu0 0.0
        %4002 = vmatpush1.xpose.msra.mxu0 0.0
        %4003 = vmatprep.subr.mxu0 0.0
        %4004 = vmatpush1.xpose.msra.mxu0 0.0
        %4005 = vmatprep.subr.mxu0 0.0
        %4006 = vmatpush1.xpose.msra.mxu0 0.0
        %4007 = vmatprep.subr.mxu0 0.0
        %4008 = vmatpush1.xpose.msra.mxu0 0.0
        %4009 = vmatprep.subr.mxu0 0.0
        %4010 = vmatpush1.xpose.msra.mxu0 0.0
        %4011 = vmatprep.subr.mxu0 0.0
        %4012 = vmatpush1.xpose.msra.mxu0 0.0
        %4013 = vmatprep.subr.mxu0 0.0
        %4014 = vmatpush1.xpose.msra.mxu0 0.0
        %4015 = vmatprep.subr.mxu0 0.0
        %4016 = vmatpush1.xpose.msra.mxu0 0.0
        %4017 = vmatprep.subr.mxu0 0.0
        %4018 = vmatpush1.xpose.msra.mxu0 0.0
        %4019 = vmatprep.subr.mxu0 0.0
        %4020 = vmatpush1.xpose.msra.mxu0 0.0
        %4021 = vmatprep.subr.mxu0 0.0
        %4022 = vmatpush1.xpose.msra.mxu0 0.0
        %4023 = vmatprep.subr.mxu0 0.0
        %4024 = vmatpush1.xpose.msra.mxu0 0.0
        %4025 = vmatprep.subr.mxu0 0.0
        %4026 = vmatpush1.xpose.msra.mxu0 0.0
        %4027 = vmatprep.subr.mxu0 0.0
        %4028 = vmatpush1.xpose.msra.mxu0 0.0
        %4029 = vmatprep.subr.mxu0 0.0
        %4030 = vmatpush1.xpose.msra.mxu0 0.0
        %4031 = vmatprep.subr.mxu0 0.0
        %4032 = vmatpush1.xpose.msra.mxu0 0.0
        %4033 = vmatprep.subr.mxu0 0.0
        %4034 = vmatpush1.xpose.msra.mxu0 0.0
        %4035 = vmatprep.subr.mxu0 0.0
        %4036 = vmatpush1.xpose.msra.mxu0 0.0
        %4037 = vmatprep.subr.mxu0 0.0
        %4038 = vmatpush1.xpose.msra.mxu0 0.0
        %4039 = vmatprep.subr.mxu0 0.0
        %4040 = vmatpush1.xpose.msra.mxu0 0.0
        %4041 = vmatprep.subr.mxu0 0.0
        %4042 = vmatpush1.xpose.msra.mxu0 0.0
        %4043 = vmatprep.mubr.f32.mxu0 0.0
        %4044 = vmatmul.mubr.f32.gmra.mrb[0].mxu0 %v3977
        %v4045 = vpop.f32.mrb[0].mxu0
        %v4046 = vadd.f32 0.0, %v4045
        %v4047 = vpop.f32.mrb[0].mxu0
        %4048 = vdwg.mxu0
        %v4049 = vmul.f32 %v3827, 0.70710677
        %v4050 = vmul.f32 %v3900, 0.70710677
        %v4051 = vmul.f32 %v3973, 0.70710677
        %v4052 = vmul.f32 %v4046, 0.70710677
        %v4053 = vsel %vm1814, %v4049, -inf
        %4054 = vmax.xlane.f32.xlu0 %v4053
        %v4055 = vpop.xlane.xlu0 %4054
        %v4056 = vsel %vm1814, %v4050, -inf
        %4057 = vmax.xlane.f32.xlu0 %v4056
        %v4058 = vpop.xlane.xlu0 %4057
        %v4059 = vsel %vm1814, %v4051, -inf
        %4060 = vmax.xlane.f32.xlu0 %v4059
        %v4061 = vpop.xlane.xlu0 %4060
        %v4062 = vsel %vm1814, %v4052, -inf
        %4063 = vmax.xlane.f32.xlu0 %v4062
        %v4064 = vpop.xlane.xlu0 %4063
        %v4065 = vsub.f32 %v4049, %v4055
        %v4066 = vsub.f32 %v4050, %v4058
        %v4067 = vsub.f32 %v4051, %v4061
        %v4068 = vsub.f32 %v4052, %v4064
        %v4069 = vmul.f32 %v4065, 1.442695
        %v4070 = vpow.pop %v4069
        %v4071 = vmul.f32 %v4066, 1.442695
        %v4072 = vpow.pop %v4071
        %v4073 = vmul.f32 %v4067, 1.442695
        %v4074 = vpow.pop %v4073
        %v4075 = vmul.f32 %v4068, 1.442695
        %v4076 = vpow.pop %v4075
        %v4077 = vsel %vm1814, %v4070, 0.0
        %4078 = vadd.xlane.f32.xlu0 %v4077
        %v4079 = vpop.xlane.xlu0 %4078
        %v4080 = vsel %vm1814, %v4072, 0.0
        %4081 = vadd.xlane.f32.xlu0 %v4080
        %v4082 = vpop.xlane.xlu0 %4081
        %v4083 = vsel %vm1814, %v4074, 0.0
        %4084 = vadd.xlane.f32.xlu0 %v4083
        %v4085 = vpop.xlane.xlu0 %4084
        %v4086 = vsel %vm1814, %v4076, 0.0
        %4087 = vadd.xlane.f32.xlu0 %v4086
        %v4088 = vpop.xlane.xlu0 %4087
        %v4089 = vrcp.pop %v4079
        %v4090 = vrcp.pop %v4082
        %v4091 = vrcp.pop %v4085
        %v4092 = vrcp.pop %v4088
        %v4093 = vmul.f32 %v4070, %v4089
        %v4094 = vmul.f32 %v4072, %v4090
        %v4095 = vmul.f32 %v4074, %v4091
        %v4096 = vmul.f32 %v4076, %v4092
        %4097 = vrot.lane.b32.xlu0 %v3693, 112
        %v4098 = vpop.permute.xlu0 %4097
        %v4101 = vsel %vm1814, %v4093, 0
        %4103 = vmatprep.subr.mxu0 0.0
        %4104 = vmatpush1.msra.mxu0 %v4098
        %4105 = vmatprep.subr.mxu0 0.0
        %4106 = vmatpush1.msra.mxu0 0.0
        %4107 = vmatprep.subr.mxu0 0.0
        %4108 = vmatpush1.msra.mxu0 0.0
        %4109 = vmatprep.subr.mxu0 0.0
        %4110 = vmatpush1.msra.mxu0 0.0
        %4111 = vmatprep.subr.mxu0 0.0
        %4112 = vmatpush1.msra.mxu0 0.0
        %4113 = vmatprep.subr.mxu0 0.0
        %4114 = vmatpush1.msra.mxu0 0.0
        %4115 = vmatprep.subr.mxu0 0.0
        %4116 = vmatpush1.msra.mxu0 0.0
        %4117 = vmatprep.subr.mxu0 0.0
        %4118 = vmatpush1.msra.mxu0 0.0
        %4119 = vmatprep.subr.mxu0 0.0
        %4120 = vmatpush1.msra.mxu0 0.0
        %4121 = vmatprep.subr.mxu0 0.0
        %4122 = vmatpush1.msra.mxu0 0.0
        %4123 = vmatprep.subr.mxu0 0.0
        %4124 = vmatpush1.msra.mxu0 0.0
        %4125 = vmatprep.subr.mxu0 0.0
        %4126 = vmatpush1.msra.mxu0 0.0
        %4127 = vmatprep.subr.mxu0 0.0
        %4128 = vmatpush1.msra.mxu0 0.0
        %4129 = vmatprep.subr.mxu0 0.0
        %4130 = vmatpush1.msra.mxu0 0.0
        %4131 = vmatprep.subr.mxu0 0.0
        %4132 = vmatpush1.msra.mxu0 0.0
        %4133 = vmatprep.subr.mxu0 0.0
        %4134 = vmatpush1.msra.mxu0 0.0
        %4135 = vmatprep.subr.mxu0 0.0
        %4136 = vmatpush1.msra.mxu0 0.0
        %4137 = vmatprep.subr.mxu0 0.0
        %4138 = vmatpush1.msra.mxu0 0.0
        %4139 = vmatprep.subr.mxu0 0.0
        %4140 = vmatpush1.msra.mxu0 0.0
        %4141 = vmatprep.subr.mxu0 0.0
        %4142 = vmatpush1.msra.mxu0 0.0
        %4143 = vmatprep.subr.mxu0 0.0
        %4144 = vmatpush1.msra.mxu0 0.0
        %4145 = vmatprep.subr.mxu0 0.0
        %4146 = vmatpush1.msra.mxu0 0.0
        %4147 = vmatprep.subr.mxu0 0.0
        %4148 = vmatpush1.msra.mxu0 0.0
        %4149 = vmatprep.subr.mxu0 0.0
        %4150 = vmatpush1.msra.mxu0 0.0
        %4151 = vmatprep.subr.mxu0 0.0
        %4152 = vmatpush1.msra.mxu0 0.0
        %4153 = vmatprep.subr.mxu0 0.0
        %4154 = vmatpush1.msra.mxu0 0.0
        %4155 = vmatprep.subr.mxu0 0.0
        %4156 = vmatpush1.msra.mxu0 0.0
        %4157 = vmatprep.subr.mxu0 0.0
        %4158 = vmatpush1.msra.mxu0 0.0
        %4159 = vmatprep.subr.mxu0 0.0
        %4160 = vmatpush1.msra.mxu0 0.0
        %4161 = vmatprep.subr.mxu0 0.0
        %4162 = vmatpush1.msra.mxu0 0.0
        %4163 = vmatprep.subr.mxu0 0.0
        %4164 = vmatpush1.msra.mxu0 0.0
        %4165 = vmatprep.subr.mxu0 0.0
        %4166 = vmatpush1.msra.mxu0 0.0
        %4167 = vmatprep.mubr.f32.mxu0 0.0
        %4168 = vmatmul.mubr.f32.gmra.mrb[0].mxu0 %v4101
        %v4169 = vpop.f32.mrb[0].mxu0
        %v4170 = vadd.f32 0.0, %v4169
        %v4171 = vpop.f32.mrb[0].mxu0
        %4172 = vdwg.mxu0
        %v4174 = vsel %vm1814, %v4094, 0
        %4176 = vmatprep.subr.mxu0 0.0
        %4177 = vmatpush1.msra.mxu0 %v4098
        %4178 = vmatprep.subr.mxu0 0.0
        %4179 = vmatpush1.msra.mxu0 0.0
        %4180 = vmatprep.subr.mxu0 0.0
        %4181 = vmatpush1.msra.mxu0 0.0
        %4182 = vmatprep.subr.mxu0 0.0
        %4183 = vmatpush1.msra.mxu0 0.0
        %4184 = vmatprep.subr.mxu0 0.0
        %4185 = vmatpush1.msra.mxu0 0.0
        %4186 = vmatprep.subr.mxu0 0.0
        %4187 = vmatpush1.msra.mxu0 0.0
        %4188 = vmatprep.subr.mxu0 0.0
        %4189 = vmatpush1.msra.mxu0 0.0
        %4190 = vmatprep.subr.mxu0 0.0
        %4191 = vmatpush1.msra.mxu0 0.0
        %4192 = vmatprep.subr.mxu0 0.0
        %4193 = vmatpush1.msra.mxu0 0.0
        %4194 = vmatprep.subr.mxu0 0.0
        %4195 = vmatpush1.msra.mxu0 0.0
        %4196 = vmatprep.subr.mxu0 0.0
        %4197 = vmatpush1.msra.mxu0 0.0
        %4198 = vmatprep.subr.mxu0 0.0
        %4199 = vmatpush1.msra.mxu0 0.0
        %4200 = vmatprep.subr.mxu0 0.0
        %4201 = vmatpush1.msra.mxu0 0.0
        %4202 = vmatprep.subr.mxu0 0.0
        %4203 = vmatpush1.msra.mxu0 0.0
        %4204 = vmatprep.subr.mxu0 0.0
        %4205 = vmatpush1.msra.mxu0 0.0
        %4206 = vmatprep.subr.mxu0 0.0
        %4207 = vmatpush1.msra.mxu0 0.0
        %4208 = vmatprep.subr.mxu0 0.0
        %4209 = vmatpush1.msra.mxu0 0.0
        %4210 = vmatprep.subr.mxu0 0.0
        %4211 = vmatpush1.msra.mxu0 0.0
        %4212 = vmatprep.subr.mxu0 0.0
        %4213 = vmatpush1.msra.mxu0 0.0
        %4214 = vmatprep.subr.mxu0 0.0
        %4215 = vmatpush1.msra.mxu0 0.0
        %4216 = vmatprep.subr.mxu0 0.0
        %4217 = vmatpush1.msra.mxu0 0.0
        %4218 = vmatprep.subr.mxu0 0.0
        %4219 = vmatpush1.msra.mxu0 0.0
        %4220 = vmatprep.subr.mxu0 0.0
        %4221 = vmatpush1.msra.mxu0 0.0
        %4222 = vmatprep.subr.mxu0 0.0
        %4223 = vmatpush1.msra.mxu0 0.0
        %4224 = vmatprep.subr.mxu0 0.0
        %4225 = vmatpush1.msra.mxu0 0.0
        %4226 = vmatprep.subr.mxu0 0.0
        %4227 = vmatpush1.msra.mxu0 0.0
        %4228 = vmatprep.subr.mxu0 0.0
        %4229 = vmatpush1.msra.mxu0 0.0
        %4230 = vmatprep.subr.mxu0 0.0
        %4231 = vmatpush1.msra.mxu0 0.0
        %4232 = vmatprep.subr.mxu0 0.0
        %4233 = vmatpush1.msra.mxu0 0.0
        %4234 = vmatprep.subr.mxu0 0.0
        %4235 = vmatpush1.msra.mxu0 0.0
        %4236 = vmatprep.subr.mxu0 0.0
        %4237 = vmatpush1.msra.mxu0 0.0
        %4238 = vmatprep.subr.mxu0 0.0
        %4239 = vmatpush1.msra.mxu0 0.0
        %4240 = vmatprep.mubr.f32.mxu0 0.0
        %4241 = vmatmul.mubr.f32.gmra.mrb[0].mxu0 %v4174
        %v4242 = vpop.f32.mrb[0].mxu0
        %v4243 = vadd.f32 0.0, %v4242
        %v4244 = vpop.f32.mrb[0].mxu0
        %4245 = vdwg.mxu0
        %v4247 = vsel %vm1814, %v4095, 0
        %4249 = vmatprep.subr.mxu0 0.0
        %4250 = vmatpush1.msra.mxu0 %v4098
        %4251 = vmatprep.subr.mxu0 0.0
        %4252 = vmatpush1.msra.mxu0 0.0
        %4253 = vmatprep.subr.mxu0 0.0
        %4254 = vmatpush1.msra.mxu0 0.0
        %4255 = vmatprep.subr.mxu0 0.0
        %4256 = vmatpush1.msra.mxu0 0.0
        %4257 = vmatprep.subr.mxu0 0.0
        %4258 = vmatpush1.msra.mxu0 0.0
        %4259 = vmatprep.subr.mxu0 0.0
        %4260 = vmatpush1.msra.mxu0 0.0
        %4261 = vmatprep.subr.mxu0 0.0
        %4262 = vmatpush1.msra.mxu0 0.0
        %4263 = vmatprep.subr.mxu0 0.0
        %4264 = vmatpush1.msra.mxu0 0.0
        %4265 = vmatprep.subr.mxu0 0.0
        %4266 = vmatpush1.msra.mxu0 0.0
        %4267 = vmatprep.subr.mxu0 0.0
        %4268 = vmatpush1.msra.mxu0 0.0
        %4269 = vmatprep.subr.mxu0 0.0
        %4270 = vmatpush1.msra.mxu0 0.0
        %4271 = vmatprep.subr.mxu0 0.0
        %4272 = vmatpush1.msra.mxu0 0.0
        %4273 = vmatprep.subr.mxu0 0.0
        %4274 = vmatpush1.msra.mxu0 0.0
        %4275 = vmatprep.subr.mxu0 0.0
        %4276 = vmatpush1.msra.mxu0 0.0
        %4277 = vmatprep.subr.mxu0 0.0
        %4278 = vmatpush1.msra.mxu0 0.0
        %4279 = vmatprep.subr.mxu0 0.0
        %4280 = vmatpush1.msra.mxu0 0.0
        %4281 = vmatprep.subr.mxu0 0.0
        %4282 = vmatpush1.msra.mxu0 0.0
        %4283 = vmatprep.subr.mxu0 0.0
        %4284 = vmatpush1.msra.mxu0 0.0
        %4285 = vmatprep.subr.mxu0 0.0
        %4286 = vmatpush1.msra.mxu0 0.0
        %4287 = vmatprep.subr.mxu0 0.0
        %4288 = vmatpush1.msra.mxu0 0.0
        %4289 = vmatprep.subr.mxu0 0.0
        %4290 = vmatpush1.msra.mxu0 0.0
        %4291 = vmatprep.subr.mxu0 0.0
        %4292 = vmatpush1.msra.mxu0 0.0
        %4293 = vmatprep.subr.mxu0 0.0
        %4294 = vmatpush1.msra.mxu0 0.0
        %4295 = vmatprep.subr.mxu0 0.0
        %4296 = vmatpush1.msra.mxu0 0.0
        %4297 = vmatprep.subr.mxu0 0.0
        %4298 = vmatpush1.msra.mxu0 0.0
        %4299 = vmatprep.subr.mxu0 0.0
        %4300 = vmatpush1.msra.mxu0 0.0
        %4301 = vmatprep.subr.mxu0 0.0
        %4302 = vmatpush1.msra.mxu0 0.0
        %4303 = vmatprep.subr.mxu0 0.0
        %4304 = vmatpush1.msra.mxu0 0.0
        %4305 = vmatprep.subr.mxu0 0.0
        %4306 = vmatpush1.msra.mxu0 0.0
        %4307 = vmatprep.subr.mxu0 0.0
        %4308 = vmatpush1.msra.mxu0 0.0
        %4309 = vmatprep.subr.mxu0 0.0
        %4310 = vmatpush1.msra.mxu0 0.0
        %4311 = vmatprep.subr.mxu0 0.0
        %4312 = vmatpush1.msra.mxu0 0.0
        %4313 = vmatprep.mubr.f32.mxu0 0.0
        %4314 = vmatmul.mubr.f32.gmra.mrb[0].mxu0 %v4247
        %v4315 = vpop.f32.mrb[0].mxu0
        %v4316 = vadd.f32 0.0, %v4315
        %v4317 = vpop.f32.mrb[0].mxu0
        %4318 = vdwg.mxu0
        %v4320 = vsel %vm1814, %v4096, 0
        %4322 = vmatprep.subr.mxu0 0.0
        %4323 = vmatpush1.msra.mxu0 %v4098
        %4324 = vmatprep.subr.mxu0 0.0
        %4325 = vmatpush1.msra.mxu0 0.0
        %4326 = vmatprep.subr.mxu0 0.0
        %4327 = vmatpush1.msra.mxu0 0.0
        %4328 = vmatprep.subr.mxu0 0.0
        %4329 = vmatpush1.msra.mxu0 0.0
        %4330 = vmatprep.subr.mxu0 0.0
        %4331 = vmatpush1.msra.mxu0 0.0
        %4332 = vmatprep.subr.mxu0 0.0
        %4333 = vmatpush1.msra.mxu0 0.0
        %4334 = vmatprep.subr.mxu0 0.0
        %4335 = vmatpush1.msra.mxu0 0.0
        %4336 = vmatprep.subr.mxu0 0.0
        %4337 = vmatpush1.msra.mxu0 0.0
        %4338 = vmatprep.subr.mxu0 0.0
        %4339 = vmatpush1.msra.mxu0 0.0
        %4340 = vmatprep.subr.mxu0 0.0
        %4341 = vmatpush1.msra.mxu0 0.0
        %4342 = vmatprep.subr.mxu0 0.0
        %4343 = vmatpush1.msra.mxu0 0.0
        %4344 = vmatprep.subr.mxu0 0.0
        %4345 = vmatpush1.msra.mxu0 0.0
        %4346 = vmatprep.subr.mxu0 0.0
        %4347 = vmatpush1.msra.mxu0 0.0
        %4348 = vmatprep.subr.mxu0 0.0
        %4349 = vmatpush1.msra.mxu0 0.0
        %4350 = vmatprep.subr.mxu0 0.0
        %4351 = vmatpush1.msra.mxu0 0.0
        %4352 = vmatprep.subr.mxu0 0.0
        %4353 = vmatpush1.msra.mxu0 0.0
        %4354 = vmatprep.subr.mxu0 0.0
        %4355 = vmatpush1.msra.mxu0 0.0
        %4356 = vmatprep.subr.mxu0 0.0
        %4357 = vmatpush1.msra.mxu0 0.0
        %4358 = vmatprep.subr.mxu0 0.0
        %4359 = vmatpush1.msra.mxu0 0.0
        %4360 = vmatprep.subr.mxu0 0.0
        %4361 = vmatpush1.msra.mxu0 0.0
        %4362 = vmatprep.subr.mxu0 0.0
        %4363 = vmatpush1.msra.mxu0 0.0
        %4364 = vmatprep.subr.mxu0 0.0
        %4365 = vmatpush1.msra.mxu0 0.0
        %4366 = vmatprep.subr.mxu0 0.0
        %4367 = vmatpush1.msra.mxu0 0.0
        %4368 = vmatprep.subr.mxu0 0.0
        %4369 = vmatpush1.msra.mxu0 0.0
        %4370 = vmatprep.subr.mxu0 0.0
        %4371 = vmatpush1.msra.mxu0 0.0
        %4372 = vmatprep.subr.mxu0 0.0
        %4373 = vmatpush1.msra.mxu0 0.0
        %4374 = vmatprep.subr.mxu0 0.0
        %4375 = vmatpush1.msra.mxu0 0.0
        %4376 = vmatprep.subr.mxu0 0.0
        %4377 = vmatpush1.msra.mxu0 0.0
        %4378 = vmatprep.subr.mxu0 0.0
        %4379 = vmatpush1.msra.mxu0 0.0
        %4380 = vmatprep.subr.mxu0 0.0
        %4381 = vmatpush1.msra.mxu0 0.0
        %4382 = vmatprep.subr.mxu0 0.0
        %4383 = vmatpush1.msra.mxu0 0.0
        %4384 = vmatprep.subr.mxu0 0.0
        %4385 = vmatpush1.msra.mxu0 0.0
        %4386 = vmatprep.mubr.f32.mxu0 0.0
        %4387 = vmatmul.mubr.f32.gmra.mrb[0].mxu0 %v4320
        %v4388 = vpop.f32.mrb[0].mxu0
        %v4389 = vadd.f32 0.0, %v4388
        %v4390 = vpop.f32.mrb[0].mxu0
        %4391 = vdwg.mxu0
        %v4392 = vmul.f32 %v4170, %v3731
        %v4393 = vmul.f32 %v4243, %v3735
        %v4394 = vmul.f32 %v4316, %v3739
        %v4395 = vmul.f32 %v4389, %v3743
        %v4396 = vsel %vm1814, %v4392, 0.0
        %v4397 = vsel %vm1814, %v4393, 0.0
        %v4398 = vadd.f32 %v4396, %v4397
        %v4399 = vsel %vm1814, %v4394, 0.0
        %v4400 = vadd.f32 %v4398, %v4399
        %v4401 = vsel %vm1814, %v4395, 0.0
        %v4402 = vadd.f32 %v4400, %v4401
        %v4404 = vlaneseq
        %v4405 = vshrl.u32 %v4404, 7
        %v4406 = vsub.s32 0, %v4405
        %v4407 = vrot.slane %v3585, %v4406
        %v4410 = vsel %vm1814, %v4402, 0
        %4412 = vmatprep.subr.mxu0 0.0
        %4413 = vmatpush1.msra.mxu0 %v3584
        %4414 = vmatprep.subr.mxu0 0.0
        %4415 = vmatpush1.msra.mxu0 0.0
        %4416 = vmatprep.subr.mxu0 0.0
        %4417 = vmatpush1.msra.mxu0 0.0
        %4418 = vmatprep.subr.mxu0 0.0
        %4419 = vmatpush1.msra.mxu0 0.0
        %4420 = vmatprep.subr.mxu0 0.0
        %4421 = vmatpush1.msra.mxu0 0.0
        %4422 = vmatprep.subr.mxu0 0.0
        %4423 = vmatpush1.msra.mxu0 0.0
        %4424 = vmatprep.subr.mxu0 0.0
        %4425 = vmatpush1.msra.mxu0 0.0
        %4426 = vmatprep.subr.mxu0 0.0
        %4427 = vmatpush1.msra.mxu0 0.0
        %4428 = vmatprep.subr.mxu0 0.0
        %4429 = vmatpush1.msra.mxu0 0.0
        %4430 = vmatprep.subr.mxu0 0.0
        %4431 = vmatpush1.msra.mxu0 0.0
        %4432 = vmatprep.subr.mxu0 0.0
        %4433 = vmatpush1.msra.mxu0 0.0
        %4434 = vmatprep.subr.mxu0 0.0
        %4435 = vmatpush1.msra.mxu0 0.0
        %4436 = vmatprep.subr.mxu0 0.0
        %4437 = vmatpush1.msra.mxu0 0.0
        %4438 = vmatprep.subr.mxu0 0.0
        %4439 = vmatpush1.msra.mxu0 0.0
        %4440 = vmatprep.subr.mxu0 0.0
        %4441 = vmatpush1.msra.mxu0 0.0
        %4442 = vmatprep.subr.mxu0 0.0
        %4443 = vmatpush1.msra.mxu0 0.0
        %4444 = vmatprep.subr.mxu0 0.0
        %4445 = vmatpush1.msra.mxu0 0.0
        %4446 = vmatprep.subr.mxu0 0.0
        %4447 = vmatpush1.msra.mxu0 0.0
        %4448 = vmatprep.subr.mxu0 0.0
        %4449 = vmatpush1.msra.mxu0 0.0
        %4450 = vmatprep.subr.mxu0 0.0
        %4451 = vmatpush1.msra.mxu0 0.0
        %4452 = vmatprep.subr.mxu0 0.0
        %4453 = vmatpush1.msra.mxu0 0.0
        %4454 = vmatprep.subr.mxu0 0.0
        %4455 = vmatpush1.msra.mxu0 0.0
        %4456 = vmatprep.subr.mxu0 0.0
        %4457 = vmatpush1.msra.mxu0 0.0
        %4458 = vmatprep.subr.mxu0 0.0
        %4459 = vmatpush1.msra.mxu0 0.0
        %4460 = vmatprep.subr.mxu0 0.0
        %4461 = vmatpush1.msra.mxu0 0.0
        %4462 = vmatprep.subr.mxu0 0.0
        %4463 = vmatpush1.msra.mxu0 0.0
        %4464 = vmatprep.subr.mxu0 0.0
        %4465 = vmatpush1.msra.mxu0 0.0
        %4466 = vmatprep.subr.mxu0 0.0
        %4467 = vmatpush1.msra.mxu0 0.0
        %4468 = vmatprep.subr.mxu0 0.0
        %4469 = vmatpush1.msra.mxu0 0.0
        %4470 = vmatprep.subr.mxu0 0.0
        %4471 = vmatpush1.msra.mxu0 0.0
        %4472 = vmatprep.subr.mxu0 0.0
        %4473 = vmatpush1.msra.mxu0 0.0
        %4474 = vmatprep.subr.mxu0 0.0
        %4475 = vmatpush1.msra.mxu0 0.0
        %4476 = vmatprep.mubr.f32.mxu0 0.0
        %4477 = vmatmul.mubr.f32.gmra.mrb[0].mxu0 %v4410
        %v4478 = vpop.f32.mrb[0].mxu0
        %v4479 = vadd.f32 %v4407, %v4478
        %v4480 = vpop.f32.mrb[0].mxu0
        %4481 = vdwg.mxu0
        %v4482 = vadd.f32 %v3580, %v4479
        %v4483 = vsel %vm1814, %v4482, 0.0
        %4484 = vadd.xlane.f32.xlu0 %v4483
        %v4485 = vpop.xlane.xlu0 %4484
        %v4486 = vmul.f32 %v4485, %v3598
        %v4487 = vsub.f32 %v4482, %v4486
        %v4488 = vmul.f32 %v4487, %v4487
        %v4489 = vsel %vm1814, %v4488, 0.0
        %4490 = vadd.xlane.f32.xlu0 %v4489
        %v4491 = vpop.xlane.xlu0 %4490
        %v4492 = vmul.f32 %v4491, %v3598
        %v4493 = vadd.f32 %v4492, 1e-05
        %v4494 = vrsqrt.pop %v4493
        %v4495 = vmul.f32 %v4487, %v4494
        %v4497 = vlaneseq
        %v4498 = vshrl.u32 %v4497, 7
        %v4499 = vsub.s32 0, %v4498
        %v4500 = vrot.slane %v3586, %v4499
        %v4502 = vmul.f32 %v4495, %v4500
        %v4504 = vlaneseq
        %v4505 = vshrl.u32 %v4504, 7
        %v4506 = vsub.s32 0, %v4505
        %v4507 = vrot.slane %v3587, %v4506
        %v4509 = vadd.f32 %v4502, %v4507
        %v4511 = vlaneseq
        %v4512 = vshrl.u32 %v4511, 7
        %v4513 = vsub.s32 0, %v4512
        %v4514 = vrot.slane %v3589, %v4513
        %v4517 = vsel %vm1814, %v4509, 0
        %4519 = vmatprep.subr.mxu0 0.0
        %4520 = vmatpush1.msra.mxu0 %v3588
        %4521 = vmatprep.subr.mxu0 0.0
        %4522 = vmatpush1.msra.mxu0 0.0
        %4523 = vmatprep.subr.mxu0 0.0
        %4524 = vmatpush1.msra.mxu0 0.0
        %4525 = vmatprep.subr.mxu0 0.0
        %4526 = vmatpush1.msra.mxu0 0.0
        %4527 = vmatprep.subr.mxu0 0.0
        %4528 = vmatpush1.msra.mxu0 0.0
        %4529 = vmatprep.subr.mxu0 0.0
        %4530 = vmatpush1.msra.mxu0 0.0
        %4531 = vmatprep.subr.mxu0 0.0
        %4532 = vmatpush1.msra.mxu0 0.0
        %4533 = vmatprep.subr.mxu0 0.0
        %4534 = vmatpush1.msra.mxu0 0.0
        %4535 = vmatprep.subr.mxu0 0.0
        %4536 = vmatpush1.msra.mxu0 0.0
        %4537 = vmatprep.subr.mxu0 0.0
        %4538 = vmatpush1.msra.mxu0 0.0
        %4539 = vmatprep.subr.mxu0 0.0
        %4540 = vmatpush1.msra.mxu0 0.0
        %4541 = vmatprep.subr.mxu0 0.0
        %4542 = vmatpush1.msra.mxu0 0.0
        %4543 = vmatprep.subr.mxu0 0.0
        %4544 = vmatpush1.msra.mxu0 0.0
        %4545 = vmatprep.subr.mxu0 0.0
        %4546 = vmatpush1.msra.mxu0 0.0
        %4547 = vmatprep.subr.mxu0 0.0
        %4548 = vmatpush1.msra.mxu0 0.0
        %4549 = vmatprep.subr.mxu0 0.0
        %4550 = vmatpush1.msra.mxu0 0.0
        %4551 = vmatprep.subr.mxu0 0.0
        %4552 = vmatpush1.msra.mxu0 0.0
        %4553 = vmatprep.subr.mxu0 0.0
        %4554 = vmatpush1.msra.mxu0 0.0
        %4555 = vmatprep.subr.mxu0 0.0
        %4556 = vmatpush1.msra.mxu0 0.0
        %4557 = vmatprep.subr.mxu0 0.0
        %4558 = vmatpush1.msra.mxu0 0.0
        %4559 = vmatprep.subr.mxu0 0.0
        %4560 = vmatpush1.msra.mxu0 0.0
        %4561 = vmatprep.subr.mxu0 0.0
        %4562 = vmatpush1.msra.mxu0 0.0
        %4563 = vmatprep.subr.mxu0 0.0
        %4564 = vmatpush1.msra.mxu0 0.0
        %4565 = vmatprep.subr.mxu0 0.0
        %4566 = vmatpush1.msra.mxu0 0.0
        %4567 = vmatprep.subr.mxu0 0.0
        %4568 = vmatpush1.msra.mxu0 0.0
        %4569 = vmatprep.subr.mxu0 0.0
        %4570 = vmatpush1.msra.mxu0 0.0
        %4571 = vmatprep.subr.mxu0 0.0
        %4572 = vmatpush1.msra.mxu0 0.0
        %4573 = vmatprep.subr.mxu0 0.0
        %4574 = vmatpush1.msra.mxu0 0.0
        %4575 = vmatprep.subr.mxu0 0.0
        %4576 = vmatpush1.msra.mxu0 0.0
        %4577 = vmatprep.subr.mxu0 0.0
        %4578 = vmatpush1.msra.mxu0 0.0
        %4579 = vmatprep.subr.mxu0 0.0
        %4580 = vmatpush1.msra.mxu0 0.0
        %4581 = vmatprep.subr.mxu0 0.0
        %4582 = vmatpush1.msra.mxu0 0.0
        %4583 = vmatprep.mubr.f32.mxu0 0.0
        %4584 = vmatmul.mubr.f32.gmra.mrb[0].mxu0 %v4517
        %v4585 = vpop.f32.mrb[0].mxu0
        %v4586 = vadd.f32 %v4514, %v4585
        %v4587 = vpop.f32.mrb[0].mxu0
        %4588 = vdwg.mxu0
        %v4589 = vmul.f32 %v4586, 0.5
        %v4590 = vmul.f32 %v4586, 0.70710677
        %vm4591 = vcmp.ge.f32.partialorder %v4590, 0.0
        %v4592 = vsel %vm4591, 1.0, -1.0
        %v4593 = vand.u32 2147483647, %v4590
        %v4594 = vmul.f32 %v4593, 0.3275911
        %v4595 = vadd.f32 %v4594, 1.0
        %v4596 = vrcp.pop %v4595
        %v4597 = vmul.f32 1.0, %v4596
        %v4598 = vmul.f32 %v4597, 1.0614054
        %v4599 = vadd.f32 %v4598, -1.4531521
        %v4600 = vmul.f32 %v4599, %v4597
        %v4601 = vadd.f32 %v4600, 1.4214138
        %v4602 = vmul.f32 %v4601, %v4597
        %v4603 = vadd.f32 %v4602, -0.28449672
        %v4604 = vmul.f32 %v4603, %v4597
        %v4605 = vadd.f32 %v4604, 0.2548296
        %v4606 = vmul.f32 %v4605, %v4597
        %v4607 = vsub.f32 0.0, %v4593
        %v4608 = vmul.f32 %v4607, %v4593
        %v4609 = vmul.f32 %v4608, 1.442695
        %v4610 = vpow.pop %v4609
        %v4611 = vmul.f32 %v4606, %v4610
        %v4612 = vsub.f32 1.0, %v4611
        %v4613 = vmul.f32 %v4592, %v4612
        %v4614 = vadd.f32 %v4613, 1.0
        %v4615 = vmul.f32 %v4589, %v4614
        %v4617 = vlaneseq
        %v4618 = vshrl.u32 %v4617, 7
        %v4619 = vsub.s32 0, %v4618
        %v4620 = vrot.slane %v3594, %v4619
        %v4623 = vsel %vm1350, %v4615, 0
        %4625 = vmatprep.subr.mxu0 0.0
        %4626 = vmatpush1.msra.mxu0 %v3590
        %4627 = vmatprep.subr.mxu0 0.0
        %4628 = vmatpush1.msra.mxu0 %v3591
        %4629 = vmatprep.subr.mxu0 0.0
        %4630 = vmatpush1.msra.mxu0 %v3592
        %4631 = vmatprep.subr.mxu0 0.0
        %4632 = vmatpush1.msra.mxu0 %v3593
        %4633 = vmatprep.subr.mxu0 0.0
        %4634 = vmatpush1.msra.mxu0 0.0
        %4635 = vmatprep.subr.mxu0 0.0
        %4636 = vmatpush1.msra.mxu0 0.0
        %4637 = vmatprep.subr.mxu0 0.0
        %4638 = vmatpush1.msra.mxu0 0.0
        %4639 = vmatprep.subr.mxu0 0.0
        %4640 = vmatpush1.msra.mxu0 0.0
        %4641 = vmatprep.subr.mxu0 0.0
        %4642 = vmatpush1.msra.mxu0 0.0
        %4643 = vmatprep.subr.mxu0 0.0
        %4644 = vmatpush1.msra.mxu0 0.0
        %4645 = vmatprep.subr.mxu0 0.0
        %4646 = vmatpush1.msra.mxu0 0.0
        %4647 = vmatprep.subr.mxu0 0.0
        %4648 = vmatpush1.msra.mxu0 0.0
        %4649 = vmatprep.subr.mxu0 0.0
        %4650 = vmatpush1.msra.mxu0 0.0
        %4651 = vmatprep.subr.mxu0 0.0
        %4652 = vmatpush1.msra.mxu0 0.0
        %4653 = vmatprep.subr.mxu0 0.0
        %4654 = vmatpush1.msra.mxu0 0.0
        %4655 = vmatprep.subr.mxu0 0.0
        %4656 = vmatpush1.msra.mxu0 0.0
        %4657 = vmatprep.subr.mxu0 0.0
        %4658 = vmatpush1.msra.mxu0 0.0
        %4659 = vmatprep.subr.mxu0 0.0
        %4660 = vmatpush1.msra.mxu0 0.0
        %4661 = vmatprep.subr.mxu0 0.0
        %4662 = vmatpush1.msra.mxu0 0.0
        %4663 = vmatprep.subr.mxu0 0.0
        %4664 = vmatpush1.msra.mxu0 0.0
        %4665 = vmatprep.subr.mxu0 0.0
        %4666 = vmatpush1.msra.mxu0 0.0
        %4667 = vmatprep.subr.mxu0 0.0
        %4668 = vmatpush1.msra.mxu0 0.0
        %4669 = vmatprep.subr.mxu0 0.0
        %4670 = vmatpush1.msra.mxu0 0.0
        %4671 = vmatprep.subr.mxu0 0.0
        %4672 = vmatpush1.msra.mxu0 0.0
        %4673 = vmatprep.subr.mxu0 0.0
        %4674 = vmatpush1.msra.mxu0 0.0
        %4675 = vmatprep.subr.mxu0 0.0
        %4676 = vmatpush1.msra.mxu0 0.0
        %4677 = vmatprep.subr.mxu0 0.0
        %4678 = vmatpush1.msra.mxu0 0.0
        %4679 = vmatprep.subr.mxu0 0.0
        %4680 = vmatpush1.msra.mxu0 0.0
        %4681 = vmatprep.subr.mxu0 0.0
        %4682 = vmatpush1.msra.mxu0 0.0
        %4683 = vmatprep.subr.mxu0 0.0
        %4684 = vmatpush1.msra.mxu0 0.0
        %4685 = vmatprep.subr.mxu0 0.0
        %4686 = vmatpush1.msra.mxu0 0.0
        %4687 = vmatprep.subr.mxu0 0.0
        %4688 = vmatpush1.msra.mxu0 0.0
        %4689 = vmatprep.mubr.f32.mxu0 0.0
        %4690 = vmatmul.mubr.f32.gmra.mrb[0].mxu0 %v4623
        %v4691 = vpop.f32.mrb[0].mxu0
        %v4692 = vadd.f32 %v4620, %v4691
        %v4693 = vpop.f32.mrb[0].mxu0
        %4694 = vdwg.mxu0
        %v4695 = vadd.f32 %v4482, %v4692
        %v4696 = vld [vmem:[%s73] sm:$0xff]
        %v4697 = vld [vmem:[%s73 + $0x8] sm:$0xff]
        %v4698 = vld [vmem:[%s75] sm:$0xff]
        %v4700 = vsel %vm1814, %v4696, 0
        %v4703 = vsel %vm1814, %v4697, 0
        %4705 = vmatprep.subr.mxu0 0.0
        %4706 = vmatpush1.msra.mxu0 %v4695
        %4707 = vmatprep.subr.mxu0 0.0
        %4708 = vmatpush1.msra.mxu0 0.0
        %4709 = vmatprep.subr.mxu0 0.0
        %4710 = vmatpush1.msra.mxu0 0.0
        %4711 = vmatprep.subr.mxu0 0.0
        %4712 = vmatpush1.msra.mxu0 0.0
        %4713 = vmatprep.subr.mxu0 0.0
        %4714 = vmatpush1.msra.mxu0 0.0
        %4715 = vmatprep.subr.mxu0 0.0
        %4716 = vmatpush1.msra.mxu0 0.0
        %4717 = vmatprep.subr.mxu0 0.0
        %4718 = vmatpush1.msra.mxu0 0.0
        %4719 = vmatprep.subr.mxu0 0.0
        %4720 = vmatpush1.msra.mxu0 0.0
        %4721 = vmatprep.subr.mxu0 0.0
        %4722 = vmatpush1.msra.mxu0 0.0
        %4723 = vmatprep.subr.mxu0 0.0
        %4724 = vmatpush1.msra.mxu0 0.0
        %4725 = vmatprep.subr.mxu0 0.0
        %4726 = vmatpush1.msra.mxu0 0.0
        %4727 = vmatprep.subr.mxu0 0.0
        %4728 = vmatpush1.msra.mxu0 0.0
        %4729 = vmatprep.subr.mxu0 0.0
        %4730 = vmatpush1.msra.mxu0 0.0
        %4731 = vmatprep.subr.mxu0 0.0
        %4732 = vmatpush1.msra.mxu0 0.0
        %4733 = vmatprep.subr.mxu0 0.0
        %4734 = vmatpush1.msra.mxu0 0.0
        %4735 = vmatprep.subr.mxu0 0.0
        %4736 = vmatpush1.msra.mxu0 0.0
        %4737 = vmatprep.subr.mxu0 0.0
        %4738 = vmatpush1.msra.mxu0 0.0
        %4739 = vmatprep.subr.mxu0 0.0
        %4740 = vmatpush1.msra.mxu0 0.0
        %4741 = vmatprep.subr.mxu0 0.0
        %4742 = vmatpush1.msra.mxu0 0.0
        %4743 = vmatprep.subr.mxu0 0.0
        %4744 = vmatpush1.msra.mxu0 0.0
        %4745 = vmatprep.subr.mxu0 0.0
        %4746 = vmatpush1.msra.mxu0 0.0
        %4747 = vmatprep.subr.mxu0 0.0
        %4748 = vmatpush1.msra.mxu0 0.0
        %4749 = vmatprep.subr.mxu0 0.0
        %4750 = vmatpush1.msra.mxu0 0.0
        %4751 = vmatprep.subr.mxu0 0.0
        %4752 = vmatpush1.msra.mxu0 0.0
        %4753 = vmatprep.subr.mxu0 0.0
        %4754 = vmatpush1.msra.mxu0 0.0
        %4755 = vmatprep.subr.mxu0 0.0
        %4756 = vmatpush1.msra.mxu0 0.0
        %4757 = vmatprep.subr.mxu0 0.0
        %4758 = vmatpush1.msra.mxu0 0.0
        %4759 = vmatprep.subr.mxu0 0.0
        %4760 = vmatpush1.msra.mxu0 0.0
        %4761 = vmatprep.subr.mxu0 0.0
        %4762 = vmatpush1.msra.mxu0 0.0
        %4763 = vmatprep.subr.mxu0 0.0
        %4764 = vmatpush1.msra.mxu0 0.0
        %4765 = vmatprep.subr.mxu0 0.0
        %4766 = vmatpush1.msra.mxu0 0.0
        %4767 = vmatprep.subr.mxu0 0.0
        %4768 = vmatpush1.msra.mxu0 0.0
        %4769 = vmatprep.mubr.f32.mxu0 0.0
        %4770 = vmatmul.mubr.f32.gmra.mrb[0].mxu0 %v4700
        %v4771 = vpop.f32.mrb[0].mxu0
        %v4772 = vadd.f32 0.0, %v4771
        %v4773 = vpop.f32.mrb[0].mxu0
        %4774 = vmatprep.mubr.f32.mxu0 0.0
        %4775 = vmatmul.mubr.f32.gmra.mrb[0].mxu0 %v4703
        %v4776 = vpop.f32.mrb[0].mxu0
        %v4777 = vadd.f32 0.0, %v4776
        %v4778 = vpop.f32.mrb[0].mxu0
        %4779 = vdwg.mxu0
        %vm4780 = vcmp.eq.s32.totalorder %v1453, %v3696
        %v4781 = vsel %vm4780, 1, 0
        %v4782 = vcvt.s32.f32 %v4781
        %v4783 = vadd.s32 %v3696, 1
        %vm4784 = vcmp.eq.s32.totalorder %v1453, %v4783
        %v4785 = vsel %vm4784, 1, 0
        %v4786 = vcvt.s32.f32 %v4785
        %v4788 = vsel %vm1814, %v4777, 0
        %4790 = vmatprep.subr.mxu0 0.0
        %4791 = vmatpush1.msra.mxu0 %v4786
        %4792 = vmatprep.subr.mxu0 0.0
        %4793 = vmatpush1.msra.mxu0 0.0
        %4794 = vmatprep.subr.mxu0 0.0
        %4795 = vmatpush1.msra.mxu0 0.0
        %4796 = vmatprep.subr.mxu0 0.0
        %4797 = vmatpush1.msra.mxu0 0.0
        %4798 = vmatprep.subr.mxu0 0.0
        %4799 = vmatpush1.msra.mxu0 0.0
        %4800 = vmatprep.subr.mxu0 0.0
        %4801 = vmatpush1.msra.mxu0 0.0
        %4802 = vmatprep.subr.mxu0 0.0
        %4803 = vmatpush1.msra.mxu0 0.0
        %4804 = vmatprep.subr.mxu0 0.0
        %4805 = vmatpush1.msra.mxu0 0.0
        %4806 = vmatprep.subr.mxu0 0.0
        %4807 = vmatpush1.msra.mxu0 0.0
        %4808 = vmatprep.subr.mxu0 0.0
        %4809 = vmatpush1.msra.mxu0 0.0
        %4810 = vmatprep.subr.mxu0 0.0
        %4811 = vmatpush1.msra.mxu0 0.0
        %4812 = vmatprep.subr.mxu0 0.0
        %4813 = vmatpush1.msra.mxu0 0.0
        %4814 = vmatprep.subr.mxu0 0.0
        %4815 = vmatpush1.msra.mxu0 0.0
        %4816 = vmatprep.subr.mxu0 0.0
        %4817 = vmatpush1.msra.mxu0 0.0
        %4818 = vmatprep.subr.mxu0 0.0
        %4819 = vmatpush1.msra.mxu0 0.0
        %4820 = vmatprep.subr.mxu0 0.0
        %4821 = vmatpush1.msra.mxu0 0.0
        %4822 = vmatprep.subr.mxu0 0.0
        %4823 = vmatpush1.msra.mxu0 0.0
        %4824 = vmatprep.subr.mxu0 0.0
        %4825 = vmatpush1.msra.mxu0 0.0
        %4826 = vmatprep.subr.mxu0 0.0
        %4827 = vmatpush1.msra.mxu0 0.0
        %4828 = vmatprep.subr.mxu0 0.0
        %4829 = vmatpush1.msra.mxu0 0.0
        %4830 = vmatprep.subr.mxu0 0.0
        %4831 = vmatpush1.msra.mxu0 0.0
        %4832 = vmatprep.subr.mxu0 0.0
        %4833 = vmatpush1.msra.mxu0 0.0
        %4834 = vmatprep.subr.mxu0 0.0
        %4835 = vmatpush1.msra.mxu0 0.0
        %4836 = vmatprep.subr.mxu0 0.0
        %4837 = vmatpush1.msra.mxu0 0.0
        %4838 = vmatprep.subr.mxu0 0.0
        %4839 = vmatpush1.msra.mxu0 0.0
        %4840 = vmatprep.subr.mxu0 0.0
        %4841 = vmatpush1.msra.mxu0 0.0
        %4842 = vmatprep.subr.mxu0 0.0
        %4843 = vmatpush1.msra.mxu0 0.0
        %4844 = vmatprep.subr.mxu0 0.0
        %4845 = vmatpush1.msra.mxu0 0.0
        %4846 = vmatprep.subr.mxu0 0.0
        %4847 = vmatpush1.msra.mxu0 0.0
        %4848 = vmatprep.subr.mxu0 0.0
        %4849 = vmatpush1.msra.mxu0 0.0
        %4850 = vmatprep.subr.mxu0 0.0
        %4851 = vmatpush1.msra.mxu0 0.0
        %4852 = vmatprep.subr.mxu0 0.0
        %4853 = vmatpush1.msra.mxu0 0.0
        %4854 = vmatprep.mubr.f32.mxu0 0.0
        %4855 = vmatmul.mubr.f32.gmra.mrb[0].mxu0 %v4788
        %v4856 = vpop.f32.mrb[0].mxu0
        %v4857 = vadd.f32 0.0, %v4856
        %v4858 = vpop.f32.mrb[0].mxu0
        %4859 = vdwg.mxu0
        %v4861 = vsel %vm1814, %v4772, 0
        %4863 = vmatprep.subr.mxu0 0.0
        %4864 = vmatpush1.msra.mxu0 %v4782
        %4865 = vmatprep.subr.mxu0 0.0
        %4866 = vmatpush1.msra.mxu0 0.0
        %4867 = vmatprep.subr.mxu0 0.0
        %4868 = vmatpush1.msra.mxu0 0.0
        %4869 = vmatprep.subr.mxu0 0.0
        %4870 = vmatpush1.msra.mxu0 0.0
        %4871 = vmatprep.subr.mxu0 0.0
        %4872 = vmatpush1.msra.mxu0 0.0
        %4873 = vmatprep.subr.mxu0 0.0
        %4874 = vmatpush1.msra.mxu0 0.0
        %4875 = vmatprep.subr.mxu0 0.0
        %4876 = vmatpush1.msra.mxu0 0.0
        %4877 = vmatprep.subr.mxu0 0.0
        %4878 = vmatpush1.msra.mxu0 0.0
        %4879 = vmatprep.subr.mxu0 0.0
        %4880 = vmatpush1.msra.mxu0 0.0
        %4881 = vmatprep.subr.mxu0 0.0
        %4882 = vmatpush1.msra.mxu0 0.0
        %4883 = vmatprep.subr.mxu0 0.0
        %4884 = vmatpush1.msra.mxu0 0.0
        %4885 = vmatprep.subr.mxu0 0.0
        %4886 = vmatpush1.msra.mxu0 0.0
        %4887 = vmatprep.subr.mxu0 0.0
        %4888 = vmatpush1.msra.mxu0 0.0
        %4889 = vmatprep.subr.mxu0 0.0
        %4890 = vmatpush1.msra.mxu0 0.0
        %4891 = vmatprep.subr.mxu0 0.0
        %4892 = vmatpush1.msra.mxu0 0.0
        %4893 = vmatprep.subr.mxu0 0.0
        %4894 = vmatpush1.msra.mxu0 0.0
        %4895 = vmatprep.subr.mxu0 0.0
        %4896 = vmatpush1.msra.mxu0 0.0
        %4897 = vmatprep.subr.mxu0 0.0
        %4898 = vmatpush1.msra.mxu0 0.0
        %4899 = vmatprep.subr.mxu0 0.0
        %4900 = vmatpush1.msra.mxu0 0.0
        %4901 = vmatprep.subr.mxu0 0.0
        %4902 = vmatpush1.msra.mxu0 0.0
        %4903 = vmatprep.subr.mxu0 0.0
        %4904 = vmatpush1.msra.mxu0 0.0
        %4905 = vmatprep.subr.mxu0 0.0
        %4906 = vmatpush1.msra.mxu0 0.0
        %4907 = vmatprep.subr.mxu0 0.0
        %4908 = vmatpush1.msra.mxu0 0.0
        %4909 = vmatprep.subr.mxu0 0.0
        %4910 = vmatpush1.msra.mxu0 0.0
        %4911 = vmatprep.subr.mxu0 0.0
        %4912 = vmatpush1.msra.mxu0 0.0
        %4913 = vmatprep.subr.mxu0 0.0
        %4914 = vmatpush1.msra.mxu0 0.0
        %4915 = vmatprep.subr.mxu0 0.0
        %4916 = vmatpush1.msra.mxu0 0.0
        %4917 = vmatprep.subr.mxu0 0.0
        %4918 = vmatpush1.msra.mxu0 0.0
        %4919 = vmatprep.subr.mxu0 0.0
        %4920 = vmatpush1.msra.mxu0 0.0
        %4921 = vmatprep.subr.mxu0 0.0
        %4922 = vmatpush1.msra.mxu0 0.0
        %4923 = vmatprep.subr.mxu0 0.0
        %4924 = vmatpush1.msra.mxu0 0.0
        %4925 = vmatprep.subr.mxu0 0.0
        %4926 = vmatpush1.msra.mxu0 0.0
        %4927 = vmatprep.mubr.f32.mxu0 0.0
        %4928 = vmatmul.mubr.f32.gmra.mrb[0].mxu0 %v4861
        %v4929 = vpop.f32.mrb[0].mxu0
        %v4930 = vadd.f32 %v4857, %v4929
        %v4931 = vpop.f32.mrb[0].mxu0
        %4932 = vdwg.mxu0
        %4934 = vset.pattern.permute.xlu0 0
        %4935 = vperm.xlu0 %4934, %v4698
        %v4936 = vpop.permute.xlu0 %4935
        %v4938 = vadd.f32 %v4930, %v4936
        %v4939 = vadd.f32 %v4938, %v3579
        %v4940 = vld [vmem:[%s77] sm:$0xff]
        %v4941 = vld [vmem:[%s77 + $0x8] sm:$0xff]
        %v4942 = vld [vmem:[%s79] sm:$0xff]
        %v4944 = vsel %vm1814, %v4940, 0
        %v4947 = vsel %vm1814, %v4941, 0
        %4949 = vmatprep.subr.mxu0 0.0
        %4950 = vmatpush1.msra.mxu0 %v4939
        %4951 = vmatprep.subr.mxu0 0.0
        %4952 = vmatpush1.msra.mxu0 0.0
        %4953 = vmatprep.subr.mxu0 0.0
        %4954 = vmatpush1.msra.mxu0 0.0
        %4955 = vmatprep.subr.mxu0 0.0
        %4956 = vmatpush1.msra.mxu0 0.0
        %4957 = vmatprep.subr.mxu0 0.0
        %4958 = vmatpush1.msra.mxu0 0.0
        %4959 = vmatprep.subr.mxu0 0.0
        %4960 = vmatpush1.msra.mxu0 0.0
        %4961 = vmatprep.subr.mxu0 0.0
        %4962 = vmatpush1.msra.mxu0 0.0
        %4963 = vmatprep.subr.mxu0 0.0
        %4964 = vmatpush1.msra.mxu0 0.0
        %4965 = vmatprep.subr.mxu0 0.0
        %4966 = vmatpush1.msra.mxu0 0.0
        %4967 = vmatprep.subr.mxu0 0.0
        %4968 = vmatpush1.msra.mxu0 0.0
        %4969 = vmatprep.subr.mxu0 0.0
        %4970 = vmatpush1.msra.mxu0 0.0
        %4971 = vmatprep.subr.mxu0 0.0
        %4972 = vmatpush1.msra.mxu0 0.0
        %4973 = vmatprep.subr.mxu0 0.0
        %4974 = vmatpush1.msra.mxu0 0.0
        %4975 = vmatprep.subr.mxu0 0.0
        %4976 = vmatpush1.msra.mxu0 0.0
        %4977 = vmatprep.subr.mxu0 0.0
        %4978 = vmatpush1.msra.mxu0 0.0
        %4979 = vmatprep.subr.mxu0 0.0
        %4980 = vmatpush1.msra.mxu0 0.0
        %4981 = vmatprep.subr.mxu0 0.0
        %4982 = vmatpush1.msra.mxu0 0.0
        %4983 = vmatprep.subr.mxu0 0.0
        %4984 = vmatpush1.msra.mxu0 0.0
        %4985 = vmatprep.subr.mxu0 0.0
        %4986 = vmatpush1.msra.mxu0 0.0
        %4987 = vmatprep.subr.mxu0 0.0
        %4988 = vmatpush1.msra.mxu0 0.0
        %4989 = vmatprep.subr.mxu0 0.0
        %4990 = vmatpush1.msra.mxu0 0.0
        %4991 = vmatprep.subr.mxu0 0.0
        %4992 = vmatpush1.msra.mxu0 0.0
        %4993 = vmatprep.subr.mxu0 0.0
        %4994 = vmatpush1.msra.mxu0 0.0
        %4995 = vmatprep.subr.mxu0 0.0
        %4996 = vmatpush1.msra.mxu0 0.0
        %4997 = vmatprep.subr.mxu0 0.0
        %4998 = vmatpush1.msra.mxu0 0.0
        %4999 = vmatprep.subr.mxu0 0.0
        %5000 = vmatpush1.msra.mxu0 0.0
        %5001 = vmatprep.subr.mxu0 0.0
        %5002 = vmatpush1.msra.mxu0 0.0
        %5003 = vmatprep.subr.mxu0 0.0
        %5004 = vmatpush1.msra.mxu0 0.0
        %5005 = vmatprep.subr.mxu0 0.0
        %5006 = vmatpush1.msra.mxu0 0.0
        %5007 = vmatprep.subr.mxu0 0.0
        %5008 = vmatpush1.msra.mxu0 0.0
        %5009 = vmatprep.subr.mxu0 0.0
        %5010 = vmatpush1.msra.mxu0 0.0
        %5011 = vmatprep.subr.mxu0 0.0
        %5012 = vmatpush1.msra.mxu0 0.0
        %5013 = vmatprep.mubr.f32.mxu0 0.0
        %5014 = vmatmul.mubr.f32.gmra.mrb[0].mxu0 %v4944
        %v5015 = vpop.f32.mrb[0].mxu0
        %v5016 = vadd.f32 0.0, %v5015
        %v5017 = vpop.f32.mrb[0].mxu0
        %5018 = vmatprep.mubr.f32.mxu0 0.0
        %5019 = vmatmul.mubr.f32.gmra.mrb[0].mxu0 %v4947
        %v5020 = vpop.f32.mrb[0].mxu0
        %v5021 = vadd.f32 0.0, %v5020
        %v5022 = vpop.f32.mrb[0].mxu0
        %5023 = vdwg.mxu0
        %v5024 = vadd.s32 %v1455, 8
        %v5025 = vmul.u32 %v5024, 2
        %vm5026 = vcmp.eq.s32.totalorder %v1453, %v5025
        %v5027 = vsel %vm5026, 1, 0
        %v5028 = vcvt.s32.f32 %v5027
        %v5029 = vadd.s32 %v5025, 1
        %vm5030 = vcmp.eq.s32.totalorder %v1453, %v5029
        %v5031 = vsel %vm5030, 1, 0
        %v5032 = vcvt.s32.f32 %v5031
        %v5034 = vsel %vm2477, %v5021, 0
        %5036 = vmatprep.subr.mxu0 0.0
        %5037 = vmatpush1.msra.mxu0 %v4786
        %5038 = vmatprep.subr.mxu0 0.0
        %5039 = vmatpush1.msra.mxu0 %v5032
        %5040 = vmatprep.subr.mxu0 0.0
        %5041 = vmatpush1.msra.mxu0 0.0
        %5042 = vmatprep.subr.mxu0 0.0
        %5043 = vmatpush1.msra.mxu0 0.0
        %5044 = vmatprep.subr.mxu0 0.0
        %5045 = vmatpush1.msra.mxu0 0.0
        %5046 = vmatprep.subr.mxu0 0.0
        %5047 = vmatpush1.msra.mxu0 0.0
        %5048 = vmatprep.subr.mxu0 0.0
        %5049 = vmatpush1.msra.mxu0 0.0
        %5050 = vmatprep.subr.mxu0 0.0
        %5051 = vmatpush1.msra.mxu0 0.0
        %5052 = vmatprep.subr.mxu0 0.0
        %5053 = vmatpush1.msra.mxu0 0.0
        %5054 = vmatprep.subr.mxu0 0.0
        %5055 = vmatpush1.msra.mxu0 0.0
        %5056 = vmatprep.subr.mxu0 0.0
        %5057 = vmatpush1.msra.mxu0 0.0
        %5058 = vmatprep.subr.mxu0 0.0
        %5059 = vmatpush1.msra.mxu0 0.0
        %5060 = vmatprep.subr.mxu0 0.0
        %5061 = vmatpush1.msra.mxu0 0.0
        %5062 = vmatprep.subr.mxu0 0.0
        %5063 = vmatpush1.msra.mxu0 0.0
        %5064 = vmatprep.subr.mxu0 0.0
        %5065 = vmatpush1.msra.mxu0 0.0
        %5066 = vmatprep.subr.mxu0 0.0
        %5067 = vmatpush1.msra.mxu0 0.0
        %5068 = vmatprep.subr.mxu0 0.0
        %5069 = vmatpush1.msra.mxu0 0.0
        %5070 = vmatprep.subr.mxu0 0.0
        %5071 = vmatpush1.msra.mxu0 0.0
        %5072 = vmatprep.subr.mxu0 0.0
        %5073 = vmatpush1.msra.mxu0 0.0
        %5074 = vmatprep.subr.mxu0 0.0
        %5075 = vmatpush1.msra.mxu0 0.0
        %5076 = vmatprep.subr.mxu0 0.0
        %5077 = vmatpush1.msra.mxu0 0.0
        %5078 = vmatprep.subr.mxu0 0.0
        %5079 = vmatpush1.msra.mxu0 0.0
        %5080 = vmatprep.subr.mxu0 0.0
        %5081 = vmatpush1.msra.mxu0 0.0
        %5082 = vmatprep.subr.mxu0 0.0
        %5083 = vmatpush1.msra.mxu0 0.0
        %5084 = vmatprep.subr.mxu0 0.0
        %5085 = vmatpush1.msra.mxu0 0.0
        %5086 = vmatprep.subr.mxu0 0.0
        %5087 = vmatpush1.msra.mxu0 0.0
        %5088 = vmatprep.subr.mxu0 0.0
        %5089 = vmatpush1.msra.mxu0 0.0
        %5090 = vmatprep.subr.mxu0 0.0
        %5091 = vmatpush1.msra.mxu0 0.0
        %5092 = vmatprep.subr.mxu0 0.0
        %5093 = vmatpush1.msra.mxu0 0.0
        %5094 = vmatprep.subr.mxu0 0.0
        %5095 = vmatpush1.msra.mxu0 0.0
        %5096 = vmatprep.subr.mxu0 0.0
        %5097 = vmatpush1.msra.mxu0 0.0
        %5098 = vmatprep.subr.mxu0 0.0
        %5099 = vmatpush1.msra.mxu0 0.0
        %5100 = vmatprep.mubr.f32.mxu0 0.0
        %5101 = vmatmul.mubr.f32.gmra.mrb[0].mxu0 %v5034
        %v5102 = vpop.f32.mrb[0].mxu0
        %v5103 = vadd.f32 0.0, %v5102
        %v5104 = vpop.f32.mrb[0].mxu0
        %5105 = vdwg.mxu0
        %v5107 = vsel %vm2477, %v5016, 0
        %5109 = vmatprep.subr.mxu0 0.0
        %5110 = vmatpush1.msra.mxu0 %v4782
        %5111 = vmatprep.subr.mxu0 0.0
        %5112 = vmatpush1.msra.mxu0 %v5028
        %5113 = vmatprep.subr.mxu0 0.0
        %5114 = vmatpush1.msra.mxu0 0.0
        %5115 = vmatprep.subr.mxu0 0.0
        %5116 = vmatpush1.msra.mxu0 0.0
        %5117 = vmatprep.subr.mxu0 0.0
        %5118 = vmatpush1.msra.mxu0 0.0
        %5119 = vmatprep.subr.mxu0 0.0
        %5120 = vmatpush1.msra.mxu0 0.0
        %5121 = vmatprep.subr.mxu0 0.0
        %5122 = vmatpush1.msra.mxu0 0.0
        %5123 = vmatprep.subr.mxu0 0.0
        %5124 = vmatpush1.msra.mxu0 0.0
        %5125 = vmatprep.subr.mxu0 0.0
        %5126 = vmatpush1.msra.mxu0 0.0
        %5127 = vmatprep.subr.mxu0 0.0
        %5128 = vmatpush1.msra.mxu0 0.0
        %5129 = vmatprep.subr.mxu0 0.0
        %5130 = vmatpush1.msra.mxu0 0.0
        %5131 = vmatprep.subr.mxu0 0.0
        %5132 = vmatpush1.msra.mxu0 0.0
        %5133 = vmatprep.subr.mxu0 0.0
        %5134 = vmatpush1.msra.mxu0 0.0
        %5135 = vmatprep.subr.mxu0 0.0
        %5136 = vmatpush1.msra.mxu0 0.0
        %5137 = vmatprep.subr.mxu0 0.0
        %5138 = vmatpush1.msra.mxu0 0.0
        %5139 = vmatprep.subr.mxu0 0.0
        %5140 = vmatpush1.msra.mxu0 0.0
        %5141 = vmatprep.subr.mxu0 0.0
        %5142 = vmatpush1.msra.mxu0 0.0
        %5143 = vmatprep.subr.mxu0 0.0
        %5144 = vmatpush1.msra.mxu0 0.0
        %5145 = vmatprep.subr.mxu0 0.0
        %5146 = vmatpush1.msra.mxu0 0.0
        %5147 = vmatprep.subr.mxu0 0.0
        %5148 = vmatpush1.msra.mxu0 0.0
        %5149 = vmatprep.subr.mxu0 0.0
        %5150 = vmatpush1.msra.mxu0 0.0
        %5151 = vmatprep.subr.mxu0 0.0
        %5152 = vmatpush1.msra.mxu0 0.0
        %5153 = vmatprep.subr.mxu0 0.0
        %5154 = vmatpush1.msra.mxu0 0.0
        %5155 = vmatprep.subr.mxu0 0.0
        %5156 = vmatpush1.msra.mxu0 0.0
        %5157 = vmatprep.subr.mxu0 0.0
        %5158 = vmatpush1.msra.mxu0 0.0
        %5159 = vmatprep.subr.mxu0 0.0
        %5160 = vmatpush1.msra.mxu0 0.0
        %5161 = vmatprep.subr.mxu0 0.0
        %5162 = vmatpush1.msra.mxu0 0.0
        %5163 = vmatprep.subr.mxu0 0.0
        %5164 = vmatpush1.msra.mxu0 0.0
        %5165 = vmatprep.subr.mxu0 0.0
        %5166 = vmatpush1.msra.mxu0 0.0
        %5167 = vmatprep.subr.mxu0 0.0
        %5168 = vmatpush1.msra.mxu0 0.0
        %5169 = vmatprep.subr.mxu0 0.0
        %5170 = vmatpush1.msra.mxu0 0.0
        %5171 = vmatprep.subr.mxu0 0.0
        %5172 = vmatpush1.msra.mxu0 0.0
        %5173 = vmatprep.mubr.f32.mxu0 0.0
        %5174 = vmatmul.mubr.f32.gmra.mrb[0].mxu0 %v5107
        %v5175 = vpop.f32.mrb[0].mxu0
        %v5176 = vadd.f32 %v5103, %v5175
        %v5177 = vpop.f32.mrb[0].mxu0
        %5178 = vdwg.mxu0
        %5180 = vset.pattern.permute.xlu0 0
        %5181 = vperm.xlu0 %5180, %v4942
        %v5182 = vpop.permute.xlu0 %5181
        %v5184 = vadd.f32 %v5176, %v5182
        %v5185 = vadd.f32 %v5184, %v2454
        %5186 = vst.msk [vmem:[%s1287] sm:$0xff] %vm1350, %v5185
        %5187 = vst.msk [vmem:[%s1294] sm:$0xff] %vm2477, %v4939
        %5188 = vst.msk [vmem:[%s1301] sm:$0xff] %vm1814, %v4695
        %s5189 = sand.u32 %s966, 1
        %s5190 = scalar_lea.sflag [#allocation3], %s5189
        %s5191 = sand.u32 %s966, 1
        %s5192 = smul.addr %s5191, 8
        %s5193 = scalar_lea.vmem [#allocation2], %s5192
        %s5194 = sand.u32 %s103, 1
        %s5195 = scalar_lea.sflag [#allocation5], %s5194
        %s5196 = sand.u32 %s992, 1
        %s5197 = smul.addr %s5196, 8
        %s5198 = scalar_lea.vmem [#allocation4], %s5197
        %s5199 = sand.u32 %s103, 1
        %s5200 = scalar_lea.sflag [#allocation5], %s5199
        %s5201 = sand.u32 %s1018, 1
        %s5202 = smul.addr %s5201, 8
        %s5203 = scalar_lea.vmem [#allocation6], %s5202
        // Predicated region
        $region181: #{tpu_custom_call.1} parent=179 // pred_check
          %p5204 = pneg %p976
        $region182: #{tpu_custom_call.1} parent=179 // pred_check_branch
          %5206 = sbr.rel (%p5204) target = $region184
        $region183: #{tpu_custom_call.1} parent=179 // pred_region
          %s5208 = ssub.s32 128, 128
          %5209 = vsyncadd %s5190, %s5208
          %s5210 = smul.addr %s103, 128
          %s5211 = scalar_lea.hbm %s81, %s5210
          %s5213 = sshll.u32 %s5193, 4
          %s5214 = int_to_ptr.vmem [resolvable:$true] %s5213
          %5216 = dma.vmem_to_hbm [thread:$0]  %s5214, 128, %s5211, %s5190
        $region184: #{tpu_custom_call.1} parent=179 // pred_fallthru
          _
        // Predicated region
        $region185: #{tpu_custom_call.1} parent=179 // pred_check
          %p5217 = pneg %p1002
        $region186: #{tpu_custom_call.1} parent=179 // pred_check_branch
          %5219 = sbr.rel (%p5217) target = $region188
        $region187: #{tpu_custom_call.1} parent=179 // pred_region
          %s5221 = ssub.s32 128, 128
          %5222 = vsyncadd %s5195, %s5221
          %s5223 = smul.addr %s103, 128
          %s5224 = scalar_lea.hbm %s83, %s5223
          %s5226 = sshll.u32 %s5198, 4
          %s5227 = int_to_ptr.vmem [resolvable:$true] %s5226
          %5229 = dma.vmem_to_hbm [thread:$0]  %s5227, 128, %s5224, %s5195
        $region188: #{tpu_custom_call.1} parent=179 // pred_fallthru
          _
        // Predicated region
        $region189: #{tpu_custom_call.1} parent=179 // pred_check
          %p5230 = pneg %p1028
        $region190: #{tpu_custom_call.1} parent=179 // pred_check_branch
          %5232 = sbr.rel (%p5230) target = $region192
        $region191: #{tpu_custom_call.1} parent=179 // pred_region
          %s5234 = ssub.s32 128, 128
          %5235 = vsyncadd %s5200, %s5234
          %s5236 = smul.addr %s103, 128
          %s5237 = scalar_lea.hbm %s85, %s5236
          %s5239 = sshll.u32 %s5203, 4
          %s5240 = int_to_ptr.vmem [resolvable:$true] %s5239
          %5242 = dma.vmem_to_hbm [thread:$0]  %s5240, 128, %s5237, %s5200
        $region192: #{tpu_custom_call.1} parent=179 // pred_fallthru
          _
      $region180: #{tpu_custom_call.1} parent=5 // pred_fallthru
        _
      %p5243 = scmp.le.s32.totalorder 2, %s98
      // Predicated region
      $region193: #{tpu_custom_call.1} parent=5 // pred_check
        %p5244 = pneg %p5243
      $region194: #{tpu_custom_call.1} parent=5 // pred_check_branch
        %5246 = sbr.rel (%p5244) target = $region196
      $region195: #{tpu_custom_call.1} parent=5 // pred_region
        %s5247 = ssub.s32 %s98, 2
        // Predicated region
        $region197: #{tpu_custom_call.1} parent=195 // pred_check
          %p5248 = pneg %p982
        $region198: #{tpu_custom_call.1} parent=195 // pred_check_branch
          %5250 = sbr.rel (%p5248) target = $region200
        $region199: #{tpu_custom_call.1} parent=195 // pred_region
          %s5251 = sand.u32 %s967, 1
          %s5252 = scalar_lea.sflag [#allocation3], %s5251
          %s5253 = sand.u32 %s967, 1
          %s5254 = smul.addr %s5253, 8
          %s5255 = scalar_lea.vmem [#allocation2], %s5254
          %5256 = dma.done %s5252, 128
        $region200: #{tpu_custom_call.1} parent=195 // pred_fallthru
          _
        // Predicated region
        $region201: #{tpu_custom_call.1} parent=195 // pred_check
          %p5257 = pneg %p1008
        $region202: #{tpu_custom_call.1} parent=195 // pred_check_branch
          %5259 = sbr.rel (%p5257) target = $region204
        $region203: #{tpu_custom_call.1} parent=195 // pred_region
          %s5260 = sand.u32 %s104, 1
          %s5261 = scalar_lea.sflag [#allocation5], %s5260
          %s5262 = sand.u32 %s993, 1
          %s5263 = smul.addr %s5262, 8
          %s5264 = scalar_lea.vmem [#allocation4], %s5263
          %5265 = dma.done %s5261, 128
        $region204: #{tpu_custom_call.1} parent=195 // pred_fallthru
          _
        // Predicated region
        $region205: #{tpu_custom_call.1} parent=195 // pred_check
          %p5266 = pneg %p1034
        $region206: #{tpu_custom_call.1} parent=195 // pred_check_branch
          %5268 = sbr.rel (%p5266) target = $region208
        $region207: #{tpu_custom_call.1} parent=195 // pred_region
          %s5269 = sand.u32 %s104, 1
          %s5270 = scalar_lea.sflag [#allocation5], %s5269
          %s5271 = sand.u32 %s1019, 1
          %s5272 = smul.addr %s5271, 8
          %s5273 = scalar_lea.vmem [#allocation6], %s5272
          %5274 = dma.done %s5270, 128
        $region208: #{tpu_custom_call.1} parent=195 // pred_fallthru
          _
      $region196: #{tpu_custom_call.1} parent=5 // pred_fallthru
        _
    $region6: #{tpu_custom_call.1} parent=1 // loop_footer
      %s102 = sadd.s32 1, %s98
    $region7: #{tpu_custom_call.1} parent=1 // loop_footer_branch
      %97 = sbr.rel target = $region3
    $region8: #{tpu_custom_call.1} parent=1 // loop_exit
      _
    %5275 = vsyncpa [#allocation3], 1
    %s5276 = scalar_lea.sflag [#allocation3], 1
    %5277 = vsyncpa %s5276, 1
    %5278 = vsyncpa [#allocation5], 1
    %s5279 = scalar_lea.sflag [#allocation5], 1
    %5280 = vsyncpa %s5279, 1

</llo_original>
